<compile_context>
chip_gen: v7x
topology: tpu7x:2x2x1
jax: 0.10.0
libtpu: 0.0.40
codegen_flags: <defaults>
</compile_context>

<pallas_src>
import functools

import jax
import jax.numpy as jnp
from jax import lax
from jax.experimental import pallas as pl
from jax.experimental.pallas import tpu as pltpu

EPS = 1e-5                      # torch.nn.LayerNorm default
COMPUTE_DTYPE = jnp.bfloat16    # MXU operand dtype (accumulation stays f32)


# ---------------------------------------------------------------------------
# Kernel 1: y = x @ W + b  (TransformerMapper.linear), tiled over out features
# ---------------------------------------------------------------------------
def _linear_kernel(x_ref, w_ref, b_ref, o_ref):
    x = x_ref[...].astype(COMPUTE_DTYPE)
    o_ref[...] = (
        jnp.dot(x, w_ref[...], preferred_element_type=jnp.float32) + b_ref[...]
    )


def pallas_linear(x, w, b):
    """y = x @ w + b with w stored (in, out) in bf16; out is f32."""
    B, K = x.shape
    Dout = w.shape[1]
    tn = Dout
    for cand in (512, 256, 128):
        if Dout % cand == 0:
            tn = cand
            break
    return pl.pallas_call(
        _linear_kernel,
        out_shape=jax.ShapeDtypeStruct((B, Dout), jnp.float32),
        grid=(Dout // tn,),
        in_specs=[
            pl.BlockSpec((B, K), lambda j: (0, 0)),      # x (re-used each step)
            pl.BlockSpec((K, tn), lambda j: (0, j)),     # weight tile
            pl.BlockSpec((1, tn), lambda j: (0, j)),     # bias tile
        ],
        out_specs=pl.BlockSpec((B, tn), lambda j: (0, j)),
        compiler_params=pltpu.CompilerParams(
            dimension_semantics=("parallel",)),
    )(x, w, b.reshape(1, Dout))


# ---------------------------------------------------------------------------
# Kernel 2: the full TransformerLayer stack.
# grid = (num_batch_tiles, num_layers); activations carried in VMEM scratch.
# ---------------------------------------------------------------------------
def _make_stack_kernel(num_heads, bt, seq_len, dim):
    M = bt * seq_len
    hd = dim // num_heads
    scale = float(hd) ** -0.5

    def layer_norm(v, g, b):                      # f32 statistics
        mu = jnp.mean(v, axis=-1, keepdims=True)
        var = jnp.mean(jnp.square(v - mu), axis=-1, keepdims=True)
        return (v - mu) * lax.rsqrt(var + EPS) * g + b

    def split_heads(t):                           # (M, D) -> (bt*H, N, hd)
        t = t.reshape(bt, seq_len, num_heads, hd)
        t = jnp.swapaxes(t, 1, 2)                 # (bt, H, N, hd)
        return t.reshape(bt * num_heads, seq_len, hd)

    def kernel(x_ref, ln1g_ref, ln1b_ref, wqkv_ref, wp_ref, bp_ref,
               ln2g_ref, ln2b_ref, w1_ref, b1_ref, w2_ref, b2_ref,
               o_ref, seq_ref):
        l = pl.program_id(1)

        @pl.when(l == 0)                          # new batch tile: load activations
        def _():
            seq_ref[...] = x_ref[...]

        x = seq_ref[...]                          # (M, D) f32, resident across layers

        # ---- attention branch (pre-LN) ----
        xn = layer_norm(x, ln1g_ref[0], ln1b_ref[0])
        qkv = jnp.dot(xn.astype(COMPUTE_DTYPE), wqkv_ref[0],
                      preferred_element_type=jnp.float32)          # (M, 3D)
        q = qkv[:, :dim] * scale                  # fold scale into q once
        k = qkv[:, dim:2 * dim]
        v = qkv[:, 2 * dim:]
        qh = split_heads(q).astype(COMPUTE_DTYPE)                  # (Z, N, hd)
        kh = split_heads(k).astype(COMPUTE_DTYPE)
        vh = split_heads(v).astype(COMPUTE_DTYPE)
        s = jnp.einsum("znd,zmd->znm", qh, kh,
                       preferred_element_type=jnp.float32)         # (Z, N, N)
        s = s - jnp.max(s, axis=-1, keepdims=True)
        p = jnp.exp(s)
        p = p * pl.reciprocal(jnp.sum(p, axis=-1, keepdims=True), approx=True)
        oz = jnp.einsum("znm,zmd->znd", p.astype(COMPUTE_DTYPE), vh,
                        preferred_element_type=jnp.float32)        # (Z, N, hd)
        attn = jnp.swapaxes(
            oz.reshape(bt, num_heads, seq_len, hd), 1, 2
        ).reshape(M, dim)
        attn = jnp.dot(attn.astype(COMPUTE_DTYPE), wp_ref[0],
                       preferred_element_type=jnp.float32) + bp_ref[0]
        x = x + attn

        # ---- MLP branch (pre-LN) ----
        xn2 = layer_norm(x, ln2g_ref[0], ln2b_ref[0])
        h1 = jnp.dot(xn2.astype(COMPUTE_DTYPE), w1_ref[0],
                     preferred_element_type=jnp.float32) + b1_ref[0]
        h1 = jnp.maximum(h1, 0.0)
        mlp = jnp.dot(h1.astype(COMPUTE_DTYPE), w2_ref[0],
                      preferred_element_type=jnp.float32) + b2_ref[0]
        x = x + mlp

        seq_ref[...] = x                          # carry to next layer iteration

        @pl.when(l == pl.num_programs(1) - 1)     # last layer: emit output
        def _():
            o_ref[...] = x

    return kernel


def _pick_batch_tile(B, N, target_rows=256):
    # Batch enough rows per grid step that matmuls are MXU-shaped (>=256 rows
    # when possible); keep >=2 batch tiles for v7x megacore when B allows it.
    bt = max(1, min(B, max(1, target_rows // max(N, 1))))
    while B % bt:
        bt -= 1
    return bt


def pallas_transformer_stack(x, layers, num_heads):
    B, N, D = x.shape
    L = layers["wqkv"].shape[0]
    H = layers["w1"].shape[2]

    bt = _pick_batch_tile(B, N)
    nbt = B // bt
    M = bt * N

    x2 = x.reshape(B * N, D)                      # lane-dense 2-D slabs

    def wspec(r, c):
        return pl.BlockSpec((1, r, c), lambda b, l: (l, 0, 0))

    in_specs = [
        pl.BlockSpec((M, D), lambda b, l: (b, 0)),   # activations (per batch tile)
        wspec(1, D), wspec(1, D),                    # ln1 gamma / beta
        wspec(D, 3 * D),                             # fused Wqkv (bias=False)
        wspec(D, D), wspec(1, D),                    # Wproj, bproj
        wspec(1, D), wspec(1, D),                    # ln2 gamma / beta
        wspec(D, H), wspec(1, H),                    # fc1
        wspec(H, D), wspec(1, D),                    # fc2
    ]

    # Explicit VMEM budget: double-buffered weight blocks + activation blocks +
    # scratch + in-kernel intermediates (qkv, scores, mlp hidden), with margin.
    w_bytes = (3 * D * D + D * D + D * H + H * D) * 2 + (6 * D + H) * 4
    act_bytes = M * D * 4
    interm = (M * 3 * D + bt * num_heads * N * N + M * H) * 4
    est = 2 * w_bytes + 5 * act_bytes + 3 * interm
    vmem_limit = int(min(max(2 * est, 32 * 2 ** 20), 64 * 2 ** 20))

    out2 = pl.pallas_call(
        _make_stack_kernel(num_heads, bt, N, D),
        out_shape=jax.ShapeDtypeStruct((B * N, D), jnp.float32),
        grid=(nbt, L),
        in_specs=in_specs,
        out_specs=pl.BlockSpec((M, D), lambda b, l: (b, 0)),
        scratch_shapes=[pltpu.VMEM((M, D), jnp.float32)],
        compiler_params=pltpu.CompilerParams(
            dimension_semantics=("parallel", "arbitrary"),
            vmem_limit_bytes=vmem_limit),
    )(x2, layers["ln1g"], layers["ln1b"], layers["wqkv"], layers["wp"],
      layers["bp"], layers["ln2g"], layers["ln2b"], layers["w1"],
      layers["b1"], layers["w2"], layers["b2"])
    return out2.reshape(B, N, D)


# ---------------------------------------------------------------------------
# Parameter construction (deterministic, synthetic). Per-layer weights are
# stacked into (L, ...) arrays; matmul weights stored pre-transposed in bf16.
# ---------------------------------------------------------------------------
def init_params(key, dim_clip, dim_embedding, prefix_length, clip_length,
                num_layers, mlp_ratio=2.0):
    D = dim_embedding
    H = int(D * mlp_ratio)
    ks = iter(jax.random.split(key, 8 + 11 * num_layers))

    def nrm(shape, scale=0.02):
        return (scale * jax.random.normal(next(ks), shape)).astype(jnp.float32)

    params = {
        "lin_w": nrm((dim_clip, clip_length * D)).astype(COMPUTE_DTYPE),
        "lin_b": nrm((clip_length * D,)),
        "prefix_const": jax.random.normal(next(ks), (prefix_length, D),
                                          dtype=jnp.float32),
    }

    def stack(make):
        return jnp.stack([make() for _ in range(num_layers)], axis=0)

    params["layers"] = {
        "ln1g": stack(lambda: 1.0 + nrm((1, D))),
        "ln1b": stack(lambda: nrm((1, D))),
        "wqkv": stack(lambda: nrm((D, 3 * D))).astype(COMPUTE_DTYPE),  # [Wq|Wk|Wv]
        "wp": stack(lambda: nrm((D, D))).astype(COMPUTE_DTYPE),
        "bp": stack(lambda: nrm((1, D))),
        "ln2g": stack(lambda: 1.0 + nrm((1, D))),
        "ln2b": stack(lambda: nrm((1, D))),
        "w1": stack(lambda: nrm((D, H))).astype(COMPUTE_DTYPE),
        "b1": stack(lambda: nrm((1, H))),
        "w2": stack(lambda: nrm((H, D))).astype(COMPUTE_DTYPE),
        "b2": stack(lambda: nrm((1, D))),
    }
    return params


# ---------------------------------------------------------------------------
# TransformerMapper forward (Pallas)
# ---------------------------------------------------------------------------
def transformer_mapper_forward(params, x, clip_length, dim_embedding,
                               num_heads=8):
    B = x.shape[0]
    proj = pallas_linear(x, params["lin_w"], params["lin_b"])
    tokens = proj.reshape(B, clip_length, dim_embedding)
    prefix = jnp.broadcast_to(params["prefix_const"][None],
                              (B,) + params["prefix_const"].shape)
    seq = jnp.concatenate([tokens, prefix], axis=1)        # (B, clip+prefix, D)
    seq = pallas_transformer_stack(seq, params["layers"], num_heads)
    return seq[:, clip_length:]


# ---------------------------------------------------------------------------
# Pure-JAX reference (mirrors the PyTorch forward; matmul operands quantized
# to bf16 exactly like the kernel so the comparison is meaningful).
# ---------------------------------------------------------------------------
def _ref_forward(params, x, clip_length, dim_embedding, num_heads=8):
    B = x.shape[0]
    D = dim_embedding
    cdt = COMPUTE_DTYPE

    def mm(a, w):
        return jnp.dot(a.astype(cdt), w.astype(cdt),
                       preferred_element_type=jnp.float32)

    def ln(v, g, b):
        mu = v.mean(-1, keepdims=True)
        var = ((v - mu) ** 2).mean(-1, keepdims=True)
        return (v - mu) / jnp.sqrt(var + EPS) * g + b

    proj = mm(x, params["lin_w"]) + params["lin_b"]
    tokens = proj.reshape(B, clip_length, D)
    prefix = jnp.broadcast_to(params["prefix_const"][None],
                              (B,) + params["prefix_const"].shape)
    s = jnp.concatenate([tokens, prefix], axis=1)

    hd = D // num_heads
    scale = hd ** -0.5
    lp = params["layers"]
    for i in range(lp["wqkv"].shape[0]):
        xn = ln(s, lp["ln1g"][i], lp["ln1b"][i])
        qkv = mm(xn, lp["wqkv"][i])
        q = (qkv[..., :D] * scale).reshape(B, -1, num_heads, hd)
        k = qkv[..., D:2 * D].reshape(B, -1, num_heads, hd)
        v = qkv[..., 2 * D:].reshape(B, -1, num_heads, hd)
        att = jnp.einsum("bnhd,bmhd->bnmh",
                         q.astype(cdt).astype(jnp.float32),
                         k.astype(cdt).astype(jnp.float32))
        att = jax.nn.softmax(att, axis=2)
        o = jnp.einsum("bnmh,bmhd->bnhd",
                       att.astype(cdt).astype(jnp.float32),
                       v.astype(cdt).astype(jnp.float32)).reshape(B, -1, D)
        s = s + (mm(o, lp["wp"][i]) + lp["bp"][i])
        xn2 = ln(s, lp["ln2g"][i], lp["ln2b"][i])
        h1 = jax.nn.relu(mm(xn2, lp["w1"][i]) + lp["b1"][i])
        s = s + (mm(h1, lp["w2"][i]) + lp["b2"][i])
    return s[:, clip_length:]


if __name__ == "__main__":
    # Small, module-consistent shapes (lane-dense D; num_heads=8 -> head_dim=16)
    B = 2
    dim_clip = 64
    dim_embedding = 128
    prefix_length = 8
    clip_length = 8
    num_layers = 2

    key = jax.random.PRNGKey(0)
    pkey, xkey = jax.random.split(key)
    params = init_params(pkey, dim_clip, dim_embedding, prefix_length,
                         clip_length, num_layers)
    x = jax.random.normal(xkey, (B, dim_clip), dtype=jnp.float32)

    fwd = jax.jit(functools.partial(transformer_mapper_forward,
                                    clip_length=clip_length,
                                    dim_embedding=dim_embedding))
    out = jax.block_until_ready(fwd(params, x))
    assert out.shape == (B, prefix_length, dim_embedding)

    ref = _ref_forward(params, x, clip_length, dim_embedding)
    assert jnp.allclose(out, ref, atol=1e-2, rtol=1e-2), "mismatch vs reference"

    print("KERNEL_OK")
</pallas_src>

<mosaic_0001>
module attributes {stable_mosaic.version = 11 : i64} {
  func.func @_linear_kernel(%arg0: i32, %arg1: memref<2x64xf32, #tpu.memory_space<vmem>>, %arg2: memref<64x512xbf16, #tpu.memory_space<vmem>>, %arg3: memref<1x512xf32, #tpu.memory_space<vmem>>, %arg4: memref<2x512xf32, #tpu.memory_space<vmem>>) attributes {dimension_semantics = [#tpu.dimension_semantics<parallel>], iteration_bounds = array<i64: 2>, scalar_prefetch = 0 : i64, scratch_operands = 0 : i64, tpu.core_type = #tpu.core_type<tc>, window_params = [{pipeline_mode = #tpu.pipeline_mode<synchronous>, transform_indices = @transform_0, window_bounds = array<i64: 2, 64>}, {transform_indices = @transform_1, window_bounds = array<i64: 64, 512>}, {transform_indices = @transform_2, window_bounds = array<i64: 1, 512>}, {transform_indices = @transform_3, window_bounds = array<i64: 2, 512>}]} {
    %c0 = arith.constant 0 : index
    %c0_0 = arith.constant 0 : index
    %0 = vector.load %arg1[%c0, %c0_0] : memref<2x64xf32, #tpu.memory_space<vmem>>, vector<2x64xf32>
    %1 = arith.truncf %0 : vector<2x64xf32> to vector<2x64xbf16>
    %c0_1 = arith.constant 0 : index
    %c0_2 = arith.constant 0 : index
    %2 = vector.load %arg2[%c0_1, %c0_2] : memref<64x512xbf16, #tpu.memory_space<vmem>>, vector<64x512xbf16>
    %cst = arith.constant dense<0.000000e+00> : vector<2x512xf32>
    %3 = tpu.matmul %1, %2, %cst {dimension_numbers = #tpu.dot_dimension_numbers<[1], [0], [0], [1], [0, 0, 1, 1], [], []>} : vector<2x64xbf16>, vector<64x512xbf16>, vector<2x512xf32> -> vector<2x512xf32>
    %c0_3 = arith.constant 0 : index
    %c0_4 = arith.constant 0 : index
    %4 = vector.load %arg3[%c0_3, %c0_4] : memref<1x512xf32, #tpu.memory_space<vmem>>, vector<1x512xf32>
    %5 = vector.broadcast %4 : vector<1x512xf32> to vector<2x512xf32>
    %6 = arith.addf %3, %5 : vector<2x512xf32>
    %c0_5 = arith.constant 0 : index
    %c0_6 = arith.constant 0 : index
    %7 = vector.load %arg4[%c0_5, %c0_6] : memref<2x512xf32, #tpu.memory_space<vmem>>, vector<2x512xf32>
    tpu.vector_store %arg4[%c0_5, %c0_6], %6 {strides = array<i32>} : memref<2x512xf32, #tpu.memory_space<vmem>>, vector<2x512xf32>,
    return
  }
  func.func @transform_0(%arg0: i32) -> (i32, i32) {
    %c0_i32 = arith.constant 0 : i32
    %c0_i32_0 = arith.constant 0 : i32
    %c0_i32_1 = arith.constant 0 : i32
    return %c0_i32, %c0_i32_0 : i32, i32
  }
  func.func @transform_1(%arg0: i32) -> (i32, i32) {
    %c0_i32 = arith.constant 0 : i32
    %c0_i32_0 = arith.constant 0 : i32
    return %c0_i32, %arg0 : i32, i32
  }
  func.func @transform_2(%arg0: i32) -> (i32, i32) {
    %c0_i32 = arith.constant 0 : i32
    %c0_i32_0 = arith.constant 0 : i32
    return %c0_i32, %arg0 : i32, i32
  }
  func.func @transform_3(%arg0: i32) -> (i32, i32) {
    %c0_i32 = arith.constant 0 : i32
    %c0_i32_0 = arith.constant 0 : i32
    return %c0_i32, %arg0 : i32, i32
  }
}

module attributes {stable_mosaic.version = 11 : i64} {
  func.func @kernel(%arg0: i32, %arg1: i32, %arg2: memref<32x128xf32, #tpu.memory_space<vmem>>, %arg3: memref<1x1x128xf32, #tpu.memory_space<vmem>>, %arg4: memref<1x1x128xf32, #tpu.memory_space<vmem>>, %arg5: memref<1x128x384xbf16, #tpu.memory_space<vmem>>, %arg6: memref<1x128x128xbf16, #tpu.memory_space<vmem>>, %arg7: memref<1x1x128xf32, #tpu.memory_space<vmem>>, %arg8: memref<1x1x128xf32, #tpu.memory_space<vmem>>, %arg9: memref<1x1x128xf32, #tpu.memory_space<vmem>>, %arg10: memref<1x128x256xbf16, #tpu.memory_space<vmem>>, %arg11: memref<1x1x256xf32, #tpu.memory_space<vmem>>, %arg12: memref<1x256x128xbf16, #tpu.memory_space<vmem>>, %arg13: memref<1x1x128xf32, #tpu.memory_space<vmem>>, %arg14: memref<32x128xf32, #tpu.memory_space<vmem>>, %arg15: memref<32x128xf32, #tpu.memory_space<vmem>>) attributes {dimension_semantics = [#tpu.dimension_semantics<parallel>, #tpu.dimension_semantics<arbitrary>], iteration_bounds = array<i64: 1, 2>, scalar_prefetch = 0 : i64, scratch_operands = 1 : i64, tpu.core_type = #tpu.core_type<tc>, window_params = [{transform_indices = @transform_0, window_bounds = array<i64: 32, 128>}, {transform_indices = @transform_1, window_bounds = array<i64: 1, 1, 128>}, {transform_indices = @transform_2, window_bounds = array<i64: 1, 1, 128>}, {transform_indices = @transform_3, window_bounds = array<i64: 1, 128, 384>}, {transform_indices = @transform_4, window_bounds = array<i64: 1, 128, 128>}, {transform_indices = @transform_5, window_bounds = array<i64: 1, 1, 128>}, {transform_indices = @transform_6, window_bounds = array<i64: 1, 1, 128>}, {transform_indices = @transform_7, window_bounds = array<i64: 1, 1, 128>}, {transform_indices = @transform_8, window_bounds = array<i64: 1, 128, 256>}, {transform_indices = @transform_9, window_bounds = array<i64: 1, 1, 256>}, {transform_indices = @transform_10, window_bounds = array<i64: 1, 256, 128>}, {transform_indices = @transform_11, window_bounds = array<i64: 1, 1, 128>}, {transform_indices = @transform_12, window_bounds = array<i64: 32, 128>}]} {
    %c0_i32 = arith.constant 0 : i32
    %0 = arith.cmpi eq, %arg1, %c0_i32 : i32
    %1 = arith.extui %0 : i1 to i32
    %c0_i32_0 = arith.constant 0 : i32
    %2 = arith.cmpi ne, %1, %c0_i32_0 : i32
    scf.if %2 {
      %c0_57 = arith.constant 0 : index
      %c0_58 = arith.constant 0 : index
      %125 = vector.load %arg2[%c0_57, %c0_58] : memref<32x128xf32, #tpu.memory_space<vmem>>, vector<32x128xf32>
      %c0_59 = arith.constant 0 : index
      %c0_60 = arith.constant 0 : index
      %126 = vector.load %arg15[%c0_59, %c0_60] : memref<32x128xf32, #tpu.memory_space<vmem>>, vector<32x128xf32>
      tpu.vector_store %arg15[%c0_59, %c0_60], %125 {strides = array<i32>} : memref<32x128xf32, #tpu.memory_space<vmem>>, vector<32x128xf32>,
    } else {
    }
    %c0 = arith.constant 0 : index
    %c0_1 = arith.constant 0 : index
    %3 = vector.load %arg15[%c0, %c0_1] : memref<32x128xf32, #tpu.memory_space<vmem>>, vector<32x128xf32>
    %c0_2 = arith.constant 0 : index
    %c0_3 = arith.constant 0 : index
    %c0_4 = arith.constant 0 : index
    %4 = vector.load %arg3[%c0_2, %c0_3, %c0_4] : memref<1x1x128xf32, #tpu.memory_space<vmem>>, vector<1x1x128xf32>
    %5 = vector.shape_cast %4 : vector<1x1x128xf32> to vector<1x128xf32>
    %c0_5 = arith.constant 0 : index
    %c0_6 = arith.constant 0 : index
    %c0_7 = arith.constant 0 : index
    %6 = vector.load %arg4[%c0_5, %c0_6, %c0_7] : memref<1x1x128xf32, #tpu.memory_space<vmem>>, vector<1x1x128xf32>
    %7 = vector.shape_cast %6 : vector<1x1x128xf32> to vector<1x128xf32>
    %cst = arith.constant dense<0.000000e+00> : vector<32xf32>
    %8 = vector.multi_reduction <add>, %3, %cst [1] : vector<32x128xf32> to vector<32xf32>
    %9 = vector.shape_cast %8 : vector<32xf32> to vector<32x1xf32>
    %cst_8 = arith.constant 1.280000e+02 : f32
    %10 = vector.broadcast %cst_8 : f32 to vector<32x1xf32>
    %11 = arith.divf %9, %10 : vector<32x1xf32>
    %12 = vector.broadcast %11 : vector<32x1xf32> to vector<32x128xf32>
    %13 = arith.subf %3, %12 : vector<32x128xf32>
    %14 = arith.mulf %13, %13 : vector<32x128xf32>
    %cst_9 = arith.constant dense<0.000000e+00> : vector<32xf32>
    %15 = vector.multi_reduction <add>, %14, %cst_9 [1] : vector<32x128xf32> to vector<32xf32>
    %16 = vector.shape_cast %15 : vector<32xf32> to vector<32x1xf32>
    %cst_10 = arith.constant 1.280000e+02 : f32
    %17 = vector.broadcast %cst_10 : f32 to vector<32x1xf32>
    %18 = arith.divf %16, %17 : vector<32x1xf32>
    %19 = vector.broadcast %11 : vector<32x1xf32> to vector<32x128xf32>
    %20 = arith.subf %3, %19 : vector<32x128xf32>
    %cst_11 = arith.constant 9.99999974E-6 : f32
    %21 = vector.broadcast %cst_11 : f32 to vector<32x1xf32>
    %22 = arith.addf %18, %21 : vector<32x1xf32>
    %23 = math.rsqrt %22 : vector<32x1xf32>
    %24 = vector.broadcast %23 : vector<32x1xf32> to vector<32x128xf32>
    %25 = arith.mulf %20, %24 : vector<32x128xf32>
    %26 = vector.broadcast %5 : vector<1x128xf32> to vector<32x128xf32>
    %27 = arith.mulf %25, %26 : vector<32x128xf32>
    %28 = vector.broadcast %7 : vector<1x128xf32> to vector<32x128xf32>
    %29 = arith.addf %27, %28 : vector<32x128xf32>
    %30 = arith.truncf %29 : vector<32x128xf32> to vector<32x128xbf16>
    %c0_12 = arith.constant 0 : index
    %c0_13 = arith.constant 0 : index
    %c0_14 = arith.constant 0 : index
    %31 = vector.load %arg5[%c0_12, %c0_13, %c0_14] : memref<1x128x384xbf16, #tpu.memory_space<vmem>>, vector<1x128x384xbf16>
    %32 = vector.shape_cast %31 : vector<1x128x384xbf16> to vector<128x384xbf16>
    %cst_15 = arith.constant dense<0.000000e+00> : vector<32x384xf32>
    %33 = tpu.matmul %30, %32, %cst_15 {dimension_numbers = #tpu.dot_dimension_numbers<[1], [0], [0], [1], [0, 0, 1, 1], [], []>} : vector<32x128xbf16>, vector<128x384xbf16>, vector<32x384xf32> -> vector<32x384xf32>
    %34 = vector.extract_strided_slice %33 {offsets = [0, 0], sizes = [32, 128], strides = [1, 1]} : vector<32x384xf32> to vector<32x128xf32>
    %cst_16 = arith.constant 2.500000e-01 : f32
    %35 = vector.broadcast %cst_16 : f32 to vector<32x128xf32>
    %36 = arith.mulf %34, %35 : vector<32x128xf32>
    %37 = vector.extract_strided_slice %33 {offsets = [0, 128], sizes = [32, 128], strides = [1, 1]} : vector<32x384xf32> to vector<32x128xf32>
    %38 = vector.extract_strided_slice %33 {offsets = [0, 256], sizes = [32, 128], strides = [1, 1]} : vector<32x384xf32> to vector<32x128xf32>
    %39 = vector.shape_cast %36 : vector<32x128xf32> to vector<2x16x8x16xf32>
    %40 = tpu.transpose %39, [0, 2, 1, 3] : vector<2x16x8x16xf32> -> vector<2x8x16x16xf32>
    %41 = vector.shape_cast %40 : vector<2x8x16x16xf32> to vector<16x16x16xf32>
    %42 = arith.truncf %41 : vector<16x16x16xf32> to vector<16x16x16xbf16>
    %43 = vector.shape_cast %37 : vector<32x128xf32> to vector<2x16x8x16xf32>
    %44 = tpu.transpose %43, [0, 2, 1, 3] : vector<2x16x8x16xf32> -> vector<2x8x16x16xf32>
    %45 = vector.shape_cast %44 : vector<2x8x16x16xf32> to vector<16x16x16xf32>
    %46 = arith.truncf %45 : vector<16x16x16xf32> to vector<16x16x16xbf16>
    %47 = vector.shape_cast %38 : vector<32x128xf32> to vector<2x16x8x16xf32>
    %48 = tpu.transpose %47, [0, 2, 1, 3] : vector<2x16x8x16xf32> -> vector<2x8x16x16xf32>
    %49 = vector.shape_cast %48 : vector<2x8x16x16xf32> to vector<16x16x16xf32>
    %50 = arith.truncf %49 : vector<16x16x16xf32> to vector<16x16x16xbf16>
    "tpu.trace_start"() <{level = 10 : i32, message = "znd,zmd->znm"}> : () -> ()
    %cst_17 = arith.constant dense<0.000000e+00> : vector<16x16x16xf32>
    %51 = tpu.matmul %42, %46, %cst_17 {dimension_numbers = #tpu.dot_dimension_numbers<[2], [2], [1], [1], [0, 0, 0, 1, 1, 1], [0], [0]>} : vector<16x16x16xbf16>, vector<16x16x16xbf16>, vector<16x16x16xf32> -> vector<16x16x16xf32>
    "tpu.trace_stop"() : () -> ()
    %cst_18 = arith.constant dense<0xFF800000> : vector<16x16xf32>
    %52 = vector.multi_reduction <maximumf>, %51, %cst_18 [2] : vector<16x16x16xf32> to vector<16x16xf32>
    %53 = vector.shape_cast %52 : vector<16x16xf32> to vector<16x16x1xf32>
    %54 = vector.broadcast %53 : vector<16x16x1xf32> to vector<16x16x16xf32>
    %55 = arith.subf %51, %54 : vector<16x16x16xf32>
    %56 = math.exp %55 : vector<16x16x16xf32>
    %cst_19 = arith.constant dense<0.000000e+00> : vector<16x16xf32>
    %57 = vector.multi_reduction <add>, %56, %cst_19 [2] : vector<16x16x16xf32> to vector<16x16xf32>
    %58 = vector.shape_cast %57 : vector<16x16xf32> to vector<16x16x1xf32>
    %59 = tpu.reciprocal %58 {approx = true} : vector<16x16x1xf32> -> vector<16x16x1xf32>
    %60 = vector.broadcast %59 : vector<16x16x1xf32> to vector<16x16x16xf32>
    %61 = arith.mulf %56, %60 : vector<16x16x16xf32>
    %62 = arith.truncf %61 : vector<16x16x16xf32> to vector<16x16x16xbf16>
    "tpu.trace_start"() <{level = 10 : i32, message = "znm,zmd->znd"}> : () -> ()
    %cst_20 = arith.constant dense<0.000000e+00> : vector<16x16x16xf32>
    %63 = tpu.matmul %62, %50, %cst_20 {dimension_numbers = #tpu.dot_dimension_numbers<[2], [1], [1], [2], [0, 0, 0, 1, 1, 2], [0], [0]>} : vector<16x16x16xbf16>, vector<16x16x16xbf16>, vector<16x16x16xf32> -> vector<16x16x16xf32>
    "tpu.trace_stop"() : () -> ()
    %64 = vector.shape_cast %63 : vector<16x16x16xf32> to vector<2x8x16x16xf32>
    %65 = tpu.transpose %64, [0, 2, 1, 3] : vector<2x8x16x16xf32> -> vector<2x16x8x16xf32>
    %66 = vector.shape_cast %65 : vector<2x16x8x16xf32> to vector<32x128xf32>
    %67 = arith.truncf %66 : vector<32x128xf32> to vector<32x128xbf16>
    %c0_21 = arith.constant 0 : index
    %c0_22 = arith.constant 0 : index
    %c0_23 = arith.constant 0 : index
    %68 = vector.load %arg6[%c0_21, %c0_22, %c0_23] : memref<1x128x128xbf16, #tpu.memory_space<vmem>>, vector<1x128x128xbf16>
    %69 = vector.shape_cast %68 : vector<1x128x128xbf16> to vector<128x128xbf16>
    %cst_24 = arith.constant dense<0.000000e+00> : vector<32x128xf32>
    %70 = tpu.matmul %67, %69, %cst_24 {dimension_numbers = #tpu.dot_dimension_numbers<[1], [0], [0], [1], [0, 0, 1, 1], [], []>} : vector<32x128xbf16>, vector<128x128xbf16>, vector<32x128xf32> -> vector<32x128xf32>
    %c0_25 = arith.constant 0 : index
    %c0_26 = arith.constant 0 : index
    %c0_27 = arith.constant 0 : index
    %71 = vector.load %arg7[%c0_25, %c0_26, %c0_27] : memref<1x1x128xf32, #tpu.memory_space<vmem>>, vector<1x1x128xf32>
    %72 = vector.shape_cast %71 : vector<1x1x128xf32> to vector<1x128xf32>
    %73 = vector.broadcast %72 : vector<1x128xf32> to vector<32x128xf32>
    %74 = arith.addf %70, %73 : vector<32x128xf32>
    %75 = arith.addf %3, %74 : vector<32x128xf32>
    %c0_28 = arith.constant 0 : index
    %c0_29 = arith.constant 0 : index
    %c0_30 = arith.constant 0 : index
    %76 = vector.load %arg8[%c0_28, %c0_29, %c0_30] : memref<1x1x128xf32, #tpu.memory_space<vmem>>, vector<1x1x128xf32>
    %77 = vector.shape_cast %76 : vector<1x1x128xf32> to vector<1x128xf32>
    %c0_31 = arith.constant 0 : index
    %c0_32 = arith.constant 0 : index
    %c0_33 = arith.constant 0 : index
    %78 = vector.load %arg9[%c0_31, %c0_32, %c0_33] : memref<1x1x128xf32, #tpu.memory_space<vmem>>, vector<1x1x128xf32>
    %79 = vector.shape_cast %78 : vector<1x1x128xf32> to vector<1x128xf32>
    %cst_34 = arith.constant dense<0.000000e+00> : vector<32xf32>
    %80 = vector.multi_reduction <add>, %75, %cst_34 [1] : vector<32x128xf32> to vector<32xf32>
    %81 = vector.shape_cast %80 : vector<32xf32> to vector<32x1xf32>
    %cst_35 = arith.constant 1.280000e+02 : f32
    %82 = vector.broadcast %cst_35 : f32 to vector<32x1xf32>
    %83 = arith.divf %81, %82 : vector<32x1xf32>
    %84 = vector.broadcast %83 : vector<32x1xf32> to vector<32x128xf32>
    %85 = arith.subf %75, %84 : vector<32x128xf32>
    %86 = arith.mulf %85, %85 : vector<32x128xf32>
    %cst_36 = arith.constant dense<0.000000e+00> : vector<32xf32>
    %87 = vector.multi_reduction <add>, %86, %cst_36 [1] : vector<32x128xf32> to vector<32xf32>
    %88 = vector.shape_cast %87 : vector<32xf32> to vector<32x1xf32>
    %cst_37 = arith.constant 1.280000e+02 : f32
    %89 = vector.broadcast %cst_37 : f32 to vector<32x1xf32>
    %90 = arith.divf %88, %89 : vector<32x1xf32>
    %91 = vector.broadcast %83 : vector<32x1xf32> to vector<32x128xf32>
    %92 = arith.subf %75, %91 : vector<32x128xf32>
    %cst_38 = arith.constant 9.99999974E-6 : f32
    %93 = vector.broadcast %cst_38 : f32 to vector<32x1xf32>
    %94 = arith.addf %90, %93 : vector<32x1xf32>
    %95 = math.rsqrt %94 : vector<32x1xf32>
    %96 = vector.broadcast %95 : vector<32x1xf32> to vector<32x128xf32>
    %97 = arith.mulf %92, %96 : vector<32x128xf32>
    %98 = vector.broadcast %77 : vector<1x128xf32> to vector<32x128xf32>
    %99 = arith.mulf %97, %98 : vector<32x128xf32>
    %100 = vector.broadcast %79 : vector<1x128xf32> to vector<32x128xf32>
    %101 = arith.addf %99, %100 : vector<32x128xf32>
    %102 = arith.truncf %101 : vector<32x128xf32> to vector<32x128xbf16>
    %c0_39 = arith.constant 0 : index
    %c0_40 = arith.constant 0 : index
    %c0_41 = arith.constant 0 : index
    %103 = vector.load %arg10[%c0_39, %c0_40, %c0_41] : memref<1x128x256xbf16, #tpu.memory_space<vmem>>, vector<1x128x256xbf16>
    %104 = vector.shape_cast %103 : vector<1x128x256xbf16> to vector<128x256xbf16>
    %cst_42 = arith.constant dense<0.000000e+00> : vector<32x256xf32>
    %105 = tpu.matmul %102, %104, %cst_42 {dimension_numbers = #tpu.dot_dimension_numbers<[1], [0], [0], [1], [0, 0, 1, 1], [], []>} : vector<32x128xbf16>, vector<128x256xbf16>, vector<32x256xf32> -> vector<32x256xf32>
    %c0_43 = arith.constant 0 : index
    %c0_44 = arith.constant 0 : index
    %c0_45 = arith.constant 0 : index
    %106 = vector.load %arg11[%c0_43, %c0_44, %c0_45] : memref<1x1x256xf32, #tpu.memory_space<vmem>>, vector<1x1x256xf32>
    %107 = vector.shape_cast %106 : vector<1x1x256xf32> to vector<1x256xf32>
    %108 = vector.broadcast %107 : vector<1x256xf32> to vector<32x256xf32>
    %109 = arith.addf %105, %108 : vector<32x256xf32>
    %cst_46 = arith.constant 0.000000e+00 : f32
    %110 = vector.broadcast %cst_46 : f32 to vector<32x256xf32>
    %111 = arith.maximumf %109, %110 : vector<32x256xf32>
    %112 = arith.truncf %111 : vector<32x256xf32> to vector<32x256xbf16>
    %c0_47 = arith.constant 0 : index
    %c0_48 = arith.constant 0 : index
    %c0_49 = arith.constant 0 : index
    %113 = vector.load %arg12[%c0_47, %c0_48, %c0_49] : memref<1x256x128xbf16, #tpu.memory_space<vmem>>, vector<1x256x128xbf16>
    %114 = vector.shape_cast %113 : vector<1x256x128xbf16> to vector<256x128xbf16>
    %cst_50 = arith.constant dense<0.000000e+00> : vector<32x128xf32>
    %115 = tpu.matmul %112, %114, %cst_50 {dimension_numbers = #tpu.dot_dimension_numbers<[1], [0], [0], [1], [0, 0, 1, 1], [], []>} : vector<32x256xbf16>, vector<256x128xbf16>, vector<32x128xf32> -> vector<32x128xf32>
    %c0_51 = arith.constant 0 : index
    %c0_52 = arith.constant 0 : index
    %c0_53 = arith.constant 0 : index
    %116 = vector.load %arg13[%c0_51, %c0_52, %c0_53] : memref<1x1x128xf32, #tpu.memory_space<vmem>>, vector<1x1x128xf32>
    %117 = vector.shape_cast %116 : vector<1x1x128xf32> to vector<1x128xf32>
    %118 = vector.broadcast %117 : vector<1x128xf32> to vector<32x128xf32>
    %119 = arith.addf %115, %118 : vector<32x128xf32>
    %120 = arith.addf %75, %119 : vector<32x128xf32>
    %c0_54 = arith.constant 0 : index
    %c0_55 = arith.constant 0 : index
    %121 = vector.load %arg15[%c0_54, %c0_55] : memref<32x128xf32, #tpu.memory_space<vmem>>, vector<32x128xf32>
    tpu.vector_store %arg15[%c0_54, %c0_55], %120 {strides = array<i32>} : memref<32x128xf32, #tpu.memory_space<vmem>>, vector<32x128xf32>,
    %c1_i32 = arith.constant 1 : i32
    %122 = arith.cmpi eq, %arg1, %c1_i32 : i32
    %123 = arith.extui %122 : i1 to i32
    %c0_i32_56 = arith.constant 0 : i32
    %124 = arith.cmpi ne, %123, %c0_i32_56 : i32
    scf.if %124 {
      %c0_57 = arith.constant 0 : index
      %c0_58 = arith.constant 0 : index
      %125 = vector.load %arg14[%c0_57, %c0_58] : memref<32x128xf32, #tpu.memory_space<vmem>>, vector<32x128xf32>
      tpu.vector_store %arg14[%c0_57, %c0_58], %120 {strides = array<i32>} : memref<32x128xf32, #tpu.memory_space<vmem>>, vector<32x128xf32>,
    } else {
    }
    return
  }
  func.func @transform_0(%arg0: i32, %arg1: i32) -> (i32, i32) {
    %c0_i32 = arith.constant 0 : i32
    %c0_i32_0 = arith.constant 0 : i32
    return %arg0, %c0_i32 : i32, i32
  }
  func.func @transform_1(%arg0: i32, %arg1: i32) -> (i32, i32, i32) {
    %c0_i32 = arith.constant 0 : i32
    %c0_i32_0 = arith.constant 0 : i32
    %c0_i32_1 = arith.constant 0 : i32
    return %arg1, %c0_i32, %c0_i32_0 : i32, i32, i32
  }
  func.func @transform_2(%arg0: i32, %arg1: i32) -> (i32, i32, i32) {
    %c0_i32 = arith.constant 0 : i32
    %c0_i32_0 = arith.constant 0 : i32
    %c0_i32_1 = arith.constant 0 : i32
    return %arg1, %c0_i32, %c0_i32_0 : i32, i32, i32
  }
  func.func @transform_3(%arg0: i32, %arg1: i32) -> (i32, i32, i32) {
    %c0_i32 = arith.constant 0 : i32
    %c0_i32_0 = arith.constant 0 : i32
    %c0_i32_1 = arith.constant 0 : i32
    return %arg1, %c0_i32, %c0_i32_0 : i32, i32, i32
  }
  func.func @transform_4(%arg0: i32, %arg1: i32) -> (i32, i32, i32) {
    %c0_i32 = arith.constant 0 : i32
    %c0_i32_0 = arith.constant 0 : i32
    %c0_i32_1 = arith.constant 0 : i32
    return %arg1, %c0_i32, %c0_i32_0 : i32, i32, i32
  }
  func.func @transform_5(%arg0: i32, %arg1: i32) -> (i32, i32, i32) {
    %c0_i32 = arith.constant 0 : i32
    %c0_i32_0 = arith.constant 0 : i32
    %c0_i32_1 = arith.constant 0 : i32
    return %arg1, %c0_i32, %c0_i32_0 : i32, i32, i32
  }
  func.func @transform_6(%arg0: i32, %arg1: i32) -> (i32, i32, i32) {
    %c0_i32 = arith.constant 0 : i32
    %c0_i32_0 = arith.constant 0 : i32
    %c0_i32_1 = arith.constant 0 : i32
    return %arg1, %c0_i32, %c0_i32_0 : i32, i32, i32
  }
  func.func @transform_7(%arg0: i32, %arg1: i32) -> (i32, i32, i32) {
    %c0_i32 = arith.constant 0 : i32
    %c0_i32_0 = arith.constant 0 : i32
    %c0_i32_1 = arith.constant 0 : i32
    return %arg1, %c0_i32, %c0_i32_0 : i32, i32, i32
  }
  func.func @transform_8(%arg0: i32, %arg1: i32) -> (i32, i32, i32) {
    %c0_i32 = arith.constant 0 : i32
    %c0_i32_0 = arith.constant 0 : i32
    %c0_i32_1 = arith.constant 0 : i32
    return %arg1, %c0_i32, %c0_i32_0 : i32, i32, i32
  }
  func.func @transform_9(%arg0: i32, %arg1: i32) -> (i32, i32, i32) {
    %c0_i32 = arith.constant 0 : i32
    %c0_i32_0 = arith.constant 0 : i32
    %c0_i32_1 = arith.constant 0 : i32
    return %arg1, %c0_i32, %c0_i32_0 : i32, i32, i32
  }
  func.func @transform_10(%arg0: i32, %arg1: i32) -> (i32, i32, i32) {
    %c0_i32 = arith.constant 0 : i32
    %c0_i32_0 = arith.constant 0 : i32
    %c0_i32_1 = arith.constant 0 : i32
    return %arg1, %c0_i32, %c0_i32_0 : i32, i32, i32
  }
  func.func @transform_11(%arg0: i32, %arg1: i32) -> (i32, i32, i32) {
    %c0_i32 = arith.constant 0 : i32
    %c0_i32_0 = arith.constant 0 : i32
    %c0_i32_1 = arith.constant 0 : i32
    return %arg1, %c0_i32, %c0_i32_0 : i32, i32, i32
  }
  func.func @transform_12(%arg0: i32, %arg1: i32) -> (i32, i32) {
    %c0_i32 = arith.constant 0 : i32
    %c0_i32_0 = arith.constant 0 : i32
    return %arg0, %c0_i32 : i32, i32
  }
}

</mosaic_0001>

<llo_original>
// kernel: transformer_mapper_forward.2
$region0: #{transformer_mapper_forward.2}
  #allocation0 [shape = 'u32[]', space=smem, size = 0x4, offset = 0x4, fixed_abs, tag = 'smem constant byte address 0x4 - core index']
  #allocation1 [shape = 'u32[144,128]{1,0:T(1,128)}', space=vmem, size = 0x12000, scoped, tag = 'internal scratch']
  %s0 = inlined_call_operand.vmem [shape: f32[2,64], index: 0, kind: input, shape index: {}]
  %s1 = inlined_call_operand.hbm [shape: bf16[64,1024], index: 1, kind: input, shape index: {}]
  %s2 = inlined_call_operand.vmem [shape: f32[1,1024], index: 2, kind: input, shape index: {}]
  %s3 = inlined_call_operand.vmem [shape: f32[2,1024], index: 3, kind: output, shape index: {}]
  %s4 = sld [smem:[#allocation0]]
  $region49: #{transformer_mapper_forward.2} parent=0
    _
  %s6 = ssub.s32 1, %s4
  %s7 = scalar_select 0, %s6, %s4
  $region1: #{transformer_mapper_forward.2} parent=0
    #allocation2 [shape = 'u8[131072]{0}', space=vmem, size = 0x20000, scoped, tag = 'input window, operand 1']
    #allocation3 [shape = 's32[2]{0}', space=sflag, size = 0x8, scoped, tag = 'scoped memory for transformer_mapper_forward.2']
    %8 = vsyncpa [#allocation3], 0
    %s9 = scalar_lea.sflag [#allocation3], 1
    %10 = vsyncpa %s9, 0
    loop: start=0, step=1, limit=4
    $region2: #{transformer_mapper_forward.2} parent=1 // loop_pre_header
      _
    $region3: #{transformer_mapper_forward.2} parent=1 // loop_header
      %s12 = sphi 0, %s16
      %p13 = scmp.ge.s32.totalorder %s12, 4
      %s20 = sphi 0, %s20
      %s22 = sphi 0, %s20
      %s23 = sphi 0, %s22
      %s37 = sphi 0, %s23
      %s43 = sphi 0, %s45
      %s46 = sphi 0, %s43
      %s47 = sphi 0, %s46
      %s63 = sphi 0, %s47
      %s69 = sphi 0, %s71
      %s72 = sphi 0, %s69
      %s73 = sphi 0, %s72
      %s89 = sphi 0, %s73
      %s95 = sphi 0, %s97
      %s98 = sphi 0, %s95
      %s99 = sphi 0, %s98
      %s115 = sphi 0, %s99
    $region4: #{transformer_mapper_forward.2} parent=1 // loop_header_branch
      %15 = sbr.rel (%p13) target = $region8
    $region5: #{transformer_mapper_forward.2} parent=1 // loop_body
      %s17 = ssub.s32 %s12, 1
      %s18 = ssub.s32 %s12, 2
      %s19 = sadd.s32 %s12, 1
      %s21 = sadd.s32 %s20, 1
      %p24 = scmp.eq.s32.totalorder %s12, 1
      %p25 = scmp.ne.s32.totalorder %s20, %s22
      %p26 = scmp.eq.s32.totalorder %s12, 0
      %p27 = por %p25, %p26
      %p28 = scmp.ne.s32.totalorder %s20, %s22
      %p29 = scmp.eq.s32.totalorder %s17, 1
      %p30 = por %p28, %p29
      %p31 = scmp.ne.s32.totalorder %s22, %s23
      %p32 = scmp.eq.s32.totalorder %s17, 0
      %p33 = por %p31, %p32
      %p34 = scmp.ne.s32.totalorder %s22, %s23
      %p35 = scmp.eq.s32.totalorder %s18, 1
      %p36 = por %p34, %p35
      %p38 = scmp.ne.s32.totalorder %s23, %s37
      %p39 = scmp.eq.s32.totalorder %s18, 0
      %p40 = por %p38, %p39
      %s41 = ssub.s32 %s12, %s19
      %p42 = scmp.eq.s32.totalorder %s41, 0
      %s44 = sadd.s32 %s43, 1
      %s45 = scalar_select %p42, %s43, %s44
      %p48 = pneg %p42
      %p49 = scmp.eq.s32.totalorder %s12, 1
      %p50 = por %p48, %p49
      %p51 = scmp.ne.s32.totalorder %s43, %s46
      %p52 = scmp.eq.s32.totalorder %s12, 0
      %p53 = por %p51, %p52
      %p54 = scmp.ne.s32.totalorder %s43, %s46
      %p55 = scmp.eq.s32.totalorder %s17, 1
      %p56 = por %p54, %p55
      %p57 = scmp.ne.s32.totalorder %s46, %s47
      %p58 = scmp.eq.s32.totalorder %s17, 0
      %p59 = por %p57, %p58
      %p60 = scmp.ne.s32.totalorder %s46, %s47
      %p61 = scmp.eq.s32.totalorder %s18, 1
      %p62 = por %p60, %p61
      %p64 = scmp.ne.s32.totalorder %s47, %s63
      %p65 = scmp.eq.s32.totalorder %s18, 0
      %p66 = por %p64, %p65
      %s67 = ssub.s32 %s12, %s19
      %p68 = scmp.eq.s32.totalorder %s67, 0
      %s70 = sadd.s32 %s69, 1
      %s71 = scalar_select %p68, %s69, %s70
      %p74 = pneg %p68
      %p75 = scmp.eq.s32.totalorder %s12, 1
      %p76 = por %p74, %p75
      %p77 = scmp.ne.s32.totalorder %s69, %s72
      %p78 = scmp.eq.s32.totalorder %s12, 0
      %p79 = por %p77, %p78
      %p80 = scmp.ne.s32.totalorder %s69, %s72
      %p81 = scmp.eq.s32.totalorder %s17, 1
      %p82 = por %p80, %p81
      %p83 = scmp.ne.s32.totalorder %s72, %s73
      %p84 = scmp.eq.s32.totalorder %s17, 0
      %p85 = por %p83, %p84
      %p86 = scmp.ne.s32.totalorder %s72, %s73
      %p87 = scmp.eq.s32.totalorder %s18, 1
      %p88 = por %p86, %p87
      %p90 = scmp.ne.s32.totalorder %s73, %s89
      %p91 = scmp.eq.s32.totalorder %s18, 0
      %p92 = por %p90, %p91
      %s93 = ssub.s32 %s12, %s19
      %p94 = scmp.eq.s32.totalorder %s93, 0
      %s96 = sadd.s32 %s95, 1
      %s97 = scalar_select %p94, %s95, %s96
      %p100 = pneg %p94
      %p101 = scmp.eq.s32.totalorder %s12, 1
      %p102 = por %p100, %p101
      %p103 = scmp.ne.s32.totalorder %s95, %s98
      %p104 = scmp.eq.s32.totalorder %s12, 0
      %p105 = por %p103, %p104
      %p106 = scmp.ne.s32.totalorder %s95, %s98
      %p107 = scmp.eq.s32.totalorder %s17, 1
      %p108 = por %p106, %p107
      %p109 = scmp.ne.s32.totalorder %s98, %s99
      %p110 = scmp.eq.s32.totalorder %s17, 0
      %p111 = por %p109, %p110
      %p112 = scmp.ne.s32.totalorder %s98, %s99
      %p113 = scmp.eq.s32.totalorder %s18, 1
      %p114 = por %p112, %p113
      %p116 = scmp.ne.s32.totalorder %s99, %s115
      %p117 = scmp.eq.s32.totalorder %s18, 0
      %p118 = por %p116, %p117
      %p119 = scmp.le.s32.totalorder 1, %s12
      %p120 = scmp.lt.s32.totalorder %s12, 3
      %p121 = pnand %p119, %p120
      %p122 = pneg %p121
      // Predicated region
      $region9: #{transformer_mapper_forward.2} parent=5 // pred_check
        _
      $region10: #{transformer_mapper_forward.2} parent=5 // pred_check_branch
        %124 = sbr.rel (%p121) target = $region12
      $region11: #{transformer_mapper_forward.2} parent=5 // pred_region
        %s125 = ssub.s32 %s12, 1
        // Predicated region
        $region13: #{transformer_mapper_forward.2} parent=11 // pred_check
          %p126 = pneg %p33
        $region14: #{transformer_mapper_forward.2} parent=11 // pred_check_branch
          %128 = sbr.rel (%p126) target = $region16
        $region15: #{transformer_mapper_forward.2} parent=11 // pred_region
          _
        $region16: #{transformer_mapper_forward.2} parent=11 // pred_fallthru
          _
      $region12: #{transformer_mapper_forward.2} parent=5 // pred_fallthru
        _
      %p129 = scmp.lt.s32.totalorder %s12, 2
      // Predicated region
      $region17: #{transformer_mapper_forward.2} parent=5 // pred_check
        %p130 = pneg %p129
      $region18: #{transformer_mapper_forward.2} parent=5 // pred_check_branch
        %132 = sbr.rel (%p130) target = $region20
      $region19: #{transformer_mapper_forward.2} parent=5 // pred_region
        // Predicated region
        $region21: #{transformer_mapper_forward.2} parent=19 // pred_check
          %p133 = pneg %p53
        $region22: #{transformer_mapper_forward.2} parent=19 // pred_check_branch
          %135 = sbr.rel (%p133) target = $region24
        $region23: #{transformer_mapper_forward.2} parent=19 // pred_region
          %s136 = sand.u32 %s43, 1
          %s137 = scalar_lea.sflag [#allocation3], %s136
          %s138 = sand.u32 %s43, 1
          %s139 = smul.addr %s138, 128
          %s140 = scalar_lea.vmem [#allocation2], %s139
          %s141 = smul.u32 4, %s12
          %s143 = ssub.s32 2048, 2048
          %144 = vsyncadd %s137, %s143
          %s145 = smul.addr %s141, 64
          %s146 = scalar_lea.hbm %s1, %s145
          %s147 = sshll.u32 %s140, 4
          %s148 = int_to_ptr.vmem [resolvable:$true] %s147
          %153 = dma.hbm_to_vmem [thread:$0]  %s146, 2048, %s148, %s137, 512, 256, 16
        $region24: #{transformer_mapper_forward.2} parent=19 // pred_fallthru
          _
        // Predicated region
        $region25: #{transformer_mapper_forward.2} parent=19 // pred_check
          %p154 = pneg %p79
        $region26: #{transformer_mapper_forward.2} parent=19 // pred_check_branch
          %156 = sbr.rel (%p154) target = $region28
        $region27: #{transformer_mapper_forward.2} parent=19 // pred_region
          %s157 = smul.u32 4, %s12
          %p158 = scmp.lt.s32.totalorder %s157, 7
          %s159 = scalar_select %p158, %s157, 7
          %s160 = scalar_lea.vmem %s2, %s159
          %s161 = smul.u32 4, %s12
        $region28: #{transformer_mapper_forward.2} parent=19 // pred_fallthru
          _
      $region20: #{transformer_mapper_forward.2} parent=5 // pred_fallthru
        _
      %p162 = scmp.le.s32.totalorder 1, %s12
      %p163 = scmp.lt.s32.totalorder %s12, 3
      %p164 = pnand %p162, %p163
      %p165 = pneg %p164
      // Predicated region
      $region29: #{transformer_mapper_forward.2} parent=5 // pred_check
        _
      $region30: #{transformer_mapper_forward.2} parent=5 // pred_check_branch
        %167 = sbr.rel (%p164) target = $region32
      $region31: #{transformer_mapper_forward.2} parent=5 // pred_region
        %s168 = ssub.s32 %s12, 1
        %s169 = sand.u32 %s46, 1
        %s170 = scalar_lea.sflag [#allocation3], %s169
        %s171 = sand.u32 %s46, 1
        %s172 = smul.addr %s171, 128
        %s173 = scalar_lea.vmem [#allocation2], %s172
        // Predicated region
        $region33: #{transformer_mapper_forward.2} parent=31 // pred_check
          %p174 = pneg %p59
        $region34: #{transformer_mapper_forward.2} parent=31 // pred_check_branch
          %176 = sbr.rel (%p174) target = $region36
        $region35: #{transformer_mapper_forward.2} parent=31 // pred_region
          %177 = dma.done %s170, 2048
        $region36: #{transformer_mapper_forward.2} parent=31 // pred_fallthru
          _
        %p178 = pneg %p33
        %p179 = pneg %p30
        %s180 = sand.u32 %s46, 1
        %s181 = scalar_lea.sflag [#allocation3], %s180
        %s182 = sand.u32 %s46, 1
        %s183 = smul.addr %s182, 128
        %s184 = scalar_lea.vmem [#allocation2], %s183
        %p185 = pneg %p59
        %p186 = pneg %p56
        %s187 = smul.u32 4, %s17
        %p188 = scmp.lt.s32.totalorder %s187, 7
        %s189 = scalar_select %p188, %s187, 7
        %s190 = scalar_lea.vmem %s2, %s189
        %p191 = pneg %p85
        %p192 = pneg %p82
        %p193 = pneg %p111
        %p194 = pneg %p108
        %s195 = smul.u32 4, %s17
        %p196 = scmp.lt.s32.totalorder %s195, 7
        %s197 = scalar_select %p196, %s195, 7
        %s198 = smul.addr %s197, 2
        %s199 = scalar_lea.vmem %s3, %s198
        %s200 = smul.u32 4, %s17
        %s201 = smul.u32 4, %s17
        %p202 = scmp.lt.s32.totalorder %s201, 7
        %s203 = scalar_select %p202, %s201, 7
        %s204 = scalar_lea.vmem %s2, %s203
        %s205 = smul.u32 4, %s17
        %s206 = smul.u32 4, %s17
        %p207 = scmp.lt.s32.totalorder %s206, 7
        %s208 = scalar_select %p207, %s206, 7
        %s209 = smul.addr %s208, 2
        %s210 = scalar_lea.vmem %s3, %s209
        %s211 = smul.u32 4, %s17
        %v213 = vld [vmem:[%s0] sm:$0x3]
        %v214 = vpack.c.bf16 %v213, %v213
        %v215 = vld [vmem:[%s173] sm:$0xff]
        %v216 = vld [vmem:[%s173 + $0x8] sm:$0xff]
        %v217 = vld [vmem:[%s173 + $0x10] sm:$0xff]
        %v218 = vld [vmem:[%s173 + $0x18] sm:$0xff]
        %v219 = vld [vmem:[%s173 + $0x20] sm:$0xff]
        %v220 = vld [vmem:[%s173 + $0x28] sm:$0xff]
        %v221 = vld [vmem:[%s173 + $0x30] sm:$0xff]
        %v222 = vld [vmem:[%s173 + $0x38] sm:$0xff]
        %v223 = vld [vmem:[%s173 + $0x40] sm:$0xff]
        %v224 = vld [vmem:[%s173 + $0x48] sm:$0xff]
        %v225 = vld [vmem:[%s173 + $0x50] sm:$0xff]
        %v226 = vld [vmem:[%s173 + $0x58] sm:$0xff]
        %v227 = vld [vmem:[%s173 + $0x60] sm:$0xff]
        %v228 = vld [vmem:[%s173 + $0x68] sm:$0xff]
        %v229 = vld [vmem:[%s173 + $0x70] sm:$0xff]
        %v230 = vld [vmem:[%s173 + $0x78] sm:$0xff]
        %v231 = vld [vmem:[%s204] sm:$0xf]
        %v233 = vlaneseq
        %v234 = vshrl.u32 %v233, 7
        %v235 = vsub.s32 0, %v234
        %v236 = vrot.slane %v231, %v235
        %v237 = vlaneseq
        %v238 = vshrl.u32 %v237, 7
        %v239 = vsub.s32 1, %v238
        %v240 = vrot.slane %v231, %v239
        %v241 = vlaneseq
        %v242 = vshrl.u32 %v241, 7
        %v243 = vsub.s32 2, %v242
        %v244 = vrot.slane %v231, %v243
        %v245 = vlaneseq
        %v246 = vshrl.u32 %v245, 7
        %v247 = vsub.s32 3, %v246
        %v248 = vrot.slane %v231, %v247
        %v269 = vunpack.c.l.b16 %v215
        %v270 = vunpack.c.h.b16 %v215
        %v271 = vunpack.c.l.b16 %v216
        %v272 = vunpack.c.h.b16 %v216
        %v273 = vunpack.c.l.b16 %v217
        %v274 = vunpack.c.h.b16 %v217
        %v275 = vunpack.c.l.b16 %v218
        %v276 = vunpack.c.h.b16 %v218
        %v277 = vunpack.c.l.b16 %v219
        %v278 = vunpack.c.h.b16 %v219
        %v279 = vunpack.c.l.b16 %v220
        %v280 = vunpack.c.h.b16 %v220
        %v281 = vunpack.c.l.b16 %v221
        %v282 = vunpack.c.h.b16 %v221
        %v283 = vunpack.c.l.b16 %v222
        %v284 = vunpack.c.h.b16 %v222
        %v285 = vunpack.c.l.b16 %v223
        %v286 = vunpack.c.h.b16 %v223
        %v287 = vunpack.c.l.b16 %v224
        %v288 = vunpack.c.h.b16 %v224
        %v289 = vunpack.c.l.b16 %v225
        %v290 = vunpack.c.h.b16 %v225
        %v291 = vunpack.c.l.b16 %v226
        %v292 = vunpack.c.h.b16 %v226
        %v293 = vunpack.c.l.b16 %v227
        %v294 = vunpack.c.h.b16 %v227
        %v295 = vunpack.c.l.b16 %v228
        %v296 = vunpack.c.h.b16 %v228
        %v297 = vunpack.c.l.b16 %v229
        %v298 = vunpack.c.h.b16 %v229
        %v299 = vunpack.c.l.b16 %v230
        %v300 = vunpack.c.h.b16 %v230
        %v301 = vpack.c.b16 %v273, %v269
        %v302 = vpack.c.b16 %v274, %v270
        %v303 = vpack.c.b16 %v275, %v271
        %v304 = vpack.c.b16 %v276, %v272
        %v305 = vpack.c.b16 %v281, %v277
        %v306 = vpack.c.b16 %v282, %v278
        %v307 = vpack.c.b16 %v283, %v279
        %v308 = vpack.c.b16 %v284, %v280
        %v309 = vpack.c.b16 %v289, %v285
        %v310 = vpack.c.b16 %v290, %v286
        %v311 = vpack.c.b16 %v291, %v287
        %v312 = vpack.c.b16 %v292, %v288
        %v313 = vpack.c.b16 %v297, %v293
        %v314 = vpack.c.b16 %v298, %v294
        %v315 = vpack.c.b16 %v299, %v295
        %v316 = vpack.c.b16 %v300, %v296
        %vm333 = vcmask 523264
        %v335 = vsel %vm333, %v214, 0
        %337 = vmatprep.subr.bf16.mxu0 %v302
        %338 = vmatpush1.bf16.msra.mxu0 %v301
        %339 = vmatprep.subr.bf16.mxu0 %v306
        %340 = vmatpush1.bf16.msra.mxu0 %v305
        %341 = vmatprep.subr.bf16.mxu0 %v310
        %342 = vmatpush1.bf16.msra.mxu0 %v309
        %343 = vmatprep.subr.bf16.mxu0 %v314
        %344 = vmatpush1.bf16.msra.mxu0 %v313
        %345 = vmatprep.subr.bf16.mxu0 0
        %346 = vmatpush1.bf16.msra.mxu0 0
        %347 = vmatprep.subr.bf16.mxu0 0
        %348 = vmatpush1.bf16.msra.mxu0 0
        %349 = vmatprep.subr.bf16.mxu0 0
        %350 = vmatpush1.bf16.msra.mxu0 0
        %351 = vmatprep.subr.bf16.mxu0 0
        %352 = vmatpush1.bf16.msra.mxu0 0
        %353 = vmatprep.subr.bf16.mxu0 0
        %354 = vmatpush1.bf16.msra.mxu0 0
        %355 = vmatprep.subr.bf16.mxu0 0
        %356 = vmatpush1.bf16.msra.mxu0 0
        %357 = vmatprep.subr.bf16.mxu0 0
        %358 = vmatpush1.bf16.msra.mxu0 0
        %359 = vmatprep.subr.bf16.mxu0 0
        %360 = vmatpush1.bf16.msra.mxu0 0
        %361 = vmatprep.subr.bf16.mxu0 0
        %362 = vmatpush1.bf16.msra.mxu0 0
        %363 = vmatprep.subr.bf16.mxu0 0
        %364 = vmatpush1.bf16.msra.mxu0 0
        %365 = vmatprep.subr.bf16.mxu0 0
        %366 = vmatpush1.bf16.msra.mxu0 0
        %367 = vmatprep.subr.bf16.mxu0 0
        %368 = vmatpush1.bf16.msra.mxu0 0
        %369 = vmatprep.mubr.bf16.mxu0 0
        %370 = vmatmul.mubr.bf16.gmra.mrb[0].mxu0 %v335
        %v371 = vpop.f32.mrb[0].mxu0
        %v372 = vadd.f32 %v236, %v371
        %v373 = vpop.f32.mrb[0].mxu0
        %v374 = vadd.f32 %v240, %v373
        %v375 = vpop.f32.mrb[0].mxu0
        %v376 = vpop.f32.mrb[0].mxu0
        %377 = vdwg.mxu0
        %378 = vmatprep.subr.bf16.mxu0 %v304
        %379 = vmatpush1.bf16.msra.mxu0 %v303
        %380 = vmatprep.subr.bf16.mxu0 %v308
        %381 = vmatpush1.bf16.msra.mxu0 %v307
        %382 = vmatprep.subr.bf16.mxu0 %v312
        %383 = vmatpush1.bf16.msra.mxu0 %v311
        %384 = vmatprep.subr.bf16.mxu0 %v316
        %385 = vmatpush1.bf16.msra.mxu0 %v315
        %386 = vmatprep.subr.bf16.mxu0 0
        %387 = vmatpush1.bf16.msra.mxu0 0
        %388 = vmatprep.subr.bf16.mxu0 0
        %389 = vmatpush1.bf16.msra.mxu0 0
        %390 = vmatprep.subr.bf16.mxu0 0
        %391 = vmatpush1.bf16.msra.mxu0 0
        %392 = vmatprep.subr.bf16.mxu0 0
        %393 = vmatpush1.bf16.msra.mxu0 0
        %394 = vmatprep.subr.bf16.mxu0 0
        %395 = vmatpush1.bf16.msra.mxu0 0
        %396 = vmatprep.subr.bf16.mxu0 0
        %397 = vmatpush1.bf16.msra.mxu0 0
        %398 = vmatprep.subr.bf16.mxu0 0
        %399 = vmatpush1.bf16.msra.mxu0 0
        %400 = vmatprep.subr.bf16.mxu0 0
        %401 = vmatpush1.bf16.msra.mxu0 0
        %402 = vmatprep.subr.bf16.mxu0 0
        %403 = vmatpush1.bf16.msra.mxu0 0
        %404 = vmatprep.subr.bf16.mxu0 0
        %405 = vmatpush1.bf16.msra.mxu0 0
        %406 = vmatprep.subr.bf16.mxu0 0
        %407 = vmatpush1.bf16.msra.mxu0 0
        %408 = vmatprep.subr.bf16.mxu0 0
        %409 = vmatpush1.bf16.msra.mxu0 0
        %410 = vmatprep.mubr.bf16.mxu0 0
        %411 = vmatmul.mubr.bf16.gmra.mrb[0].mxu0 %v335
        %v412 = vpop.f32.mrb[0].mxu0
        %v413 = vadd.f32 %v244, %v412
        %v414 = vpop.f32.mrb[0].mxu0
        %v415 = vadd.f32 %v248, %v414
        %v416 = vpop.f32.mrb[0].mxu0
        %v417 = vpop.f32.mrb[0].mxu0
        %418 = vdwg.mxu0
        %v423 = vcombine.low %v372, %v374
        %v424 = vcombine.low %v413, %v415
        %v426 = vunpack.c.l.s4 1983009808
        %v427 = vunpack.c.0.s8 %v426
        %v428 = vlaneseq
        %v429 = vshrl.u32 %v428, 7
        %v430 = vsub.s32 %v427, %v429
        %v431 = vrot.slane %v423, %v430
        %v433 = vunpack.c.l.s4 1983009808
        %v434 = vunpack.c.0.s8 %v433
        %v435 = vlaneseq
        %v436 = vshrl.u32 %v435, 7
        %v437 = vsub.s32 %v434, %v436
        %v438 = vrot.slane %v424, %v437
        %v439 = vcombine.low %v431, %v438
        %441 = vst [vmem:[%s210] sm:$0xff] %v439
        %s442 = smul.u32 4, %s17
        %p443 = scmp.lt.s32.totalorder %s442, 7
        %s444 = scalar_select %p443, %s442, 7
        %s445 = smul.addr %s444, 2
        %s446 = scalar_lea.vmem %s3, %s445
        // Predicated region
        $region37: #{transformer_mapper_forward.2} parent=31 // pred_check
          %p447 = pneg %p108
        $region38: #{transformer_mapper_forward.2} parent=31 // pred_check_branch
          %449 = sbr.rel (%p447) target = $region40
        $region39: #{transformer_mapper_forward.2} parent=31 // pred_region
          %s450 = smul.u32 4, %s17
        $region40: #{transformer_mapper_forward.2} parent=31 // pred_fallthru
          _
      $region32: #{transformer_mapper_forward.2} parent=5 // pred_fallthru
        _
      %p451 = scmp.le.s32.totalorder 2, %s12
      // Predicated region
      $region41: #{transformer_mapper_forward.2} parent=5 // pred_check
        %p452 = pneg %p451
      $region42: #{transformer_mapper_forward.2} parent=5 // pred_check_branch
        %454 = sbr.rel (%p452) target = $region44
      $region43: #{transformer_mapper_forward.2} parent=5 // pred_region
        %s455 = ssub.s32 %s12, 2
        // Predicated region
        $region45: #{transformer_mapper_forward.2} parent=43 // pred_check
          %p456 = pneg %p114
        $region46: #{transformer_mapper_forward.2} parent=43 // pred_check_branch
          %458 = sbr.rel (%p456) target = $region48
        $region47: #{transformer_mapper_forward.2} parent=43 // pred_region
          %s459 = smul.u32 4, %s18
          %p460 = scmp.lt.s32.totalorder %s459, 7
          %s461 = scalar_select %p460, %s459, 7
          %s462 = smul.addr %s461, 2
          %s463 = scalar_lea.vmem %s3, %s462
        $region48: #{transformer_mapper_forward.2} parent=43 // pred_fallthru
          _
      $region44: #{transformer_mapper_forward.2} parent=5 // pred_fallthru
        _
    $region6: #{transformer_mapper_forward.2} parent=1 // loop_footer
      %s16 = sadd.s32 1, %s12
    $region7: #{transformer_mapper_forward.2} parent=1 // loop_footer_branch
      %11 = sbr.rel target = $region3
    $region8: #{transformer_mapper_forward.2} parent=1 // loop_exit
      _
    %464 = vsyncpa [#allocation3], 1
    %s465 = scalar_lea.sflag [#allocation3], 1
    %466 = vsyncpa %s465, 1

// kernel: transformer_mapper_forward.3
$region0: #{transformer_mapper_forward.3}
  #allocation0 [shape = 'u32[]', space=smem, size = 0x4, offset = 0x4, fixed_abs, tag = 'smem constant byte address 0x4 - core index']
  #allocation1 [shape = 'u32[144,128]{1,0:T(1,128)}', space=vmem, size = 0x12000, scoped, tag = 'internal scratch']
  #allocation2 [shape = 'f32[32,128]{1,0:T(8,128)}', space=vmem, size = 0x4000, scoped, tag = 'scratch operand']
  %s0 = inlined_call_operand.vmem [shape: f32[32,128], index: 0, kind: input, shape index: {}]
  %s1 = inlined_call_operand.vmem [shape: f32[2,1,128], index: 1, kind: input, shape index: {}]
  %s2 = inlined_call_operand.vmem [shape: f32[2,1,128], index: 2, kind: input, shape index: {}]
  %s3 = inlined_call_operand.vmem [shape: bf16[2,128,384], index: 3, kind: input, shape index: {}]
  %s4 = inlined_call_operand.hbm [shape: bf16[2,128,128], index: 4, kind: input, shape index: {}]
  %s5 = inlined_call_operand.vmem [shape: f32[2,1,128], index: 5, kind: input, shape index: {}]
  %s6 = inlined_call_operand.vmem [shape: f32[2,1,128], index: 6, kind: input, shape index: {}]
  %s7 = inlined_call_operand.vmem [shape: f32[2,1,128], index: 7, kind: input, shape index: {}]
  %s8 = inlined_call_operand.hbm [shape: bf16[2,128,256], index: 8, kind: input, shape index: {}]
  %s9 = inlined_call_operand.vmem [shape: f32[2,1,256], index: 9, kind: input, shape index: {}]
  %s10 = inlined_call_operand.hbm [shape: bf16[2,256,128], index: 10, kind: input, shape index: {}]
  %s11 = inlined_call_operand.vmem [shape: f32[2,1,128], index: 11, kind: input, shape index: {}]
  %s12 = inlined_call_operand.vmem [shape: f32[32,128], index: 12, kind: output, shape index: {}]
  %s13 = sld [smem:[#allocation0]]
  $region101: #{transformer_mapper_forward.3} parent=0
    _
  %s15 = ssub.s32 1, %s13
  %s16 = scalar_select 0, %s15, %s13
  $region1: #{transformer_mapper_forward.3} parent=0
    #allocation3 [shape = 'u8[65536]{0}', space=vmem, size = 0x10000, scoped, tag = 'input window, operand 4']
    #allocation4 [shape = 's32[2]{0}', space=sflag, size = 0x8, scoped, tag = 'scoped memory for transformer_mapper_forward.3']
    #allocation5 [shape = 'u8[131072]{0}', space=vmem, size = 0x20000, scoped, tag = 'input window, operand 8']
    #allocation6 [shape = 's32[2]{0}', space=sflag, size = 0x8, scoped, tag = 'scoped memory for transformer_mapper_forward.3']
    #allocation7 [shape = 'u8[131072]{0}', space=vmem, size = 0x20000, scoped, tag = 'input window, operand 10']
    %17 = vsyncpa [#allocation4], 0
    %s18 = scalar_lea.sflag [#allocation4], 1
    %19 = vsyncpa %s18, 0
    %20 = vsyncpa [#allocation6], 0
    %s21 = scalar_lea.sflag [#allocation6], 1
    %22 = vsyncpa %s21, 0
    loop: start=0, step=1, limit=4
    $region2: #{transformer_mapper_forward.3} parent=1 // loop_pre_header
      _
    $region3: #{transformer_mapper_forward.3} parent=1 // loop_header
      %s24 = sphi 0, %s28
      %p25 = scmp.ge.s32.totalorder %s24, 4
      %s31 = sphi 0, %s43
      %s32 = sphi 0, %s39
      %s33 = sphi 0, %s31
      %s34 = sphi 0, %s32
      %s35 = sphi 0, %s33
      %s36 = sphi 0, %s34
      %s46 = sphi 0, %s48
      %s49 = sphi 0, %s46
      %s50 = sphi 0, %s49
      %s66 = sphi 0, %s50
      %s72 = sphi 0, %s74
      %s75 = sphi 0, %s72
      %s76 = sphi 0, %s75
      %s92 = sphi 0, %s76
      %s98 = sphi 0, %s100
      %s101 = sphi 0, %s98
      %s102 = sphi 0, %s101
      %s118 = sphi 0, %s102
      %s124 = sphi 0, %s126
      %s127 = sphi 0, %s124
      %s128 = sphi 0, %s127
      %s144 = sphi 0, %s128
      %s150 = sphi 0, %s152
      %s153 = sphi 0, %s150
      %s154 = sphi 0, %s153
      %s170 = sphi 0, %s154
      %s176 = sphi 0, %s178
      %s179 = sphi 0, %s176
      %s180 = sphi 0, %s179
      %s196 = sphi 0, %s180
      %s202 = sphi 0, %s204
      %s205 = sphi 0, %s202
      %s206 = sphi 0, %s205
      %s222 = sphi 0, %s206
      %s228 = sphi 0, %s230
      %s231 = sphi 0, %s228
      %s232 = sphi 0, %s231
      %s248 = sphi 0, %s232
      %s254 = sphi 0, %s256
      %s257 = sphi 0, %s254
      %s258 = sphi 0, %s257
      %s274 = sphi 0, %s258
      %s280 = sphi 0, %s282
      %s283 = sphi 0, %s280
      %s284 = sphi 0, %s283
      %s300 = sphi 0, %s284
      %s306 = sphi 0, %s308
      %s309 = sphi 0, %s306
      %s310 = sphi 0, %s309
      %s326 = sphi 0, %s310
      %s332 = sphi 0, %s334
      %s335 = sphi 0, %s332
      %s336 = sphi 0, %s335
      %s352 = sphi 0, %s336
      %s358 = sphi 0, %s360
      %s361 = sphi 0, %s358
      %s362 = sphi 0, %s361
      %s378 = sphi 0, %s362
    $region4: #{transformer_mapper_forward.3} parent=1 // loop_header_branch
      %27 = sbr.rel (%p25) target = $region8
    $region5: #{transformer_mapper_forward.3} parent=1 // loop_body
      %s29 = ssub.s32 %s24, 1
      %s30 = ssub.s32 %s24, 2
      %s37 = sadd.s32 1, %s32
      %p38 = scmp.ge.s32.totalorder %s37, 2
      %s39 = scalar_select %p38, 0, %s37
      %s40 = sadd.s32 1, %s31
      %s41 = scalar_select %p38, %s40, %s31
      %p42 = scmp.ge.s32.totalorder %s41, 1
      %s43 = scalar_select %p42, 0, %s41
      %s44 = ssub.s32 %s31, %s43
      %p45 = scmp.eq.s32.totalorder %s44, 0
      %s47 = sadd.s32 %s46, 1
      %s48 = scalar_select %p45, %s46, %s47
      %p51 = pneg %p45
      %p52 = scmp.eq.s32.totalorder %s24, 1
      %p53 = por %p51, %p52
      %p54 = scmp.ne.s32.totalorder %s46, %s49
      %p55 = scmp.eq.s32.totalorder %s24, 0
      %p56 = por %p54, %p55
      %p57 = scmp.ne.s32.totalorder %s46, %s49
      %p58 = scmp.eq.s32.totalorder %s29, 1
      %p59 = por %p57, %p58
      %p60 = scmp.ne.s32.totalorder %s49, %s50
      %p61 = scmp.eq.s32.totalorder %s29, 0
      %p62 = por %p60, %p61
      %p63 = scmp.ne.s32.totalorder %s49, %s50
      %p64 = scmp.eq.s32.totalorder %s30, 1
      %p65 = por %p63, %p64
      %p67 = scmp.ne.s32.totalorder %s50, %s66
      %p68 = scmp.eq.s32.totalorder %s30, 0
      %p69 = por %p67, %p68
      %s70 = ssub.s32 %s32, %s39
      %p71 = scmp.eq.s32.totalorder %s70, 0
      %s73 = sadd.s32 %s72, 1
      %s74 = scalar_select %p71, %s72, %s73
      %p77 = pneg %p71
      %p78 = scmp.eq.s32.totalorder %s24, 1
      %p79 = por %p77, %p78
      %p80 = scmp.ne.s32.totalorder %s72, %s75
      %p81 = scmp.eq.s32.totalorder %s24, 0
      %p82 = por %p80, %p81
      %p83 = scmp.ne.s32.totalorder %s72, %s75
      %p84 = scmp.eq.s32.totalorder %s29, 1
      %p85 = por %p83, %p84
      %p86 = scmp.ne.s32.totalorder %s75, %s76
      %p87 = scmp.eq.s32.totalorder %s29, 0
      %p88 = por %p86, %p87
      %p89 = scmp.ne.s32.totalorder %s75, %s76
      %p90 = scmp.eq.s32.totalorder %s30, 1
      %p91 = por %p89, %p90
      %p93 = scmp.ne.s32.totalorder %s76, %s92
      %p94 = scmp.eq.s32.totalorder %s30, 0
      %p95 = por %p93, %p94
      %s96 = ssub.s32 %s32, %s39
      %p97 = scmp.eq.s32.totalorder %s96, 0
      %s99 = sadd.s32 %s98, 1
      %s100 = scalar_select %p97, %s98, %s99
      %p103 = pneg %p97
      %p104 = scmp.eq.s32.totalorder %s24, 1
      %p105 = por %p103, %p104
      %p106 = scmp.ne.s32.totalorder %s98, %s101
      %p107 = scmp.eq.s32.totalorder %s24, 0
      %p108 = por %p106, %p107
      %p109 = scmp.ne.s32.totalorder %s98, %s101
      %p110 = scmp.eq.s32.totalorder %s29, 1
      %p111 = por %p109, %p110
      %p112 = scmp.ne.s32.totalorder %s101, %s102
      %p113 = scmp.eq.s32.totalorder %s29, 0
      %p114 = por %p112, %p113
      %p115 = scmp.ne.s32.totalorder %s101, %s102
      %p116 = scmp.eq.s32.totalorder %s30, 1
      %p117 = por %p115, %p116
      %p119 = scmp.ne.s32.totalorder %s102, %s118
      %p120 = scmp.eq.s32.totalorder %s30, 0
      %p121 = por %p119, %p120
      %s122 = ssub.s32 %s32, %s39
      %p123 = scmp.eq.s32.totalorder %s122, 0
      %s125 = sadd.s32 %s124, 1
      %s126 = scalar_select %p123, %s124, %s125
      %p129 = pneg %p123
      %p130 = scmp.eq.s32.totalorder %s24, 1
      %p131 = por %p129, %p130
      %p132 = scmp.ne.s32.totalorder %s124, %s127
      %p133 = scmp.eq.s32.totalorder %s24, 0
      %p134 = por %p132, %p133
      %p135 = scmp.ne.s32.totalorder %s124, %s127
      %p136 = scmp.eq.s32.totalorder %s29, 1
      %p137 = por %p135, %p136
      %p138 = scmp.ne.s32.totalorder %s127, %s128
      %p139 = scmp.eq.s32.totalorder %s29, 0
      %p140 = por %p138, %p139
      %p141 = scmp.ne.s32.totalorder %s127, %s128
      %p142 = scmp.eq.s32.totalorder %s30, 1
      %p143 = por %p141, %p142
      %p145 = scmp.ne.s32.totalorder %s128, %s144
      %p146 = scmp.eq.s32.totalorder %s30, 0
      %p147 = por %p145, %p146
      %s148 = ssub.s32 %s32, %s39
      %p149 = scmp.eq.s32.totalorder %s148, 0
      %s151 = sadd.s32 %s150, 1
      %s152 = scalar_select %p149, %s150, %s151
      %p155 = pneg %p149
      %p156 = scmp.eq.s32.totalorder %s24, 1
      %p157 = por %p155, %p156
      %p158 = scmp.ne.s32.totalorder %s150, %s153
      %p159 = scmp.eq.s32.totalorder %s24, 0
      %p160 = por %p158, %p159
      %p161 = scmp.ne.s32.totalorder %s150, %s153
      %p162 = scmp.eq.s32.totalorder %s29, 1
      %p163 = por %p161, %p162
      %p164 = scmp.ne.s32.totalorder %s153, %s154
      %p165 = scmp.eq.s32.totalorder %s29, 0
      %p166 = por %p164, %p165
      %p167 = scmp.ne.s32.totalorder %s153, %s154
      %p168 = scmp.eq.s32.totalorder %s30, 1
      %p169 = por %p167, %p168
      %p171 = scmp.ne.s32.totalorder %s154, %s170
      %p172 = scmp.eq.s32.totalorder %s30, 0
      %p173 = por %p171, %p172
      %s174 = ssub.s32 %s32, %s39
      %p175 = scmp.eq.s32.totalorder %s174, 0
      %s177 = sadd.s32 %s176, 1
      %s178 = scalar_select %p175, %s176, %s177
      %p181 = pneg %p175
      %p182 = scmp.eq.s32.totalorder %s24, 1
      %p183 = por %p181, %p182
      %p184 = scmp.ne.s32.totalorder %s176, %s179
      %p185 = scmp.eq.s32.totalorder %s24, 0
      %p186 = por %p184, %p185
      %p187 = scmp.ne.s32.totalorder %s176, %s179
      %p188 = scmp.eq.s32.totalorder %s29, 1
      %p189 = por %p187, %p188
      %p190 = scmp.ne.s32.totalorder %s179, %s180
      %p191 = scmp.eq.s32.totalorder %s29, 0
      %p192 = por %p190, %p191
      %p193 = scmp.ne.s32.totalorder %s179, %s180
      %p194 = scmp.eq.s32.totalorder %s30, 1
      %p195 = por %p193, %p194
      %p197 = scmp.ne.s32.totalorder %s180, %s196
      %p198 = scmp.eq.s32.totalorder %s30, 0
      %p199 = por %p197, %p198
      %s200 = ssub.s32 %s32, %s39
      %p201 = scmp.eq.s32.totalorder %s200, 0
      %s203 = sadd.s32 %s202, 1
      %s204 = scalar_select %p201, %s202, %s203
      %p207 = pneg %p201
      %p208 = scmp.eq.s32.totalorder %s24, 1
      %p209 = por %p207, %p208
      %p210 = scmp.ne.s32.totalorder %s202, %s205
      %p211 = scmp.eq.s32.totalorder %s24, 0
      %p212 = por %p210, %p211
      %p213 = scmp.ne.s32.totalorder %s202, %s205
      %p214 = scmp.eq.s32.totalorder %s29, 1
      %p215 = por %p213, %p214
      %p216 = scmp.ne.s32.totalorder %s205, %s206
      %p217 = scmp.eq.s32.totalorder %s29, 0
      %p218 = por %p216, %p217
      %p219 = scmp.ne.s32.totalorder %s205, %s206
      %p220 = scmp.eq.s32.totalorder %s30, 1
      %p221 = por %p219, %p220
      %p223 = scmp.ne.s32.totalorder %s206, %s222
      %p224 = scmp.eq.s32.totalorder %s30, 0
      %p225 = por %p223, %p224
      %s226 = ssub.s32 %s32, %s39
      %p227 = scmp.eq.s32.totalorder %s226, 0
      %s229 = sadd.s32 %s228, 1
      %s230 = scalar_select %p227, %s228, %s229
      %p233 = pneg %p227
      %p234 = scmp.eq.s32.totalorder %s24, 1
      %p235 = por %p233, %p234
      %p236 = scmp.ne.s32.totalorder %s228, %s231
      %p237 = scmp.eq.s32.totalorder %s24, 0
      %p238 = por %p236, %p237
      %p239 = scmp.ne.s32.totalorder %s228, %s231
      %p240 = scmp.eq.s32.totalorder %s29, 1
      %p241 = por %p239, %p240
      %p242 = scmp.ne.s32.totalorder %s231, %s232
      %p243 = scmp.eq.s32.totalorder %s29, 0
      %p244 = por %p242, %p243
      %p245 = scmp.ne.s32.totalorder %s231, %s232
      %p246 = scmp.eq.s32.totalorder %s30, 1
      %p247 = por %p245, %p246
      %p249 = scmp.ne.s32.totalorder %s232, %s248
      %p250 = scmp.eq.s32.totalorder %s30, 0
      %p251 = por %p249, %p250
      %s252 = ssub.s32 %s32, %s39
      %p253 = scmp.eq.s32.totalorder %s252, 0
      %s255 = sadd.s32 %s254, 1
      %s256 = scalar_select %p253, %s254, %s255
      %p259 = pneg %p253
      %p260 = scmp.eq.s32.totalorder %s24, 1
      %p261 = por %p259, %p260
      %p262 = scmp.ne.s32.totalorder %s254, %s257
      %p263 = scmp.eq.s32.totalorder %s24, 0
      %p264 = por %p262, %p263
      %p265 = scmp.ne.s32.totalorder %s254, %s257
      %p266 = scmp.eq.s32.totalorder %s29, 1
      %p267 = por %p265, %p266
      %p268 = scmp.ne.s32.totalorder %s257, %s258
      %p269 = scmp.eq.s32.totalorder %s29, 0
      %p270 = por %p268, %p269
      %p271 = scmp.ne.s32.totalorder %s257, %s258
      %p272 = scmp.eq.s32.totalorder %s30, 1
      %p273 = por %p271, %p272
      %p275 = scmp.ne.s32.totalorder %s258, %s274
      %p276 = scmp.eq.s32.totalorder %s30, 0
      %p277 = por %p275, %p276
      %s278 = ssub.s32 %s32, %s39
      %p279 = scmp.eq.s32.totalorder %s278, 0
      %s281 = sadd.s32 %s280, 1
      %s282 = scalar_select %p279, %s280, %s281
      %p285 = pneg %p279
      %p286 = scmp.eq.s32.totalorder %s24, 1
      %p287 = por %p285, %p286
      %p288 = scmp.ne.s32.totalorder %s280, %s283
      %p289 = scmp.eq.s32.totalorder %s24, 0
      %p290 = por %p288, %p289
      %p291 = scmp.ne.s32.totalorder %s280, %s283
      %p292 = scmp.eq.s32.totalorder %s29, 1
      %p293 = por %p291, %p292
      %p294 = scmp.ne.s32.totalorder %s283, %s284
      %p295 = scmp.eq.s32.totalorder %s29, 0
      %p296 = por %p294, %p295
      %p297 = scmp.ne.s32.totalorder %s283, %s284
      %p298 = scmp.eq.s32.totalorder %s30, 1
      %p299 = por %p297, %p298
      %p301 = scmp.ne.s32.totalorder %s284, %s300
      %p302 = scmp.eq.s32.totalorder %s30, 0
      %p303 = por %p301, %p302
      %s304 = ssub.s32 %s32, %s39
      %p305 = scmp.eq.s32.totalorder %s304, 0
      %s307 = sadd.s32 %s306, 1
      %s308 = scalar_select %p305, %s306, %s307
      %p311 = pneg %p305
      %p312 = scmp.eq.s32.totalorder %s24, 1
      %p313 = por %p311, %p312
      %p314 = scmp.ne.s32.totalorder %s306, %s309
      %p315 = scmp.eq.s32.totalorder %s24, 0
      %p316 = por %p314, %p315
      %p317 = scmp.ne.s32.totalorder %s306, %s309
      %p318 = scmp.eq.s32.totalorder %s29, 1
      %p319 = por %p317, %p318
      %p320 = scmp.ne.s32.totalorder %s309, %s310
      %p321 = scmp.eq.s32.totalorder %s29, 0
      %p322 = por %p320, %p321
      %p323 = scmp.ne.s32.totalorder %s309, %s310
      %p324 = scmp.eq.s32.totalorder %s30, 1
      %p325 = por %p323, %p324
      %p327 = scmp.ne.s32.totalorder %s310, %s326
      %p328 = scmp.eq.s32.totalorder %s30, 0
      %p329 = por %p327, %p328
      %s330 = ssub.s32 %s32, %s39
      %p331 = scmp.eq.s32.totalorder %s330, 0
      %s333 = sadd.s32 %s332, 1
      %s334 = scalar_select %p331, %s332, %s333
      %p337 = pneg %p331
      %p338 = scmp.eq.s32.totalorder %s24, 1
      %p339 = por %p337, %p338
      %p340 = scmp.ne.s32.totalorder %s332, %s335
      %p341 = scmp.eq.s32.totalorder %s24, 0
      %p342 = por %p340, %p341
      %p343 = scmp.ne.s32.totalorder %s332, %s335
      %p344 = scmp.eq.s32.totalorder %s29, 1
      %p345 = por %p343, %p344
      %p346 = scmp.ne.s32.totalorder %s335, %s336
      %p347 = scmp.eq.s32.totalorder %s29, 0
      %p348 = por %p346, %p347
      %p349 = scmp.ne.s32.totalorder %s335, %s336
      %p350 = scmp.eq.s32.totalorder %s30, 1
      %p351 = por %p349, %p350
      %p353 = scmp.ne.s32.totalorder %s336, %s352
      %p354 = scmp.eq.s32.totalorder %s30, 0
      %p355 = por %p353, %p354
      %s356 = ssub.s32 %s31, %s43
      %p357 = scmp.eq.s32.totalorder %s356, 0
      %s359 = sadd.s32 %s358, 1
      %s360 = scalar_select %p357, %s358, %s359
      %p363 = pneg %p357
      %p364 = scmp.eq.s32.totalorder %s24, 1
      %p365 = por %p363, %p364
      %p366 = scmp.ne.s32.totalorder %s358, %s361
      %p367 = scmp.eq.s32.totalorder %s24, 0
      %p368 = por %p366, %p367
      %p369 = scmp.ne.s32.totalorder %s358, %s361
      %p370 = scmp.eq.s32.totalorder %s29, 1
      %p371 = por %p369, %p370
      %p372 = scmp.ne.s32.totalorder %s361, %s362
      %p373 = scmp.eq.s32.totalorder %s29, 0
      %p374 = por %p372, %p373
      %p375 = scmp.ne.s32.totalorder %s361, %s362
      %p376 = scmp.eq.s32.totalorder %s30, 1
      %p377 = por %p375, %p376
      %p379 = scmp.ne.s32.totalorder %s362, %s378
      %p380 = scmp.eq.s32.totalorder %s30, 0
      %p381 = por %p379, %p380
      %p382 = scmp.le.s32.totalorder 1, %s24
      %p383 = scmp.lt.s32.totalorder %s24, 3
      %p384 = pnand %p382, %p383
      %p385 = pneg %p384
      // Predicated region
      $region9: #{transformer_mapper_forward.3} parent=5 // pred_check
        _
      $region10: #{transformer_mapper_forward.3} parent=5 // pred_check_branch
        %387 = sbr.rel (%p384) target = $region12
      $region11: #{transformer_mapper_forward.3} parent=5 // pred_region
        %s388 = ssub.s32 %s24, 1
        // Predicated region
        $region13: #{transformer_mapper_forward.3} parent=11 // pred_check
          %p389 = pneg %p62
        $region14: #{transformer_mapper_forward.3} parent=11 // pred_check_branch
          %391 = sbr.rel (%p389) target = $region16
        $region15: #{transformer_mapper_forward.3} parent=11 // pred_region
          %s392 = smul.u32 4, %s33
          %p393 = scmp.lt.s32.totalorder %s392, 3
          %s394 = scalar_select %p393, %s392, 3
          %s395 = smul.addr %s394, 8
          %s396 = scalar_lea.vmem %s0, %s395
          %s397 = smul.u32 4, %s33
        $region16: #{transformer_mapper_forward.3} parent=11 // pred_fallthru
          _
      $region12: #{transformer_mapper_forward.3} parent=5 // pred_fallthru
        _
      %p398 = scmp.lt.s32.totalorder %s24, 2
      // Predicated region
      $region17: #{transformer_mapper_forward.3} parent=5 // pred_check
        %p399 = pneg %p398
      $region18: #{transformer_mapper_forward.3} parent=5 // pred_check_branch
        %401 = sbr.rel (%p399) target = $region20
      $region19: #{transformer_mapper_forward.3} parent=5 // pred_region
        // Predicated region
        $region21: #{transformer_mapper_forward.3} parent=19 // pred_check
          %p402 = pneg %p82
        $region22: #{transformer_mapper_forward.3} parent=19 // pred_check_branch
          %404 = sbr.rel (%p402) target = $region24
        $region23: #{transformer_mapper_forward.3} parent=19 // pred_region
          %p405 = scmp.lt.s32.totalorder %s32, 1
          %s406 = scalar_select %p405, %s32, 1
          %s407 = scalar_lea.vmem %s1, %s406
        $region24: #{transformer_mapper_forward.3} parent=19 // pred_fallthru
          _
        // Predicated region
        $region25: #{transformer_mapper_forward.3} parent=19 // pred_check
          %p408 = pneg %p108
        $region26: #{transformer_mapper_forward.3} parent=19 // pred_check_branch
          %410 = sbr.rel (%p408) target = $region28
        $region27: #{transformer_mapper_forward.3} parent=19 // pred_region
          %p411 = scmp.lt.s32.totalorder %s32, 1
          %s412 = scalar_select %p411, %s32, 1
          %s413 = scalar_lea.vmem %s2, %s412
        $region28: #{transformer_mapper_forward.3} parent=19 // pred_fallthru
          _
        // Predicated region
        $region29: #{transformer_mapper_forward.3} parent=19 // pred_check
          %p414 = pneg %p134
        $region30: #{transformer_mapper_forward.3} parent=19 // pred_check_branch
          %416 = sbr.rel (%p414) target = $region32
        $region31: #{transformer_mapper_forward.3} parent=19 // pred_region
          %p417 = scmp.lt.s32.totalorder %s32, 1
          %s418 = scalar_select %p417, %s32, 1
          %s419 = smul.addr %s418, 48
          %s420 = smul.addr %s419, 4
          %s421 = scalar_lea.vmem %s3, %s420
        $region32: #{transformer_mapper_forward.3} parent=19 // pred_fallthru
          _
        // Predicated region
        $region33: #{transformer_mapper_forward.3} parent=19 // pred_check
          %p422 = pneg %p160
        $region34: #{transformer_mapper_forward.3} parent=19 // pred_check_branch
          %424 = sbr.rel (%p422) target = $region36
        $region35: #{transformer_mapper_forward.3} parent=19 // pred_region
          %s425 = sand.u32 %s150, 1
          %s426 = scalar_lea.sflag [#allocation4], %s425
          %s427 = sand.u32 %s150, 1
          %s428 = smul.addr %s427, 64
          %s429 = scalar_lea.vmem [#allocation3], %s428
          %s431 = ssub.s32 1024, 1024
          %432 = vsyncadd %s426, %s431
          %s433 = smul.addr %s32, 16
          %s434 = smul.addr %s433, 64
          %s435 = scalar_lea.hbm %s4, %s434
          %s436 = sshll.u32 %s429, 4
          %s437 = int_to_ptr.vmem [resolvable:$true] %s436
          %442 = dma.hbm_to_vmem [thread:$0]  %s435, 1024, %s437, %s426, 64, 64, 4
        $region36: #{transformer_mapper_forward.3} parent=19 // pred_fallthru
          _
        // Predicated region
        $region37: #{transformer_mapper_forward.3} parent=19 // pred_check
          %p443 = pneg %p186
        $region38: #{transformer_mapper_forward.3} parent=19 // pred_check_branch
          %445 = sbr.rel (%p443) target = $region40
        $region39: #{transformer_mapper_forward.3} parent=19 // pred_region
          %p446 = scmp.lt.s32.totalorder %s32, 1
          %s447 = scalar_select %p446, %s32, 1
          %s448 = scalar_lea.vmem %s5, %s447
        $region40: #{transformer_mapper_forward.3} parent=19 // pred_fallthru
          _
        // Predicated region
        $region41: #{transformer_mapper_forward.3} parent=19 // pred_check
          %p449 = pneg %p212
        $region42: #{transformer_mapper_forward.3} parent=19 // pred_check_branch
          %451 = sbr.rel (%p449) target = $region44
        $region43: #{transformer_mapper_forward.3} parent=19 // pred_region
          %p452 = scmp.lt.s32.totalorder %s32, 1
          %s453 = scalar_select %p452, %s32, 1
          %s454 = scalar_lea.vmem %s6, %s453
        $region44: #{transformer_mapper_forward.3} parent=19 // pred_fallthru
          _
        // Predicated region
        $region45: #{transformer_mapper_forward.3} parent=19 // pred_check
          %p455 = pneg %p238
        $region46: #{transformer_mapper_forward.3} parent=19 // pred_check_branch
          %457 = sbr.rel (%p455) target = $region48
        $region47: #{transformer_mapper_forward.3} parent=19 // pred_region
          %p458 = scmp.lt.s32.totalorder %s32, 1
          %s459 = scalar_select %p458, %s32, 1
          %s460 = scalar_lea.vmem %s7, %s459
        $region48: #{transformer_mapper_forward.3} parent=19 // pred_fallthru
          _
        // Predicated region
        $region49: #{transformer_mapper_forward.3} parent=19 // pred_check
          %p461 = pneg %p264
        $region50: #{transformer_mapper_forward.3} parent=19 // pred_check_branch
          %463 = sbr.rel (%p461) target = $region52
        $region51: #{transformer_mapper_forward.3} parent=19 // pred_region
          %s464 = sand.u32 %s24, 1
          %s465 = scalar_lea.sflag [#allocation6], %s464
          %s466 = sand.u32 %s254, 1
          %s467 = smul.addr %s466, 128
          %s468 = scalar_lea.vmem [#allocation5], %s467
          %s470 = ssub.s32 2048, 2048
          %471 = vsyncadd %s465, %s470
          %s472 = smul.addr %s32, 32
          %s473 = smul.addr %s472, 64
          %s474 = scalar_lea.hbm %s8, %s473
          %s475 = sshll.u32 %s468, 4
          %s476 = int_to_ptr.vmem [resolvable:$true] %s475
          %481 = dma.hbm_to_vmem [thread:$0]  %s474, 2048, %s476, %s465, 128, 128, 8
        $region52: #{transformer_mapper_forward.3} parent=19 // pred_fallthru
          _
        // Predicated region
        $region53: #{transformer_mapper_forward.3} parent=19 // pred_check
          %p482 = pneg %p290
        $region54: #{transformer_mapper_forward.3} parent=19 // pred_check_branch
          %484 = sbr.rel (%p482) target = $region56
        $region55: #{transformer_mapper_forward.3} parent=19 // pred_region
          %p485 = scmp.lt.s32.totalorder %s32, 1
          %s486 = scalar_select %p485, %s32, 1
          %s487 = smul.addr %s486, 2
          %s488 = scalar_lea.vmem %s9, %s487
        $region56: #{transformer_mapper_forward.3} parent=19 // pred_fallthru
          _
        // Predicated region
        $region57: #{transformer_mapper_forward.3} parent=19 // pred_check
          %p489 = pneg %p316
        $region58: #{transformer_mapper_forward.3} parent=19 // pred_check_branch
          %491 = sbr.rel (%p489) target = $region60
        $region59: #{transformer_mapper_forward.3} parent=19 // pred_region
          %s492 = sand.u32 %s24, 1
          %s493 = scalar_lea.sflag [#allocation6], %s492
          %s494 = sand.u32 %s306, 1
          %s495 = smul.addr %s494, 128
          %s496 = scalar_lea.vmem [#allocation7], %s495
          %s498 = ssub.s32 2048, 2048
          %499 = vsyncadd %s493, %s498
          %s500 = smul.addr %s32, 32
          %s501 = smul.addr %s500, 64
          %s502 = scalar_lea.hbm %s10, %s501
          %s503 = sshll.u32 %s496, 4
          %s504 = int_to_ptr.vmem [resolvable:$true] %s503
          %509 = dma.hbm_to_vmem [thread:$0]  %s502, 2048, %s504, %s493, 64, 64, 4
        $region60: #{transformer_mapper_forward.3} parent=19 // pred_fallthru
          _
        // Predicated region
        $region61: #{transformer_mapper_forward.3} parent=19 // pred_check
          %p510 = pneg %p342
        $region62: #{transformer_mapper_forward.3} parent=19 // pred_check_branch
          %512 = sbr.rel (%p510) target = $region64
        $region63: #{transformer_mapper_forward.3} parent=19 // pred_region
          %p513 = scmp.lt.s32.totalorder %s32, 1
          %s514 = scalar_select %p513, %s32, 1
          %s515 = scalar_lea.vmem %s11, %s514
        $region64: #{transformer_mapper_forward.3} parent=19 // pred_fallthru
          _
      $region20: #{transformer_mapper_forward.3} parent=5 // pred_fallthru
        _
      %p516 = scmp.le.s32.totalorder 1, %s24
      %p517 = scmp.lt.s32.totalorder %s24, 3
      %p518 = pnand %p516, %p517
      %p519 = pneg %p518
      // Predicated region
      $region65: #{transformer_mapper_forward.3} parent=5 // pred_check
        _
      $region66: #{transformer_mapper_forward.3} parent=5 // pred_check_branch
        %521 = sbr.rel (%p518) target = $region68
      $region67: #{transformer_mapper_forward.3} parent=5 // pred_region
        %s522 = ssub.s32 %s24, 1
        %s523 = sand.u32 %s153, 1
        %s524 = scalar_lea.sflag [#allocation4], %s523
        %s525 = sand.u32 %s153, 1
        %s526 = smul.addr %s525, 64
        %s527 = scalar_lea.vmem [#allocation3], %s526
        // Predicated region
        $region69: #{transformer_mapper_forward.3} parent=67 // pred_check
          %p528 = pneg %p166
        $region70: #{transformer_mapper_forward.3} parent=67 // pred_check_branch
          %530 = sbr.rel (%p528) target = $region72
        $region71: #{transformer_mapper_forward.3} parent=67 // pred_region
          %531 = dma.done %s524, 1024
        $region72: #{transformer_mapper_forward.3} parent=67 // pred_fallthru
          _
        %s532 = sand.u32 %s29, 1
        %s533 = scalar_lea.sflag [#allocation6], %s532
        %s534 = sand.u32 %s257, 1
        %s535 = smul.addr %s534, 128
        %s536 = scalar_lea.vmem [#allocation5], %s535
        // Predicated region
        $region73: #{transformer_mapper_forward.3} parent=67 // pred_check
          %p537 = pneg %p270
        $region74: #{transformer_mapper_forward.3} parent=67 // pred_check_branch
          %539 = sbr.rel (%p537) target = $region76
        $region75: #{transformer_mapper_forward.3} parent=67 // pred_region
          %540 = dma.done %s533, 2048
        $region76: #{transformer_mapper_forward.3} parent=67 // pred_fallthru
          _
        %s541 = sand.u32 %s29, 1
        %s542 = scalar_lea.sflag [#allocation6], %s541
        %s543 = sand.u32 %s309, 1
        %s544 = smul.addr %s543, 128
        %s545 = scalar_lea.vmem [#allocation7], %s544
        // Predicated region
        $region77: #{transformer_mapper_forward.3} parent=67 // pred_check
          %p546 = pneg %p322
        $region78: #{transformer_mapper_forward.3} parent=67 // pred_check_branch
          %548 = sbr.rel (%p546) target = $region80
        $region79: #{transformer_mapper_forward.3} parent=67 // pred_region
          %549 = dma.done %s542, 2048
        $region80: #{transformer_mapper_forward.3} parent=67 // pred_fallthru
          _
        %s550 = smul.u32 4, %s33
        %p551 = scmp.lt.s32.totalorder %s550, 3
        %s552 = scalar_select %p551, %s550, 3
        %s553 = smul.addr %s552, 8
        %s554 = scalar_lea.vmem %s0, %s553
        %p555 = pneg %p62
        %p556 = pneg %p59
        %p557 = scmp.lt.s32.totalorder %s34, 1
        %s558 = scalar_select %p557, %s34, 1
        %s559 = scalar_lea.vmem %s1, %s558
        %p560 = pneg %p88
        %p561 = pneg %p85
        %p562 = scmp.lt.s32.totalorder %s34, 1
        %s563 = scalar_select %p562, %s34, 1
        %s564 = scalar_lea.vmem %s2, %s563
        %p565 = pneg %p114
        %p566 = pneg %p111
        %p567 = scmp.lt.s32.totalorder %s34, 1
        %s568 = scalar_select %p567, %s34, 1
        %s569 = smul.addr %s568, 48
        %s570 = smul.addr %s569, 4
        %s571 = scalar_lea.vmem %s3, %s570
        %p572 = pneg %p140
        %p573 = pneg %p137
        %s574 = sand.u32 %s153, 1
        %s575 = scalar_lea.sflag [#allocation4], %s574
        %s576 = sand.u32 %s153, 1
        %s577 = smul.addr %s576, 64
        %s578 = scalar_lea.vmem [#allocation3], %s577
        %p579 = pneg %p166
        %p580 = pneg %p163
        %p581 = scmp.lt.s32.totalorder %s34, 1
        %s582 = scalar_select %p581, %s34, 1
        %s583 = scalar_lea.vmem %s5, %s582
        %p584 = pneg %p192
        %p585 = pneg %p189
        %p586 = scmp.lt.s32.totalorder %s34, 1
        %s587 = scalar_select %p586, %s34, 1
        %s588 = scalar_lea.vmem %s6, %s587
        %p589 = pneg %p218
        %p590 = pneg %p215
        %p591 = scmp.lt.s32.totalorder %s34, 1
        %s592 = scalar_select %p591, %s34, 1
        %s593 = scalar_lea.vmem %s7, %s592
        %p594 = pneg %p244
        %p595 = pneg %p241
        %s596 = sand.u32 %s29, 1
        %s597 = scalar_lea.sflag [#allocation6], %s596
        %s598 = sand.u32 %s257, 1
        %s599 = smul.addr %s598, 128
        %s600 = scalar_lea.vmem [#allocation5], %s599
        %p601 = pneg %p270
        %p602 = pneg %p267
        %p603 = scmp.lt.s32.totalorder %s34, 1
        %s604 = scalar_select %p603, %s34, 1
        %s605 = smul.addr %s604, 2
        %s606 = scalar_lea.vmem %s9, %s605
        %p607 = pneg %p296
        %p608 = pneg %p293
        %s609 = sand.u32 %s29, 1
        %s610 = scalar_lea.sflag [#allocation6], %s609
        %s611 = sand.u32 %s309, 1
        %s612 = smul.addr %s611, 128
        %s613 = scalar_lea.vmem [#allocation7], %s612
        %p614 = pneg %p322
        %p615 = pneg %p319
        %p616 = scmp.lt.s32.totalorder %s34, 1
        %s617 = scalar_select %p616, %s34, 1
        %s618 = scalar_lea.vmem %s11, %s617
        %p619 = pneg %p348
        %p620 = pneg %p345
        %p621 = pneg %p374
        %p622 = pneg %p371
        %s623 = smul.u32 4, %s33
        %p624 = scmp.lt.s32.totalorder %s623, 3
        %s625 = scalar_select %p624, %s623, 3
        %s626 = smul.addr %s625, 8
        %s627 = scalar_lea.vmem %s12, %s626
        %s628 = smul.u32 4, %s33
        %p629 = scmp.lt.s32.totalorder %s628, 3
        %s630 = scalar_select %p629, %s628, 3
        %s631 = smul.addr %s630, 8
        %s632 = scalar_lea.vmem %s0, %s631
        %s633 = smul.u32 4, %s33
        %p634 = scmp.lt.s32.totalorder %s34, 1
        %s635 = scalar_select %p634, %s34, 1
        %s636 = scalar_lea.vmem %s1, %s635
        %p637 = scmp.lt.s32.totalorder %s34, 1
        %s638 = scalar_select %p637, %s34, 1
        %s639 = scalar_lea.vmem %s2, %s638
        %p640 = scmp.lt.s32.totalorder %s34, 1
        %s641 = scalar_select %p640, %s34, 1
        %s642 = smul.addr %s641, 48
        %s643 = smul.addr %s642, 4
        %s644 = scalar_lea.vmem %s3, %s643
        %p645 = scmp.lt.s32.totalorder %s34, 1
        %s646 = scalar_select %p645, %s34, 1
        %s647 = scalar_lea.vmem %s5, %s646
        %p648 = scmp.lt.s32.totalorder %s34, 1
        %s649 = scalar_select %p648, %s34, 1
        %s650 = scalar_lea.vmem %s6, %s649
        %p651 = scmp.lt.s32.totalorder %s34, 1
        %s652 = scalar_select %p651, %s34, 1
        %s653 = scalar_lea.vmem %s7, %s652
        %p654 = scmp.lt.s32.totalorder %s34, 1
        %s655 = scalar_select %p654, %s34, 1
        %s656 = smul.addr %s655, 2
        %s657 = scalar_lea.vmem %s9, %s656
        %p658 = scmp.lt.s32.totalorder %s34, 1
        %s659 = scalar_select %p658, %s34, 1
        %s660 = scalar_lea.vmem %s11, %s659
        %s661 = smul.u32 4, %s33
        %p662 = scmp.lt.s32.totalorder %s661, 3
        %s663 = scalar_select %p662, %s661, 3
        %s664 = smul.addr %s663, 8
        %s665 = scalar_lea.vmem %s12, %s664
        %s666 = smul.u32 4, %s33
        %p668 = scmp.eq.s32.totalorder %s34, 0
        // Predicated region
        $region81: #{transformer_mapper_forward.3} parent=67 // pred_check
          %p669 = pneg %p668
        $region82: #{transformer_mapper_forward.3} parent=67 // pred_check_branch
          %671 = sbr.rel (%p669) target = $region84
        $region83: #{transformer_mapper_forward.3} parent=67 // pred_region
          %v672 = vld [vmem:[%s632] sm:$0xff]
          %v673 = vld [vmem:[%s632 + $0x8] sm:$0xff]
          %v674 = vld [vmem:[%s632 + $0x10] sm:$0xff]
          %v675 = vld [vmem:[%s632 + $0x18] sm:$0xff]
          %676 = vst [vmem:[#allocation2] sm:$0xff] %v672
          %677 = vst [vmem:[#allocation2 + $0x8] sm:$0xff] %v673
          %678 = vst [vmem:[#allocation2 + $0x10] sm:$0xff] %v674
          %679 = vst [vmem:[#allocation2 + $0x18] sm:$0xff] %v675
        $region84: #{transformer_mapper_forward.3} parent=67 // pred_fallthru
          _
        %v680 = vld [vmem:[#allocation2] sm:$0xff]
        %v681 = vld [vmem:[#allocation2 + $0x8] sm:$0xff]
        %v682 = vld [vmem:[#allocation2 + $0x10] sm:$0xff]
        %v683 = vld [vmem:[#allocation2 + $0x18] sm:$0xff]
        %v684 = vld [vmem:[%s636] sm:$0x1]
        %v685 = vld [vmem:[%s639] sm:$0x1]
        %686 = vadd.xlane.f32.xlu0 %v680
        %v687 = vpop.xlane.xlu0 %686
        %688 = vadd.xlane.f32.xlu0 %v681
        %v689 = vpop.xlane.xlu0 %688
        %690 = vadd.xlane.f32.xlu0 %v682
        %v691 = vpop.xlane.xlu0 %690
        %692 = vadd.xlane.f32.xlu0 %v683
        %v693 = vpop.xlane.xlu0 %692
        %v694 = vrcp.pop 128.0
        %v695 = vmul.f32 %v687, %v694
        %v696 = vmul.f32 %v689, %v694
        %v697 = vmul.f32 %v691, %v694
        %v698 = vmul.f32 %v693, %v694
        %v699 = vsub.f32 %v680, %v695
        %v700 = vsub.f32 %v681, %v696
        %v701 = vsub.f32 %v682, %v697
        %v702 = vsub.f32 %v683, %v698
        %v703 = vmul.f32 %v699, %v699
        %v704 = vmul.f32 %v700, %v700
        %v705 = vmul.f32 %v701, %v701
        %v706 = vmul.f32 %v702, %v702
        %707 = vadd.xlane.f32.xlu0 %v703
        %v708 = vpop.xlane.xlu0 %707
        %709 = vadd.xlane.f32.xlu0 %v704
        %v710 = vpop.xlane.xlu0 %709
        %711 = vadd.xlane.f32.xlu0 %v705
        %v712 = vpop.xlane.xlu0 %711
        %713 = vadd.xlane.f32.xlu0 %v706
        %v714 = vpop.xlane.xlu0 %713
        %v715 = vmul.f32 %v708, %v694
        %v716 = vmul.f32 %v710, %v694
        %v717 = vmul.f32 %v712, %v694
        %v718 = vmul.f32 %v714, %v694
        %v719 = vadd.f32 %v715, 1e-05
        %v720 = vadd.f32 %v716, 1e-05
        %v721 = vadd.f32 %v717, 1e-05
        %v722 = vadd.f32 %v718, 1e-05
        %v723 = vrsqrt.pop %v719
        %v724 = vrsqrt.pop %v720
        %v725 = vrsqrt.pop %v721
        %v726 = vrsqrt.pop %v722
        %v727 = vmul.f32 %v699, %v723
        %v728 = vmul.f32 %v700, %v724
        %v729 = vmul.f32 %v701, %v725
        %v730 = vmul.f32 %v702, %v726
        %v732 = vlaneseq
        %v733 = vshrl.u32 %v732, 7
        %v734 = vsub.s32 0, %v733
        %v735 = vrot.slane %v684, %v734
        %v737 = vmul.f32 %v727, %v735
        %v738 = vmul.f32 %v728, %v735
        %v739 = vmul.f32 %v729, %v735
        %v740 = vmul.f32 %v730, %v735
        %v742 = vlaneseq
        %v743 = vshrl.u32 %v742, 7
        %v744 = vsub.s32 0, %v743
        %v745 = vrot.slane %v685, %v744
        %v747 = vadd.f32 %v737, %v745
        %v748 = vadd.f32 %v738, %v745
        %v749 = vadd.f32 %v739, %v745
        %v750 = vadd.f32 %v740, %v745
        %v751 = vpack.c.bf16 %v748, %v747
        %v752 = vpack.c.bf16 %v750, %v749
        %v753 = vld [vmem:[%s644] sm:$0xff]
        %v754 = vld [vmem:[%s644 + $0x8] sm:$0xf]
        %v755 = vld [vmem:[%s644 + $0xc] sm:$0xff]
        %v756 = vld [vmem:[%s644 + $0x14] sm:$0xf]
        %v757 = vld [vmem:[%s644 + $0x18] sm:$0xff]
        %v758 = vld [vmem:[%s644 + $0x20] sm:$0xf]
        %v759 = vld [vmem:[%s644 + $0x24] sm:$0xff]
        %v760 = vld [vmem:[%s644 + $0x2c] sm:$0xf]
        %v761 = vld [vmem:[%s644 + $0x30] sm:$0xff]
        %v762 = vld [vmem:[%s644 + $0x38] sm:$0xf]
        %v763 = vld [vmem:[%s644 + $0x3c] sm:$0xff]
        %v764 = vld [vmem:[%s644 + $0x44] sm:$0xf]
        %v765 = vld [vmem:[%s644 + $0x48] sm:$0xff]
        %v766 = vld [vmem:[%s644 + $0x50] sm:$0xf]
        %v767 = vld [vmem:[%s644 + $0x54] sm:$0xff]
        %v768 = vld [vmem:[%s644 + $0x5c] sm:$0xf]
        %v769 = vld [vmem:[%s644 + $0x60] sm:$0xff]
        %v770 = vld [vmem:[%s644 + $0x68] sm:$0xf]
        %v771 = vld [vmem:[%s644 + $0x6c] sm:$0xff]
        %v772 = vld [vmem:[%s644 + $0x74] sm:$0xf]
        %v773 = vld [vmem:[%s644 + $0x78] sm:$0xff]
        %v774 = vld [vmem:[%s644 + $0x80] sm:$0xf]
        %v775 = vld [vmem:[%s644 + $0x84] sm:$0xff]
        %v776 = vld [vmem:[%s644 + $0x8c] sm:$0xf]
        %v777 = vld [vmem:[%s644 + $0x90] sm:$0xff]
        %v778 = vld [vmem:[%s644 + $0x98] sm:$0xf]
        %v779 = vld [vmem:[%s644 + $0x9c] sm:$0xff]
        %v780 = vld [vmem:[%s644 + $0xa4] sm:$0xf]
        %v781 = vld [vmem:[%s644 + $0xa8] sm:$0xff]
        %v782 = vld [vmem:[%s644 + $0xb0] sm:$0xf]
        %v783 = vld [vmem:[%s644 + $0xb4] sm:$0xff]
        %v784 = vld [vmem:[%s644 + $0xbc] sm:$0xf]
        %v817 = vunpack.c.l.b16 %v753
        %v818 = vunpack.c.h.b16 %v753
        %v819 = vunpack.c.l.b16 %v754
        %v820 = vunpack.c.l.b16 %v755
        %v821 = vunpack.c.h.b16 %v755
        %v822 = vunpack.c.l.b16 %v756
        %v823 = vunpack.c.l.b16 %v757
        %v824 = vunpack.c.h.b16 %v757
        %v825 = vunpack.c.l.b16 %v758
        %v826 = vunpack.c.l.b16 %v759
        %v827 = vunpack.c.h.b16 %v759
        %v828 = vunpack.c.l.b16 %v760
        %v829 = vunpack.c.l.b16 %v761
        %v830 = vunpack.c.h.b16 %v761
        %v831 = vunpack.c.l.b16 %v762
        %v832 = vunpack.c.l.b16 %v763
        %v833 = vunpack.c.h.b16 %v763
        %v834 = vunpack.c.l.b16 %v764
        %v835 = vunpack.c.l.b16 %v765
        %v836 = vunpack.c.h.b16 %v765
        %v837 = vunpack.c.l.b16 %v766
        %v838 = vunpack.c.l.b16 %v767
        %v839 = vunpack.c.h.b16 %v767
        %v840 = vunpack.c.l.b16 %v768
        %v841 = vunpack.c.l.b16 %v769
        %v842 = vunpack.c.h.b16 %v769
        %v843 = vunpack.c.l.b16 %v770
        %v844 = vunpack.c.l.b16 %v771
        %v845 = vunpack.c.h.b16 %v771
        %v846 = vunpack.c.l.b16 %v772
        %v847 = vunpack.c.l.b16 %v773
        %v848 = vunpack.c.h.b16 %v773
        %v849 = vunpack.c.l.b16 %v774
        %v850 = vunpack.c.l.b16 %v775
        %v851 = vunpack.c.h.b16 %v775
        %v852 = vunpack.c.l.b16 %v776
        %v853 = vunpack.c.l.b16 %v777
        %v854 = vunpack.c.h.b16 %v777
        %v855 = vunpack.c.l.b16 %v778
        %v856 = vunpack.c.l.b16 %v779
        %v857 = vunpack.c.h.b16 %v779
        %v858 = vunpack.c.l.b16 %v780
        %v859 = vunpack.c.l.b16 %v781
        %v860 = vunpack.c.h.b16 %v781
        %v861 = vunpack.c.l.b16 %v782
        %v862 = vunpack.c.l.b16 %v783
        %v863 = vunpack.c.h.b16 %v783
        %v864 = vunpack.c.l.b16 %v784
        %v865 = vpack.c.b16 %v820, %v817
        %v866 = vpack.c.b16 %v821, %v818
        %v867 = vpack.c.b16 %v822, %v819
        %v868 = vpack.c.b16 %v826, %v823
        %v869 = vpack.c.b16 %v827, %v824
        %v870 = vpack.c.b16 %v828, %v825
        %v871 = vpack.c.b16 %v832, %v829
        %v872 = vpack.c.b16 %v833, %v830
        %v873 = vpack.c.b16 %v834, %v831
        %v874 = vpack.c.b16 %v838, %v835
        %v875 = vpack.c.b16 %v839, %v836
        %v876 = vpack.c.b16 %v840, %v837
        %v877 = vpack.c.b16 %v844, %v841
        %v878 = vpack.c.b16 %v845, %v842
        %v879 = vpack.c.b16 %v846, %v843
        %v880 = vpack.c.b16 %v850, %v847
        %v881 = vpack.c.b16 %v851, %v848
        %v882 = vpack.c.b16 %v852, %v849
        %v883 = vpack.c.b16 %v856, %v853
        %v884 = vpack.c.b16 %v857, %v854
        %v885 = vpack.c.b16 %v858, %v855
        %v886 = vpack.c.b16 %v862, %v859
        %v887 = vpack.c.b16 %v863, %v860
        %v888 = vpack.c.b16 %v864, %v861
        %913 = vmatprep.subr.bf16.mxu0 %v866
        %914 = vmatpush1.bf16.msra.mxu0 %v865
        %915 = vmatprep.subr.bf16.mxu0 %v869
        %916 = vmatpush1.bf16.msra.mxu0 %v868
        %917 = vmatprep.subr.bf16.mxu0 %v872
        %918 = vmatpush1.bf16.msra.mxu0 %v871
        %919 = vmatprep.subr.bf16.mxu0 %v875
        %920 = vmatpush1.bf16.msra.mxu0 %v874
        %921 = vmatprep.subr.bf16.mxu0 %v878
        %922 = vmatpush1.bf16.msra.mxu0 %v877
        %923 = vmatprep.subr.bf16.mxu0 %v881
        %924 = vmatpush1.bf16.msra.mxu0 %v880
        %925 = vmatprep.subr.bf16.mxu0 %v884
        %926 = vmatpush1.bf16.msra.mxu0 %v883
        %927 = vmatprep.subr.bf16.mxu0 %v887
        %928 = vmatpush1.bf16.msra.mxu0 %v886
        %929 = vmatprep.subr.bf16.mxu0 0
        %930 = vmatpush1.bf16.msra.mxu0 0
        %931 = vmatprep.subr.bf16.mxu0 0
        %932 = vmatpush1.bf16.msra.mxu0 0
        %933 = vmatprep.subr.bf16.mxu0 0
        %934 = vmatpush1.bf16.msra.mxu0 0
        %935 = vmatprep.subr.bf16.mxu0 0
        %936 = vmatpush1.bf16.msra.mxu0 0
        %937 = vmatprep.subr.bf16.mxu0 0
        %938 = vmatpush1.bf16.msra.mxu0 0
        %939 = vmatprep.subr.bf16.mxu0 0
        %940 = vmatpush1.bf16.msra.mxu0 0
        %941 = vmatprep.subr.bf16.mxu0 0
        %942 = vmatpush1.bf16.msra.mxu0 0
        %943 = vmatprep.subr.bf16.mxu0 0
        %944 = vmatpush1.bf16.msra.mxu0 0
        %945 = vmatprep.mubr.bf16.mxu0 0
        %946 = vmatmul.mubr.bf16.gmra.mrb[0].mxu0 %v751
        %v947 = vpop.f32.mrb[0].mxu0
        %v948 = vadd.f32 0.0, %v947
        %v949 = vpop.f32.mrb[0].mxu0
        %v950 = vadd.f32 0.0, %v949
        %v951 = vpop.f32.mrb[0].mxu0
        %v952 = vadd.f32 0.0, %v951
        %v953 = vpop.f32.mrb[0].mxu0
        %v954 = vadd.f32 0.0, %v953
        %955 = vmatprep.mubr.bf16.mxu0 0
        %956 = vmatmul.mubr.bf16.gmra.mrb[0].mxu0 %v752
        %v957 = vpop.f32.mrb[0].mxu0
        %v958 = vadd.f32 0.0, %v957
        %v959 = vpop.f32.mrb[0].mxu0
        %v960 = vadd.f32 0.0, %v959
        %v961 = vpop.f32.mrb[0].mxu0
        %v962 = vadd.f32 0.0, %v961
        %v963 = vpop.f32.mrb[0].mxu0
        %v964 = vadd.f32 0.0, %v963
        %965 = vdwg.mxu0
        %966 = vmatprep.subr.bf16.mxu0 0
        %967 = vmatpush1.bf16.msra.mxu0 %v867
        %968 = vmatprep.subr.bf16.mxu0 0
        %969 = vmatpush1.bf16.msra.mxu0 %v870
        %970 = vmatprep.subr.bf16.mxu0 0
        %971 = vmatpush1.bf16.msra.mxu0 %v873
        %972 = vmatprep.subr.bf16.mxu0 0
        %973 = vmatpush1.bf16.msra.mxu0 %v876
        %974 = vmatprep.subr.bf16.mxu0 0
        %975 = vmatpush1.bf16.msra.mxu0 %v879
        %976 = vmatprep.subr.bf16.mxu0 0
        %977 = vmatpush1.bf16.msra.mxu0 %v882
        %978 = vmatprep.subr.bf16.mxu0 0
        %979 = vmatpush1.bf16.msra.mxu0 %v885
        %980 = vmatprep.subr.bf16.mxu0 0
        %981 = vmatpush1.bf16.msra.mxu0 %v888
        %982 = vmatprep.subr.bf16.mxu0 0
        %983 = vmatpush1.bf16.msra.mxu0 0
        %984 = vmatprep.subr.bf16.mxu0 0
        %985 = vmatpush1.bf16.msra.mxu0 0
        %986 = vmatprep.subr.bf16.mxu0 0
        %987 = vmatpush1.bf16.msra.mxu0 0
        %988 = vmatprep.subr.bf16.mxu0 0
        %989 = vmatpush1.bf16.msra.mxu0 0
        %990 = vmatprep.subr.bf16.mxu0 0
        %991 = vmatpush1.bf16.msra.mxu0 0
        %992 = vmatprep.subr.bf16.mxu0 0
        %993 = vmatpush1.bf16.msra.mxu0 0
        %994 = vmatprep.subr.bf16.mxu0 0
        %995 = vmatpush1.bf16.msra.mxu0 0
        %996 = vmatprep.subr.bf16.mxu0 0
        %997 = vmatpush1.bf16.msra.mxu0 0
        %998 = vmatprep.mubr.bf16.mxu0 0
        %999 = vmatmul.mubr.bf16.gmra.mrb[0].mxu0 %v751
        %v1000 = vpop.f32.mrb[0].mxu0
        %v1001 = vadd.f32 0.0, %v1000
        %v1002 = vpop.f32.mrb[0].mxu0
        %v1003 = vpop.f32.mrb[0].mxu0
        %v1004 = vadd.f32 0.0, %v1003
        %v1005 = vpop.f32.mrb[0].mxu0
        %1006 = vmatprep.mubr.bf16.mxu0 0
        %1007 = vmatmul.mubr.bf16.gmra.mrb[0].mxu0 %v752
        %v1008 = vpop.f32.mrb[0].mxu0
        %v1009 = vadd.f32 0.0, %v1008
        %v1010 = vpop.f32.mrb[0].mxu0
        %v1011 = vpop.f32.mrb[0].mxu0
        %v1012 = vadd.f32 0.0, %v1011
        %v1013 = vpop.f32.mrb[0].mxu0
        %1014 = vdwg.mxu0
        %v1015 = vmul.f32 %v948, 0.25
        %v1016 = vmul.f32 %v952, 0.25
        %v1017 = vmul.f32 %v958, 0.25
        %v1018 = vmul.f32 %v962, 0.25
        %1023 = vrot.lane.b32.xlu0 %v1015, 112
        %v1024 = vpop.permute.xlu0 %1023
        %1025 = vrot.lane.b32.xlu0 %v1016, 112
        %v1026 = vpop.permute.xlu0 %1025
        %1027 = vrot.lane.b32.xlu0 %v1017, 112
        %v1028 = vpop.permute.xlu0 %1027
        %1029 = vrot.lane.b32.xlu0 %v1018, 112
        %v1030 = vpop.permute.xlu0 %1029
        %1035 = vrot.lane.b32.xlu0 %v1015, 96
        %v1036 = vpop.permute.xlu0 %1035
        %1037 = vrot.lane.b32.xlu0 %v1016, 96
        %v1038 = vpop.permute.xlu0 %1037
        %1039 = vrot.lane.b32.xlu0 %v1017, 96
        %v1040 = vpop.permute.xlu0 %1039
        %1041 = vrot.lane.b32.xlu0 %v1018, 96
        %v1042 = vpop.permute.xlu0 %1041
        %1047 = vrot.lane.b32.xlu0 %v1015, 80
        %v1048 = vpop.permute.xlu0 %1047
        %1049 = vrot.lane.b32.xlu0 %v1016, 80
        %v1050 = vpop.permute.xlu0 %1049
        %1051 = vrot.lane.b32.xlu0 %v1017, 80
        %v1052 = vpop.permute.xlu0 %1051
        %1053 = vrot.lane.b32.xlu0 %v1018, 80
        %v1054 = vpop.permute.xlu0 %1053
        %1059 = vrot.lane.b32.xlu0 %v1015, 64
        %v1060 = vpop.permute.xlu0 %1059
        %1061 = vrot.lane.b32.xlu0 %v1016, 64
        %v1062 = vpop.permute.xlu0 %1061
        %1063 = vrot.lane.b32.xlu0 %v1017, 64
        %v1064 = vpop.permute.xlu0 %1063
        %1065 = vrot.lane.b32.xlu0 %v1018, 64
        %v1066 = vpop.permute.xlu0 %1065
        %1071 = vrot.lane.b32.xlu0 %v1015, 48
        %v1072 = vpop.permute.xlu0 %1071
        %1073 = vrot.lane.b32.xlu0 %v1016, 48
        %v1074 = vpop.permute.xlu0 %1073
        %1075 = vrot.lane.b32.xlu0 %v1017, 48
        %v1076 = vpop.permute.xlu0 %1075
        %1077 = vrot.lane.b32.xlu0 %v1018, 48
        %v1078 = vpop.permute.xlu0 %1077
        %1083 = vrot.lane.b32.xlu0 %v1015, 32
        %v1084 = vpop.permute.xlu0 %1083
        %1085 = vrot.lane.b32.xlu0 %v1016, 32
        %v1086 = vpop.permute.xlu0 %1085
        %1087 = vrot.lane.b32.xlu0 %v1017, 32
        %v1088 = vpop.permute.xlu0 %1087
        %1089 = vrot.lane.b32.xlu0 %v1018, 32
        %v1090 = vpop.permute.xlu0 %1089
        %1095 = vrot.lane.b32.xlu0 %v1015, 16
        %v1096 = vpop.permute.xlu0 %1095
        %1097 = vrot.lane.b32.xlu0 %v1016, 16
        %v1098 = vpop.permute.xlu0 %1097
        %1099 = vrot.lane.b32.xlu0 %v1017, 16
        %v1100 = vpop.permute.xlu0 %1099
        %1101 = vrot.lane.b32.xlu0 %v1018, 16
        %v1102 = vpop.permute.xlu0 %1101
        %v1107 = vcombine.low %v1015, %v1036
        %v1108 = vcombine.high %v1015, %v1036
        %v1110 = vunpack.c.l.s4 1983009808
        %v1111 = vunpack.c.0.s8 %v1110
        %v1112 = vlaneseq
        %v1113 = vshrl.u32 %v1112, 7
        %v1114 = vsub.s32 %v1111, %v1113
        %v1115 = vrot.slane %v1107, %v1114
        %v1117 = vunpack.c.l.s4 1983009808
        %v1118 = vunpack.c.0.s8 %v1117
        %v1119 = vlaneseq
        %v1120 = vshrl.u32 %v1119, 7
        %v1121 = vsub.s32 %v1118, %v1120
        %v1122 = vrot.slane %v1108, %v1121
        %v1123 = vcombine.low %v1024, %v1048
        %v1124 = vcombine.high %v1024, %v1048
        %v1126 = vunpack.c.l.s4 1983009808
        %v1127 = vunpack.c.0.s8 %v1126
        %v1128 = vlaneseq
        %v1129 = vshrl.u32 %v1128, 7
        %v1130 = vsub.s32 %v1127, %v1129
        %v1131 = vrot.slane %v1123, %v1130
        %v1133 = vunpack.c.l.s4 1983009808
        %v1134 = vunpack.c.0.s8 %v1133
        %v1135 = vlaneseq
        %v1136 = vshrl.u32 %v1135, 7
        %v1137 = vsub.s32 %v1134, %v1136
        %v1138 = vrot.slane %v1124, %v1137
        %v1139 = vcombine.low %v1060, %v1084
        %v1140 = vcombine.high %v1060, %v1084
        %v1142 = vunpack.c.l.s4 1983009808
        %v1143 = vunpack.c.0.s8 %v1142
        %v1144 = vlaneseq
        %v1145 = vshrl.u32 %v1144, 7
        %v1146 = vsub.s32 %v1143, %v1145
        %v1147 = vrot.slane %v1139, %v1146
        %v1149 = vunpack.c.l.s4 1983009808
        %v1150 = vunpack.c.0.s8 %v1149
        %v1151 = vlaneseq
        %v1152 = vshrl.u32 %v1151, 7
        %v1153 = vsub.s32 %v1150, %v1152
        %v1154 = vrot.slane %v1140, %v1153
        %v1155 = vcombine.low %v1072, %v1096
        %v1156 = vcombine.high %v1072, %v1096
        %v1158 = vunpack.c.l.s4 1983009808
        %v1159 = vunpack.c.0.s8 %v1158
        %v1160 = vlaneseq
        %v1161 = vshrl.u32 %v1160, 7
        %v1162 = vsub.s32 %v1159, %v1161
        %v1163 = vrot.slane %v1155, %v1162
        %v1165 = vunpack.c.l.s4 1983009808
        %v1166 = vunpack.c.0.s8 %v1165
        %v1167 = vlaneseq
        %v1168 = vshrl.u32 %v1167, 7
        %v1169 = vsub.s32 %v1166, %v1168
        %v1170 = vrot.slane %v1156, %v1169
        %v1171 = vcombine.low %v1115, %v1131
        %v1172 = vcombine.high %v1115, %v1131
        %v1174 = vunpack.c.l.s4 1934713408
        %v1175 = vunpack.c.0.s8 %v1174
        %v1176 = vlaneseq
        %v1177 = vshrl.u32 %v1176, 7
        %v1178 = vsub.s32 %v1175, %v1177
        %v1179 = vrot.slane %v1171, %v1178
        %v1181 = vunpack.c.l.s4 1934713408
        %v1182 = vunpack.c.0.s8 %v1181
        %v1183 = vlaneseq
        %v1184 = vshrl.u32 %v1183, 7
        %v1185 = vsub.s32 %v1182, %v1184
        %v1186 = vrot.slane %v1172, %v1185
        %v1187 = vcombine.low %v1122, %v1138
        %v1188 = vcombine.high %v1122, %v1138
        %v1190 = vunpack.c.l.s4 1934713408
        %v1191 = vunpack.c.0.s8 %v1190
        %v1192 = vlaneseq
        %v1193 = vshrl.u32 %v1192, 7
        %v1194 = vsub.s32 %v1191, %v1193
        %v1195 = vrot.slane %v1187, %v1194
        %v1197 = vunpack.c.l.s4 1934713408
        %v1198 = vunpack.c.0.s8 %v1197
        %v1199 = vlaneseq
        %v1200 = vshrl.u32 %v1199, 7
        %v1201 = vsub.s32 %v1198, %v1200
        %v1202 = vrot.slane %v1188, %v1201
        %v1203 = vcombine.low %v1147, %v1163
        %v1204 = vcombine.high %v1147, %v1163
        %v1206 = vunpack.c.l.s4 1934713408
        %v1207 = vunpack.c.0.s8 %v1206
        %v1208 = vlaneseq
        %v1209 = vshrl.u32 %v1208, 7
        %v1210 = vsub.s32 %v1207, %v1209
        %v1211 = vrot.slane %v1203, %v1210
        %v1213 = vunpack.c.l.s4 1934713408
        %v1214 = vunpack.c.0.s8 %v1213
        %v1215 = vlaneseq
        %v1216 = vshrl.u32 %v1215, 7
        %v1217 = vsub.s32 %v1214, %v1216
        %v1218 = vrot.slane %v1204, %v1217
        %v1219 = vcombine.low %v1154, %v1170
        %v1220 = vcombine.high %v1154, %v1170
        %v1222 = vunpack.c.l.s4 1934713408
        %v1223 = vunpack.c.0.s8 %v1222
        %v1224 = vlaneseq
        %v1225 = vshrl.u32 %v1224, 7
        %v1226 = vsub.s32 %v1223, %v1225
        %v1227 = vrot.slane %v1219, %v1226
        %v1229 = vunpack.c.l.s4 1934713408
        %v1230 = vunpack.c.0.s8 %v1229
        %v1231 = vlaneseq
        %v1232 = vshrl.u32 %v1231, 7
        %v1233 = vsub.s32 %v1230, %v1232
        %v1234 = vrot.slane %v1220, %v1233
        %v1235 = vcombine.low %v1179, %v1211
        %v1236 = vcombine.high %v1179, %v1211
        %v1237 = vcombine.low %v1186, %v1218
        %v1238 = vcombine.high %v1186, %v1218
        %v1239 = vcombine.low %v1195, %v1227
        %v1240 = vcombine.high %v1195, %v1227
        %v1241 = vcombine.low %v1202, %v1234
        %v1242 = vcombine.high %v1202, %v1234
        %v1243 = vcombine.low %v1016, %v1038
        %v1244 = vcombine.high %v1016, %v1038
        %v1246 = vunpack.c.l.s4 1983009808
        %v1247 = vunpack.c.0.s8 %v1246
        %v1248 = vlaneseq
        %v1249 = vshrl.u32 %v1248, 7
        %v1250 = vsub.s32 %v1247, %v1249
        %v1251 = vrot.slane %v1243, %v1250
        %v1253 = vunpack.c.l.s4 1983009808
        %v1254 = vunpack.c.0.s8 %v1253
        %v1255 = vlaneseq
        %v1256 = vshrl.u32 %v1255, 7
        %v1257 = vsub.s32 %v1254, %v1256
        %v1258 = vrot.slane %v1244, %v1257
        %v1259 = vcombine.low %v1026, %v1050
        %v1260 = vcombine.high %v1026, %v1050
        %v1262 = vunpack.c.l.s4 1983009808
        %v1263 = vunpack.c.0.s8 %v1262
        %v1264 = vlaneseq
        %v1265 = vshrl.u32 %v1264, 7
        %v1266 = vsub.s32 %v1263, %v1265
        %v1267 = vrot.slane %v1259, %v1266
        %v1269 = vunpack.c.l.s4 1983009808
        %v1270 = vunpack.c.0.s8 %v1269
        %v1271 = vlaneseq
        %v1272 = vshrl.u32 %v1271, 7
        %v1273 = vsub.s32 %v1270, %v1272
        %v1274 = vrot.slane %v1260, %v1273
        %v1275 = vcombine.low %v1062, %v1086
        %v1276 = vcombine.high %v1062, %v1086
        %v1278 = vunpack.c.l.s4 1983009808
        %v1279 = vunpack.c.0.s8 %v1278
        %v1280 = vlaneseq
        %v1281 = vshrl.u32 %v1280, 7
        %v1282 = vsub.s32 %v1279, %v1281
        %v1283 = vrot.slane %v1275, %v1282
        %v1285 = vunpack.c.l.s4 1983009808
        %v1286 = vunpack.c.0.s8 %v1285
        %v1287 = vlaneseq
        %v1288 = vshrl.u32 %v1287, 7
        %v1289 = vsub.s32 %v1286, %v1288
        %v1290 = vrot.slane %v1276, %v1289
        %v1291 = vcombine.low %v1074, %v1098
        %v1292 = vcombine.high %v1074, %v1098
        %v1294 = vunpack.c.l.s4 1983009808
        %v1295 = vunpack.c.0.s8 %v1294
        %v1296 = vlaneseq
        %v1297 = vshrl.u32 %v1296, 7
        %v1298 = vsub.s32 %v1295, %v1297
        %v1299 = vrot.slane %v1291, %v1298
        %v1301 = vunpack.c.l.s4 1983009808
        %v1302 = vunpack.c.0.s8 %v1301
        %v1303 = vlaneseq
        %v1304 = vshrl.u32 %v1303, 7
        %v1305 = vsub.s32 %v1302, %v1304
        %v1306 = vrot.slane %v1292, %v1305
        %v1307 = vcombine.low %v1251, %v1267
        %v1308 = vcombine.high %v1251, %v1267
        %v1310 = vunpack.c.l.s4 1934713408
        %v1311 = vunpack.c.0.s8 %v1310
        %v1312 = vlaneseq
        %v1313 = vshrl.u32 %v1312, 7
        %v1314 = vsub.s32 %v1311, %v1313
        %v1315 = vrot.slane %v1307, %v1314
        %v1317 = vunpack.c.l.s4 1934713408
        %v1318 = vunpack.c.0.s8 %v1317
        %v1319 = vlaneseq
        %v1320 = vshrl.u32 %v1319, 7
        %v1321 = vsub.s32 %v1318, %v1320
        %v1322 = vrot.slane %v1308, %v1321
        %v1323 = vcombine.low %v1258, %v1274
        %v1324 = vcombine.high %v1258, %v1274
        %v1326 = vunpack.c.l.s4 1934713408
        %v1327 = vunpack.c.0.s8 %v1326
        %v1328 = vlaneseq
        %v1329 = vshrl.u32 %v1328, 7
        %v1330 = vsub.s32 %v1327, %v1329
        %v1331 = vrot.slane %v1323, %v1330
        %v1333 = vunpack.c.l.s4 1934713408
        %v1334 = vunpack.c.0.s8 %v1333
        %v1335 = vlaneseq
        %v1336 = vshrl.u32 %v1335, 7
        %v1337 = vsub.s32 %v1334, %v1336
        %v1338 = vrot.slane %v1324, %v1337
        %v1339 = vcombine.low %v1283, %v1299
        %v1340 = vcombine.high %v1283, %v1299
        %v1342 = vunpack.c.l.s4 1934713408
        %v1343 = vunpack.c.0.s8 %v1342
        %v1344 = vlaneseq
        %v1345 = vshrl.u32 %v1344, 7
        %v1346 = vsub.s32 %v1343, %v1345
        %v1347 = vrot.slane %v1339, %v1346
        %v1349 = vunpack.c.l.s4 1934713408
        %v1350 = vunpack.c.0.s8 %v1349
        %v1351 = vlaneseq
        %v1352 = vshrl.u32 %v1351, 7
        %v1353 = vsub.s32 %v1350, %v1352
        %v1354 = vrot.slane %v1340, %v1353
        %v1355 = vcombine.low %v1290, %v1306
        %v1356 = vcombine.high %v1290, %v1306
        %v1358 = vunpack.c.l.s4 1934713408
        %v1359 = vunpack.c.0.s8 %v1358
        %v1360 = vlaneseq
        %v1361 = vshrl.u32 %v1360, 7
        %v1362 = vsub.s32 %v1359, %v1361
        %v1363 = vrot.slane %v1355, %v1362
        %v1365 = vunpack.c.l.s4 1934713408
        %v1366 = vunpack.c.0.s8 %v1365
        %v1367 = vlaneseq
        %v1368 = vshrl.u32 %v1367, 7
        %v1369 = vsub.s32 %v1366, %v1368
        %v1370 = vrot.slane %v1356, %v1369
        %v1371 = vcombine.low %v1315, %v1347
        %v1372 = vcombine.high %v1315, %v1347
        %v1373 = vcombine.low %v1322, %v1354
        %v1374 = vcombine.high %v1322, %v1354
        %v1375 = vcombine.low %v1331, %v1363
        %v1376 = vcombine.high %v1331, %v1363
        %v1377 = vcombine.low %v1338, %v1370
        %v1378 = vcombine.high %v1338, %v1370
        %v1379 = vcombine.low %v1017, %v1040
        %v1380 = vcombine.high %v1017, %v1040
        %v1382 = vunpack.c.l.s4 1983009808
        %v1383 = vunpack.c.0.s8 %v1382
        %v1384 = vlaneseq
        %v1385 = vshrl.u32 %v1384, 7
        %v1386 = vsub.s32 %v1383, %v1385
        %v1387 = vrot.slane %v1379, %v1386
        %v1389 = vunpack.c.l.s4 1983009808
        %v1390 = vunpack.c.0.s8 %v1389
        %v1391 = vlaneseq
        %v1392 = vshrl.u32 %v1391, 7
        %v1393 = vsub.s32 %v1390, %v1392
        %v1394 = vrot.slane %v1380, %v1393
        %v1395 = vcombine.low %v1028, %v1052
        %v1396 = vcombine.high %v1028, %v1052
        %v1398 = vunpack.c.l.s4 1983009808
        %v1399 = vunpack.c.0.s8 %v1398
        %v1400 = vlaneseq
        %v1401 = vshrl.u32 %v1400, 7
        %v1402 = vsub.s32 %v1399, %v1401
        %v1403 = vrot.slane %v1395, %v1402
        %v1405 = vunpack.c.l.s4 1983009808
        %v1406 = vunpack.c.0.s8 %v1405
        %v1407 = vlaneseq
        %v1408 = vshrl.u32 %v1407, 7
        %v1409 = vsub.s32 %v1406, %v1408
        %v1410 = vrot.slane %v1396, %v1409
        %v1411 = vcombine.low %v1064, %v1088
        %v1412 = vcombine.high %v1064, %v1088
        %v1414 = vunpack.c.l.s4 1983009808
        %v1415 = vunpack.c.0.s8 %v1414
        %v1416 = vlaneseq
        %v1417 = vshrl.u32 %v1416, 7
        %v1418 = vsub.s32 %v1415, %v1417
        %v1419 = vrot.slane %v1411, %v1418
        %v1421 = vunpack.c.l.s4 1983009808
        %v1422 = vunpack.c.0.s8 %v1421
        %v1423 = vlaneseq
        %v1424 = vshrl.u32 %v1423, 7
        %v1425 = vsub.s32 %v1422, %v1424
        %v1426 = vrot.slane %v1412, %v1425
        %v1427 = vcombine.low %v1076, %v1100
        %v1428 = vcombine.high %v1076, %v1100
        %v1430 = vunpack.c.l.s4 1983009808
        %v1431 = vunpack.c.0.s8 %v1430
        %v1432 = vlaneseq
        %v1433 = vshrl.u32 %v1432, 7
        %v1434 = vsub.s32 %v1431, %v1433
        %v1435 = vrot.slane %v1427, %v1434
        %v1437 = vunpack.c.l.s4 1983009808
        %v1438 = vunpack.c.0.s8 %v1437
        %v1439 = vlaneseq
        %v1440 = vshrl.u32 %v1439, 7
        %v1441 = vsub.s32 %v1438, %v1440
        %v1442 = vrot.slane %v1428, %v1441
        %v1443 = vcombine.low %v1387, %v1403
        %v1444 = vcombine.high %v1387, %v1403
        %v1446 = vunpack.c.l.s4 1934713408
        %v1447 = vunpack.c.0.s8 %v1446
        %v1448 = vlaneseq
        %v1449 = vshrl.u32 %v1448, 7
        %v1450 = vsub.s32 %v1447, %v1449
        %v1451 = vrot.slane %v1443, %v1450
        %v1453 = vunpack.c.l.s4 1934713408
        %v1454 = vunpack.c.0.s8 %v1453
        %v1455 = vlaneseq
        %v1456 = vshrl.u32 %v1455, 7
        %v1457 = vsub.s32 %v1454, %v1456
        %v1458 = vrot.slane %v1444, %v1457
        %v1459 = vcombine.low %v1394, %v1410
        %v1460 = vcombine.high %v1394, %v1410
        %v1462 = vunpack.c.l.s4 1934713408
        %v1463 = vunpack.c.0.s8 %v1462
        %v1464 = vlaneseq
        %v1465 = vshrl.u32 %v1464, 7
        %v1466 = vsub.s32 %v1463, %v1465
        %v1467 = vrot.slane %v1459, %v1466
        %v1469 = vunpack.c.l.s4 1934713408
        %v1470 = vunpack.c.0.s8 %v1469
        %v1471 = vlaneseq
        %v1472 = vshrl.u32 %v1471, 7
        %v1473 = vsub.s32 %v1470, %v1472
        %v1474 = vrot.slane %v1460, %v1473
        %v1475 = vcombine.low %v1419, %v1435
        %v1476 = vcombine.high %v1419, %v1435
        %v1478 = vunpack.c.l.s4 1934713408
        %v1479 = vunpack.c.0.s8 %v1478
        %v1480 = vlaneseq
        %v1481 = vshrl.u32 %v1480, 7
        %v1482 = vsub.s32 %v1479, %v1481
        %v1483 = vrot.slane %v1475, %v1482
        %v1485 = vunpack.c.l.s4 1934713408
        %v1486 = vunpack.c.0.s8 %v1485
        %v1487 = vlaneseq
        %v1488 = vshrl.u32 %v1487, 7
        %v1489 = vsub.s32 %v1486, %v1488
        %v1490 = vrot.slane %v1476, %v1489
        %v1491 = vcombine.low %v1426, %v1442
        %v1492 = vcombine.high %v1426, %v1442
        %v1494 = vunpack.c.l.s4 1934713408
        %v1495 = vunpack.c.0.s8 %v1494
        %v1496 = vlaneseq
        %v1497 = vshrl.u32 %v1496, 7
        %v1498 = vsub.s32 %v1495, %v1497
        %v1499 = vrot.slane %v1491, %v1498
        %v1501 = vunpack.c.l.s4 1934713408
        %v1502 = vunpack.c.0.s8 %v1501
        %v1503 = vlaneseq
        %v1504 = vshrl.u32 %v1503, 7
        %v1505 = vsub.s32 %v1502, %v1504
        %v1506 = vrot.slane %v1492, %v1505
        %v1507 = vcombine.low %v1451, %v1483
        %v1508 = vcombine.high %v1451, %v1483
        %v1509 = vcombine.low %v1458, %v1490
        %v1510 = vcombine.high %v1458, %v1490
        %v1511 = vcombine.low %v1467, %v1499
        %v1512 = vcombine.high %v1467, %v1499
        %v1513 = vcombine.low %v1474, %v1506
        %v1514 = vcombine.high %v1474, %v1506
        %v1515 = vcombine.low %v1018, %v1042
        %v1516 = vcombine.high %v1018, %v1042
        %v1518 = vunpack.c.l.s4 1983009808
        %v1519 = vunpack.c.0.s8 %v1518
        %v1520 = vlaneseq
        %v1521 = vshrl.u32 %v1520, 7
        %v1522 = vsub.s32 %v1519, %v1521
        %v1523 = vrot.slane %v1515, %v1522
        %v1525 = vunpack.c.l.s4 1983009808
        %v1526 = vunpack.c.0.s8 %v1525
        %v1527 = vlaneseq
        %v1528 = vshrl.u32 %v1527, 7
        %v1529 = vsub.s32 %v1526, %v1528
        %v1530 = vrot.slane %v1516, %v1529
        %v1531 = vcombine.low %v1030, %v1054
        %v1532 = vcombine.high %v1030, %v1054
        %v1534 = vunpack.c.l.s4 1983009808
        %v1535 = vunpack.c.0.s8 %v1534
        %v1536 = vlaneseq
        %v1537 = vshrl.u32 %v1536, 7
        %v1538 = vsub.s32 %v1535, %v1537
        %v1539 = vrot.slane %v1531, %v1538
        %v1541 = vunpack.c.l.s4 1983009808
        %v1542 = vunpack.c.0.s8 %v1541
        %v1543 = vlaneseq
        %v1544 = vshrl.u32 %v1543, 7
        %v1545 = vsub.s32 %v1542, %v1544
        %v1546 = vrot.slane %v1532, %v1545
        %v1547 = vcombine.low %v1066, %v1090
        %v1548 = vcombine.high %v1066, %v1090
        %v1550 = vunpack.c.l.s4 1983009808
        %v1551 = vunpack.c.0.s8 %v1550
        %v1552 = vlaneseq
        %v1553 = vshrl.u32 %v1552, 7
        %v1554 = vsub.s32 %v1551, %v1553
        %v1555 = vrot.slane %v1547, %v1554
        %v1557 = vunpack.c.l.s4 1983009808
        %v1558 = vunpack.c.0.s8 %v1557
        %v1559 = vlaneseq
        %v1560 = vshrl.u32 %v1559, 7
        %v1561 = vsub.s32 %v1558, %v1560
        %v1562 = vrot.slane %v1548, %v1561
        %v1563 = vcombine.low %v1078, %v1102
        %v1564 = vcombine.high %v1078, %v1102
        %v1566 = vunpack.c.l.s4 1983009808
        %v1567 = vunpack.c.0.s8 %v1566
        %v1568 = vlaneseq
        %v1569 = vshrl.u32 %v1568, 7
        %v1570 = vsub.s32 %v1567, %v1569
        %v1571 = vrot.slane %v1563, %v1570
        %v1573 = vunpack.c.l.s4 1983009808
        %v1574 = vunpack.c.0.s8 %v1573
        %v1575 = vlaneseq
        %v1576 = vshrl.u32 %v1575, 7
        %v1577 = vsub.s32 %v1574, %v1576
        %v1578 = vrot.slane %v1564, %v1577
        %v1579 = vcombine.low %v1523, %v1539
        %v1580 = vcombine.high %v1523, %v1539
        %v1582 = vunpack.c.l.s4 1934713408
        %v1583 = vunpack.c.0.s8 %v1582
        %v1584 = vlaneseq
        %v1585 = vshrl.u32 %v1584, 7
        %v1586 = vsub.s32 %v1583, %v1585
        %v1587 = vrot.slane %v1579, %v1586
        %v1589 = vunpack.c.l.s4 1934713408
        %v1590 = vunpack.c.0.s8 %v1589
        %v1591 = vlaneseq
        %v1592 = vshrl.u32 %v1591, 7
        %v1593 = vsub.s32 %v1590, %v1592
        %v1594 = vrot.slane %v1580, %v1593
        %v1595 = vcombine.low %v1530, %v1546
        %v1596 = vcombine.high %v1530, %v1546
        %v1598 = vunpack.c.l.s4 1934713408
        %v1599 = vunpack.c.0.s8 %v1598
        %v1600 = vlaneseq
        %v1601 = vshrl.u32 %v1600, 7
        %v1602 = vsub.s32 %v1599, %v1601
        %v1603 = vrot.slane %v1595, %v1602
        %v1605 = vunpack.c.l.s4 1934713408
        %v1606 = vunpack.c.0.s8 %v1605
        %v1607 = vlaneseq
        %v1608 = vshrl.u32 %v1607, 7
        %v1609 = vsub.s32 %v1606, %v1608
        %v1610 = vrot.slane %v1596, %v1609
        %v1611 = vcombine.low %v1555, %v1571
        %v1612 = vcombine.high %v1555, %v1571
        %v1614 = vunpack.c.l.s4 1934713408
        %v1615 = vunpack.c.0.s8 %v1614
        %v1616 = vlaneseq
        %v1617 = vshrl.u32 %v1616, 7
        %v1618 = vsub.s32 %v1615, %v1617
        %v1619 = vrot.slane %v1611, %v1618
        %v1621 = vunpack.c.l.s4 1934713408
        %v1622 = vunpack.c.0.s8 %v1621
        %v1623 = vlaneseq
        %v1624 = vshrl.u32 %v1623, 7
        %v1625 = vsub.s32 %v1622, %v1624
        %v1626 = vrot.slane %v1612, %v1625
        %v1627 = vcombine.low %v1562, %v1578
        %v1628 = vcombine.high %v1562, %v1578
        %v1630 = vunpack.c.l.s4 1934713408
        %v1631 = vunpack.c.0.s8 %v1630
        %v1632 = vlaneseq
        %v1633 = vshrl.u32 %v1632, 7
        %v1634 = vsub.s32 %v1631, %v1633
        %v1635 = vrot.slane %v1627, %v1634
        %v1637 = vunpack.c.l.s4 1934713408
        %v1638 = vunpack.c.0.s8 %v1637
        %v1639 = vlaneseq
        %v1640 = vshrl.u32 %v1639, 7
        %v1641 = vsub.s32 %v1638, %v1640
        %v1642 = vrot.slane %v1628, %v1641
        %v1643 = vcombine.low %v1587, %v1619
        %v1644 = vcombine.high %v1587, %v1619
        %v1645 = vcombine.low %v1594, %v1626
        %v1646 = vcombine.high %v1594, %v1626
        %v1647 = vcombine.low %v1603, %v1635
        %v1648 = vcombine.high %v1603, %v1635
        %v1649 = vcombine.low %v1610, %v1642
        %v1650 = vcombine.high %v1610, %v1642
        %v1651 = vcombine.low %v1235, %v1237
        %v1652 = vcombine.high %v1235, %v1237
        %v1654 = vunpack.c.l.s4 1983009808
        %v1655 = vunpack.c.0.s8 %v1654
        %v1656 = vlaneseq
        %v1657 = vshrl.u32 %v1656, 7
        %v1658 = vsub.s32 %v1655, %v1657
        %v1659 = vrot.slane %v1651, %v1658
        %v1661 = vunpack.c.l.s4 1983009808
        %v1662 = vunpack.c.0.s8 %v1661
        %v1663 = vlaneseq
        %v1664 = vshrl.u32 %v1663, 7
        %v1665 = vsub.s32 %v1662, %v1664
        %v1666 = vrot.slane %v1652, %v1665
        %v1667 = vcombine.low %v1236, %v1238
        %v1668 = vcombine.high %v1236, %v1238
        %v1670 = vunpack.c.l.s4 1983009808
        %v1671 = vunpack.c.0.s8 %v1670
        %v1672 = vlaneseq
        %v1673 = vshrl.u32 %v1672, 7
        %v1674 = vsub.s32 %v1671, %v1673
        %v1675 = vrot.slane %v1667, %v1674
        %v1677 = vunpack.c.l.s4 1983009808
        %v1678 = vunpack.c.0.s8 %v1677
        %v1679 = vlaneseq
        %v1680 = vshrl.u32 %v1679, 7
        %v1681 = vsub.s32 %v1678, %v1680
        %v1682 = vrot.slane %v1668, %v1681
        %v1683 = vcombine.low %v1239, %v1241
        %v1684 = vcombine.high %v1239, %v1241
        %v1686 = vunpack.c.l.s4 1983009808
        %v1687 = vunpack.c.0.s8 %v1686
        %v1688 = vlaneseq
        %v1689 = vshrl.u32 %v1688, 7
        %v1690 = vsub.s32 %v1687, %v1689
        %v1691 = vrot.slane %v1683, %v1690
        %v1693 = vunpack.c.l.s4 1983009808
        %v1694 = vunpack.c.0.s8 %v1693
        %v1695 = vlaneseq
        %v1696 = vshrl.u32 %v1695, 7
        %v1697 = vsub.s32 %v1694, %v1696
        %v1698 = vrot.slane %v1684, %v1697
        %v1699 = vcombine.low %v1240, %v1242
        %v1700 = vcombine.high %v1240, %v1242
        %v1702 = vunpack.c.l.s4 1983009808
        %v1703 = vunpack.c.0.s8 %v1702
        %v1704 = vlaneseq
        %v1705 = vshrl.u32 %v1704, 7
        %v1706 = vsub.s32 %v1703, %v1705
        %v1707 = vrot.slane %v1699, %v1706
        %v1709 = vunpack.c.l.s4 1983009808
        %v1710 = vunpack.c.0.s8 %v1709
        %v1711 = vlaneseq
        %v1712 = vshrl.u32 %v1711, 7
        %v1713 = vsub.s32 %v1710, %v1712
        %v1714 = vrot.slane %v1700, %v1713
        %v1715 = vcombine.low %v1659, %v1675
        %v1716 = vcombine.high %v1659, %v1675
        %v1718 = vunpack.c.l.s4 1934713408
        %v1719 = vunpack.c.0.s8 %v1718
        %v1720 = vlaneseq
        %v1721 = vshrl.u32 %v1720, 7
        %v1722 = vsub.s32 %v1719, %v1721
        %v1723 = vrot.slane %v1715, %v1722
        %v1725 = vunpack.c.l.s4 1934713408
        %v1726 = vunpack.c.0.s8 %v1725
        %v1727 = vlaneseq
        %v1728 = vshrl.u32 %v1727, 7
        %v1729 = vsub.s32 %v1726, %v1728
        %v1730 = vrot.slane %v1716, %v1729
        %v1731 = vcombine.low %v1666, %v1682
        %v1732 = vcombine.high %v1666, %v1682
        %v1734 = vunpack.c.l.s4 1934713408
        %v1735 = vunpack.c.0.s8 %v1734
        %v1736 = vlaneseq
        %v1737 = vshrl.u32 %v1736, 7
        %v1738 = vsub.s32 %v1735, %v1737
        %v1739 = vrot.slane %v1731, %v1738
        %v1741 = vunpack.c.l.s4 1934713408
        %v1742 = vunpack.c.0.s8 %v1741
        %v1743 = vlaneseq
        %v1744 = vshrl.u32 %v1743, 7
        %v1745 = vsub.s32 %v1742, %v1744
        %v1746 = vrot.slane %v1732, %v1745
        %v1747 = vcombine.low %v1691, %v1707
        %v1748 = vcombine.high %v1691, %v1707
        %v1750 = vunpack.c.l.s4 1934713408
        %v1751 = vunpack.c.0.s8 %v1750
        %v1752 = vlaneseq
        %v1753 = vshrl.u32 %v1752, 7
        %v1754 = vsub.s32 %v1751, %v1753
        %v1755 = vrot.slane %v1747, %v1754
        %v1757 = vunpack.c.l.s4 1934713408
        %v1758 = vunpack.c.0.s8 %v1757
        %v1759 = vlaneseq
        %v1760 = vshrl.u32 %v1759, 7
        %v1761 = vsub.s32 %v1758, %v1760
        %v1762 = vrot.slane %v1748, %v1761
        %v1763 = vcombine.low %v1698, %v1714
        %v1764 = vcombine.high %v1698, %v1714
        %v1766 = vunpack.c.l.s4 1934713408
        %v1767 = vunpack.c.0.s8 %v1766
        %v1768 = vlaneseq
        %v1769 = vshrl.u32 %v1768, 7
        %v1770 = vsub.s32 %v1767, %v1769
        %v1771 = vrot.slane %v1763, %v1770
        %v1773 = vunpack.c.l.s4 1934713408
        %v1774 = vunpack.c.0.s8 %v1773
        %v1775 = vlaneseq
        %v1776 = vshrl.u32 %v1775, 7
        %v1777 = vsub.s32 %v1774, %v1776
        %v1778 = vrot.slane %v1764, %v1777
        %v1779 = vcombine.low %v1723, %v1755
        %v1780 = vcombine.high %v1723, %v1755
        %v1781 = vcombine.low %v1730, %v1762
        %v1782 = vcombine.high %v1730, %v1762
        %v1783 = vcombine.low %v1739, %v1771
        %v1784 = vcombine.high %v1739, %v1771
        %v1785 = vcombine.low %v1746, %v1778
        %v1786 = vcombine.high %v1746, %v1778
        %v1787 = vcombine.low %v1371, %v1373
        %v1788 = vcombine.high %v1371, %v1373
        %v1790 = vunpack.c.l.s4 1983009808
        %v1791 = vunpack.c.0.s8 %v1790
        %v1792 = vlaneseq
        %v1793 = vshrl.u32 %v1792, 7
        %v1794 = vsub.s32 %v1791, %v1793
        %v1795 = vrot.slane %v1787, %v1794
        %v1797 = vunpack.c.l.s4 1983009808
        %v1798 = vunpack.c.0.s8 %v1797
        %v1799 = vlaneseq
        %v1800 = vshrl.u32 %v1799, 7
        %v1801 = vsub.s32 %v1798, %v1800
        %v1802 = vrot.slane %v1788, %v1801
        %v1803 = vcombine.low %v1372, %v1374
        %v1804 = vcombine.high %v1372, %v1374
        %v1806 = vunpack.c.l.s4 1983009808
        %v1807 = vunpack.c.0.s8 %v1806
        %v1808 = vlaneseq
        %v1809 = vshrl.u32 %v1808, 7
        %v1810 = vsub.s32 %v1807, %v1809
        %v1811 = vrot.slane %v1803, %v1810
        %v1813 = vunpack.c.l.s4 1983009808
        %v1814 = vunpack.c.0.s8 %v1813
        %v1815 = vlaneseq
        %v1816 = vshrl.u32 %v1815, 7
        %v1817 = vsub.s32 %v1814, %v1816
        %v1818 = vrot.slane %v1804, %v1817
        %v1819 = vcombine.low %v1375, %v1377
        %v1820 = vcombine.high %v1375, %v1377
        %v1822 = vunpack.c.l.s4 1983009808
        %v1823 = vunpack.c.0.s8 %v1822
        %v1824 = vlaneseq
        %v1825 = vshrl.u32 %v1824, 7
        %v1826 = vsub.s32 %v1823, %v1825
        %v1827 = vrot.slane %v1819, %v1826
        %v1829 = vunpack.c.l.s4 1983009808
        %v1830 = vunpack.c.0.s8 %v1829
        %v1831 = vlaneseq
        %v1832 = vshrl.u32 %v1831, 7
        %v1833 = vsub.s32 %v1830, %v1832
        %v1834 = vrot.slane %v1820, %v1833
        %v1835 = vcombine.low %v1376, %v1378
        %v1836 = vcombine.high %v1376, %v1378
        %v1838 = vunpack.c.l.s4 1983009808
        %v1839 = vunpack.c.0.s8 %v1838
        %v1840 = vlaneseq
        %v1841 = vshrl.u32 %v1840, 7
        %v1842 = vsub.s32 %v1839, %v1841
        %v1843 = vrot.slane %v1835, %v1842
        %v1845 = vunpack.c.l.s4 1983009808
        %v1846 = vunpack.c.0.s8 %v1845
        %v1847 = vlaneseq
        %v1848 = vshrl.u32 %v1847, 7
        %v1849 = vsub.s32 %v1846, %v1848
        %v1850 = vrot.slane %v1836, %v1849
        %v1851 = vcombine.low %v1795, %v1811
        %v1852 = vcombine.high %v1795, %v1811
        %v1854 = vunpack.c.l.s4 1934713408
        %v1855 = vunpack.c.0.s8 %v1854
        %v1856 = vlaneseq
        %v1857 = vshrl.u32 %v1856, 7
        %v1858 = vsub.s32 %v1855, %v1857
        %v1859 = vrot.slane %v1851, %v1858
        %v1861 = vunpack.c.l.s4 1934713408
        %v1862 = vunpack.c.0.s8 %v1861
        %v1863 = vlaneseq
        %v1864 = vshrl.u32 %v1863, 7
        %v1865 = vsub.s32 %v1862, %v1864
        %v1866 = vrot.slane %v1852, %v1865
        %v1867 = vcombine.low %v1802, %v1818
        %v1868 = vcombine.high %v1802, %v1818
        %v1870 = vunpack.c.l.s4 1934713408
        %v1871 = vunpack.c.0.s8 %v1870
        %v1872 = vlaneseq
        %v1873 = vshrl.u32 %v1872, 7
        %v1874 = vsub.s32 %v1871, %v1873
        %v1875 = vrot.slane %v1867, %v1874
        %v1877 = vunpack.c.l.s4 1934713408
        %v1878 = vunpack.c.0.s8 %v1877
        %v1879 = vlaneseq
        %v1880 = vshrl.u32 %v1879, 7
        %v1881 = vsub.s32 %v1878, %v1880
        %v1882 = vrot.slane %v1868, %v1881
        %v1883 = vcombine.low %v1827, %v1843
        %v1884 = vcombine.high %v1827, %v1843
        %v1886 = vunpack.c.l.s4 1934713408
        %v1887 = vunpack.c.0.s8 %v1886
        %v1888 = vlaneseq
        %v1889 = vshrl.u32 %v1888, 7
        %v1890 = vsub.s32 %v1887, %v1889
        %v1891 = vrot.slane %v1883, %v1890
        %v1893 = vunpack.c.l.s4 1934713408
        %v1894 = vunpack.c.0.s8 %v1893
        %v1895 = vlaneseq
        %v1896 = vshrl.u32 %v1895, 7
        %v1897 = vsub.s32 %v1894, %v1896
        %v1898 = vrot.slane %v1884, %v1897
        %v1899 = vcombine.low %v1834, %v1850
        %v1900 = vcombine.high %v1834, %v1850
        %v1902 = vunpack.c.l.s4 1934713408
        %v1903 = vunpack.c.0.s8 %v1902
        %v1904 = vlaneseq
        %v1905 = vshrl.u32 %v1904, 7
        %v1906 = vsub.s32 %v1903, %v1905
        %v1907 = vrot.slane %v1899, %v1906
        %v1909 = vunpack.c.l.s4 1934713408
        %v1910 = vunpack.c.0.s8 %v1909
        %v1911 = vlaneseq
        %v1912 = vshrl.u32 %v1911, 7
        %v1913 = vsub.s32 %v1910, %v1912
        %v1914 = vrot.slane %v1900, %v1913
        %v1915 = vcombine.low %v1859, %v1891
        %v1916 = vcombine.high %v1859, %v1891
        %v1917 = vcombine.low %v1866, %v1898
        %v1918 = vcombine.high %v1866, %v1898
        %v1919 = vcombine.low %v1875, %v1907
        %v1920 = vcombine.high %v1875, %v1907
        %v1921 = vcombine.low %v1882, %v1914
        %v1922 = vcombine.high %v1882, %v1914
        %v1923 = vcombine.low %v1507, %v1509
        %v1924 = vcombine.high %v1507, %v1509
        %v1926 = vunpack.c.l.s4 1983009808
        %v1927 = vunpack.c.0.s8 %v1926
        %v1928 = vlaneseq
        %v1929 = vshrl.u32 %v1928, 7
        %v1930 = vsub.s32 %v1927, %v1929
        %v1931 = vrot.slane %v1923, %v1930
        %v1933 = vunpack.c.l.s4 1983009808
        %v1934 = vunpack.c.0.s8 %v1933
        %v1935 = vlaneseq
        %v1936 = vshrl.u32 %v1935, 7
        %v1937 = vsub.s32 %v1934, %v1936
        %v1938 = vrot.slane %v1924, %v1937
        %v1939 = vcombine.low %v1508, %v1510
        %v1940 = vcombine.high %v1508, %v1510
        %v1942 = vunpack.c.l.s4 1983009808
        %v1943 = vunpack.c.0.s8 %v1942
        %v1944 = vlaneseq
        %v1945 = vshrl.u32 %v1944, 7
        %v1946 = vsub.s32 %v1943, %v1945
        %v1947 = vrot.slane %v1939, %v1946
        %v1949 = vunpack.c.l.s4 1983009808
        %v1950 = vunpack.c.0.s8 %v1949
        %v1951 = vlaneseq
        %v1952 = vshrl.u32 %v1951, 7
        %v1953 = vsub.s32 %v1950, %v1952
        %v1954 = vrot.slane %v1940, %v1953
        %v1955 = vcombine.low %v1511, %v1513
        %v1956 = vcombine.high %v1511, %v1513
        %v1958 = vunpack.c.l.s4 1983009808
        %v1959 = vunpack.c.0.s8 %v1958
        %v1960 = vlaneseq
        %v1961 = vshrl.u32 %v1960, 7
        %v1962 = vsub.s32 %v1959, %v1961
        %v1963 = vrot.slane %v1955, %v1962
        %v1965 = vunpack.c.l.s4 1983009808
        %v1966 = vunpack.c.0.s8 %v1965
        %v1967 = vlaneseq
        %v1968 = vshrl.u32 %v1967, 7
        %v1969 = vsub.s32 %v1966, %v1968
        %v1970 = vrot.slane %v1956, %v1969
        %v1971 = vcombine.low %v1512, %v1514
        %v1972 = vcombine.high %v1512, %v1514
        %v1974 = vunpack.c.l.s4 1983009808
        %v1975 = vunpack.c.0.s8 %v1974
        %v1976 = vlaneseq
        %v1977 = vshrl.u32 %v1976, 7
        %v1978 = vsub.s32 %v1975, %v1977
        %v1979 = vrot.slane %v1971, %v1978
        %v1981 = vunpack.c.l.s4 1983009808
        %v1982 = vunpack.c.0.s8 %v1981
        %v1983 = vlaneseq
        %v1984 = vshrl.u32 %v1983, 7
        %v1985 = vsub.s32 %v1982, %v1984
        %v1986 = vrot.slane %v1972, %v1985
        %v1987 = vcombine.low %v1931, %v1947
        %v1988 = vcombine.high %v1931, %v1947
        %v1990 = vunpack.c.l.s4 1934713408
        %v1991 = vunpack.c.0.s8 %v1990
        %v1992 = vlaneseq
        %v1993 = vshrl.u32 %v1992, 7
        %v1994 = vsub.s32 %v1991, %v1993
        %v1995 = vrot.slane %v1987, %v1994
        %v1997 = vunpack.c.l.s4 1934713408
        %v1998 = vunpack.c.0.s8 %v1997
        %v1999 = vlaneseq
        %v2000 = vshrl.u32 %v1999, 7
        %v2001 = vsub.s32 %v1998, %v2000
        %v2002 = vrot.slane %v1988, %v2001
        %v2003 = vcombine.low %v1938, %v1954
        %v2004 = vcombine.high %v1938, %v1954
        %v2006 = vunpack.c.l.s4 1934713408
        %v2007 = vunpack.c.0.s8 %v2006
        %v2008 = vlaneseq
        %v2009 = vshrl.u32 %v2008, 7
        %v2010 = vsub.s32 %v2007, %v2009
        %v2011 = vrot.slane %v2003, %v2010
        %v2013 = vunpack.c.l.s4 1934713408
        %v2014 = vunpack.c.0.s8 %v2013
        %v2015 = vlaneseq
        %v2016 = vshrl.u32 %v2015, 7
        %v2017 = vsub.s32 %v2014, %v2016
        %v2018 = vrot.slane %v2004, %v2017
        %v2019 = vcombine.low %v1963, %v1979
        %v2020 = vcombine.high %v1963, %v1979
        %v2022 = vunpack.c.l.s4 1934713408
        %v2023 = vunpack.c.0.s8 %v2022
        %v2024 = vlaneseq
        %v2025 = vshrl.u32 %v2024, 7
        %v2026 = vsub.s32 %v2023, %v2025
        %v2027 = vrot.slane %v2019, %v2026
        %v2029 = vunpack.c.l.s4 1934713408
        %v2030 = vunpack.c.0.s8 %v2029
        %v2031 = vlaneseq
        %v2032 = vshrl.u32 %v2031, 7
        %v2033 = vsub.s32 %v2030, %v2032
        %v2034 = vrot.slane %v2020, %v2033
        %v2035 = vcombine.low %v1970, %v1986
        %v2036 = vcombine.high %v1970, %v1986
        %v2038 = vunpack.c.l.s4 1934713408
        %v2039 = vunpack.c.0.s8 %v2038
        %v2040 = vlaneseq
        %v2041 = vshrl.u32 %v2040, 7
        %v2042 = vsub.s32 %v2039, %v2041
        %v2043 = vrot.slane %v2035, %v2042
        %v2045 = vunpack.c.l.s4 1934713408
        %v2046 = vunpack.c.0.s8 %v2045
        %v2047 = vlaneseq
        %v2048 = vshrl.u32 %v2047, 7
        %v2049 = vsub.s32 %v2046, %v2048
        %v2050 = vrot.slane %v2036, %v2049
        %v2051 = vcombine.low %v1995, %v2027
        %v2052 = vcombine.high %v1995, %v2027
        %v2053 = vcombine.low %v2002, %v2034
        %v2054 = vcombine.high %v2002, %v2034
        %v2055 = vcombine.low %v2011, %v2043
        %v2056 = vcombine.high %v2011, %v2043
        %v2057 = vcombine.low %v2018, %v2050
        %v2058 = vcombine.high %v2018, %v2050
        %v2059 = vcombine.low %v1643, %v1645
        %v2060 = vcombine.high %v1643, %v1645
        %v2062 = vunpack.c.l.s4 1983009808
        %v2063 = vunpack.c.0.s8 %v2062
        %v2064 = vlaneseq
        %v2065 = vshrl.u32 %v2064, 7
        %v2066 = vsub.s32 %v2063, %v2065
        %v2067 = vrot.slane %v2059, %v2066
        %v2069 = vunpack.c.l.s4 1983009808
        %v2070 = vunpack.c.0.s8 %v2069
        %v2071 = vlaneseq
        %v2072 = vshrl.u32 %v2071, 7
        %v2073 = vsub.s32 %v2070, %v2072
        %v2074 = vrot.slane %v2060, %v2073
        %v2075 = vcombine.low %v1644, %v1646
        %v2076 = vcombine.high %v1644, %v1646
        %v2078 = vunpack.c.l.s4 1983009808
        %v2079 = vunpack.c.0.s8 %v2078
        %v2080 = vlaneseq
        %v2081 = vshrl.u32 %v2080, 7
        %v2082 = vsub.s32 %v2079, %v2081
        %v2083 = vrot.slane %v2075, %v2082
        %v2085 = vunpack.c.l.s4 1983009808
        %v2086 = vunpack.c.0.s8 %v2085
        %v2087 = vlaneseq
        %v2088 = vshrl.u32 %v2087, 7
        %v2089 = vsub.s32 %v2086, %v2088
        %v2090 = vrot.slane %v2076, %v2089
        %v2091 = vcombine.low %v1647, %v1649
        %v2092 = vcombine.high %v1647, %v1649
        %v2094 = vunpack.c.l.s4 1983009808
        %v2095 = vunpack.c.0.s8 %v2094
        %v2096 = vlaneseq
        %v2097 = vshrl.u32 %v2096, 7
        %v2098 = vsub.s32 %v2095, %v2097
        %v2099 = vrot.slane %v2091, %v2098
        %v2101 = vunpack.c.l.s4 1983009808
        %v2102 = vunpack.c.0.s8 %v2101
        %v2103 = vlaneseq
        %v2104 = vshrl.u32 %v2103, 7
        %v2105 = vsub.s32 %v2102, %v2104
        %v2106 = vrot.slane %v2092, %v2105
        %v2107 = vcombine.low %v1648, %v1650
        %v2108 = vcombine.high %v1648, %v1650
        %v2110 = vunpack.c.l.s4 1983009808
        %v2111 = vunpack.c.0.s8 %v2110
        %v2112 = vlaneseq
        %v2113 = vshrl.u32 %v2112, 7
        %v2114 = vsub.s32 %v2111, %v2113
        %v2115 = vrot.slane %v2107, %v2114
        %v2117 = vunpack.c.l.s4 1983009808
        %v2118 = vunpack.c.0.s8 %v2117
        %v2119 = vlaneseq
        %v2120 = vshrl.u32 %v2119, 7
        %v2121 = vsub.s32 %v2118, %v2120
        %v2122 = vrot.slane %v2108, %v2121
        %v2123 = vcombine.low %v2067, %v2083
        %v2124 = vcombine.high %v2067, %v2083
        %v2126 = vunpack.c.l.s4 1934713408
        %v2127 = vunpack.c.0.s8 %v2126
        %v2128 = vlaneseq
        %v2129 = vshrl.u32 %v2128, 7
        %v2130 = vsub.s32 %v2127, %v2129
        %v2131 = vrot.slane %v2123, %v2130
        %v2133 = vunpack.c.l.s4 1934713408
        %v2134 = vunpack.c.0.s8 %v2133
        %v2135 = vlaneseq
        %v2136 = vshrl.u32 %v2135, 7
        %v2137 = vsub.s32 %v2134, %v2136
        %v2138 = vrot.slane %v2124, %v2137
        %v2139 = vcombine.low %v2074, %v2090
        %v2140 = vcombine.high %v2074, %v2090
        %v2142 = vunpack.c.l.s4 1934713408
        %v2143 = vunpack.c.0.s8 %v2142
        %v2144 = vlaneseq
        %v2145 = vshrl.u32 %v2144, 7
        %v2146 = vsub.s32 %v2143, %v2145
        %v2147 = vrot.slane %v2139, %v2146
        %v2149 = vunpack.c.l.s4 1934713408
        %v2150 = vunpack.c.0.s8 %v2149
        %v2151 = vlaneseq
        %v2152 = vshrl.u32 %v2151, 7
        %v2153 = vsub.s32 %v2150, %v2152
        %v2154 = vrot.slane %v2140, %v2153
        %v2155 = vcombine.low %v2099, %v2115
        %v2156 = vcombine.high %v2099, %v2115
        %v2158 = vunpack.c.l.s4 1934713408
        %v2159 = vunpack.c.0.s8 %v2158
        %v2160 = vlaneseq
        %v2161 = vshrl.u32 %v2160, 7
        %v2162 = vsub.s32 %v2159, %v2161
        %v2163 = vrot.slane %v2155, %v2162
        %v2165 = vunpack.c.l.s4 1934713408
        %v2166 = vunpack.c.0.s8 %v2165
        %v2167 = vlaneseq
        %v2168 = vshrl.u32 %v2167, 7
        %v2169 = vsub.s32 %v2166, %v2168
        %v2170 = vrot.slane %v2156, %v2169
        %v2171 = vcombine.low %v2106, %v2122
        %v2172 = vcombine.high %v2106, %v2122
        %v2174 = vunpack.c.l.s4 1934713408
        %v2175 = vunpack.c.0.s8 %v2174
        %v2176 = vlaneseq
        %v2177 = vshrl.u32 %v2176, 7
        %v2178 = vsub.s32 %v2175, %v2177
        %v2179 = vrot.slane %v2171, %v2178
        %v2181 = vunpack.c.l.s4 1934713408
        %v2182 = vunpack.c.0.s8 %v2181
        %v2183 = vlaneseq
        %v2184 = vshrl.u32 %v2183, 7
        %v2185 = vsub.s32 %v2182, %v2184
        %v2186 = vrot.slane %v2172, %v2185
        %v2187 = vcombine.low %v2131, %v2163
        %v2188 = vcombine.high %v2131, %v2163
        %v2189 = vcombine.low %v2138, %v2170
        %v2190 = vcombine.high %v2138, %v2170
        %v2191 = vcombine.low %v2147, %v2179
        %v2192 = vcombine.high %v2147, %v2179
        %v2193 = vcombine.low %v2154, %v2186
        %v2194 = vcombine.high %v2154, %v2186
        %v2195 = vpack.c.bf16 %v1915, %v1779
        %v2196 = vpack.c.bf16 %v1916, %v1780
        %v2197 = vpack.c.bf16 %v1917, %v1781
        %v2198 = vpack.c.bf16 %v1918, %v1782
        %v2199 = vpack.c.bf16 %v1919, %v1783
        %v2200 = vpack.c.bf16 %v1920, %v1784
        %v2201 = vpack.c.bf16 %v1921, %v1785
        %v2202 = vpack.c.bf16 %v1922, %v1786
        %v2203 = vpack.c.bf16 %v2187, %v2051
        %v2204 = vpack.c.bf16 %v2188, %v2052
        %v2205 = vpack.c.bf16 %v2189, %v2053
        %v2206 = vpack.c.bf16 %v2190, %v2054
        %v2207 = vpack.c.bf16 %v2191, %v2055
        %v2208 = vpack.c.bf16 %v2192, %v2056
        %v2209 = vpack.c.bf16 %v2193, %v2057
        %v2210 = vpack.c.bf16 %v2194, %v2058
        %2215 = vrot.lane.b32.xlu0 %v950, 112
        %v2216 = vpop.permute.xlu0 %2215
        %2217 = vrot.lane.b32.xlu0 %v954, 112
        %v2218 = vpop.permute.xlu0 %2217
        %2219 = vrot.lane.b32.xlu0 %v960, 112
        %v2220 = vpop.permute.xlu0 %2219
        %2221 = vrot.lane.b32.xlu0 %v964, 112
        %v2222 = vpop.permute.xlu0 %2221
        %2227 = vrot.lane.b32.xlu0 %v950, 96
        %v2228 = vpop.permute.xlu0 %2227
        %2229 = vrot.lane.b32.xlu0 %v954, 96
        %v2230 = vpop.permute.xlu0 %2229
        %2231 = vrot.lane.b32.xlu0 %v960, 96
        %v2232 = vpop.permute.xlu0 %2231
        %2233 = vrot.lane.b32.xlu0 %v964, 96
        %v2234 = vpop.permute.xlu0 %2233
        %2239 = vrot.lane.b32.xlu0 %v950, 80
        %v2240 = vpop.permute.xlu0 %2239
        %2241 = vrot.lane.b32.xlu0 %v954, 80
        %v2242 = vpop.permute.xlu0 %2241
        %2243 = vrot.lane.b32.xlu0 %v960, 80
        %v2244 = vpop.permute.xlu0 %2243
        %2245 = vrot.lane.b32.xlu0 %v964, 80
        %v2246 = vpop.permute.xlu0 %2245
        %2251 = vrot.lane.b32.xlu0 %v950, 64
        %v2252 = vpop.permute.xlu0 %2251
        %2253 = vrot.lane.b32.xlu0 %v954, 64
        %v2254 = vpop.permute.xlu0 %2253
        %2255 = vrot.lane.b32.xlu0 %v960, 64
        %v2256 = vpop.permute.xlu0 %2255
        %2257 = vrot.lane.b32.xlu0 %v964, 64
        %v2258 = vpop.permute.xlu0 %2257
        %2263 = vrot.lane.b32.xlu0 %v950, 48
        %v2264 = vpop.permute.xlu0 %2263
        %2265 = vrot.lane.b32.xlu0 %v954, 48
        %v2266 = vpop.permute.xlu0 %2265
        %2267 = vrot.lane.b32.xlu0 %v960, 48
        %v2268 = vpop.permute.xlu0 %2267
        %2269 = vrot.lane.b32.xlu0 %v964, 48
        %v2270 = vpop.permute.xlu0 %2269
        %2275 = vrot.lane.b32.xlu0 %v950, 32
        %v2276 = vpop.permute.xlu0 %2275
        %2277 = vrot.lane.b32.xlu0 %v954, 32
        %v2278 = vpop.permute.xlu0 %2277
        %2279 = vrot.lane.b32.xlu0 %v960, 32
        %v2280 = vpop.permute.xlu0 %2279
        %2281 = vrot.lane.b32.xlu0 %v964, 32
        %v2282 = vpop.permute.xlu0 %2281
        %2287 = vrot.lane.b32.xlu0 %v950, 16
        %v2288 = vpop.permute.xlu0 %2287
        %2289 = vrot.lane.b32.xlu0 %v954, 16
        %v2290 = vpop.permute.xlu0 %2289
        %2291 = vrot.lane.b32.xlu0 %v960, 16
        %v2292 = vpop.permute.xlu0 %2291
        %2293 = vrot.lane.b32.xlu0 %v964, 16
        %v2294 = vpop.permute.xlu0 %2293
        %v2299 = vcombine.low %v950, %v2228
        %v2300 = vcombine.high %v950, %v2228
        %v2302 = vunpack.c.l.s4 1983009808
        %v2303 = vunpack.c.0.s8 %v2302
        %v2304 = vlaneseq
        %v2305 = vshrl.u32 %v2304, 7
        %v2306 = vsub.s32 %v2303, %v2305
        %v2307 = vrot.slane %v2299, %v2306
        %v2309 = vunpack.c.l.s4 1983009808
        %v2310 = vunpack.c.0.s8 %v2309
        %v2311 = vlaneseq
        %v2312 = vshrl.u32 %v2311, 7
        %v2313 = vsub.s32 %v2310, %v2312
        %v2314 = vrot.slane %v2300, %v2313
        %v2315 = vcombine.low %v2216, %v2240
        %v2316 = vcombine.high %v2216, %v2240
        %v2318 = vunpack.c.l.s4 1983009808
        %v2319 = vunpack.c.0.s8 %v2318
        %v2320 = vlaneseq
        %v2321 = vshrl.u32 %v2320, 7
        %v2322 = vsub.s32 %v2319, %v2321
        %v2323 = vrot.slane %v2315, %v2322
        %v2325 = vunpack.c.l.s4 1983009808
        %v2326 = vunpack.c.0.s8 %v2325
        %v2327 = vlaneseq
        %v2328 = vshrl.u32 %v2327, 7
        %v2329 = vsub.s32 %v2326, %v2328
        %v2330 = vrot.slane %v2316, %v2329
        %v2331 = vcombine.low %v2252, %v2276
        %v2332 = vcombine.high %v2252, %v2276
        %v2334 = vunpack.c.l.s4 1983009808
        %v2335 = vunpack.c.0.s8 %v2334
        %v2336 = vlaneseq
        %v2337 = vshrl.u32 %v2336, 7
        %v2338 = vsub.s32 %v2335, %v2337
        %v2339 = vrot.slane %v2331, %v2338
        %v2341 = vunpack.c.l.s4 1983009808
        %v2342 = vunpack.c.0.s8 %v2341
        %v2343 = vlaneseq
        %v2344 = vshrl.u32 %v2343, 7
        %v2345 = vsub.s32 %v2342, %v2344
        %v2346 = vrot.slane %v2332, %v2345
        %v2347 = vcombine.low %v2264, %v2288
        %v2348 = vcombine.high %v2264, %v2288
        %v2350 = vunpack.c.l.s4 1983009808
        %v2351 = vunpack.c.0.s8 %v2350
        %v2352 = vlaneseq
        %v2353 = vshrl.u32 %v2352, 7
        %v2354 = vsub.s32 %v2351, %v2353
        %v2355 = vrot.slane %v2347, %v2354
        %v2357 = vunpack.c.l.s4 1983009808
        %v2358 = vunpack.c.0.s8 %v2357
        %v2359 = vlaneseq
        %v2360 = vshrl.u32 %v2359, 7
        %v2361 = vsub.s32 %v2358, %v2360
        %v2362 = vrot.slane %v2348, %v2361
        %v2363 = vcombine.low %v2307, %v2323
        %v2364 = vcombine.high %v2307, %v2323
        %v2366 = vunpack.c.l.s4 1934713408
        %v2367 = vunpack.c.0.s8 %v2366
        %v2368 = vlaneseq
        %v2369 = vshrl.u32 %v2368, 7
        %v2370 = vsub.s32 %v2367, %v2369
        %v2371 = vrot.slane %v2363, %v2370
        %v2373 = vunpack.c.l.s4 1934713408
        %v2374 = vunpack.c.0.s8 %v2373
        %v2375 = vlaneseq
        %v2376 = vshrl.u32 %v2375, 7
        %v2377 = vsub.s32 %v2374, %v2376
        %v2378 = vrot.slane %v2364, %v2377
        %v2379 = vcombine.low %v2314, %v2330
        %v2380 = vcombine.high %v2314, %v2330
        %v2382 = vunpack.c.l.s4 1934713408
        %v2383 = vunpack.c.0.s8 %v2382
        %v2384 = vlaneseq
        %v2385 = vshrl.u32 %v2384, 7
        %v2386 = vsub.s32 %v2383, %v2385
        %v2387 = vrot.slane %v2379, %v2386
        %v2389 = vunpack.c.l.s4 1934713408
        %v2390 = vunpack.c.0.s8 %v2389
        %v2391 = vlaneseq
        %v2392 = vshrl.u32 %v2391, 7
        %v2393 = vsub.s32 %v2390, %v2392
        %v2394 = vrot.slane %v2380, %v2393
        %v2395 = vcombine.low %v2339, %v2355
        %v2396 = vcombine.high %v2339, %v2355
        %v2398 = vunpack.c.l.s4 1934713408
        %v2399 = vunpack.c.0.s8 %v2398
        %v2400 = vlaneseq
        %v2401 = vshrl.u32 %v2400, 7
        %v2402 = vsub.s32 %v2399, %v2401
        %v2403 = vrot.slane %v2395, %v2402
        %v2405 = vunpack.c.l.s4 1934713408
        %v2406 = vunpack.c.0.s8 %v2405
        %v2407 = vlaneseq
        %v2408 = vshrl.u32 %v2407, 7
        %v2409 = vsub.s32 %v2406, %v2408
        %v2410 = vrot.slane %v2396, %v2409
        %v2411 = vcombine.low %v2346, %v2362
        %v2412 = vcombine.high %v2346, %v2362
        %v2414 = vunpack.c.l.s4 1934713408
        %v2415 = vunpack.c.0.s8 %v2414
        %v2416 = vlaneseq
        %v2417 = vshrl.u32 %v2416, 7
        %v2418 = vsub.s32 %v2415, %v2417
        %v2419 = vrot.slane %v2411, %v2418
        %v2421 = vunpack.c.l.s4 1934713408
        %v2422 = vunpack.c.0.s8 %v2421
        %v2423 = vlaneseq
        %v2424 = vshrl.u32 %v2423, 7
        %v2425 = vsub.s32 %v2422, %v2424
        %v2426 = vrot.slane %v2412, %v2425
        %v2427 = vcombine.low %v2371, %v2403
        %v2428 = vcombine.high %v2371, %v2403
        %v2429 = vcombine.low %v2378, %v2410
        %v2430 = vcombine.high %v2378, %v2410
        %v2431 = vcombine.low %v2387, %v2419
        %v2432 = vcombine.high %v2387, %v2419
        %v2433 = vcombine.low %v2394, %v2426
        %v2434 = vcombine.high %v2394, %v2426
        %v2435 = vcombine.low %v954, %v2230
        %v2436 = vcombine.high %v954, %v2230
        %v2438 = vunpack.c.l.s4 1983009808
        %v2439 = vunpack.c.0.s8 %v2438
        %v2440 = vlaneseq
        %v2441 = vshrl.u32 %v2440, 7
        %v2442 = vsub.s32 %v2439, %v2441
        %v2443 = vrot.slane %v2435, %v2442
        %v2445 = vunpack.c.l.s4 1983009808
        %v2446 = vunpack.c.0.s8 %v2445
        %v2447 = vlaneseq
        %v2448 = vshrl.u32 %v2447, 7
        %v2449 = vsub.s32 %v2446, %v2448
        %v2450 = vrot.slane %v2436, %v2449
        %v2451 = vcombine.low %v2218, %v2242
        %v2452 = vcombine.high %v2218, %v2242
        %v2454 = vunpack.c.l.s4 1983009808
        %v2455 = vunpack.c.0.s8 %v2454
        %v2456 = vlaneseq
        %v2457 = vshrl.u32 %v2456, 7
        %v2458 = vsub.s32 %v2455, %v2457
        %v2459 = vrot.slane %v2451, %v2458
        %v2461 = vunpack.c.l.s4 1983009808
        %v2462 = vunpack.c.0.s8 %v2461
        %v2463 = vlaneseq
        %v2464 = vshrl.u32 %v2463, 7
        %v2465 = vsub.s32 %v2462, %v2464
        %v2466 = vrot.slane %v2452, %v2465
        %v2467 = vcombine.low %v2254, %v2278
        %v2468 = vcombine.high %v2254, %v2278
        %v2470 = vunpack.c.l.s4 1983009808
        %v2471 = vunpack.c.0.s8 %v2470
        %v2472 = vlaneseq
        %v2473 = vshrl.u32 %v2472, 7
        %v2474 = vsub.s32 %v2471, %v2473
        %v2475 = vrot.slane %v2467, %v2474
        %v2477 = vunpack.c.l.s4 1983009808
        %v2478 = vunpack.c.0.s8 %v2477
        %v2479 = vlaneseq
        %v2480 = vshrl.u32 %v2479, 7
        %v2481 = vsub.s32 %v2478, %v2480
        %v2482 = vrot.slane %v2468, %v2481
        %v2483 = vcombine.low %v2266, %v2290
        %v2484 = vcombine.high %v2266, %v2290
        %v2486 = vunpack.c.l.s4 1983009808
        %v2487 = vunpack.c.0.s8 %v2486
        %v2488 = vlaneseq
        %v2489 = vshrl.u32 %v2488, 7
        %v2490 = vsub.s32 %v2487, %v2489
        %v2491 = vrot.slane %v2483, %v2490
        %v2493 = vunpack.c.l.s4 1983009808
        %v2494 = vunpack.c.0.s8 %v2493
        %v2495 = vlaneseq
        %v2496 = vshrl.u32 %v2495, 7
        %v2497 = vsub.s32 %v2494, %v2496
        %v2498 = vrot.slane %v2484, %v2497
        %v2499 = vcombine.low %v2443, %v2459
        %v2500 = vcombine.high %v2443, %v2459
        %v2502 = vunpack.c.l.s4 1934713408
        %v2503 = vunpack.c.0.s8 %v2502
        %v2504 = vlaneseq
        %v2505 = vshrl.u32 %v2504, 7
        %v2506 = vsub.s32 %v2503, %v2505
        %v2507 = vrot.slane %v2499, %v2506
        %v2509 = vunpack.c.l.s4 1934713408
        %v2510 = vunpack.c.0.s8 %v2509
        %v2511 = vlaneseq
        %v2512 = vshrl.u32 %v2511, 7
        %v2513 = vsub.s32 %v2510, %v2512
        %v2514 = vrot.slane %v2500, %v2513
        %v2515 = vcombine.low %v2450, %v2466
        %v2516 = vcombine.high %v2450, %v2466
        %v2518 = vunpack.c.l.s4 1934713408
        %v2519 = vunpack.c.0.s8 %v2518
        %v2520 = vlaneseq
        %v2521 = vshrl.u32 %v2520, 7
        %v2522 = vsub.s32 %v2519, %v2521
        %v2523 = vrot.slane %v2515, %v2522
        %v2525 = vunpack.c.l.s4 1934713408
        %v2526 = vunpack.c.0.s8 %v2525
        %v2527 = vlaneseq
        %v2528 = vshrl.u32 %v2527, 7
        %v2529 = vsub.s32 %v2526, %v2528
        %v2530 = vrot.slane %v2516, %v2529
        %v2531 = vcombine.low %v2475, %v2491
        %v2532 = vcombine.high %v2475, %v2491
        %v2534 = vunpack.c.l.s4 1934713408
        %v2535 = vunpack.c.0.s8 %v2534
        %v2536 = vlaneseq
        %v2537 = vshrl.u32 %v2536, 7
        %v2538 = vsub.s32 %v2535, %v2537
        %v2539 = vrot.slane %v2531, %v2538
        %v2541 = vunpack.c.l.s4 1934713408
        %v2542 = vunpack.c.0.s8 %v2541
        %v2543 = vlaneseq
        %v2544 = vshrl.u32 %v2543, 7
        %v2545 = vsub.s32 %v2542, %v2544
        %v2546 = vrot.slane %v2532, %v2545
        %v2547 = vcombine.low %v2482, %v2498
        %v2548 = vcombine.high %v2482, %v2498
        %v2550 = vunpack.c.l.s4 1934713408
        %v2551 = vunpack.c.0.s8 %v2550
        %v2552 = vlaneseq
        %v2553 = vshrl.u32 %v2552, 7
        %v2554 = vsub.s32 %v2551, %v2553
        %v2555 = vrot.slane %v2547, %v2554
        %v2557 = vunpack.c.l.s4 1934713408
        %v2558 = vunpack.c.0.s8 %v2557
        %v2559 = vlaneseq
        %v2560 = vshrl.u32 %v2559, 7
        %v2561 = vsub.s32 %v2558, %v2560
        %v2562 = vrot.slane %v2548, %v2561
        %v2563 = vcombine.low %v2507, %v2539
        %v2564 = vcombine.high %v2507, %v2539
        %v2565 = vcombine.low %v2514, %v2546
        %v2566 = vcombine.high %v2514, %v2546
        %v2567 = vcombine.low %v2523, %v2555
        %v2568 = vcombine.high %v2523, %v2555
        %v2569 = vcombine.low %v2530, %v2562
        %v2570 = vcombine.high %v2530, %v2562
        %v2571 = vcombine.low %v960, %v2232
        %v2572 = vcombine.high %v960, %v2232
        %v2574 = vunpack.c.l.s4 1983009808
        %v2575 = vunpack.c.0.s8 %v2574
        %v2576 = vlaneseq
        %v2577 = vshrl.u32 %v2576, 7
        %v2578 = vsub.s32 %v2575, %v2577
        %v2579 = vrot.slane %v2571, %v2578
        %v2581 = vunpack.c.l.s4 1983009808
        %v2582 = vunpack.c.0.s8 %v2581
        %v2583 = vlaneseq
        %v2584 = vshrl.u32 %v2583, 7
        %v2585 = vsub.s32 %v2582, %v2584
        %v2586 = vrot.slane %v2572, %v2585
        %v2587 = vcombine.low %v2220, %v2244
        %v2588 = vcombine.high %v2220, %v2244
        %v2590 = vunpack.c.l.s4 1983009808
        %v2591 = vunpack.c.0.s8 %v2590
        %v2592 = vlaneseq
        %v2593 = vshrl.u32 %v2592, 7
        %v2594 = vsub.s32 %v2591, %v2593
        %v2595 = vrot.slane %v2587, %v2594
        %v2597 = vunpack.c.l.s4 1983009808
        %v2598 = vunpack.c.0.s8 %v2597
        %v2599 = vlaneseq
        %v2600 = vshrl.u32 %v2599, 7
        %v2601 = vsub.s32 %v2598, %v2600
        %v2602 = vrot.slane %v2588, %v2601
        %v2603 = vcombine.low %v2256, %v2280
        %v2604 = vcombine.high %v2256, %v2280
        %v2606 = vunpack.c.l.s4 1983009808
        %v2607 = vunpack.c.0.s8 %v2606
        %v2608 = vlaneseq
        %v2609 = vshrl.u32 %v2608, 7
        %v2610 = vsub.s32 %v2607, %v2609
        %v2611 = vrot.slane %v2603, %v2610
        %v2613 = vunpack.c.l.s4 1983009808
        %v2614 = vunpack.c.0.s8 %v2613
        %v2615 = vlaneseq
        %v2616 = vshrl.u32 %v2615, 7
        %v2617 = vsub.s32 %v2614, %v2616
        %v2618 = vrot.slane %v2604, %v2617
        %v2619 = vcombine.low %v2268, %v2292
        %v2620 = vcombine.high %v2268, %v2292
        %v2622 = vunpack.c.l.s4 1983009808
        %v2623 = vunpack.c.0.s8 %v2622
        %v2624 = vlaneseq
        %v2625 = vshrl.u32 %v2624, 7
        %v2626 = vsub.s32 %v2623, %v2625
        %v2627 = vrot.slane %v2619, %v2626
        %v2629 = vunpack.c.l.s4 1983009808
        %v2630 = vunpack.c.0.s8 %v2629
        %v2631 = vlaneseq
        %v2632 = vshrl.u32 %v2631, 7
        %v2633 = vsub.s32 %v2630, %v2632
        %v2634 = vrot.slane %v2620, %v2633
        %v2635 = vcombine.low %v2579, %v2595
        %v2636 = vcombine.high %v2579, %v2595
        %v2638 = vunpack.c.l.s4 1934713408
        %v2639 = vunpack.c.0.s8 %v2638
        %v2640 = vlaneseq
        %v2641 = vshrl.u32 %v2640, 7
        %v2642 = vsub.s32 %v2639, %v2641
        %v2643 = vrot.slane %v2635, %v2642
        %v2645 = vunpack.c.l.s4 1934713408
        %v2646 = vunpack.c.0.s8 %v2645
        %v2647 = vlaneseq
        %v2648 = vshrl.u32 %v2647, 7
        %v2649 = vsub.s32 %v2646, %v2648
        %v2650 = vrot.slane %v2636, %v2649
        %v2651 = vcombine.low %v2586, %v2602
        %v2652 = vcombine.high %v2586, %v2602
        %v2654 = vunpack.c.l.s4 1934713408
        %v2655 = vunpack.c.0.s8 %v2654
        %v2656 = vlaneseq
        %v2657 = vshrl.u32 %v2656, 7
        %v2658 = vsub.s32 %v2655, %v2657
        %v2659 = vrot.slane %v2651, %v2658
        %v2661 = vunpack.c.l.s4 1934713408
        %v2662 = vunpack.c.0.s8 %v2661
        %v2663 = vlaneseq
        %v2664 = vshrl.u32 %v2663, 7
        %v2665 = vsub.s32 %v2662, %v2664
        %v2666 = vrot.slane %v2652, %v2665
        %v2667 = vcombine.low %v2611, %v2627
        %v2668 = vcombine.high %v2611, %v2627
        %v2670 = vunpack.c.l.s4 1934713408
        %v2671 = vunpack.c.0.s8 %v2670
        %v2672 = vlaneseq
        %v2673 = vshrl.u32 %v2672, 7
        %v2674 = vsub.s32 %v2671, %v2673
        %v2675 = vrot.slane %v2667, %v2674
        %v2677 = vunpack.c.l.s4 1934713408
        %v2678 = vunpack.c.0.s8 %v2677
        %v2679 = vlaneseq
        %v2680 = vshrl.u32 %v2679, 7
        %v2681 = vsub.s32 %v2678, %v2680
        %v2682 = vrot.slane %v2668, %v2681
        %v2683 = vcombine.low %v2618, %v2634
        %v2684 = vcombine.high %v2618, %v2634
        %v2686 = vunpack.c.l.s4 1934713408
        %v2687 = vunpack.c.0.s8 %v2686
        %v2688 = vlaneseq
        %v2689 = vshrl.u32 %v2688, 7
        %v2690 = vsub.s32 %v2687, %v2689
        %v2691 = vrot.slane %v2683, %v2690
        %v2693 = vunpack.c.l.s4 1934713408
        %v2694 = vunpack.c.0.s8 %v2693
        %v2695 = vlaneseq
        %v2696 = vshrl.u32 %v2695, 7
        %v2697 = vsub.s32 %v2694, %v2696
        %v2698 = vrot.slane %v2684, %v2697
        %v2699 = vcombine.low %v2643, %v2675
        %v2700 = vcombine.high %v2643, %v2675
        %v2701 = vcombine.low %v2650, %v2682
        %v2702 = vcombine.high %v2650, %v2682
        %v2703 = vcombine.low %v2659, %v2691
        %v2704 = vcombine.high %v2659, %v2691
        %v2705 = vcombine.low %v2666, %v2698
        %v2706 = vcombine.high %v2666, %v2698
        %v2707 = vcombine.low %v964, %v2234
        %v2708 = vcombine.high %v964, %v2234
        %v2710 = vunpack.c.l.s4 1983009808
        %v2711 = vunpack.c.0.s8 %v2710
        %v2712 = vlaneseq
        %v2713 = vshrl.u32 %v2712, 7
        %v2714 = vsub.s32 %v2711, %v2713
        %v2715 = vrot.slane %v2707, %v2714
        %v2717 = vunpack.c.l.s4 1983009808
        %v2718 = vunpack.c.0.s8 %v2717
        %v2719 = vlaneseq
        %v2720 = vshrl.u32 %v2719, 7
        %v2721 = vsub.s32 %v2718, %v2720
        %v2722 = vrot.slane %v2708, %v2721
        %v2723 = vcombine.low %v2222, %v2246
        %v2724 = vcombine.high %v2222, %v2246
        %v2726 = vunpack.c.l.s4 1983009808
        %v2727 = vunpack.c.0.s8 %v2726
        %v2728 = vlaneseq
        %v2729 = vshrl.u32 %v2728, 7
        %v2730 = vsub.s32 %v2727, %v2729
        %v2731 = vrot.slane %v2723, %v2730
        %v2733 = vunpack.c.l.s4 1983009808
        %v2734 = vunpack.c.0.s8 %v2733
        %v2735 = vlaneseq
        %v2736 = vshrl.u32 %v2735, 7
        %v2737 = vsub.s32 %v2734, %v2736
        %v2738 = vrot.slane %v2724, %v2737
        %v2739 = vcombine.low %v2258, %v2282
        %v2740 = vcombine.high %v2258, %v2282
        %v2742 = vunpack.c.l.s4 1983009808
        %v2743 = vunpack.c.0.s8 %v2742
        %v2744 = vlaneseq
        %v2745 = vshrl.u32 %v2744, 7
        %v2746 = vsub.s32 %v2743, %v2745
        %v2747 = vrot.slane %v2739, %v2746
        %v2749 = vunpack.c.l.s4 1983009808
        %v2750 = vunpack.c.0.s8 %v2749
        %v2751 = vlaneseq
        %v2752 = vshrl.u32 %v2751, 7
        %v2753 = vsub.s32 %v2750, %v2752
        %v2754 = vrot.slane %v2740, %v2753
        %v2755 = vcombine.low %v2270, %v2294
        %v2756 = vcombine.high %v2270, %v2294
        %v2758 = vunpack.c.l.s4 1983009808
        %v2759 = vunpack.c.0.s8 %v2758
        %v2760 = vlaneseq
        %v2761 = vshrl.u32 %v2760, 7
        %v2762 = vsub.s32 %v2759, %v2761
        %v2763 = vrot.slane %v2755, %v2762
        %v2765 = vunpack.c.l.s4 1983009808
        %v2766 = vunpack.c.0.s8 %v2765
        %v2767 = vlaneseq
        %v2768 = vshrl.u32 %v2767, 7
        %v2769 = vsub.s32 %v2766, %v2768
        %v2770 = vrot.slane %v2756, %v2769
        %v2771 = vcombine.low %v2715, %v2731
        %v2772 = vcombine.high %v2715, %v2731
        %v2774 = vunpack.c.l.s4 1934713408
        %v2775 = vunpack.c.0.s8 %v2774
        %v2776 = vlaneseq
        %v2777 = vshrl.u32 %v2776, 7
        %v2778 = vsub.s32 %v2775, %v2777
        %v2779 = vrot.slane %v2771, %v2778
        %v2781 = vunpack.c.l.s4 1934713408
        %v2782 = vunpack.c.0.s8 %v2781
        %v2783 = vlaneseq
        %v2784 = vshrl.u32 %v2783, 7
        %v2785 = vsub.s32 %v2782, %v2784
        %v2786 = vrot.slane %v2772, %v2785
        %v2787 = vcombine.low %v2722, %v2738
        %v2788 = vcombine.high %v2722, %v2738
        %v2790 = vunpack.c.l.s4 1934713408
        %v2791 = vunpack.c.0.s8 %v2790
        %v2792 = vlaneseq
        %v2793 = vshrl.u32 %v2792, 7
        %v2794 = vsub.s32 %v2791, %v2793
        %v2795 = vrot.slane %v2787, %v2794
        %v2797 = vunpack.c.l.s4 1934713408
        %v2798 = vunpack.c.0.s8 %v2797
        %v2799 = vlaneseq
        %v2800 = vshrl.u32 %v2799, 7
        %v2801 = vsub.s32 %v2798, %v2800
        %v2802 = vrot.slane %v2788, %v2801
        %v2803 = vcombine.low %v2747, %v2763
        %v2804 = vcombine.high %v2747, %v2763
        %v2806 = vunpack.c.l.s4 1934713408
        %v2807 = vunpack.c.0.s8 %v2806
        %v2808 = vlaneseq
        %v2809 = vshrl.u32 %v2808, 7
        %v2810 = vsub.s32 %v2807, %v2809
        %v2811 = vrot.slane %v2803, %v2810
        %v2813 = vunpack.c.l.s4 1934713408
        %v2814 = vunpack.c.0.s8 %v2813
        %v2815 = vlaneseq
        %v2816 = vshrl.u32 %v2815, 7
        %v2817 = vsub.s32 %v2814, %v2816
        %v2818 = vrot.slane %v2804, %v2817
        %v2819 = vcombine.low %v2754, %v2770
        %v2820 = vcombine.high %v2754, %v2770
        %v2822 = vunpack.c.l.s4 1934713408
        %v2823 = vunpack.c.0.s8 %v2822
        %v2824 = vlaneseq
        %v2825 = vshrl.u32 %v2824, 7
        %v2826 = vsub.s32 %v2823, %v2825
        %v2827 = vrot.slane %v2819, %v2826
        %v2829 = vunpack.c.l.s4 1934713408
        %v2830 = vunpack.c.0.s8 %v2829
        %v2831 = vlaneseq
        %v2832 = vshrl.u32 %v2831, 7
        %v2833 = vsub.s32 %v2830, %v2832
        %v2834 = vrot.slane %v2820, %v2833
        %v2835 = vcombine.low %v2779, %v2811
        %v2836 = vcombine.high %v2779, %v2811
        %v2837 = vcombine.low %v2786, %v2818
        %v2838 = vcombine.high %v2786, %v2818
        %v2839 = vcombine.low %v2795, %v2827
        %v2840 = vcombine.high %v2795, %v2827
        %v2841 = vcombine.low %v2802, %v2834
        %v2842 = vcombine.high %v2802, %v2834
        %v2843 = vcombine.low %v2427, %v2429
        %v2844 = vcombine.high %v2427, %v2429
        %v2846 = vunpack.c.l.s4 1983009808
        %v2847 = vunpack.c.0.s8 %v2846
        %v2848 = vlaneseq
        %v2849 = vshrl.u32 %v2848, 7
        %v2850 = vsub.s32 %v2847, %v2849
        %v2851 = vrot.slane %v2843, %v2850
        %v2853 = vunpack.c.l.s4 1983009808
        %v2854 = vunpack.c.0.s8 %v2853
        %v2855 = vlaneseq
        %v2856 = vshrl.u32 %v2855, 7
        %v2857 = vsub.s32 %v2854, %v2856
        %v2858 = vrot.slane %v2844, %v2857
        %v2859 = vcombine.low %v2428, %v2430
        %v2860 = vcombine.high %v2428, %v2430
        %v2862 = vunpack.c.l.s4 1983009808
        %v2863 = vunpack.c.0.s8 %v2862
        %v2864 = vlaneseq
        %v2865 = vshrl.u32 %v2864, 7
        %v2866 = vsub.s32 %v2863, %v2865
        %v2867 = vrot.slane %v2859, %v2866
        %v2869 = vunpack.c.l.s4 1983009808
        %v2870 = vunpack.c.0.s8 %v2869
        %v2871 = vlaneseq
        %v2872 = vshrl.u32 %v2871, 7
        %v2873 = vsub.s32 %v2870, %v2872
        %v2874 = vrot.slane %v2860, %v2873
        %v2875 = vcombine.low %v2431, %v2433
        %v2876 = vcombine.high %v2431, %v2433
        %v2878 = vunpack.c.l.s4 1983009808
        %v2879 = vunpack.c.0.s8 %v2878
        %v2880 = vlaneseq
        %v2881 = vshrl.u32 %v2880, 7
        %v2882 = vsub.s32 %v2879, %v2881
        %v2883 = vrot.slane %v2875, %v2882
        %v2885 = vunpack.c.l.s4 1983009808
        %v2886 = vunpack.c.0.s8 %v2885
        %v2887 = vlaneseq
        %v2888 = vshrl.u32 %v2887, 7
        %v2889 = vsub.s32 %v2886, %v2888
        %v2890 = vrot.slane %v2876, %v2889
        %v2891 = vcombine.low %v2432, %v2434
        %v2892 = vcombine.high %v2432, %v2434
        %v2894 = vunpack.c.l.s4 1983009808
        %v2895 = vunpack.c.0.s8 %v2894
        %v2896 = vlaneseq
        %v2897 = vshrl.u32 %v2896, 7
        %v2898 = vsub.s32 %v2895, %v2897
        %v2899 = vrot.slane %v2891, %v2898
        %v2901 = vunpack.c.l.s4 1983009808
        %v2902 = vunpack.c.0.s8 %v2901
        %v2903 = vlaneseq
        %v2904 = vshrl.u32 %v2903, 7
        %v2905 = vsub.s32 %v2902, %v2904
        %v2906 = vrot.slane %v2892, %v2905
        %v2907 = vcombine.low %v2851, %v2867
        %v2908 = vcombine.high %v2851, %v2867
        %v2910 = vunpack.c.l.s4 1934713408
        %v2911 = vunpack.c.0.s8 %v2910
        %v2912 = vlaneseq
        %v2913 = vshrl.u32 %v2912, 7
        %v2914 = vsub.s32 %v2911, %v2913
        %v2915 = vrot.slane %v2907, %v2914
        %v2917 = vunpack.c.l.s4 1934713408
        %v2918 = vunpack.c.0.s8 %v2917
        %v2919 = vlaneseq
        %v2920 = vshrl.u32 %v2919, 7
        %v2921 = vsub.s32 %v2918, %v2920
        %v2922 = vrot.slane %v2908, %v2921
        %v2923 = vcombine.low %v2858, %v2874
        %v2924 = vcombine.high %v2858, %v2874
        %v2926 = vunpack.c.l.s4 1934713408
        %v2927 = vunpack.c.0.s8 %v2926
        %v2928 = vlaneseq
        %v2929 = vshrl.u32 %v2928, 7
        %v2930 = vsub.s32 %v2927, %v2929
        %v2931 = vrot.slane %v2923, %v2930
        %v2933 = vunpack.c.l.s4 1934713408
        %v2934 = vunpack.c.0.s8 %v2933
        %v2935 = vlaneseq
        %v2936 = vshrl.u32 %v2935, 7
        %v2937 = vsub.s32 %v2934, %v2936
        %v2938 = vrot.slane %v2924, %v2937
        %v2939 = vcombine.low %v2883, %v2899
        %v2940 = vcombine.high %v2883, %v2899
        %v2942 = vunpack.c.l.s4 1934713408
        %v2943 = vunpack.c.0.s8 %v2942
        %v2944 = vlaneseq
        %v2945 = vshrl.u32 %v2944, 7
        %v2946 = vsub.s32 %v2943, %v2945
        %v2947 = vrot.slane %v2939, %v2946
        %v2949 = vunpack.c.l.s4 1934713408
        %v2950 = vunpack.c.0.s8 %v2949
        %v2951 = vlaneseq
        %v2952 = vshrl.u32 %v2951, 7
        %v2953 = vsub.s32 %v2950, %v2952
        %v2954 = vrot.slane %v2940, %v2953
        %v2955 = vcombine.low %v2890, %v2906
        %v2956 = vcombine.high %v2890, %v2906
        %v2958 = vunpack.c.l.s4 1934713408
        %v2959 = vunpack.c.0.s8 %v2958
        %v2960 = vlaneseq
        %v2961 = vshrl.u32 %v2960, 7
        %v2962 = vsub.s32 %v2959, %v2961
        %v2963 = vrot.slane %v2955, %v2962
        %v2965 = vunpack.c.l.s4 1934713408
        %v2966 = vunpack.c.0.s8 %v2965
        %v2967 = vlaneseq
        %v2968 = vshrl.u32 %v2967, 7
        %v2969 = vsub.s32 %v2966, %v2968
        %v2970 = vrot.slane %v2956, %v2969
        %v2971 = vcombine.low %v2915, %v2947
        %v2972 = vcombine.high %v2915, %v2947
        %v2973 = vcombine.low %v2922, %v2954
        %v2974 = vcombine.high %v2922, %v2954
        %v2975 = vcombine.low %v2931, %v2963
        %v2976 = vcombine.high %v2931, %v2963
        %v2977 = vcombine.low %v2938, %v2970
        %v2978 = vcombine.high %v2938, %v2970
        %v2979 = vcombine.low %v2563, %v2565
        %v2980 = vcombine.high %v2563, %v2565
        %v2982 = vunpack.c.l.s4 1983009808
        %v2983 = vunpack.c.0.s8 %v2982
        %v2984 = vlaneseq
        %v2985 = vshrl.u32 %v2984, 7
        %v2986 = vsub.s32 %v2983, %v2985
        %v2987 = vrot.slane %v2979, %v2986
        %v2989 = vunpack.c.l.s4 1983009808
        %v2990 = vunpack.c.0.s8 %v2989
        %v2991 = vlaneseq
        %v2992 = vshrl.u32 %v2991, 7
        %v2993 = vsub.s32 %v2990, %v2992
        %v2994 = vrot.slane %v2980, %v2993
        %v2995 = vcombine.low %v2564, %v2566
        %v2996 = vcombine.high %v2564, %v2566
        %v2998 = vunpack.c.l.s4 1983009808
        %v2999 = vunpack.c.0.s8 %v2998
        %v3000 = vlaneseq
        %v3001 = vshrl.u32 %v3000, 7
        %v3002 = vsub.s32 %v2999, %v3001
        %v3003 = vrot.slane %v2995, %v3002
        %v3005 = vunpack.c.l.s4 1983009808
        %v3006 = vunpack.c.0.s8 %v3005
        %v3007 = vlaneseq
        %v3008 = vshrl.u32 %v3007, 7
        %v3009 = vsub.s32 %v3006, %v3008
        %v3010 = vrot.slane %v2996, %v3009
        %v3011 = vcombine.low %v2567, %v2569
        %v3012 = vcombine.high %v2567, %v2569
        %v3014 = vunpack.c.l.s4 1983009808
        %v3015 = vunpack.c.0.s8 %v3014
        %v3016 = vlaneseq
        %v3017 = vshrl.u32 %v3016, 7
        %v3018 = vsub.s32 %v3015, %v3017
        %v3019 = vrot.slane %v3011, %v3018
        %v3021 = vunpack.c.l.s4 1983009808
        %v3022 = vunpack.c.0.s8 %v3021
        %v3023 = vlaneseq
        %v3024 = vshrl.u32 %v3023, 7
        %v3025 = vsub.s32 %v3022, %v3024
        %v3026 = vrot.slane %v3012, %v3025
        %v3027 = vcombine.low %v2568, %v2570
        %v3028 = vcombine.high %v2568, %v2570
        %v3030 = vunpack.c.l.s4 1983009808
        %v3031 = vunpack.c.0.s8 %v3030
        %v3032 = vlaneseq
        %v3033 = vshrl.u32 %v3032, 7
        %v3034 = vsub.s32 %v3031, %v3033
        %v3035 = vrot.slane %v3027, %v3034
        %v3037 = vunpack.c.l.s4 1983009808
        %v3038 = vunpack.c.0.s8 %v3037
        %v3039 = vlaneseq
        %v3040 = vshrl.u32 %v3039, 7
        %v3041 = vsub.s32 %v3038, %v3040
        %v3042 = vrot.slane %v3028, %v3041
        %v3043 = vcombine.low %v2987, %v3003
        %v3044 = vcombine.high %v2987, %v3003
        %v3046 = vunpack.c.l.s4 1934713408
        %v3047 = vunpack.c.0.s8 %v3046
        %v3048 = vlaneseq
        %v3049 = vshrl.u32 %v3048, 7
        %v3050 = vsub.s32 %v3047, %v3049
        %v3051 = vrot.slane %v3043, %v3050
        %v3053 = vunpack.c.l.s4 1934713408
        %v3054 = vunpack.c.0.s8 %v3053
        %v3055 = vlaneseq
        %v3056 = vshrl.u32 %v3055, 7
        %v3057 = vsub.s32 %v3054, %v3056
        %v3058 = vrot.slane %v3044, %v3057
        %v3059 = vcombine.low %v2994, %v3010
        %v3060 = vcombine.high %v2994, %v3010
        %v3062 = vunpack.c.l.s4 1934713408
        %v3063 = vunpack.c.0.s8 %v3062
        %v3064 = vlaneseq
        %v3065 = vshrl.u32 %v3064, 7
        %v3066 = vsub.s32 %v3063, %v3065
        %v3067 = vrot.slane %v3059, %v3066
        %v3069 = vunpack.c.l.s4 1934713408
        %v3070 = vunpack.c.0.s8 %v3069
        %v3071 = vlaneseq
        %v3072 = vshrl.u32 %v3071, 7
        %v3073 = vsub.s32 %v3070, %v3072
        %v3074 = vrot.slane %v3060, %v3073
        %v3075 = vcombine.low %v3019, %v3035
        %v3076 = vcombine.high %v3019, %v3035
        %v3078 = vunpack.c.l.s4 1934713408
        %v3079 = vunpack.c.0.s8 %v3078
        %v3080 = vlaneseq
        %v3081 = vshrl.u32 %v3080, 7
        %v3082 = vsub.s32 %v3079, %v3081
        %v3083 = vrot.slane %v3075, %v3082
        %v3085 = vunpack.c.l.s4 1934713408
        %v3086 = vunpack.c.0.s8 %v3085
        %v3087 = vlaneseq
        %v3088 = vshrl.u32 %v3087, 7
        %v3089 = vsub.s32 %v3086, %v3088
        %v3090 = vrot.slane %v3076, %v3089
        %v3091 = vcombine.low %v3026, %v3042
        %v3092 = vcombine.high %v3026, %v3042
        %v3094 = vunpack.c.l.s4 1934713408
        %v3095 = vunpack.c.0.s8 %v3094
        %v3096 = vlaneseq
        %v3097 = vshrl.u32 %v3096, 7
        %v3098 = vsub.s32 %v3095, %v3097
        %v3099 = vrot.slane %v3091, %v3098
        %v3101 = vunpack.c.l.s4 1934713408
        %v3102 = vunpack.c.0.s8 %v3101
        %v3103 = vlaneseq
        %v3104 = vshrl.u32 %v3103, 7
        %v3105 = vsub.s32 %v3102, %v3104
        %v3106 = vrot.slane %v3092, %v3105
        %v3107 = vcombine.low %v3051, %v3083
        %v3108 = vcombine.high %v3051, %v3083
        %v3109 = vcombine.low %v3058, %v3090
        %v3110 = vcombine.high %v3058, %v3090
        %v3111 = vcombine.low %v3067, %v3099
        %v3112 = vcombine.high %v3067, %v3099
        %v3113 = vcombine.low %v3074, %v3106
        %v3114 = vcombine.high %v3074, %v3106
        %v3115 = vcombine.low %v2699, %v2701
        %v3116 = vcombine.high %v2699, %v2701
        %v3118 = vunpack.c.l.s4 1983009808
        %v3119 = vunpack.c.0.s8 %v3118
        %v3120 = vlaneseq
        %v3121 = vshrl.u32 %v3120, 7
        %v3122 = vsub.s32 %v3119, %v3121
        %v3123 = vrot.slane %v3115, %v3122
        %v3125 = vunpack.c.l.s4 1983009808
        %v3126 = vunpack.c.0.s8 %v3125
        %v3127 = vlaneseq
        %v3128 = vshrl.u32 %v3127, 7
        %v3129 = vsub.s32 %v3126, %v3128
        %v3130 = vrot.slane %v3116, %v3129
        %v3131 = vcombine.low %v2700, %v2702
        %v3132 = vcombine.high %v2700, %v2702
        %v3134 = vunpack.c.l.s4 1983009808
        %v3135 = vunpack.c.0.s8 %v3134
        %v3136 = vlaneseq
        %v3137 = vshrl.u32 %v3136, 7
        %v3138 = vsub.s32 %v3135, %v3137
        %v3139 = vrot.slane %v3131, %v3138
        %v3141 = vunpack.c.l.s4 1983009808
        %v3142 = vunpack.c.0.s8 %v3141
        %v3143 = vlaneseq
        %v3144 = vshrl.u32 %v3143, 7
        %v3145 = vsub.s32 %v3142, %v3144
        %v3146 = vrot.slane %v3132, %v3145
        %v3147 = vcombine.low %v2703, %v2705
        %v3148 = vcombine.high %v2703, %v2705
        %v3150 = vunpack.c.l.s4 1983009808
        %v3151 = vunpack.c.0.s8 %v3150
        %v3152 = vlaneseq
        %v3153 = vshrl.u32 %v3152, 7
        %v3154 = vsub.s32 %v3151, %v3153
        %v3155 = vrot.slane %v3147, %v3154
        %v3157 = vunpack.c.l.s4 1983009808
        %v3158 = vunpack.c.0.s8 %v3157
        %v3159 = vlaneseq
        %v3160 = vshrl.u32 %v3159, 7
        %v3161 = vsub.s32 %v3158, %v3160
        %v3162 = vrot.slane %v3148, %v3161
        %v3163 = vcombine.low %v2704, %v2706
        %v3164 = vcombine.high %v2704, %v2706
        %v3166 = vunpack.c.l.s4 1983009808
        %v3167 = vunpack.c.0.s8 %v3166
        %v3168 = vlaneseq
        %v3169 = vshrl.u32 %v3168, 7
        %v3170 = vsub.s32 %v3167, %v3169
        %v3171 = vrot.slane %v3163, %v3170
        %v3173 = vunpack.c.l.s4 1983009808
        %v3174 = vunpack.c.0.s8 %v3173
        %v3175 = vlaneseq
        %v3176 = vshrl.u32 %v3175, 7
        %v3177 = vsub.s32 %v3174, %v3176
        %v3178 = vrot.slane %v3164, %v3177
        %v3179 = vcombine.low %v3123, %v3139
        %v3180 = vcombine.high %v3123, %v3139
        %v3182 = vunpack.c.l.s4 1934713408
        %v3183 = vunpack.c.0.s8 %v3182
        %v3184 = vlaneseq
        %v3185 = vshrl.u32 %v3184, 7
        %v3186 = vsub.s32 %v3183, %v3185
        %v3187 = vrot.slane %v3179, %v3186
        %v3189 = vunpack.c.l.s4 1934713408
        %v3190 = vunpack.c.0.s8 %v3189
        %v3191 = vlaneseq
        %v3192 = vshrl.u32 %v3191, 7
        %v3193 = vsub.s32 %v3190, %v3192
        %v3194 = vrot.slane %v3180, %v3193
        %v3195 = vcombine.low %v3130, %v3146
        %v3196 = vcombine.high %v3130, %v3146
        %v3198 = vunpack.c.l.s4 1934713408
        %v3199 = vunpack.c.0.s8 %v3198
        %v3200 = vlaneseq
        %v3201 = vshrl.u32 %v3200, 7
        %v3202 = vsub.s32 %v3199, %v3201
        %v3203 = vrot.slane %v3195, %v3202
        %v3205 = vunpack.c.l.s4 1934713408
        %v3206 = vunpack.c.0.s8 %v3205
        %v3207 = vlaneseq
        %v3208 = vshrl.u32 %v3207, 7
        %v3209 = vsub.s32 %v3206, %v3208
        %v3210 = vrot.slane %v3196, %v3209
        %v3211 = vcombine.low %v3155, %v3171
        %v3212 = vcombine.high %v3155, %v3171
        %v3214 = vunpack.c.l.s4 1934713408
        %v3215 = vunpack.c.0.s8 %v3214
        %v3216 = vlaneseq
        %v3217 = vshrl.u32 %v3216, 7
        %v3218 = vsub.s32 %v3215, %v3217
        %v3219 = vrot.slane %v3211, %v3218
        %v3221 = vunpack.c.l.s4 1934713408
        %v3222 = vunpack.c.0.s8 %v3221
        %v3223 = vlaneseq
        %v3224 = vshrl.u32 %v3223, 7
        %v3225 = vsub.s32 %v3222, %v3224
        %v3226 = vrot.slane %v3212, %v3225
        %v3227 = vcombine.low %v3162, %v3178
        %v3228 = vcombine.high %v3162, %v3178
        %v3230 = vunpack.c.l.s4 1934713408
        %v3231 = vunpack.c.0.s8 %v3230
        %v3232 = vlaneseq
        %v3233 = vshrl.u32 %v3232, 7
        %v3234 = vsub.s32 %v3231, %v3233
        %v3235 = vrot.slane %v3227, %v3234
        %v3237 = vunpack.c.l.s4 1934713408
        %v3238 = vunpack.c.0.s8 %v3237
        %v3239 = vlaneseq
        %v3240 = vshrl.u32 %v3239, 7
        %v3241 = vsub.s32 %v3238, %v3240
        %v3242 = vrot.slane %v3228, %v3241
        %v3243 = vcombine.low %v3187, %v3219
        %v3244 = vcombine.high %v3187, %v3219
        %v3245 = vcombine.low %v3194, %v3226
        %v3246 = vcombine.high %v3194, %v3226
        %v3247 = vcombine.low %v3203, %v3235
        %v3248 = vcombine.high %v3203, %v3235
        %v3249 = vcombine.low %v3210, %v3242
        %v3250 = vcombine.high %v3210, %v3242
        %v3251 = vcombine.low %v2835, %v2837
        %v3252 = vcombine.high %v2835, %v2837
        %v3254 = vunpack.c.l.s4 1983009808
        %v3255 = vunpack.c.0.s8 %v3254
        %v3256 = vlaneseq
        %v3257 = vshrl.u32 %v3256, 7
        %v3258 = vsub.s32 %v3255, %v3257
        %v3259 = vrot.slane %v3251, %v3258
        %v3261 = vunpack.c.l.s4 1983009808
        %v3262 = vunpack.c.0.s8 %v3261
        %v3263 = vlaneseq
        %v3264 = vshrl.u32 %v3263, 7
        %v3265 = vsub.s32 %v3262, %v3264
        %v3266 = vrot.slane %v3252, %v3265
        %v3267 = vcombine.low %v2836, %v2838
        %v3268 = vcombine.high %v2836, %v2838
        %v3270 = vunpack.c.l.s4 1983009808
        %v3271 = vunpack.c.0.s8 %v3270
        %v3272 = vlaneseq
        %v3273 = vshrl.u32 %v3272, 7
        %v3274 = vsub.s32 %v3271, %v3273
        %v3275 = vrot.slane %v3267, %v3274
        %v3277 = vunpack.c.l.s4 1983009808
        %v3278 = vunpack.c.0.s8 %v3277
        %v3279 = vlaneseq
        %v3280 = vshrl.u32 %v3279, 7
        %v3281 = vsub.s32 %v3278, %v3280
        %v3282 = vrot.slane %v3268, %v3281
        %v3283 = vcombine.low %v2839, %v2841
        %v3284 = vcombine.high %v2839, %v2841
        %v3286 = vunpack.c.l.s4 1983009808
        %v3287 = vunpack.c.0.s8 %v3286
        %v3288 = vlaneseq
        %v3289 = vshrl.u32 %v3288, 7
        %v3290 = vsub.s32 %v3287, %v3289
        %v3291 = vrot.slane %v3283, %v3290
        %v3293 = vunpack.c.l.s4 1983009808
        %v3294 = vunpack.c.0.s8 %v3293
        %v3295 = vlaneseq
        %v3296 = vshrl.u32 %v3295, 7
        %v3297 = vsub.s32 %v3294, %v3296
        %v3298 = vrot.slane %v3284, %v3297
        %v3299 = vcombine.low %v2840, %v2842
        %v3300 = vcombine.high %v2840, %v2842
        %v3302 = vunpack.c.l.s4 1983009808
        %v3303 = vunpack.c.0.s8 %v3302
        %v3304 = vlaneseq
        %v3305 = vshrl.u32 %v3304, 7
        %v3306 = vsub.s32 %v3303, %v3305
        %v3307 = vrot.slane %v3299, %v3306
        %v3309 = vunpack.c.l.s4 1983009808
        %v3310 = vunpack.c.0.s8 %v3309
        %v3311 = vlaneseq
        %v3312 = vshrl.u32 %v3311, 7
        %v3313 = vsub.s32 %v3310, %v3312
        %v3314 = vrot.slane %v3300, %v3313
        %v3315 = vcombine.low %v3259, %v3275
        %v3316 = vcombine.high %v3259, %v3275
        %v3318 = vunpack.c.l.s4 1934713408
        %v3319 = vunpack.c.0.s8 %v3318
        %v3320 = vlaneseq
        %v3321 = vshrl.u32 %v3320, 7
        %v3322 = vsub.s32 %v3319, %v3321
        %v3323 = vrot.slane %v3315, %v3322
        %v3325 = vunpack.c.l.s4 1934713408
        %v3326 = vunpack.c.0.s8 %v3325
        %v3327 = vlaneseq
        %v3328 = vshrl.u32 %v3327, 7
        %v3329 = vsub.s32 %v3326, %v3328
        %v3330 = vrot.slane %v3316, %v3329
        %v3331 = vcombine.low %v3266, %v3282
        %v3332 = vcombine.high %v3266, %v3282
        %v3334 = vunpack.c.l.s4 1934713408
        %v3335 = vunpack.c.0.s8 %v3334
        %v3336 = vlaneseq
        %v3337 = vshrl.u32 %v3336, 7
        %v3338 = vsub.s32 %v3335, %v3337
        %v3339 = vrot.slane %v3331, %v3338
        %v3341 = vunpack.c.l.s4 1934713408
        %v3342 = vunpack.c.0.s8 %v3341
        %v3343 = vlaneseq
        %v3344 = vshrl.u32 %v3343, 7
        %v3345 = vsub.s32 %v3342, %v3344
        %v3346 = vrot.slane %v3332, %v3345
        %v3347 = vcombine.low %v3291, %v3307
        %v3348 = vcombine.high %v3291, %v3307
        %v3350 = vunpack.c.l.s4 1934713408
        %v3351 = vunpack.c.0.s8 %v3350
        %v3352 = vlaneseq
        %v3353 = vshrl.u32 %v3352, 7
        %v3354 = vsub.s32 %v3351, %v3353
        %v3355 = vrot.slane %v3347, %v3354
        %v3357 = vunpack.c.l.s4 1934713408
        %v3358 = vunpack.c.0.s8 %v3357
        %v3359 = vlaneseq
        %v3360 = vshrl.u32 %v3359, 7
        %v3361 = vsub.s32 %v3358, %v3360
        %v3362 = vrot.slane %v3348, %v3361
        %v3363 = vcombine.low %v3298, %v3314
        %v3364 = vcombine.high %v3298, %v3314
        %v3366 = vunpack.c.l.s4 1934713408
        %v3367 = vunpack.c.0.s8 %v3366
        %v3368 = vlaneseq
        %v3369 = vshrl.u32 %v3368, 7
        %v3370 = vsub.s32 %v3367, %v3369
        %v3371 = vrot.slane %v3363, %v3370
        %v3373 = vunpack.c.l.s4 1934713408
        %v3374 = vunpack.c.0.s8 %v3373
        %v3375 = vlaneseq
        %v3376 = vshrl.u32 %v3375, 7
        %v3377 = vsub.s32 %v3374, %v3376
        %v3378 = vrot.slane %v3364, %v3377
        %v3379 = vcombine.low %v3323, %v3355
        %v3380 = vcombine.high %v3323, %v3355
        %v3381 = vcombine.low %v3330, %v3362
        %v3382 = vcombine.high %v3330, %v3362
        %v3383 = vcombine.low %v3339, %v3371
        %v3384 = vcombine.high %v3339, %v3371
        %v3385 = vcombine.low %v3346, %v3378
        %v3386 = vcombine.high %v3346, %v3378
        %v3387 = vpack.c.bf16 %v3107, %v2971
        %v3388 = vpack.c.bf16 %v3108, %v2972
        %v3389 = vpack.c.bf16 %v3109, %v2973
        %v3390 = vpack.c.bf16 %v3110, %v2974
        %v3391 = vpack.c.bf16 %v3111, %v2975
        %v3392 = vpack.c.bf16 %v3112, %v2976
        %v3393 = vpack.c.bf16 %v3113, %v2977
        %v3394 = vpack.c.bf16 %v3114, %v2978
        %v3395 = vpack.c.bf16 %v3379, %v3243
        %v3396 = vpack.c.bf16 %v3380, %v3244
        %v3397 = vpack.c.bf16 %v3381, %v3245
        %v3398 = vpack.c.bf16 %v3382, %v3246
        %v3399 = vpack.c.bf16 %v3383, %v3247
        %v3400 = vpack.c.bf16 %v3384, %v3248
        %v3401 = vpack.c.bf16 %v3385, %v3249
        %v3402 = vpack.c.bf16 %v3386, %v3250
        %3407 = vrot.lane.b32.xlu0 %v1001, 112
        %v3408 = vpop.permute.xlu0 %3407
        %3409 = vrot.lane.b32.xlu0 %v1004, 112
        %v3410 = vpop.permute.xlu0 %3409
        %3411 = vrot.lane.b32.xlu0 %v1009, 112
        %v3412 = vpop.permute.xlu0 %3411
        %3413 = vrot.lane.b32.xlu0 %v1012, 112
        %v3414 = vpop.permute.xlu0 %3413
        %3419 = vrot.lane.b32.xlu0 %v1001, 96
        %v3420 = vpop.permute.xlu0 %3419
        %3421 = vrot.lane.b32.xlu0 %v1004, 96
        %v3422 = vpop.permute.xlu0 %3421
        %3423 = vrot.lane.b32.xlu0 %v1009, 96
        %v3424 = vpop.permute.xlu0 %3423
        %3425 = vrot.lane.b32.xlu0 %v1012, 96
        %v3426 = vpop.permute.xlu0 %3425
        %3431 = vrot.lane.b32.xlu0 %v1001, 80
        %v3432 = vpop.permute.xlu0 %3431
        %3433 = vrot.lane.b32.xlu0 %v1004, 80
        %v3434 = vpop.permute.xlu0 %3433
        %3435 = vrot.lane.b32.xlu0 %v1009, 80
        %v3436 = vpop.permute.xlu0 %3435
        %3437 = vrot.lane.b32.xlu0 %v1012, 80
        %v3438 = vpop.permute.xlu0 %3437
        %3443 = vrot.lane.b32.xlu0 %v1001, 64
        %v3444 = vpop.permute.xlu0 %3443
        %3445 = vrot.lane.b32.xlu0 %v1004, 64
        %v3446 = vpop.permute.xlu0 %3445
        %3447 = vrot.lane.b32.xlu0 %v1009, 64
        %v3448 = vpop.permute.xlu0 %3447
        %3449 = vrot.lane.b32.xlu0 %v1012, 64
        %v3450 = vpop.permute.xlu0 %3449
        %3455 = vrot.lane.b32.xlu0 %v1001, 48
        %v3456 = vpop.permute.xlu0 %3455
        %3457 = vrot.lane.b32.xlu0 %v1004, 48
        %v3458 = vpop.permute.xlu0 %3457
        %3459 = vrot.lane.b32.xlu0 %v1009, 48
        %v3460 = vpop.permute.xlu0 %3459
        %3461 = vrot.lane.b32.xlu0 %v1012, 48
        %v3462 = vpop.permute.xlu0 %3461
        %3467 = vrot.lane.b32.xlu0 %v1001, 32
        %v3468 = vpop.permute.xlu0 %3467
        %3469 = vrot.lane.b32.xlu0 %v1004, 32
        %v3470 = vpop.permute.xlu0 %3469
        %3471 = vrot.lane.b32.xlu0 %v1009, 32
        %v3472 = vpop.permute.xlu0 %3471
        %3473 = vrot.lane.b32.xlu0 %v1012, 32
        %v3474 = vpop.permute.xlu0 %3473
        %3479 = vrot.lane.b32.xlu0 %v1001, 16
        %v3480 = vpop.permute.xlu0 %3479
        %3481 = vrot.lane.b32.xlu0 %v1004, 16
        %v3482 = vpop.permute.xlu0 %3481
        %3483 = vrot.lane.b32.xlu0 %v1009, 16
        %v3484 = vpop.permute.xlu0 %3483
        %3485 = vrot.lane.b32.xlu0 %v1012, 16
        %v3486 = vpop.permute.xlu0 %3485
        %v3491 = vcombine.low %v1001, %v3420
        %v3492 = vcombine.high %v1001, %v3420
        %v3494 = vunpack.c.l.s4 1983009808
        %v3495 = vunpack.c.0.s8 %v3494
        %v3496 = vlaneseq
        %v3497 = vshrl.u32 %v3496, 7
        %v3498 = vsub.s32 %v3495, %v3497
        %v3499 = vrot.slane %v3491, %v3498
        %v3501 = vunpack.c.l.s4 1983009808
        %v3502 = vunpack.c.0.s8 %v3501
        %v3503 = vlaneseq
        %v3504 = vshrl.u32 %v3503, 7
        %v3505 = vsub.s32 %v3502, %v3504
        %v3506 = vrot.slane %v3492, %v3505
        %v3507 = vcombine.low %v3408, %v3432
        %v3508 = vcombine.high %v3408, %v3432
        %v3510 = vunpack.c.l.s4 1983009808
        %v3511 = vunpack.c.0.s8 %v3510
        %v3512 = vlaneseq
        %v3513 = vshrl.u32 %v3512, 7
        %v3514 = vsub.s32 %v3511, %v3513
        %v3515 = vrot.slane %v3507, %v3514
        %v3517 = vunpack.c.l.s4 1983009808
        %v3518 = vunpack.c.0.s8 %v3517
        %v3519 = vlaneseq
        %v3520 = vshrl.u32 %v3519, 7
        %v3521 = vsub.s32 %v3518, %v3520
        %v3522 = vrot.slane %v3508, %v3521
        %v3523 = vcombine.low %v3444, %v3468
        %v3524 = vcombine.high %v3444, %v3468
        %v3526 = vunpack.c.l.s4 1983009808
        %v3527 = vunpack.c.0.s8 %v3526
        %v3528 = vlaneseq
        %v3529 = vshrl.u32 %v3528, 7
        %v3530 = vsub.s32 %v3527, %v3529
        %v3531 = vrot.slane %v3523, %v3530
        %v3533 = vunpack.c.l.s4 1983009808
        %v3534 = vunpack.c.0.s8 %v3533
        %v3535 = vlaneseq
        %v3536 = vshrl.u32 %v3535, 7
        %v3537 = vsub.s32 %v3534, %v3536
        %v3538 = vrot.slane %v3524, %v3537
        %v3539 = vcombine.low %v3456, %v3480
        %v3540 = vcombine.high %v3456, %v3480
        %v3542 = vunpack.c.l.s4 1983009808
        %v3543 = vunpack.c.0.s8 %v3542
        %v3544 = vlaneseq
        %v3545 = vshrl.u32 %v3544, 7
        %v3546 = vsub.s32 %v3543, %v3545
        %v3547 = vrot.slane %v3539, %v3546
        %v3549 = vunpack.c.l.s4 1983009808
        %v3550 = vunpack.c.0.s8 %v3549
        %v3551 = vlaneseq
        %v3552 = vshrl.u32 %v3551, 7
        %v3553 = vsub.s32 %v3550, %v3552
        %v3554 = vrot.slane %v3540, %v3553
        %v3555 = vcombine.low %v3499, %v3515
        %v3556 = vcombine.high %v3499, %v3515
        %v3558 = vunpack.c.l.s4 1934713408
        %v3559 = vunpack.c.0.s8 %v3558
        %v3560 = vlaneseq
        %v3561 = vshrl.u32 %v3560, 7
        %v3562 = vsub.s32 %v3559, %v3561
        %v3563 = vrot.slane %v3555, %v3562
        %v3565 = vunpack.c.l.s4 1934713408
        %v3566 = vunpack.c.0.s8 %v3565
        %v3567 = vlaneseq
        %v3568 = vshrl.u32 %v3567, 7
        %v3569 = vsub.s32 %v3566, %v3568
        %v3570 = vrot.slane %v3556, %v3569
        %v3571 = vcombine.low %v3506, %v3522
        %v3572 = vcombine.high %v3506, %v3522
        %v3574 = vunpack.c.l.s4 1934713408
        %v3575 = vunpack.c.0.s8 %v3574
        %v3576 = vlaneseq
        %v3577 = vshrl.u32 %v3576, 7
        %v3578 = vsub.s32 %v3575, %v3577
        %v3579 = vrot.slane %v3571, %v3578
        %v3581 = vunpack.c.l.s4 1934713408
        %v3582 = vunpack.c.0.s8 %v3581
        %v3583 = vlaneseq
        %v3584 = vshrl.u32 %v3583, 7
        %v3585 = vsub.s32 %v3582, %v3584
        %v3586 = vrot.slane %v3572, %v3585
        %v3587 = vcombine.low %v3531, %v3547
        %v3588 = vcombine.high %v3531, %v3547
        %v3590 = vunpack.c.l.s4 1934713408
        %v3591 = vunpack.c.0.s8 %v3590
        %v3592 = vlaneseq
        %v3593 = vshrl.u32 %v3592, 7
        %v3594 = vsub.s32 %v3591, %v3593
        %v3595 = vrot.slane %v3587, %v3594
        %v3597 = vunpack.c.l.s4 1934713408
        %v3598 = vunpack.c.0.s8 %v3597
        %v3599 = vlaneseq
        %v3600 = vshrl.u32 %v3599, 7
        %v3601 = vsub.s32 %v3598, %v3600
        %v3602 = vrot.slane %v3588, %v3601
        %v3603 = vcombine.low %v3538, %v3554
        %v3604 = vcombine.high %v3538, %v3554
        %v3606 = vunpack.c.l.s4 1934713408
        %v3607 = vunpack.c.0.s8 %v3606
        %v3608 = vlaneseq
        %v3609 = vshrl.u32 %v3608, 7
        %v3610 = vsub.s32 %v3607, %v3609
        %v3611 = vrot.slane %v3603, %v3610
        %v3613 = vunpack.c.l.s4 1934713408
        %v3614 = vunpack.c.0.s8 %v3613
        %v3615 = vlaneseq
        %v3616 = vshrl.u32 %v3615, 7
        %v3617 = vsub.s32 %v3614, %v3616
        %v3618 = vrot.slane %v3604, %v3617
        %v3619 = vcombine.low %v3563, %v3595
        %v3620 = vcombine.high %v3563, %v3595
        %v3621 = vcombine.low %v3570, %v3602
        %v3622 = vcombine.high %v3570, %v3602
        %v3623 = vcombine.low %v3579, %v3611
        %v3624 = vcombine.high %v3579, %v3611
        %v3625 = vcombine.low %v3586, %v3618
        %v3626 = vcombine.high %v3586, %v3618
        %v3627 = vcombine.low %v1004, %v3422
        %v3628 = vcombine.high %v1004, %v3422
        %v3630 = vunpack.c.l.s4 1983009808
        %v3631 = vunpack.c.0.s8 %v3630
        %v3632 = vlaneseq
        %v3633 = vshrl.u32 %v3632, 7
        %v3634 = vsub.s32 %v3631, %v3633
        %v3635 = vrot.slane %v3627, %v3634
        %v3637 = vunpack.c.l.s4 1983009808
        %v3638 = vunpack.c.0.s8 %v3637
        %v3639 = vlaneseq
        %v3640 = vshrl.u32 %v3639, 7
        %v3641 = vsub.s32 %v3638, %v3640
        %v3642 = vrot.slane %v3628, %v3641
        %v3643 = vcombine.low %v3410, %v3434
        %v3644 = vcombine.high %v3410, %v3434
        %v3646 = vunpack.c.l.s4 1983009808
        %v3647 = vunpack.c.0.s8 %v3646
        %v3648 = vlaneseq
        %v3649 = vshrl.u32 %v3648, 7
        %v3650 = vsub.s32 %v3647, %v3649
        %v3651 = vrot.slane %v3643, %v3650
        %v3653 = vunpack.c.l.s4 1983009808
        %v3654 = vunpack.c.0.s8 %v3653
        %v3655 = vlaneseq
        %v3656 = vshrl.u32 %v3655, 7
        %v3657 = vsub.s32 %v3654, %v3656
        %v3658 = vrot.slane %v3644, %v3657
        %v3659 = vcombine.low %v3446, %v3470
        %v3660 = vcombine.high %v3446, %v3470
        %v3662 = vunpack.c.l.s4 1983009808
        %v3663 = vunpack.c.0.s8 %v3662
        %v3664 = vlaneseq
        %v3665 = vshrl.u32 %v3664, 7
        %v3666 = vsub.s32 %v3663, %v3665
        %v3667 = vrot.slane %v3659, %v3666
        %v3669 = vunpack.c.l.s4 1983009808
        %v3670 = vunpack.c.0.s8 %v3669
        %v3671 = vlaneseq
        %v3672 = vshrl.u32 %v3671, 7
        %v3673 = vsub.s32 %v3670, %v3672
        %v3674 = vrot.slane %v3660, %v3673
        %v3675 = vcombine.low %v3458, %v3482
        %v3676 = vcombine.high %v3458, %v3482
        %v3678 = vunpack.c.l.s4 1983009808
        %v3679 = vunpack.c.0.s8 %v3678
        %v3680 = vlaneseq
        %v3681 = vshrl.u32 %v3680, 7
        %v3682 = vsub.s32 %v3679, %v3681
        %v3683 = vrot.slane %v3675, %v3682
        %v3685 = vunpack.c.l.s4 1983009808
        %v3686 = vunpack.c.0.s8 %v3685
        %v3687 = vlaneseq
        %v3688 = vshrl.u32 %v3687, 7
        %v3689 = vsub.s32 %v3686, %v3688
        %v3690 = vrot.slane %v3676, %v3689
        %v3691 = vcombine.low %v3635, %v3651
        %v3692 = vcombine.high %v3635, %v3651
        %v3694 = vunpack.c.l.s4 1934713408
        %v3695 = vunpack.c.0.s8 %v3694
        %v3696 = vlaneseq
        %v3697 = vshrl.u32 %v3696, 7
        %v3698 = vsub.s32 %v3695, %v3697
        %v3699 = vrot.slane %v3691, %v3698
        %v3701 = vunpack.c.l.s4 1934713408
        %v3702 = vunpack.c.0.s8 %v3701
        %v3703 = vlaneseq
        %v3704 = vshrl.u32 %v3703, 7
        %v3705 = vsub.s32 %v3702, %v3704
        %v3706 = vrot.slane %v3692, %v3705
        %v3707 = vcombine.low %v3642, %v3658
        %v3708 = vcombine.high %v3642, %v3658
        %v3710 = vunpack.c.l.s4 1934713408
        %v3711 = vunpack.c.0.s8 %v3710
        %v3712 = vlaneseq
        %v3713 = vshrl.u32 %v3712, 7
        %v3714 = vsub.s32 %v3711, %v3713
        %v3715 = vrot.slane %v3707, %v3714
        %v3717 = vunpack.c.l.s4 1934713408
        %v3718 = vunpack.c.0.s8 %v3717
        %v3719 = vlaneseq
        %v3720 = vshrl.u32 %v3719, 7
        %v3721 = vsub.s32 %v3718, %v3720
        %v3722 = vrot.slane %v3708, %v3721
        %v3723 = vcombine.low %v3667, %v3683
        %v3724 = vcombine.high %v3667, %v3683
        %v3726 = vunpack.c.l.s4 1934713408
        %v3727 = vunpack.c.0.s8 %v3726
        %v3728 = vlaneseq
        %v3729 = vshrl.u32 %v3728, 7
        %v3730 = vsub.s32 %v3727, %v3729
        %v3731 = vrot.slane %v3723, %v3730
        %v3733 = vunpack.c.l.s4 1934713408
        %v3734 = vunpack.c.0.s8 %v3733
        %v3735 = vlaneseq
        %v3736 = vshrl.u32 %v3735, 7
        %v3737 = vsub.s32 %v3734, %v3736
        %v3738 = vrot.slane %v3724, %v3737
        %v3739 = vcombine.low %v3674, %v3690
        %v3740 = vcombine.high %v3674, %v3690
        %v3742 = vunpack.c.l.s4 1934713408
        %v3743 = vunpack.c.0.s8 %v3742
        %v3744 = vlaneseq
        %v3745 = vshrl.u32 %v3744, 7
        %v3746 = vsub.s32 %v3743, %v3745
        %v3747 = vrot.slane %v3739, %v3746
        %v3749 = vunpack.c.l.s4 1934713408
        %v3750 = vunpack.c.0.s8 %v3749
        %v3751 = vlaneseq
        %v3752 = vshrl.u32 %v3751, 7
        %v3753 = vsub.s32 %v3750, %v3752
        %v3754 = vrot.slane %v3740, %v3753
        %v3755 = vcombine.low %v3699, %v3731
        %v3756 = vcombine.high %v3699, %v3731
        %v3757 = vcombine.low %v3706, %v3738
        %v3758 = vcombine.high %v3706, %v3738
        %v3759 = vcombine.low %v3715, %v3747
        %v3760 = vcombine.high %v3715, %v3747
        %v3761 = vcombine.low %v3722, %v3754
        %v3762 = vcombine.high %v3722, %v3754
        %v3763 = vcombine.low %v1009, %v3424
        %v3764 = vcombine.high %v1009, %v3424
        %v3766 = vunpack.c.l.s4 1983009808
        %v3767 = vunpack.c.0.s8 %v3766
        %v3768 = vlaneseq
        %v3769 = vshrl.u32 %v3768, 7
        %v3770 = vsub.s32 %v3767, %v3769
        %v3771 = vrot.slane %v3763, %v3770
        %v3773 = vunpack.c.l.s4 1983009808
        %v3774 = vunpack.c.0.s8 %v3773
        %v3775 = vlaneseq
        %v3776 = vshrl.u32 %v3775, 7
        %v3777 = vsub.s32 %v3774, %v3776
        %v3778 = vrot.slane %v3764, %v3777
        %v3779 = vcombine.low %v3412, %v3436
        %v3780 = vcombine.high %v3412, %v3436
        %v3782 = vunpack.c.l.s4 1983009808
        %v3783 = vunpack.c.0.s8 %v3782
        %v3784 = vlaneseq
        %v3785 = vshrl.u32 %v3784, 7
        %v3786 = vsub.s32 %v3783, %v3785
        %v3787 = vrot.slane %v3779, %v3786
        %v3789 = vunpack.c.l.s4 1983009808
        %v3790 = vunpack.c.0.s8 %v3789
        %v3791 = vlaneseq
        %v3792 = vshrl.u32 %v3791, 7
        %v3793 = vsub.s32 %v3790, %v3792
        %v3794 = vrot.slane %v3780, %v3793
        %v3795 = vcombine.low %v3448, %v3472
        %v3796 = vcombine.high %v3448, %v3472
        %v3798 = vunpack.c.l.s4 1983009808
        %v3799 = vunpack.c.0.s8 %v3798
        %v3800 = vlaneseq
        %v3801 = vshrl.u32 %v3800, 7
        %v3802 = vsub.s32 %v3799, %v3801
        %v3803 = vrot.slane %v3795, %v3802
        %v3805 = vunpack.c.l.s4 1983009808
        %v3806 = vunpack.c.0.s8 %v3805
        %v3807 = vlaneseq
        %v3808 = vshrl.u32 %v3807, 7
        %v3809 = vsub.s32 %v3806, %v3808
        %v3810 = vrot.slane %v3796, %v3809
        %v3811 = vcombine.low %v3460, %v3484
        %v3812 = vcombine.high %v3460, %v3484
        %v3814 = vunpack.c.l.s4 1983009808
        %v3815 = vunpack.c.0.s8 %v3814
        %v3816 = vlaneseq
        %v3817 = vshrl.u32 %v3816, 7
        %v3818 = vsub.s32 %v3815, %v3817
        %v3819 = vrot.slane %v3811, %v3818
        %v3821 = vunpack.c.l.s4 1983009808
        %v3822 = vunpack.c.0.s8 %v3821
        %v3823 = vlaneseq
        %v3824 = vshrl.u32 %v3823, 7
        %v3825 = vsub.s32 %v3822, %v3824
        %v3826 = vrot.slane %v3812, %v3825
        %v3827 = vcombine.low %v3771, %v3787
        %v3828 = vcombine.high %v3771, %v3787
        %v3830 = vunpack.c.l.s4 1934713408
        %v3831 = vunpack.c.0.s8 %v3830
        %v3832 = vlaneseq
        %v3833 = vshrl.u32 %v3832, 7
        %v3834 = vsub.s32 %v3831, %v3833
        %v3835 = vrot.slane %v3827, %v3834
        %v3837 = vunpack.c.l.s4 1934713408
        %v3838 = vunpack.c.0.s8 %v3837
        %v3839 = vlaneseq
        %v3840 = vshrl.u32 %v3839, 7
        %v3841 = vsub.s32 %v3838, %v3840
        %v3842 = vrot.slane %v3828, %v3841
        %v3843 = vcombine.low %v3778, %v3794
        %v3844 = vcombine.high %v3778, %v3794
        %v3846 = vunpack.c.l.s4 1934713408
        %v3847 = vunpack.c.0.s8 %v3846
        %v3848 = vlaneseq
        %v3849 = vshrl.u32 %v3848, 7
        %v3850 = vsub.s32 %v3847, %v3849
        %v3851 = vrot.slane %v3843, %v3850
        %v3853 = vunpack.c.l.s4 1934713408
        %v3854 = vunpack.c.0.s8 %v3853
        %v3855 = vlaneseq
        %v3856 = vshrl.u32 %v3855, 7
        %v3857 = vsub.s32 %v3854, %v3856
        %v3858 = vrot.slane %v3844, %v3857
        %v3859 = vcombine.low %v3803, %v3819
        %v3860 = vcombine.high %v3803, %v3819
        %v3862 = vunpack.c.l.s4 1934713408
        %v3863 = vunpack.c.0.s8 %v3862
        %v3864 = vlaneseq
        %v3865 = vshrl.u32 %v3864, 7
        %v3866 = vsub.s32 %v3863, %v3865
        %v3867 = vrot.slane %v3859, %v3866
        %v3869 = vunpack.c.l.s4 1934713408
        %v3870 = vunpack.c.0.s8 %v3869
        %v3871 = vlaneseq
        %v3872 = vshrl.u32 %v3871, 7
        %v3873 = vsub.s32 %v3870, %v3872
        %v3874 = vrot.slane %v3860, %v3873
        %v3875 = vcombine.low %v3810, %v3826
        %v3876 = vcombine.high %v3810, %v3826
        %v3878 = vunpack.c.l.s4 1934713408
        %v3879 = vunpack.c.0.s8 %v3878
        %v3880 = vlaneseq
        %v3881 = vshrl.u32 %v3880, 7
        %v3882 = vsub.s32 %v3879, %v3881
        %v3883 = vrot.slane %v3875, %v3882
        %v3885 = vunpack.c.l.s4 1934713408
        %v3886 = vunpack.c.0.s8 %v3885
        %v3887 = vlaneseq
        %v3888 = vshrl.u32 %v3887, 7
        %v3889 = vsub.s32 %v3886, %v3888
        %v3890 = vrot.slane %v3876, %v3889
        %v3891 = vcombine.low %v3835, %v3867
        %v3892 = vcombine.high %v3835, %v3867
        %v3893 = vcombine.low %v3842, %v3874
        %v3894 = vcombine.high %v3842, %v3874
        %v3895 = vcombine.low %v3851, %v3883
        %v3896 = vcombine.high %v3851, %v3883
        %v3897 = vcombine.low %v3858, %v3890
        %v3898 = vcombine.high %v3858, %v3890
        %v3899 = vcombine.low %v1012, %v3426
        %v3900 = vcombine.high %v1012, %v3426
        %v3902 = vunpack.c.l.s4 1983009808
        %v3903 = vunpack.c.0.s8 %v3902
        %v3904 = vlaneseq
        %v3905 = vshrl.u32 %v3904, 7
        %v3906 = vsub.s32 %v3903, %v3905
        %v3907 = vrot.slane %v3899, %v3906
        %v3909 = vunpack.c.l.s4 1983009808
        %v3910 = vunpack.c.0.s8 %v3909
        %v3911 = vlaneseq
        %v3912 = vshrl.u32 %v3911, 7
        %v3913 = vsub.s32 %v3910, %v3912
        %v3914 = vrot.slane %v3900, %v3913
        %v3915 = vcombine.low %v3414, %v3438
        %v3916 = vcombine.high %v3414, %v3438
        %v3918 = vunpack.c.l.s4 1983009808
        %v3919 = vunpack.c.0.s8 %v3918
        %v3920 = vlaneseq
        %v3921 = vshrl.u32 %v3920, 7
        %v3922 = vsub.s32 %v3919, %v3921
        %v3923 = vrot.slane %v3915, %v3922
        %v3925 = vunpack.c.l.s4 1983009808
        %v3926 = vunpack.c.0.s8 %v3925
        %v3927 = vlaneseq
        %v3928 = vshrl.u32 %v3927, 7
        %v3929 = vsub.s32 %v3926, %v3928
        %v3930 = vrot.slane %v3916, %v3929
        %v3931 = vcombine.low %v3450, %v3474
        %v3932 = vcombine.high %v3450, %v3474
        %v3934 = vunpack.c.l.s4 1983009808
        %v3935 = vunpack.c.0.s8 %v3934
        %v3936 = vlaneseq
        %v3937 = vshrl.u32 %v3936, 7
        %v3938 = vsub.s32 %v3935, %v3937
        %v3939 = vrot.slane %v3931, %v3938
        %v3941 = vunpack.c.l.s4 1983009808
        %v3942 = vunpack.c.0.s8 %v3941
        %v3943 = vlaneseq
        %v3944 = vshrl.u32 %v3943, 7
        %v3945 = vsub.s32 %v3942, %v3944
        %v3946 = vrot.slane %v3932, %v3945
        %v3947 = vcombine.low %v3462, %v3486
        %v3948 = vcombine.high %v3462, %v3486
        %v3950 = vunpack.c.l.s4 1983009808
        %v3951 = vunpack.c.0.s8 %v3950
        %v3952 = vlaneseq
        %v3953 = vshrl.u32 %v3952, 7
        %v3954 = vsub.s32 %v3951, %v3953
        %v3955 = vrot.slane %v3947, %v3954
        %v3957 = vunpack.c.l.s4 1983009808
        %v3958 = vunpack.c.0.s8 %v3957
        %v3959 = vlaneseq
        %v3960 = vshrl.u32 %v3959, 7
        %v3961 = vsub.s32 %v3958, %v3960
        %v3962 = vrot.slane %v3948, %v3961
        %v3963 = vcombine.low %v3907, %v3923
        %v3964 = vcombine.high %v3907, %v3923
        %v3966 = vunpack.c.l.s4 1934713408
        %v3967 = vunpack.c.0.s8 %v3966
        %v3968 = vlaneseq
        %v3969 = vshrl.u32 %v3968, 7
        %v3970 = vsub.s32 %v3967, %v3969
        %v3971 = vrot.slane %v3963, %v3970
        %v3973 = vunpack.c.l.s4 1934713408
        %v3974 = vunpack.c.0.s8 %v3973
        %v3975 = vlaneseq
        %v3976 = vshrl.u32 %v3975, 7
        %v3977 = vsub.s32 %v3974, %v3976
        %v3978 = vrot.slane %v3964, %v3977
        %v3979 = vcombine.low %v3914, %v3930
        %v3980 = vcombine.high %v3914, %v3930
        %v3982 = vunpack.c.l.s4 1934713408
        %v3983 = vunpack.c.0.s8 %v3982
        %v3984 = vlaneseq
        %v3985 = vshrl.u32 %v3984, 7
        %v3986 = vsub.s32 %v3983, %v3985
        %v3987 = vrot.slane %v3979, %v3986
        %v3989 = vunpack.c.l.s4 1934713408
        %v3990 = vunpack.c.0.s8 %v3989
        %v3991 = vlaneseq
        %v3992 = vshrl.u32 %v3991, 7
        %v3993 = vsub.s32 %v3990, %v3992
        %v3994 = vrot.slane %v3980, %v3993
        %v3995 = vcombine.low %v3939, %v3955
        %v3996 = vcombine.high %v3939, %v3955
        %v3998 = vunpack.c.l.s4 1934713408
        %v3999 = vunpack.c.0.s8 %v3998
        %v4000 = vlaneseq
        %v4001 = vshrl.u32 %v4000, 7
        %v4002 = vsub.s32 %v3999, %v4001
        %v4003 = vrot.slane %v3995, %v4002
        %v4005 = vunpack.c.l.s4 1934713408
        %v4006 = vunpack.c.0.s8 %v4005
        %v4007 = vlaneseq
        %v4008 = vshrl.u32 %v4007, 7
        %v4009 = vsub.s32 %v4006, %v4008
        %v4010 = vrot.slane %v3996, %v4009
        %v4011 = vcombine.low %v3946, %v3962
        %v4012 = vcombine.high %v3946, %v3962
        %v4014 = vunpack.c.l.s4 1934713408
        %v4015 = vunpack.c.0.s8 %v4014
        %v4016 = vlaneseq
        %v4017 = vshrl.u32 %v4016, 7
        %v4018 = vsub.s32 %v4015, %v4017
        %v4019 = vrot.slane %v4011, %v4018
        %v4021 = vunpack.c.l.s4 1934713408
        %v4022 = vunpack.c.0.s8 %v4021
        %v4023 = vlaneseq
        %v4024 = vshrl.u32 %v4023, 7
        %v4025 = vsub.s32 %v4022, %v4024
        %v4026 = vrot.slane %v4012, %v4025
        %v4027 = vcombine.low %v3971, %v4003
        %v4028 = vcombine.high %v3971, %v4003
        %v4029 = vcombine.low %v3978, %v4010
        %v4030 = vcombine.high %v3978, %v4010
        %v4031 = vcombine.low %v3987, %v4019
        %v4032 = vcombine.high %v3987, %v4019
        %v4033 = vcombine.low %v3994, %v4026
        %v4034 = vcombine.high %v3994, %v4026
        %v4035 = vcombine.low %v3619, %v3621
        %v4036 = vcombine.high %v3619, %v3621
        %v4038 = vunpack.c.l.s4 1983009808
        %v4039 = vunpack.c.0.s8 %v4038
        %v4040 = vlaneseq
        %v4041 = vshrl.u32 %v4040, 7
        %v4042 = vsub.s32 %v4039, %v4041
        %v4043 = vrot.slane %v4035, %v4042
        %v4045 = vunpack.c.l.s4 1983009808
        %v4046 = vunpack.c.0.s8 %v4045
        %v4047 = vlaneseq
        %v4048 = vshrl.u32 %v4047, 7
        %v4049 = vsub.s32 %v4046, %v4048
        %v4050 = vrot.slane %v4036, %v4049
        %v4051 = vcombine.low %v3620, %v3622
        %v4052 = vcombine.high %v3620, %v3622
        %v4054 = vunpack.c.l.s4 1983009808
        %v4055 = vunpack.c.0.s8 %v4054
        %v4056 = vlaneseq
        %v4057 = vshrl.u32 %v4056, 7
        %v4058 = vsub.s32 %v4055, %v4057
        %v4059 = vrot.slane %v4051, %v4058
        %v4061 = vunpack.c.l.s4 1983009808
        %v4062 = vunpack.c.0.s8 %v4061
        %v4063 = vlaneseq
        %v4064 = vshrl.u32 %v4063, 7
        %v4065 = vsub.s32 %v4062, %v4064
        %v4066 = vrot.slane %v4052, %v4065
        %v4067 = vcombine.low %v3623, %v3625
        %v4068 = vcombine.high %v3623, %v3625
        %v4070 = vunpack.c.l.s4 1983009808
        %v4071 = vunpack.c.0.s8 %v4070
        %v4072 = vlaneseq
        %v4073 = vshrl.u32 %v4072, 7
        %v4074 = vsub.s32 %v4071, %v4073
        %v4075 = vrot.slane %v4067, %v4074
        %v4077 = vunpack.c.l.s4 1983009808
        %v4078 = vunpack.c.0.s8 %v4077
        %v4079 = vlaneseq
        %v4080 = vshrl.u32 %v4079, 7
        %v4081 = vsub.s32 %v4078, %v4080
        %v4082 = vrot.slane %v4068, %v4081
        %v4083 = vcombine.low %v3624, %v3626
        %v4084 = vcombine.high %v3624, %v3626
        %v4086 = vunpack.c.l.s4 1983009808
        %v4087 = vunpack.c.0.s8 %v4086
        %v4088 = vlaneseq
        %v4089 = vshrl.u32 %v4088, 7
        %v4090 = vsub.s32 %v4087, %v4089
        %v4091 = vrot.slane %v4083, %v4090
        %v4093 = vunpack.c.l.s4 1983009808
        %v4094 = vunpack.c.0.s8 %v4093
        %v4095 = vlaneseq
        %v4096 = vshrl.u32 %v4095, 7
        %v4097 = vsub.s32 %v4094, %v4096
        %v4098 = vrot.slane %v4084, %v4097
        %v4099 = vcombine.low %v4043, %v4059
        %v4100 = vcombine.high %v4043, %v4059
        %v4102 = vunpack.c.l.s4 1934713408
        %v4103 = vunpack.c.0.s8 %v4102
        %v4104 = vlaneseq
        %v4105 = vshrl.u32 %v4104, 7
        %v4106 = vsub.s32 %v4103, %v4105
        %v4107 = vrot.slane %v4099, %v4106
        %v4109 = vunpack.c.l.s4 1934713408
        %v4110 = vunpack.c.0.s8 %v4109
        %v4111 = vlaneseq
        %v4112 = vshrl.u32 %v4111, 7
        %v4113 = vsub.s32 %v4110, %v4112
        %v4114 = vrot.slane %v4100, %v4113
        %v4115 = vcombine.low %v4050, %v4066
        %v4116 = vcombine.high %v4050, %v4066
        %v4118 = vunpack.c.l.s4 1934713408
        %v4119 = vunpack.c.0.s8 %v4118
        %v4120 = vlaneseq
        %v4121 = vshrl.u32 %v4120, 7
        %v4122 = vsub.s32 %v4119, %v4121
        %v4123 = vrot.slane %v4115, %v4122
        %v4125 = vunpack.c.l.s4 1934713408
        %v4126 = vunpack.c.0.s8 %v4125
        %v4127 = vlaneseq
        %v4128 = vshrl.u32 %v4127, 7
        %v4129 = vsub.s32 %v4126, %v4128
        %v4130 = vrot.slane %v4116, %v4129
        %v4131 = vcombine.low %v4075, %v4091
        %v4132 = vcombine.high %v4075, %v4091
        %v4134 = vunpack.c.l.s4 1934713408
        %v4135 = vunpack.c.0.s8 %v4134
        %v4136 = vlaneseq
        %v4137 = vshrl.u32 %v4136, 7
        %v4138 = vsub.s32 %v4135, %v4137
        %v4139 = vrot.slane %v4131, %v4138
        %v4141 = vunpack.c.l.s4 1934713408
        %v4142 = vunpack.c.0.s8 %v4141
        %v4143 = vlaneseq
        %v4144 = vshrl.u32 %v4143, 7
        %v4145 = vsub.s32 %v4142, %v4144
        %v4146 = vrot.slane %v4132, %v4145
        %v4147 = vcombine.low %v4082, %v4098
        %v4148 = vcombine.high %v4082, %v4098
        %v4150 = vunpack.c.l.s4 1934713408
        %v4151 = vunpack.c.0.s8 %v4150
        %v4152 = vlaneseq
        %v4153 = vshrl.u32 %v4152, 7
        %v4154 = vsub.s32 %v4151, %v4153
        %v4155 = vrot.slane %v4147, %v4154
        %v4157 = vunpack.c.l.s4 1934713408
        %v4158 = vunpack.c.0.s8 %v4157
        %v4159 = vlaneseq
        %v4160 = vshrl.u32 %v4159, 7
        %v4161 = vsub.s32 %v4158, %v4160
        %v4162 = vrot.slane %v4148, %v4161
        %v4163 = vcombine.low %v4107, %v4139
        %v4164 = vcombine.high %v4107, %v4139
        %v4165 = vcombine.low %v4114, %v4146
        %v4166 = vcombine.high %v4114, %v4146
        %v4167 = vcombine.low %v4123, %v4155
        %v4168 = vcombine.high %v4123, %v4155
        %v4169 = vcombine.low %v4130, %v4162
        %v4170 = vcombine.high %v4130, %v4162
        %v4171 = vcombine.low %v3755, %v3757
        %v4172 = vcombine.high %v3755, %v3757
        %v4174 = vunpack.c.l.s4 1983009808
        %v4175 = vunpack.c.0.s8 %v4174
        %v4176 = vlaneseq
        %v4177 = vshrl.u32 %v4176, 7
        %v4178 = vsub.s32 %v4175, %v4177
        %v4179 = vrot.slane %v4171, %v4178
        %v4181 = vunpack.c.l.s4 1983009808
        %v4182 = vunpack.c.0.s8 %v4181
        %v4183 = vlaneseq
        %v4184 = vshrl.u32 %v4183, 7
        %v4185 = vsub.s32 %v4182, %v4184
        %v4186 = vrot.slane %v4172, %v4185
        %v4187 = vcombine.low %v3756, %v3758
        %v4188 = vcombine.high %v3756, %v3758
        %v4190 = vunpack.c.l.s4 1983009808
        %v4191 = vunpack.c.0.s8 %v4190
        %v4192 = vlaneseq
        %v4193 = vshrl.u32 %v4192, 7
        %v4194 = vsub.s32 %v4191, %v4193
        %v4195 = vrot.slane %v4187, %v4194
        %v4197 = vunpack.c.l.s4 1983009808
        %v4198 = vunpack.c.0.s8 %v4197
        %v4199 = vlaneseq
        %v4200 = vshrl.u32 %v4199, 7
        %v4201 = vsub.s32 %v4198, %v4200
        %v4202 = vrot.slane %v4188, %v4201
        %v4203 = vcombine.low %v3759, %v3761
        %v4204 = vcombine.high %v3759, %v3761
        %v4206 = vunpack.c.l.s4 1983009808
        %v4207 = vunpack.c.0.s8 %v4206
        %v4208 = vlaneseq
        %v4209 = vshrl.u32 %v4208, 7
        %v4210 = vsub.s32 %v4207, %v4209
        %v4211 = vrot.slane %v4203, %v4210
        %v4213 = vunpack.c.l.s4 1983009808
        %v4214 = vunpack.c.0.s8 %v4213
        %v4215 = vlaneseq
        %v4216 = vshrl.u32 %v4215, 7
        %v4217 = vsub.s32 %v4214, %v4216
        %v4218 = vrot.slane %v4204, %v4217
        %v4219 = vcombine.low %v3760, %v3762
        %v4220 = vcombine.high %v3760, %v3762
        %v4222 = vunpack.c.l.s4 1983009808
        %v4223 = vunpack.c.0.s8 %v4222
        %v4224 = vlaneseq
        %v4225 = vshrl.u32 %v4224, 7
        %v4226 = vsub.s32 %v4223, %v4225
        %v4227 = vrot.slane %v4219, %v4226
        %v4229 = vunpack.c.l.s4 1983009808
        %v4230 = vunpack.c.0.s8 %v4229
        %v4231 = vlaneseq
        %v4232 = vshrl.u32 %v4231, 7
        %v4233 = vsub.s32 %v4230, %v4232
        %v4234 = vrot.slane %v4220, %v4233
        %v4235 = vcombine.low %v4179, %v4195
        %v4236 = vcombine.high %v4179, %v4195
        %v4238 = vunpack.c.l.s4 1934713408
        %v4239 = vunpack.c.0.s8 %v4238
        %v4240 = vlaneseq
        %v4241 = vshrl.u32 %v4240, 7
        %v4242 = vsub.s32 %v4239, %v4241
        %v4243 = vrot.slane %v4235, %v4242
        %v4245 = vunpack.c.l.s4 1934713408
        %v4246 = vunpack.c.0.s8 %v4245
        %v4247 = vlaneseq
        %v4248 = vshrl.u32 %v4247, 7
        %v4249 = vsub.s32 %v4246, %v4248
        %v4250 = vrot.slane %v4236, %v4249
        %v4251 = vcombine.low %v4186, %v4202
        %v4252 = vcombine.high %v4186, %v4202
        %v4254 = vunpack.c.l.s4 1934713408
        %v4255 = vunpack.c.0.s8 %v4254
        %v4256 = vlaneseq
        %v4257 = vshrl.u32 %v4256, 7
        %v4258 = vsub.s32 %v4255, %v4257
        %v4259 = vrot.slane %v4251, %v4258
        %v4261 = vunpack.c.l.s4 1934713408
        %v4262 = vunpack.c.0.s8 %v4261
        %v4263 = vlaneseq
        %v4264 = vshrl.u32 %v4263, 7
        %v4265 = vsub.s32 %v4262, %v4264
        %v4266 = vrot.slane %v4252, %v4265
        %v4267 = vcombine.low %v4211, %v4227
        %v4268 = vcombine.high %v4211, %v4227
        %v4270 = vunpack.c.l.s4 1934713408
        %v4271 = vunpack.c.0.s8 %v4270
        %v4272 = vlaneseq
        %v4273 = vshrl.u32 %v4272, 7
        %v4274 = vsub.s32 %v4271, %v4273
        %v4275 = vrot.slane %v4267, %v4274
        %v4277 = vunpack.c.l.s4 1934713408
        %v4278 = vunpack.c.0.s8 %v4277
        %v4279 = vlaneseq
        %v4280 = vshrl.u32 %v4279, 7
        %v4281 = vsub.s32 %v4278, %v4280
        %v4282 = vrot.slane %v4268, %v4281
        %v4283 = vcombine.low %v4218, %v4234
        %v4284 = vcombine.high %v4218, %v4234
        %v4286 = vunpack.c.l.s4 1934713408
        %v4287 = vunpack.c.0.s8 %v4286
        %v4288 = vlaneseq
        %v4289 = vshrl.u32 %v4288, 7
        %v4290 = vsub.s32 %v4287, %v4289
        %v4291 = vrot.slane %v4283, %v4290
        %v4293 = vunpack.c.l.s4 1934713408
        %v4294 = vunpack.c.0.s8 %v4293
        %v4295 = vlaneseq
        %v4296 = vshrl.u32 %v4295, 7
        %v4297 = vsub.s32 %v4294, %v4296
        %v4298 = vrot.slane %v4284, %v4297
        %v4299 = vcombine.low %v4243, %v4275
        %v4300 = vcombine.high %v4243, %v4275
        %v4301 = vcombine.low %v4250, %v4282
        %v4302 = vcombine.high %v4250, %v4282
        %v4303 = vcombine.low %v4259, %v4291
        %v4304 = vcombine.high %v4259, %v4291
        %v4305 = vcombine.low %v4266, %v4298
        %v4306 = vcombine.high %v4266, %v4298
        %v4307 = vcombine.low %v3891, %v3893
        %v4308 = vcombine.high %v3891, %v3893
        %v4310 = vunpack.c.l.s4 1983009808
        %v4311 = vunpack.c.0.s8 %v4310
        %v4312 = vlaneseq
        %v4313 = vshrl.u32 %v4312, 7
        %v4314 = vsub.s32 %v4311, %v4313
        %v4315 = vrot.slane %v4307, %v4314
        %v4317 = vunpack.c.l.s4 1983009808
        %v4318 = vunpack.c.0.s8 %v4317
        %v4319 = vlaneseq
        %v4320 = vshrl.u32 %v4319, 7
        %v4321 = vsub.s32 %v4318, %v4320
        %v4322 = vrot.slane %v4308, %v4321
        %v4323 = vcombine.low %v3892, %v3894
        %v4324 = vcombine.high %v3892, %v3894
        %v4326 = vunpack.c.l.s4 1983009808
        %v4327 = vunpack.c.0.s8 %v4326
        %v4328 = vlaneseq
        %v4329 = vshrl.u32 %v4328, 7
        %v4330 = vsub.s32 %v4327, %v4329
        %v4331 = vrot.slane %v4323, %v4330
        %v4333 = vunpack.c.l.s4 1983009808
        %v4334 = vunpack.c.0.s8 %v4333
        %v4335 = vlaneseq
        %v4336 = vshrl.u32 %v4335, 7
        %v4337 = vsub.s32 %v4334, %v4336
        %v4338 = vrot.slane %v4324, %v4337
        %v4339 = vcombine.low %v3895, %v3897
        %v4340 = vcombine.high %v3895, %v3897
        %v4342 = vunpack.c.l.s4 1983009808
        %v4343 = vunpack.c.0.s8 %v4342
        %v4344 = vlaneseq
        %v4345 = vshrl.u32 %v4344, 7
        %v4346 = vsub.s32 %v4343, %v4345
        %v4347 = vrot.slane %v4339, %v4346
        %v4349 = vunpack.c.l.s4 1983009808
        %v4350 = vunpack.c.0.s8 %v4349
        %v4351 = vlaneseq
        %v4352 = vshrl.u32 %v4351, 7
        %v4353 = vsub.s32 %v4350, %v4352
        %v4354 = vrot.slane %v4340, %v4353
        %v4355 = vcombine.low %v3896, %v3898
        %v4356 = vcombine.high %v3896, %v3898
        %v4358 = vunpack.c.l.s4 1983009808
        %v4359 = vunpack.c.0.s8 %v4358
        %v4360 = vlaneseq
        %v4361 = vshrl.u32 %v4360, 7
        %v4362 = vsub.s32 %v4359, %v4361
        %v4363 = vrot.slane %v4355, %v4362
        %v4365 = vunpack.c.l.s4 1983009808
        %v4366 = vunpack.c.0.s8 %v4365
        %v4367 = vlaneseq
        %v4368 = vshrl.u32 %v4367, 7
        %v4369 = vsub.s32 %v4366, %v4368
        %v4370 = vrot.slane %v4356, %v4369
        %v4371 = vcombine.low %v4315, %v4331
        %v4372 = vcombine.high %v4315, %v4331
        %v4374 = vunpack.c.l.s4 1934713408
        %v4375 = vunpack.c.0.s8 %v4374
        %v4376 = vlaneseq
        %v4377 = vshrl.u32 %v4376, 7
        %v4378 = vsub.s32 %v4375, %v4377
        %v4379 = vrot.slane %v4371, %v4378
        %v4381 = vunpack.c.l.s4 1934713408
        %v4382 = vunpack.c.0.s8 %v4381
        %v4383 = vlaneseq
        %v4384 = vshrl.u32 %v4383, 7
        %v4385 = vsub.s32 %v4382, %v4384
        %v4386 = vrot.slane %v4372, %v4385
        %v4387 = vcombine.low %v4322, %v4338
        %v4388 = vcombine.high %v4322, %v4338
        %v4390 = vunpack.c.l.s4 1934713408
        %v4391 = vunpack.c.0.s8 %v4390
        %v4392 = vlaneseq
        %v4393 = vshrl.u32 %v4392, 7
        %v4394 = vsub.s32 %v4391, %v4393
        %v4395 = vrot.slane %v4387, %v4394
        %v4397 = vunpack.c.l.s4 1934713408
        %v4398 = vunpack.c.0.s8 %v4397
        %v4399 = vlaneseq
        %v4400 = vshrl.u32 %v4399, 7
        %v4401 = vsub.s32 %v4398, %v4400
        %v4402 = vrot.slane %v4388, %v4401
        %v4403 = vcombine.low %v4347, %v4363
        %v4404 = vcombine.high %v4347, %v4363
        %v4406 = vunpack.c.l.s4 1934713408
        %v4407 = vunpack.c.0.s8 %v4406
        %v4408 = vlaneseq
        %v4409 = vshrl.u32 %v4408, 7
        %v4410 = vsub.s32 %v4407, %v4409
        %v4411 = vrot.slane %v4403, %v4410
        %v4413 = vunpack.c.l.s4 1934713408
        %v4414 = vunpack.c.0.s8 %v4413
        %v4415 = vlaneseq
        %v4416 = vshrl.u32 %v4415, 7
        %v4417 = vsub.s32 %v4414, %v4416
        %v4418 = vrot.slane %v4404, %v4417
        %v4419 = vcombine.low %v4354, %v4370
        %v4420 = vcombine.high %v4354, %v4370
        %v4422 = vunpack.c.l.s4 1934713408
        %v4423 = vunpack.c.0.s8 %v4422
        %v4424 = vlaneseq
        %v4425 = vshrl.u32 %v4424, 7
        %v4426 = vsub.s32 %v4423, %v4425
        %v4427 = vrot.slane %v4419, %v4426
        %v4429 = vunpack.c.l.s4 1934713408
        %v4430 = vunpack.c.0.s8 %v4429
        %v4431 = vlaneseq
        %v4432 = vshrl.u32 %v4431, 7
        %v4433 = vsub.s32 %v4430, %v4432
        %v4434 = vrot.slane %v4420, %v4433
        %v4435 = vcombine.low %v4379, %v4411
        %v4436 = vcombine.high %v4379, %v4411
        %v4437 = vcombine.low %v4386, %v4418
        %v4438 = vcombine.high %v4386, %v4418
        %v4439 = vcombine.low %v4395, %v4427
        %v4440 = vcombine.high %v4395, %v4427
        %v4441 = vcombine.low %v4402, %v4434
        %v4442 = vcombine.high %v4402, %v4434
        %v4443 = vcombine.low %v4027, %v4029
        %v4444 = vcombine.high %v4027, %v4029
        %v4446 = vunpack.c.l.s4 1983009808
        %v4447 = vunpack.c.0.s8 %v4446
        %v4448 = vlaneseq
        %v4449 = vshrl.u32 %v4448, 7
        %v4450 = vsub.s32 %v4447, %v4449
        %v4451 = vrot.slane %v4443, %v4450
        %v4453 = vunpack.c.l.s4 1983009808
        %v4454 = vunpack.c.0.s8 %v4453
        %v4455 = vlaneseq
        %v4456 = vshrl.u32 %v4455, 7
        %v4457 = vsub.s32 %v4454, %v4456
        %v4458 = vrot.slane %v4444, %v4457
        %v4459 = vcombine.low %v4028, %v4030
        %v4460 = vcombine.high %v4028, %v4030
        %v4462 = vunpack.c.l.s4 1983009808
        %v4463 = vunpack.c.0.s8 %v4462
        %v4464 = vlaneseq
        %v4465 = vshrl.u32 %v4464, 7
        %v4466 = vsub.s32 %v4463, %v4465
        %v4467 = vrot.slane %v4459, %v4466
        %v4469 = vunpack.c.l.s4 1983009808
        %v4470 = vunpack.c.0.s8 %v4469
        %v4471 = vlaneseq
        %v4472 = vshrl.u32 %v4471, 7
        %v4473 = vsub.s32 %v4470, %v4472
        %v4474 = vrot.slane %v4460, %v4473
        %v4475 = vcombine.low %v4031, %v4033
        %v4476 = vcombine.high %v4031, %v4033
        %v4478 = vunpack.c.l.s4 1983009808
        %v4479 = vunpack.c.0.s8 %v4478
        %v4480 = vlaneseq
        %v4481 = vshrl.u32 %v4480, 7
        %v4482 = vsub.s32 %v4479, %v4481
        %v4483 = vrot.slane %v4475, %v4482
        %v4485 = vunpack.c.l.s4 1983009808
        %v4486 = vunpack.c.0.s8 %v4485
        %v4487 = vlaneseq
        %v4488 = vshrl.u32 %v4487, 7
        %v4489 = vsub.s32 %v4486, %v4488
        %v4490 = vrot.slane %v4476, %v4489
        %v4491 = vcombine.low %v4032, %v4034
        %v4492 = vcombine.high %v4032, %v4034
        %v4494 = vunpack.c.l.s4 1983009808
        %v4495 = vunpack.c.0.s8 %v4494
        %v4496 = vlaneseq
        %v4497 = vshrl.u32 %v4496, 7
        %v4498 = vsub.s32 %v4495, %v4497
        %v4499 = vrot.slane %v4491, %v4498
        %v4501 = vunpack.c.l.s4 1983009808
        %v4502 = vunpack.c.0.s8 %v4501
        %v4503 = vlaneseq
        %v4504 = vshrl.u32 %v4503, 7
        %v4505 = vsub.s32 %v4502, %v4504
        %v4506 = vrot.slane %v4492, %v4505
        %v4507 = vcombine.low %v4451, %v4467
        %v4508 = vcombine.high %v4451, %v4467
        %v4510 = vunpack.c.l.s4 1934713408
        %v4511 = vunpack.c.0.s8 %v4510
        %v4512 = vlaneseq
        %v4513 = vshrl.u32 %v4512, 7
        %v4514 = vsub.s32 %v4511, %v4513
        %v4515 = vrot.slane %v4507, %v4514
        %v4517 = vunpack.c.l.s4 1934713408
        %v4518 = vunpack.c.0.s8 %v4517
        %v4519 = vlaneseq
        %v4520 = vshrl.u32 %v4519, 7
        %v4521 = vsub.s32 %v4518, %v4520
        %v4522 = vrot.slane %v4508, %v4521
        %v4523 = vcombine.low %v4458, %v4474
        %v4524 = vcombine.high %v4458, %v4474
        %v4526 = vunpack.c.l.s4 1934713408
        %v4527 = vunpack.c.0.s8 %v4526
        %v4528 = vlaneseq
        %v4529 = vshrl.u32 %v4528, 7
        %v4530 = vsub.s32 %v4527, %v4529
        %v4531 = vrot.slane %v4523, %v4530
        %v4533 = vunpack.c.l.s4 1934713408
        %v4534 = vunpack.c.0.s8 %v4533
        %v4535 = vlaneseq
        %v4536 = vshrl.u32 %v4535, 7
        %v4537 = vsub.s32 %v4534, %v4536
        %v4538 = vrot.slane %v4524, %v4537
        %v4539 = vcombine.low %v4483, %v4499
        %v4540 = vcombine.high %v4483, %v4499
        %v4542 = vunpack.c.l.s4 1934713408
        %v4543 = vunpack.c.0.s8 %v4542
        %v4544 = vlaneseq
        %v4545 = vshrl.u32 %v4544, 7
        %v4546 = vsub.s32 %v4543, %v4545
        %v4547 = vrot.slane %v4539, %v4546
        %v4549 = vunpack.c.l.s4 1934713408
        %v4550 = vunpack.c.0.s8 %v4549
        %v4551 = vlaneseq
        %v4552 = vshrl.u32 %v4551, 7
        %v4553 = vsub.s32 %v4550, %v4552
        %v4554 = vrot.slane %v4540, %v4553
        %v4555 = vcombine.low %v4490, %v4506
        %v4556 = vcombine.high %v4490, %v4506
        %v4558 = vunpack.c.l.s4 1934713408
        %v4559 = vunpack.c.0.s8 %v4558
        %v4560 = vlaneseq
        %v4561 = vshrl.u32 %v4560, 7
        %v4562 = vsub.s32 %v4559, %v4561
        %v4563 = vrot.slane %v4555, %v4562
        %v4565 = vunpack.c.l.s4 1934713408
        %v4566 = vunpack.c.0.s8 %v4565
        %v4567 = vlaneseq
        %v4568 = vshrl.u32 %v4567, 7
        %v4569 = vsub.s32 %v4566, %v4568
        %v4570 = vrot.slane %v4556, %v4569
        %v4571 = vcombine.low %v4515, %v4547
        %v4572 = vcombine.high %v4515, %v4547
        %v4573 = vcombine.low %v4522, %v4554
        %v4574 = vcombine.high %v4522, %v4554
        %v4575 = vcombine.low %v4531, %v4563
        %v4576 = vcombine.high %v4531, %v4563
        %v4577 = vcombine.low %v4538, %v4570
        %v4578 = vcombine.high %v4538, %v4570
        %v4579 = vpack.c.bf16 %v4299, %v4163
        %v4580 = vpack.c.bf16 %v4300, %v4164
        %v4581 = vpack.c.bf16 %v4301, %v4165
        %v4582 = vpack.c.bf16 %v4302, %v4166
        %v4583 = vpack.c.bf16 %v4303, %v4167
        %v4584 = vpack.c.bf16 %v4304, %v4168
        %v4585 = vpack.c.bf16 %v4305, %v4169
        %v4586 = vpack.c.bf16 %v4306, %v4170
        %v4587 = vpack.c.bf16 %v4571, %v4435
        %v4588 = vpack.c.bf16 %v4572, %v4436
        %v4589 = vpack.c.bf16 %v4573, %v4437
        %v4590 = vpack.c.bf16 %v4574, %v4438
        %v4591 = vpack.c.bf16 %v4575, %v4439
        %v4592 = vpack.c.bf16 %v4576, %v4440
        %v4593 = vpack.c.bf16 %v4577, %v4441
        %v4594 = vpack.c.bf16 %v4578, %v4442
        %vm4595 = vcmask 130048
        %v4597 = vsel %vm4595, %v2195, 0
        %v4600 = vsel %vm4595, %v3387, 0
        %4602 = vmatprep.subr.bf16.mxu0 0
        %4603 = vmatpush1.bf16.xpose.msra.mxu0 %v4600
        %4604 = vmatprep.subr.bf16.mxu0 0
        %4605 = vmatpush1.bf16.xpose.msra.mxu0 0
        %4606 = vmatprep.subr.bf16.mxu0 0
        %4607 = vmatpush1.bf16.xpose.msra.mxu0 0
        %4608 = vmatprep.subr.bf16.mxu0 0
        %4609 = vmatpush1.bf16.xpose.msra.mxu0 0
        %4610 = vmatprep.subr.bf16.mxu0 0
        %4611 = vmatpush1.bf16.xpose.msra.mxu0 0
        %4612 = vmatprep.subr.bf16.mxu0 0
        %4613 = vmatpush1.bf16.xpose.msra.mxu0 0
        %4614 = vmatprep.subr.bf16.mxu0 0
        %4615 = vmatpush1.bf16.xpose.msra.mxu0 0
        %4616 = vmatprep.subr.bf16.mxu0 0
        %4617 = vmatpush1.bf16.xpose.msra.mxu0 0
        %4618 = vmatprep.subr.bf16.mxu0 0
        %4619 = vmatpush1.bf16.xpose.msra.mxu0 0
        %4620 = vmatprep.subr.bf16.mxu0 0
        %4621 = vmatpush1.bf16.xpose.msra.mxu0 0
        %4622 = vmatprep.subr.bf16.mxu0 0
        %4623 = vmatpush1.bf16.xpose.msra.mxu0 0
        %4624 = vmatprep.subr.bf16.mxu0 0
        %4625 = vmatpush1.bf16.xpose.msra.mxu0 0
        %4626 = vmatprep.subr.bf16.mxu0 0
        %4627 = vmatpush1.bf16.xpose.msra.mxu0 0
        %4628 = vmatprep.subr.bf16.mxu0 0
        %4629 = vmatpush1.bf16.xpose.msra.mxu0 0
        %4630 = vmatprep.subr.bf16.mxu0 0
        %4631 = vmatpush1.bf16.xpose.msra.mxu0 0
        %4632 = vmatprep.subr.bf16.mxu0 0
        %4633 = vmatpush1.bf16.xpose.msra.mxu0 0
        %4634 = vmatprep.mubr.bf16.mxu0 0
        %4635 = vmatmul.mubr.bf16.gmra.mrb[0].mxu0 %v4597
        %v4636 = vpop.f32.mrb[0].mxu0
        %v4637 = vadd.f32 0.0, %v4636
        %v4638 = vpop.f32.mrb[0].mxu0
        %v4639 = vpop.f32.mrb[0].mxu0
        %v4640 = vadd.f32 0.0, %v4639
        %v4641 = vpop.f32.mrb[0].mxu0
        %4642 = vdwg.mxu0
        %v4644 = vsel %vm4595, %v2196, 0
        %v4647 = vsel %vm4595, %v3388, 0
        %4649 = vmatprep.subr.bf16.mxu0 0
        %4650 = vmatpush1.bf16.xpose.msra.mxu0 %v4647
        %4651 = vmatprep.subr.bf16.mxu0 0
        %4652 = vmatpush1.bf16.xpose.msra.mxu0 0
        %4653 = vmatprep.subr.bf16.mxu0 0
        %4654 = vmatpush1.bf16.xpose.msra.mxu0 0
        %4655 = vmatprep.subr.bf16.mxu0 0
        %4656 = vmatpush1.bf16.xpose.msra.mxu0 0
        %4657 = vmatprep.subr.bf16.mxu0 0
        %4658 = vmatpush1.bf16.xpose.msra.mxu0 0
        %4659 = vmatprep.subr.bf16.mxu0 0
        %4660 = vmatpush1.bf16.xpose.msra.mxu0 0
        %4661 = vmatprep.subr.bf16.mxu0 0
        %4662 = vmatpush1.bf16.xpose.msra.mxu0 0
        %4663 = vmatprep.subr.bf16.mxu0 0
        %4664 = vmatpush1.bf16.xpose.msra.mxu0 0
        %4665 = vmatprep.subr.bf16.mxu0 0
        %4666 = vmatpush1.bf16.xpose.msra.mxu0 0
        %4667 = vmatprep.subr.bf16.mxu0 0
        %4668 = vmatpush1.bf16.xpose.msra.mxu0 0
        %4669 = vmatprep.subr.bf16.mxu0 0
        %4670 = vmatpush1.bf16.xpose.msra.mxu0 0
        %4671 = vmatprep.subr.bf16.mxu0 0
        %4672 = vmatpush1.bf16.xpose.msra.mxu0 0
        %4673 = vmatprep.subr.bf16.mxu0 0
        %4674 = vmatpush1.bf16.xpose.msra.mxu0 0
        %4675 = vmatprep.subr.bf16.mxu0 0
        %4676 = vmatpush1.bf16.xpose.msra.mxu0 0
        %4677 = vmatprep.subr.bf16.mxu0 0
        %4678 = vmatpush1.bf16.xpose.msra.mxu0 0
        %4679 = vmatprep.subr.bf16.mxu0 0
        %4680 = vmatpush1.bf16.xpose.msra.mxu0 0
        %4681 = vmatprep.mubr.bf16.mxu0 0
        %4682 = vmatmul.mubr.bf16.gmra.mrb[0].mxu0 %v4644
        %v4683 = vpop.f32.mrb[0].mxu0
        %v4684 = vadd.f32 0.0, %v4683
        %v4685 = vpop.f32.mrb[0].mxu0
        %v4686 = vpop.f32.mrb[0].mxu0
        %v4687 = vadd.f32 0.0, %v4686
        %v4688 = vpop.f32.mrb[0].mxu0
        %4689 = vdwg.mxu0
        %v4691 = vsel %vm4595, %v2197, 0
        %v4694 = vsel %vm4595, %v3389, 0
        %4696 = vmatprep.subr.bf16.mxu0 0
        %4697 = vmatpush1.bf16.xpose.msra.mxu0 %v4694
        %4698 = vmatprep.subr.bf16.mxu0 0
        %4699 = vmatpush1.bf16.xpose.msra.mxu0 0
        %4700 = vmatprep.subr.bf16.mxu0 0
        %4701 = vmatpush1.bf16.xpose.msra.mxu0 0
        %4702 = vmatprep.subr.bf16.mxu0 0
        %4703 = vmatpush1.bf16.xpose.msra.mxu0 0
        %4704 = vmatprep.subr.bf16.mxu0 0
        %4705 = vmatpush1.bf16.xpose.msra.mxu0 0
        %4706 = vmatprep.subr.bf16.mxu0 0
        %4707 = vmatpush1.bf16.xpose.msra.mxu0 0
        %4708 = vmatprep.subr.bf16.mxu0 0
        %4709 = vmatpush1.bf16.xpose.msra.mxu0 0
        %4710 = vmatprep.subr.bf16.mxu0 0
        %4711 = vmatpush1.bf16.xpose.msra.mxu0 0
        %4712 = vmatprep.subr.bf16.mxu0 0
        %4713 = vmatpush1.bf16.xpose.msra.mxu0 0
        %4714 = vmatprep.subr.bf16.mxu0 0
        %4715 = vmatpush1.bf16.xpose.msra.mxu0 0
        %4716 = vmatprep.subr.bf16.mxu0 0
        %4717 = vmatpush1.bf16.xpose.msra.mxu0 0
        %4718 = vmatprep.subr.bf16.mxu0 0
        %4719 = vmatpush1.bf16.xpose.msra.mxu0 0
        %4720 = vmatprep.subr.bf16.mxu0 0
        %4721 = vmatpush1.bf16.xpose.msra.mxu0 0
        %4722 = vmatprep.subr.bf16.mxu0 0
        %4723 = vmatpush1.bf16.xpose.msra.mxu0 0
        %4724 = vmatprep.subr.bf16.mxu0 0
        %4725 = vmatpush1.bf16.xpose.msra.mxu0 0
        %4726 = vmatprep.subr.bf16.mxu0 0
        %4727 = vmatpush1.bf16.xpose.msra.mxu0 0
        %4728 = vmatprep.mubr.bf16.mxu0 0
        %4729 = vmatmul.mubr.bf16.gmra.mrb[0].mxu0 %v4691
        %v4730 = vpop.f32.mrb[0].mxu0
        %v4731 = vadd.f32 0.0, %v4730
        %v4732 = vpop.f32.mrb[0].mxu0
        %v4733 = vpop.f32.mrb[0].mxu0
        %v4734 = vadd.f32 0.0, %v4733
        %v4735 = vpop.f32.mrb[0].mxu0
        %4736 = vdwg.mxu0
        %v4738 = vsel %vm4595, %v2198, 0
        %v4741 = vsel %vm4595, %v3390, 0
        %4743 = vmatprep.subr.bf16.mxu0 0
        %4744 = vmatpush1.bf16.xpose.msra.mxu0 %v4741
        %4745 = vmatprep.subr.bf16.mxu0 0
        %4746 = vmatpush1.bf16.xpose.msra.mxu0 0
        %4747 = vmatprep.subr.bf16.mxu0 0
        %4748 = vmatpush1.bf16.xpose.msra.mxu0 0
        %4749 = vmatprep.subr.bf16.mxu0 0
        %4750 = vmatpush1.bf16.xpose.msra.mxu0 0
        %4751 = vmatprep.subr.bf16.mxu0 0
        %4752 = vmatpush1.bf16.xpose.msra.mxu0 0
        %4753 = vmatprep.subr.bf16.mxu0 0
        %4754 = vmatpush1.bf16.xpose.msra.mxu0 0
        %4755 = vmatprep.subr.bf16.mxu0 0
        %4756 = vmatpush1.bf16.xpose.msra.mxu0 0
        %4757 = vmatprep.subr.bf16.mxu0 0
        %4758 = vmatpush1.bf16.xpose.msra.mxu0 0
        %4759 = vmatprep.subr.bf16.mxu0 0
        %4760 = vmatpush1.bf16.xpose.msra.mxu0 0
        %4761 = vmatprep.subr.bf16.mxu0 0
        %4762 = vmatpush1.bf16.xpose.msra.mxu0 0
        %4763 = vmatprep.subr.bf16.mxu0 0
        %4764 = vmatpush1.bf16.xpose.msra.mxu0 0
        %4765 = vmatprep.subr.bf16.mxu0 0
        %4766 = vmatpush1.bf16.xpose.msra.mxu0 0
        %4767 = vmatprep.subr.bf16.mxu0 0
        %4768 = vmatpush1.bf16.xpose.msra.mxu0 0
        %4769 = vmatprep.subr.bf16.mxu0 0
        %4770 = vmatpush1.bf16.xpose.msra.mxu0 0
        %4771 = vmatprep.subr.bf16.mxu0 0
        %4772 = vmatpush1.bf16.xpose.msra.mxu0 0
        %4773 = vmatprep.subr.bf16.mxu0 0
        %4774 = vmatpush1.bf16.xpose.msra.mxu0 0
        %4775 = vmatprep.mubr.bf16.mxu0 0
        %4776 = vmatmul.mubr.bf16.gmra.mrb[0].mxu0 %v4738
        %v4777 = vpop.f32.mrb[0].mxu0
        %v4778 = vadd.f32 0.0, %v4777
        %v4779 = vpop.f32.mrb[0].mxu0
        %v4780 = vpop.f32.mrb[0].mxu0
        %v4781 = vadd.f32 0.0, %v4780
        %v4782 = vpop.f32.mrb[0].mxu0
        %4783 = vdwg.mxu0
        %v4785 = vsel %vm4595, %v2199, 0
        %v4788 = vsel %vm4595, %v3391, 0
        %4790 = vmatprep.subr.bf16.mxu0 0
        %4791 = vmatpush1.bf16.xpose.msra.mxu0 %v4788
        %4792 = vmatprep.subr.bf16.mxu0 0
        %4793 = vmatpush1.bf16.xpose.msra.mxu0 0
        %4794 = vmatprep.subr.bf16.mxu0 0
        %4795 = vmatpush1.bf16.xpose.msra.mxu0 0
        %4796 = vmatprep.subr.bf16.mxu0 0
        %4797 = vmatpush1.bf16.xpose.msra.mxu0 0
        %4798 = vmatprep.subr.bf16.mxu0 0
        %4799 = vmatpush1.bf16.xpose.msra.mxu0 0
        %4800 = vmatprep.subr.bf16.mxu0 0
        %4801 = vmatpush1.bf16.xpose.msra.mxu0 0
        %4802 = vmatprep.subr.bf16.mxu0 0
        %4803 = vmatpush1.bf16.xpose.msra.mxu0 0
        %4804 = vmatprep.subr.bf16.mxu0 0
        %4805 = vmatpush1.bf16.xpose.msra.mxu0 0
        %4806 = vmatprep.subr.bf16.mxu0 0
        %4807 = vmatpush1.bf16.xpose.msra.mxu0 0
        %4808 = vmatprep.subr.bf16.mxu0 0
        %4809 = vmatpush1.bf16.xpose.msra.mxu0 0
        %4810 = vmatprep.subr.bf16.mxu0 0
        %4811 = vmatpush1.bf16.xpose.msra.mxu0 0
        %4812 = vmatprep.subr.bf16.mxu0 0
        %4813 = vmatpush1.bf16.xpose.msra.mxu0 0
        %4814 = vmatprep.subr.bf16.mxu0 0
        %4815 = vmatpush1.bf16.xpose.msra.mxu0 0
        %4816 = vmatprep.subr.bf16.mxu0 0
        %4817 = vmatpush1.bf16.xpose.msra.mxu0 0
        %4818 = vmatprep.subr.bf16.mxu0 0
        %4819 = vmatpush1.bf16.xpose.msra.mxu0 0
        %4820 = vmatprep.subr.bf16.mxu0 0
        %4821 = vmatpush1.bf16.xpose.msra.mxu0 0
        %4822 = vmatprep.mubr.bf16.mxu0 0
        %4823 = vmatmul.mubr.bf16.gmra.mrb[0].mxu0 %v4785
        %v4824 = vpop.f32.mrb[0].mxu0
        %v4825 = vadd.f32 0.0, %v4824
        %v4826 = vpop.f32.mrb[0].mxu0
        %v4827 = vpop.f32.mrb[0].mxu0
        %v4828 = vadd.f32 0.0, %v4827
        %v4829 = vpop.f32.mrb[0].mxu0
        %4830 = vdwg.mxu0
        %v4832 = vsel %vm4595, %v2200, 0
        %v4835 = vsel %vm4595, %v3392, 0
        %4837 = vmatprep.subr.bf16.mxu0 0
        %4838 = vmatpush1.bf16.xpose.msra.mxu0 %v4835
        %4839 = vmatprep.subr.bf16.mxu0 0
        %4840 = vmatpush1.bf16.xpose.msra.mxu0 0
        %4841 = vmatprep.subr.bf16.mxu0 0
        %4842 = vmatpush1.bf16.xpose.msra.mxu0 0
        %4843 = vmatprep.subr.bf16.mxu0 0
        %4844 = vmatpush1.bf16.xpose.msra.mxu0 0
        %4845 = vmatprep.subr.bf16.mxu0 0
        %4846 = vmatpush1.bf16.xpose.msra.mxu0 0
        %4847 = vmatprep.subr.bf16.mxu0 0
        %4848 = vmatpush1.bf16.xpose.msra.mxu0 0
        %4849 = vmatprep.subr.bf16.mxu0 0
        %4850 = vmatpush1.bf16.xpose.msra.mxu0 0
        %4851 = vmatprep.subr.bf16.mxu0 0
        %4852 = vmatpush1.bf16.xpose.msra.mxu0 0
        %4853 = vmatprep.subr.bf16.mxu0 0
        %4854 = vmatpush1.bf16.xpose.msra.mxu0 0
        %4855 = vmatprep.subr.bf16.mxu0 0
        %4856 = vmatpush1.bf16.xpose.msra.mxu0 0
        %4857 = vmatprep.subr.bf16.mxu0 0
        %4858 = vmatpush1.bf16.xpose.msra.mxu0 0
        %4859 = vmatprep.subr.bf16.mxu0 0
        %4860 = vmatpush1.bf16.xpose.msra.mxu0 0
        %4861 = vmatprep.subr.bf16.mxu0 0
        %4862 = vmatpush1.bf16.xpose.msra.mxu0 0
        %4863 = vmatprep.subr.bf16.mxu0 0
        %4864 = vmatpush1.bf16.xpose.msra.mxu0 0
        %4865 = vmatprep.subr.bf16.mxu0 0
        %4866 = vmatpush1.bf16.xpose.msra.mxu0 0
        %4867 = vmatprep.subr.bf16.mxu0 0
        %4868 = vmatpush1.bf16.xpose.msra.mxu0 0
        %4869 = vmatprep.mubr.bf16.mxu0 0
        %4870 = vmatmul.mubr.bf16.gmra.mrb[0].mxu0 %v4832
        %v4871 = vpop.f32.mrb[0].mxu0
        %v4872 = vadd.f32 0.0, %v4871
        %v4873 = vpop.f32.mrb[0].mxu0
        %v4874 = vpop.f32.mrb[0].mxu0
        %v4875 = vadd.f32 0.0, %v4874
        %v4876 = vpop.f32.mrb[0].mxu0
        %4877 = vdwg.mxu0
        %v4879 = vsel %vm4595, %v2201, 0
        %v4882 = vsel %vm4595, %v3393, 0
        %4884 = vmatprep.subr.bf16.mxu0 0
        %4885 = vmatpush1.bf16.xpose.msra.mxu0 %v4882
        %4886 = vmatprep.subr.bf16.mxu0 0
        %4887 = vmatpush1.bf16.xpose.msra.mxu0 0
        %4888 = vmatprep.subr.bf16.mxu0 0
        %4889 = vmatpush1.bf16.xpose.msra.mxu0 0
        %4890 = vmatprep.subr.bf16.mxu0 0
        %4891 = vmatpush1.bf16.xpose.msra.mxu0 0
        %4892 = vmatprep.subr.bf16.mxu0 0
        %4893 = vmatpush1.bf16.xpose.msra.mxu0 0
        %4894 = vmatprep.subr.bf16.mxu0 0
        %4895 = vmatpush1.bf16.xpose.msra.mxu0 0
        %4896 = vmatprep.subr.bf16.mxu0 0
        %4897 = vmatpush1.bf16.xpose.msra.mxu0 0
        %4898 = vmatprep.subr.bf16.mxu0 0
        %4899 = vmatpush1.bf16.xpose.msra.mxu0 0
        %4900 = vmatprep.subr.bf16.mxu0 0
        %4901 = vmatpush1.bf16.xpose.msra.mxu0 0
        %4902 = vmatprep.subr.bf16.mxu0 0
        %4903 = vmatpush1.bf16.xpose.msra.mxu0 0
        %4904 = vmatprep.subr.bf16.mxu0 0
        %4905 = vmatpush1.bf16.xpose.msra.mxu0 0
        %4906 = vmatprep.subr.bf16.mxu0 0
        %4907 = vmatpush1.bf16.xpose.msra.mxu0 0
        %4908 = vmatprep.subr.bf16.mxu0 0
        %4909 = vmatpush1.bf16.xpose.msra.mxu0 0
        %4910 = vmatprep.subr.bf16.mxu0 0
        %4911 = vmatpush1.bf16.xpose.msra.mxu0 0
        %4912 = vmatprep.subr.bf16.mxu0 0
        %4913 = vmatpush1.bf16.xpose.msra.mxu0 0
        %4914 = vmatprep.subr.bf16.mxu0 0
        %4915 = vmatpush1.bf16.xpose.msra.mxu0 0
        %4916 = vmatprep.mubr.bf16.mxu0 0
        %4917 = vmatmul.mubr.bf16.gmra.mrb[0].mxu0 %v4879
        %v4918 = vpop.f32.mrb[0].mxu0
        %v4919 = vadd.f32 0.0, %v4918
        %v4920 = vpop.f32.mrb[0].mxu0
        %v4921 = vpop.f32.mrb[0].mxu0
        %v4922 = vadd.f32 0.0, %v4921
        %v4923 = vpop.f32.mrb[0].mxu0
        %4924 = vdwg.mxu0
        %v4926 = vsel %vm4595, %v2202, 0
        %v4929 = vsel %vm4595, %v3394, 0
        %4931 = vmatprep.subr.bf16.mxu0 0
        %4932 = vmatpush1.bf16.xpose.msra.mxu0 %v4929
        %4933 = vmatprep.subr.bf16.mxu0 0
        %4934 = vmatpush1.bf16.xpose.msra.mxu0 0
        %4935 = vmatprep.subr.bf16.mxu0 0
        %4936 = vmatpush1.bf16.xpose.msra.mxu0 0
        %4937 = vmatprep.subr.bf16.mxu0 0
        %4938 = vmatpush1.bf16.xpose.msra.mxu0 0
        %4939 = vmatprep.subr.bf16.mxu0 0
        %4940 = vmatpush1.bf16.xpose.msra.mxu0 0
        %4941 = vmatprep.subr.bf16.mxu0 0
        %4942 = vmatpush1.bf16.xpose.msra.mxu0 0
        %4943 = vmatprep.subr.bf16.mxu0 0
        %4944 = vmatpush1.bf16.xpose.msra.mxu0 0
        %4945 = vmatprep.subr.bf16.mxu0 0
        %4946 = vmatpush1.bf16.xpose.msra.mxu0 0
        %4947 = vmatprep.subr.bf16.mxu0 0
        %4948 = vmatpush1.bf16.xpose.msra.mxu0 0
        %4949 = vmatprep.subr.bf16.mxu0 0
        %4950 = vmatpush1.bf16.xpose.msra.mxu0 0
        %4951 = vmatprep.subr.bf16.mxu0 0
        %4952 = vmatpush1.bf16.xpose.msra.mxu0 0
        %4953 = vmatprep.subr.bf16.mxu0 0
        %4954 = vmatpush1.bf16.xpose.msra.mxu0 0
        %4955 = vmatprep.subr.bf16.mxu0 0
        %4956 = vmatpush1.bf16.xpose.msra.mxu0 0
        %4957 = vmatprep.subr.bf16.mxu0 0
        %4958 = vmatpush1.bf16.xpose.msra.mxu0 0
        %4959 = vmatprep.subr.bf16.mxu0 0
        %4960 = vmatpush1.bf16.xpose.msra.mxu0 0
        %4961 = vmatprep.subr.bf16.mxu0 0
        %4962 = vmatpush1.bf16.xpose.msra.mxu0 0
        %4963 = vmatprep.mubr.bf16.mxu0 0
        %4964 = vmatmul.mubr.bf16.gmra.mrb[0].mxu0 %v4926
        %v4965 = vpop.f32.mrb[0].mxu0
        %v4966 = vadd.f32 0.0, %v4965
        %v4967 = vpop.f32.mrb[0].mxu0
        %v4968 = vpop.f32.mrb[0].mxu0
        %v4969 = vadd.f32 0.0, %v4968
        %v4970 = vpop.f32.mrb[0].mxu0
        %4971 = vdwg.mxu0
        %v4973 = vsel %vm4595, %v2203, 0
        %v4976 = vsel %vm4595, %v3395, 0
        %4978 = vmatprep.subr.bf16.mxu0 0
        %4979 = vmatpush1.bf16.xpose.msra.mxu0 %v4976
        %4980 = vmatprep.subr.bf16.mxu0 0
        %4981 = vmatpush1.bf16.xpose.msra.mxu0 0
        %4982 = vmatprep.subr.bf16.mxu0 0
        %4983 = vmatpush1.bf16.xpose.msra.mxu0 0
        %4984 = vmatprep.subr.bf16.mxu0 0
        %4985 = vmatpush1.bf16.xpose.msra.mxu0 0
        %4986 = vmatprep.subr.bf16.mxu0 0
        %4987 = vmatpush1.bf16.xpose.msra.mxu0 0
        %4988 = vmatprep.subr.bf16.mxu0 0
        %4989 = vmatpush1.bf16.xpose.msra.mxu0 0
        %4990 = vmatprep.subr.bf16.mxu0 0
        %4991 = vmatpush1.bf16.xpose.msra.mxu0 0
        %4992 = vmatprep.subr.bf16.mxu0 0
        %4993 = vmatpush1.bf16.xpose.msra.mxu0 0
        %4994 = vmatprep.subr.bf16.mxu0 0
        %4995 = vmatpush1.bf16.xpose.msra.mxu0 0
        %4996 = vmatprep.subr.bf16.mxu0 0
        %4997 = vmatpush1.bf16.xpose.msra.mxu0 0
        %4998 = vmatprep.subr.bf16.mxu0 0
        %4999 = vmatpush1.bf16.xpose.msra.mxu0 0
        %5000 = vmatprep.subr.bf16.mxu0 0
        %5001 = vmatpush1.bf16.xpose.msra.mxu0 0
        %5002 = vmatprep.subr.bf16.mxu0 0
        %5003 = vmatpush1.bf16.xpose.msra.mxu0 0
        %5004 = vmatprep.subr.bf16.mxu0 0
        %5005 = vmatpush1.bf16.xpose.msra.mxu0 0
        %5006 = vmatprep.subr.bf16.mxu0 0
        %5007 = vmatpush1.bf16.xpose.msra.mxu0 0
        %5008 = vmatprep.subr.bf16.mxu0 0
        %5009 = vmatpush1.bf16.xpose.msra.mxu0 0
        %5010 = vmatprep.mubr.bf16.mxu0 0
        %5011 = vmatmul.mubr.bf16.gmra.mrb[0].mxu0 %v4973
        %v5012 = vpop.f32.mrb[0].mxu0
        %v5013 = vadd.f32 0.0, %v5012
        %v5014 = vpop.f32.mrb[0].mxu0
        %v5015 = vpop.f32.mrb[0].mxu0
        %v5016 = vadd.f32 0.0, %v5015
        %v5017 = vpop.f32.mrb[0].mxu0
        %5018 = vdwg.mxu0
        %v5020 = vsel %vm4595, %v2204, 0
        %v5023 = vsel %vm4595, %v3396, 0
        %5025 = vmatprep.subr.bf16.mxu0 0
        %5026 = vmatpush1.bf16.xpose.msra.mxu0 %v5023
        %5027 = vmatprep.subr.bf16.mxu0 0
        %5028 = vmatpush1.bf16.xpose.msra.mxu0 0
        %5029 = vmatprep.subr.bf16.mxu0 0
        %5030 = vmatpush1.bf16.xpose.msra.mxu0 0
        %5031 = vmatprep.subr.bf16.mxu0 0
        %5032 = vmatpush1.bf16.xpose.msra.mxu0 0
        %5033 = vmatprep.subr.bf16.mxu0 0
        %5034 = vmatpush1.bf16.xpose.msra.mxu0 0
        %5035 = vmatprep.subr.bf16.mxu0 0
        %5036 = vmatpush1.bf16.xpose.msra.mxu0 0
        %5037 = vmatprep.subr.bf16.mxu0 0
        %5038 = vmatpush1.bf16.xpose.msra.mxu0 0
        %5039 = vmatprep.subr.bf16.mxu0 0
        %5040 = vmatpush1.bf16.xpose.msra.mxu0 0
        %5041 = vmatprep.subr.bf16.mxu0 0
        %5042 = vmatpush1.bf16.xpose.msra.mxu0 0
        %5043 = vmatprep.subr.bf16.mxu0 0
        %5044 = vmatpush1.bf16.xpose.msra.mxu0 0
        %5045 = vmatprep.subr.bf16.mxu0 0
        %5046 = vmatpush1.bf16.xpose.msra.mxu0 0
        %5047 = vmatprep.subr.bf16.mxu0 0
        %5048 = vmatpush1.bf16.xpose.msra.mxu0 0
        %5049 = vmatprep.subr.bf16.mxu0 0
        %5050 = vmatpush1.bf16.xpose.msra.mxu0 0
        %5051 = vmatprep.subr.bf16.mxu0 0
        %5052 = vmatpush1.bf16.xpose.msra.mxu0 0
        %5053 = vmatprep.subr.bf16.mxu0 0
        %5054 = vmatpush1.bf16.xpose.msra.mxu0 0
        %5055 = vmatprep.subr.bf16.mxu0 0
        %5056 = vmatpush1.bf16.xpose.msra.mxu0 0
        %5057 = vmatprep.mubr.bf16.mxu0 0
        %5058 = vmatmul.mubr.bf16.gmra.mrb[0].mxu0 %v5020
        %v5059 = vpop.f32.mrb[0].mxu0
        %v5060 = vadd.f32 0.0, %v5059
        %v5061 = vpop.f32.mrb[0].mxu0
        %v5062 = vpop.f32.mrb[0].mxu0
        %v5063 = vadd.f32 0.0, %v5062
        %v5064 = vpop.f32.mrb[0].mxu0
        %5065 = vdwg.mxu0
        %v5067 = vsel %vm4595, %v2205, 0
        %v5070 = vsel %vm4595, %v3397, 0
        %5072 = vmatprep.subr.bf16.mxu0 0
        %5073 = vmatpush1.bf16.xpose.msra.mxu0 %v5070
        %5074 = vmatprep.subr.bf16.mxu0 0
        %5075 = vmatpush1.bf16.xpose.msra.mxu0 0
        %5076 = vmatprep.subr.bf16.mxu0 0
        %5077 = vmatpush1.bf16.xpose.msra.mxu0 0
        %5078 = vmatprep.subr.bf16.mxu0 0
        %5079 = vmatpush1.bf16.xpose.msra.mxu0 0
        %5080 = vmatprep.subr.bf16.mxu0 0
        %5081 = vmatpush1.bf16.xpose.msra.mxu0 0
        %5082 = vmatprep.subr.bf16.mxu0 0
        %5083 = vmatpush1.bf16.xpose.msra.mxu0 0
        %5084 = vmatprep.subr.bf16.mxu0 0
        %5085 = vmatpush1.bf16.xpose.msra.mxu0 0
        %5086 = vmatprep.subr.bf16.mxu0 0
        %5087 = vmatpush1.bf16.xpose.msra.mxu0 0
        %5088 = vmatprep.subr.bf16.mxu0 0
        %5089 = vmatpush1.bf16.xpose.msra.mxu0 0
        %5090 = vmatprep.subr.bf16.mxu0 0
        %5091 = vmatpush1.bf16.xpose.msra.mxu0 0
        %5092 = vmatprep.subr.bf16.mxu0 0
        %5093 = vmatpush1.bf16.xpose.msra.mxu0 0
        %5094 = vmatprep.subr.bf16.mxu0 0
        %5095 = vmatpush1.bf16.xpose.msra.mxu0 0
        %5096 = vmatprep.subr.bf16.mxu0 0
        %5097 = vmatpush1.bf16.xpose.msra.mxu0 0
        %5098 = vmatprep.subr.bf16.mxu0 0
        %5099 = vmatpush1.bf16.xpose.msra.mxu0 0
        %5100 = vmatprep.subr.bf16.mxu0 0
        %5101 = vmatpush1.bf16.xpose.msra.mxu0 0
        %5102 = vmatprep.subr.bf16.mxu0 0
        %5103 = vmatpush1.bf16.xpose.msra.mxu0 0
        %5104 = vmatprep.mubr.bf16.mxu0 0
        %5105 = vmatmul.mubr.bf16.gmra.mrb[0].mxu0 %v5067
        %v5106 = vpop.f32.mrb[0].mxu0
        %v5107 = vadd.f32 0.0, %v5106
        %v5108 = vpop.f32.mrb[0].mxu0
        %v5109 = vpop.f32.mrb[0].mxu0
        %v5110 = vadd.f32 0.0, %v5109
        %v5111 = vpop.f32.mrb[0].mxu0
        %5112 = vdwg.mxu0
        %v5114 = vsel %vm4595, %v2206, 0
        %v5117 = vsel %vm4595, %v3398, 0
        %5119 = vmatprep.subr.bf16.mxu0 0
        %5120 = vmatpush1.bf16.xpose.msra.mxu0 %v5117
        %5121 = vmatprep.subr.bf16.mxu0 0
        %5122 = vmatpush1.bf16.xpose.msra.mxu0 0
        %5123 = vmatprep.subr.bf16.mxu0 0
        %5124 = vmatpush1.bf16.xpose.msra.mxu0 0
        %5125 = vmatprep.subr.bf16.mxu0 0
        %5126 = vmatpush1.bf16.xpose.msra.mxu0 0
        %5127 = vmatprep.subr.bf16.mxu0 0
        %5128 = vmatpush1.bf16.xpose.msra.mxu0 0
        %5129 = vmatprep.subr.bf16.mxu0 0
        %5130 = vmatpush1.bf16.xpose.msra.mxu0 0
        %5131 = vmatprep.subr.bf16.mxu0 0
        %5132 = vmatpush1.bf16.xpose.msra.mxu0 0
        %5133 = vmatprep.subr.bf16.mxu0 0
        %5134 = vmatpush1.bf16.xpose.msra.mxu0 0
        %5135 = vmatprep.subr.bf16.mxu0 0
        %5136 = vmatpush1.bf16.xpose.msra.mxu0 0
        %5137 = vmatprep.subr.bf16.mxu0 0
        %5138 = vmatpush1.bf16.xpose.msra.mxu0 0
        %5139 = vmatprep.subr.bf16.mxu0 0
        %5140 = vmatpush1.bf16.xpose.msra.mxu0 0
        %5141 = vmatprep.subr.bf16.mxu0 0
        %5142 = vmatpush1.bf16.xpose.msra.mxu0 0
        %5143 = vmatprep.subr.bf16.mxu0 0
        %5144 = vmatpush1.bf16.xpose.msra.mxu0 0
        %5145 = vmatprep.subr.bf16.mxu0 0
        %5146 = vmatpush1.bf16.xpose.msra.mxu0 0
        %5147 = vmatprep.subr.bf16.mxu0 0
        %5148 = vmatpush1.bf16.xpose.msra.mxu0 0
        %5149 = vmatprep.subr.bf16.mxu0 0
        %5150 = vmatpush1.bf16.xpose.msra.mxu0 0
        %5151 = vmatprep.mubr.bf16.mxu0 0
        %5152 = vmatmul.mubr.bf16.gmra.mrb[0].mxu0 %v5114
        %v5153 = vpop.f32.mrb[0].mxu0
        %v5154 = vadd.f32 0.0, %v5153
        %v5155 = vpop.f32.mrb[0].mxu0
        %v5156 = vpop.f32.mrb[0].mxu0
        %v5157 = vadd.f32 0.0, %v5156
        %v5158 = vpop.f32.mrb[0].mxu0
        %5159 = vdwg.mxu0
        %v5161 = vsel %vm4595, %v2207, 0
        %v5164 = vsel %vm4595, %v3399, 0
        %5166 = vmatprep.subr.bf16.mxu0 0
        %5167 = vmatpush1.bf16.xpose.msra.mxu0 %v5164
        %5168 = vmatprep.subr.bf16.mxu0 0
        %5169 = vmatpush1.bf16.xpose.msra.mxu0 0
        %5170 = vmatprep.subr.bf16.mxu0 0
        %5171 = vmatpush1.bf16.xpose.msra.mxu0 0
        %5172 = vmatprep.subr.bf16.mxu0 0
        %5173 = vmatpush1.bf16.xpose.msra.mxu0 0
        %5174 = vmatprep.subr.bf16.mxu0 0
        %5175 = vmatpush1.bf16.xpose.msra.mxu0 0
        %5176 = vmatprep.subr.bf16.mxu0 0
        %5177 = vmatpush1.bf16.xpose.msra.mxu0 0
        %5178 = vmatprep.subr.bf16.mxu0 0
        %5179 = vmatpush1.bf16.xpose.msra.mxu0 0
        %5180 = vmatprep.subr.bf16.mxu0 0
        %5181 = vmatpush1.bf16.xpose.msra.mxu0 0
        %5182 = vmatprep.subr.bf16.mxu0 0
        %5183 = vmatpush1.bf16.xpose.msra.mxu0 0
        %5184 = vmatprep.subr.bf16.mxu0 0
        %5185 = vmatpush1.bf16.xpose.msra.mxu0 0
        %5186 = vmatprep.subr.bf16.mxu0 0
        %5187 = vmatpush1.bf16.xpose.msra.mxu0 0
        %5188 = vmatprep.subr.bf16.mxu0 0
        %5189 = vmatpush1.bf16.xpose.msra.mxu0 0
        %5190 = vmatprep.subr.bf16.mxu0 0
        %5191 = vmatpush1.bf16.xpose.msra.mxu0 0
        %5192 = vmatprep.subr.bf16.mxu0 0
        %5193 = vmatpush1.bf16.xpose.msra.mxu0 0
        %5194 = vmatprep.subr.bf16.mxu0 0
        %5195 = vmatpush1.bf16.xpose.msra.mxu0 0
        %5196 = vmatprep.subr.bf16.mxu0 0
        %5197 = vmatpush1.bf16.xpose.msra.mxu0 0
        %5198 = vmatprep.mubr.bf16.mxu0 0
        %5199 = vmatmul.mubr.bf16.gmra.mrb[0].mxu0 %v5161
        %v5200 = vpop.f32.mrb[0].mxu0
        %v5201 = vadd.f32 0.0, %v5200
        %v5202 = vpop.f32.mrb[0].mxu0
        %v5203 = vpop.f32.mrb[0].mxu0
        %v5204 = vadd.f32 0.0, %v5203
        %v5205 = vpop.f32.mrb[0].mxu0
        %5206 = vdwg.mxu0
        %v5208 = vsel %vm4595, %v2208, 0
        %v5211 = vsel %vm4595, %v3400, 0
        %5213 = vmatprep.subr.bf16.mxu0 0
        %5214 = vmatpush1.bf16.xpose.msra.mxu0 %v5211
        %5215 = vmatprep.subr.bf16.mxu0 0
        %5216 = vmatpush1.bf16.xpose.msra.mxu0 0
        %5217 = vmatprep.subr.bf16.mxu0 0
        %5218 = vmatpush1.bf16.xpose.msra.mxu0 0
        %5219 = vmatprep.subr.bf16.mxu0 0
        %5220 = vmatpush1.bf16.xpose.msra.mxu0 0
        %5221 = vmatprep.subr.bf16.mxu0 0
        %5222 = vmatpush1.bf16.xpose.msra.mxu0 0
        %5223 = vmatprep.subr.bf16.mxu0 0
        %5224 = vmatpush1.bf16.xpose.msra.mxu0 0
        %5225 = vmatprep.subr.bf16.mxu0 0
        %5226 = vmatpush1.bf16.xpose.msra.mxu0 0
        %5227 = vmatprep.subr.bf16.mxu0 0
        %5228 = vmatpush1.bf16.xpose.msra.mxu0 0
        %5229 = vmatprep.subr.bf16.mxu0 0
        %5230 = vmatpush1.bf16.xpose.msra.mxu0 0
        %5231 = vmatprep.subr.bf16.mxu0 0
        %5232 = vmatpush1.bf16.xpose.msra.mxu0 0
        %5233 = vmatprep.subr.bf16.mxu0 0
        %5234 = vmatpush1.bf16.xpose.msra.mxu0 0
        %5235 = vmatprep.subr.bf16.mxu0 0
        %5236 = vmatpush1.bf16.xpose.msra.mxu0 0
        %5237 = vmatprep.subr.bf16.mxu0 0
        %5238 = vmatpush1.bf16.xpose.msra.mxu0 0
        %5239 = vmatprep.subr.bf16.mxu0 0
        %5240 = vmatpush1.bf16.xpose.msra.mxu0 0
        %5241 = vmatprep.subr.bf16.mxu0 0
        %5242 = vmatpush1.bf16.xpose.msra.mxu0 0
        %5243 = vmatprep.subr.bf16.mxu0 0
        %5244 = vmatpush1.bf16.xpose.msra.mxu0 0
        %5245 = vmatprep.mubr.bf16.mxu0 0
        %5246 = vmatmul.mubr.bf16.gmra.mrb[0].mxu0 %v5208
        %v5247 = vpop.f32.mrb[0].mxu0
        %v5248 = vadd.f32 0.0, %v5247
        %v5249 = vpop.f32.mrb[0].mxu0
        %v5250 = vpop.f32.mrb[0].mxu0
        %v5251 = vadd.f32 0.0, %v5250
        %v5252 = vpop.f32.mrb[0].mxu0
        %5253 = vdwg.mxu0
        %v5255 = vsel %vm4595, %v2209, 0
        %v5258 = vsel %vm4595, %v3401, 0
        %5260 = vmatprep.subr.bf16.mxu0 0
        %5261 = vmatpush1.bf16.xpose.msra.mxu0 %v5258
        %5262 = vmatprep.subr.bf16.mxu0 0
        %5263 = vmatpush1.bf16.xpose.msra.mxu0 0
        %5264 = vmatprep.subr.bf16.mxu0 0
        %5265 = vmatpush1.bf16.xpose.msra.mxu0 0
        %5266 = vmatprep.subr.bf16.mxu0 0
        %5267 = vmatpush1.bf16.xpose.msra.mxu0 0
        %5268 = vmatprep.subr.bf16.mxu0 0
        %5269 = vmatpush1.bf16.xpose.msra.mxu0 0
        %5270 = vmatprep.subr.bf16.mxu0 0
        %5271 = vmatpush1.bf16.xpose.msra.mxu0 0
        %5272 = vmatprep.subr.bf16.mxu0 0
        %5273 = vmatpush1.bf16.xpose.msra.mxu0 0
        %5274 = vmatprep.subr.bf16.mxu0 0
        %5275 = vmatpush1.bf16.xpose.msra.mxu0 0
        %5276 = vmatprep.subr.bf16.mxu0 0
        %5277 = vmatpush1.bf16.xpose.msra.mxu0 0
        %5278 = vmatprep.subr.bf16.mxu0 0
        %5279 = vmatpush1.bf16.xpose.msra.mxu0 0
        %5280 = vmatprep.subr.bf16.mxu0 0
        %5281 = vmatpush1.bf16.xpose.msra.mxu0 0
        %5282 = vmatprep.subr.bf16.mxu0 0
        %5283 = vmatpush1.bf16.xpose.msra.mxu0 0
        %5284 = vmatprep.subr.bf16.mxu0 0
        %5285 = vmatpush1.bf16.xpose.msra.mxu0 0
        %5286 = vmatprep.subr.bf16.mxu0 0
        %5287 = vmatpush1.bf16.xpose.msra.mxu0 0
        %5288 = vmatprep.subr.bf16.mxu0 0
        %5289 = vmatpush1.bf16.xpose.msra.mxu0 0
        %5290 = vmatprep.subr.bf16.mxu0 0
        %5291 = vmatpush1.bf16.xpose.msra.mxu0 0
        %5292 = vmatprep.mubr.bf16.mxu0 0
        %5293 = vmatmul.mubr.bf16.gmra.mrb[0].mxu0 %v5255
        %v5294 = vpop.f32.mrb[0].mxu0
        %v5295 = vadd.f32 0.0, %v5294
        %v5296 = vpop.f32.mrb[0].mxu0
        %v5297 = vpop.f32.mrb[0].mxu0
        %v5298 = vadd.f32 0.0, %v5297
        %v5299 = vpop.f32.mrb[0].mxu0
        %5300 = vdwg.mxu0
        %v5302 = vsel %vm4595, %v2210, 0
        %v5305 = vsel %vm4595, %v3402, 0
        %5307 = vmatprep.subr.bf16.mxu0 0
        %5308 = vmatpush1.bf16.xpose.msra.mxu0 %v5305
        %5309 = vmatprep.subr.bf16.mxu0 0
        %5310 = vmatpush1.bf16.xpose.msra.mxu0 0
        %5311 = vmatprep.subr.bf16.mxu0 0
        %5312 = vmatpush1.bf16.xpose.msra.mxu0 0
        %5313 = vmatprep.subr.bf16.mxu0 0
        %5314 = vmatpush1.bf16.xpose.msra.mxu0 0
        %5315 = vmatprep.subr.bf16.mxu0 0
        %5316 = vmatpush1.bf16.xpose.msra.mxu0 0
        %5317 = vmatprep.subr.bf16.mxu0 0
        %5318 = vmatpush1.bf16.xpose.msra.mxu0 0
        %5319 = vmatprep.subr.bf16.mxu0 0
        %5320 = vmatpush1.bf16.xpose.msra.mxu0 0
        %5321 = vmatprep.subr.bf16.mxu0 0
        %5322 = vmatpush1.bf16.xpose.msra.mxu0 0
        %5323 = vmatprep.subr.bf16.mxu0 0
        %5324 = vmatpush1.bf16.xpose.msra.mxu0 0
        %5325 = vmatprep.subr.bf16.mxu0 0
        %5326 = vmatpush1.bf16.xpose.msra.mxu0 0
        %5327 = vmatprep.subr.bf16.mxu0 0
        %5328 = vmatpush1.bf16.xpose.msra.mxu0 0
        %5329 = vmatprep.subr.bf16.mxu0 0
        %5330 = vmatpush1.bf16.xpose.msra.mxu0 0
        %5331 = vmatprep.subr.bf16.mxu0 0
        %5332 = vmatpush1.bf16.xpose.msra.mxu0 0
        %5333 = vmatprep.subr.bf16.mxu0 0
        %5334 = vmatpush1.bf16.xpose.msra.mxu0 0
        %5335 = vmatprep.subr.bf16.mxu0 0
        %5336 = vmatpush1.bf16.xpose.msra.mxu0 0
        %5337 = vmatprep.subr.bf16.mxu0 0
        %5338 = vmatpush1.bf16.xpose.msra.mxu0 0
        %5339 = vmatprep.mubr.bf16.mxu0 0
        %5340 = vmatmul.mubr.bf16.gmra.mrb[0].mxu0 %v5302
        %v5341 = vpop.f32.mrb[0].mxu0
        %v5342 = vadd.f32 0.0, %v5341
        %v5343 = vpop.f32.mrb[0].mxu0
        %v5344 = vpop.f32.mrb[0].mxu0
        %v5345 = vadd.f32 0.0, %v5344
        %v5346 = vpop.f32.mrb[0].mxu0
        %5347 = vdwg.mxu0
        %v5348 = vsel %vm4595, %v4637, -inf
        %5349 = vmax.xlane.f32.xlu0 %v5348
        %v5350 = vpop.xlane.xlu0 %5349
        %v5351 = vsel %vm4595, %v4640, -inf
        %5352 = vmax.xlane.f32.xlu0 %v5351
        %v5353 = vpop.xlane.xlu0 %5352
        %v5354 = vsel %vm4595, %v4684, -inf
        %5355 = vmax.xlane.f32.xlu0 %v5354
        %v5356 = vpop.xlane.xlu0 %5355
        %v5357 = vsel %vm4595, %v4687, -inf
        %5358 = vmax.xlane.f32.xlu0 %v5357
        %v5359 = vpop.xlane.xlu0 %5358
        %v5360 = vsel %vm4595, %v4731, -inf
        %5361 = vmax.xlane.f32.xlu0 %v5360
        %v5362 = vpop.xlane.xlu0 %5361
        %v5363 = vsel %vm4595, %v4734, -inf
        %5364 = vmax.xlane.f32.xlu0 %v5363
        %v5365 = vpop.xlane.xlu0 %5364
        %v5366 = vsel %vm4595, %v4778, -inf
        %5367 = vmax.xlane.f32.xlu0 %v5366
        %v5368 = vpop.xlane.xlu0 %5367
        %v5369 = vsel %vm4595, %v4781, -inf
        %5370 = vmax.xlane.f32.xlu0 %v5369
        %v5371 = vpop.xlane.xlu0 %5370
        %v5372 = vsel %vm4595, %v4825, -inf
        %5373 = vmax.xlane.f32.xlu0 %v5372
        %v5374 = vpop.xlane.xlu0 %5373
        %v5375 = vsel %vm4595, %v4828, -inf
        %5376 = vmax.xlane.f32.xlu0 %v5375
        %v5377 = vpop.xlane.xlu0 %5376
        %v5378 = vsel %vm4595, %v4872, -inf
        %5379 = vmax.xlane.f32.xlu0 %v5378
        %v5380 = vpop.xlane.xlu0 %5379
        %v5381 = vsel %vm4595, %v4875, -inf
        %5382 = vmax.xlane.f32.xlu0 %v5381
        %v5383 = vpop.xlane.xlu0 %5382
        %v5384 = vsel %vm4595, %v4919, -inf
        %5385 = vmax.xlane.f32.xlu0 %v5384
        %v5386 = vpop.xlane.xlu0 %5385
        %v5387 = vsel %vm4595, %v4922, -inf
        %5388 = vmax.xlane.f32.xlu0 %v5387
        %v5389 = vpop.xlane.xlu0 %5388
        %v5390 = vsel %vm4595, %v4966, -inf
        %5391 = vmax.xlane.f32.xlu0 %v5390
        %v5392 = vpop.xlane.xlu0 %5391
        %v5393 = vsel %vm4595, %v4969, -inf
        %5394 = vmax.xlane.f32.xlu0 %v5393
        %v5395 = vpop.xlane.xlu0 %5394
        %v5396 = vsel %vm4595, %v5013, -inf
        %5397 = vmax.xlane.f32.xlu0 %v5396
        %v5398 = vpop.xlane.xlu0 %5397
        %v5399 = vsel %vm4595, %v5016, -inf
        %5400 = vmax.xlane.f32.xlu0 %v5399
        %v5401 = vpop.xlane.xlu0 %5400
        %v5402 = vsel %vm4595, %v5060, -inf
        %5403 = vmax.xlane.f32.xlu0 %v5402
        %v5404 = vpop.xlane.xlu0 %5403
        %v5405 = vsel %vm4595, %v5063, -inf
        %5406 = vmax.xlane.f32.xlu0 %v5405
        %v5407 = vpop.xlane.xlu0 %5406
        %v5408 = vsel %vm4595, %v5107, -inf
        %5409 = vmax.xlane.f32.xlu0 %v5408
        %v5410 = vpop.xlane.xlu0 %5409
        %v5411 = vsel %vm4595, %v5110, -inf
        %5412 = vmax.xlane.f32.xlu0 %v5411
        %v5413 = vpop.xlane.xlu0 %5412
        %v5414 = vsel %vm4595, %v5154, -inf
        %5415 = vmax.xlane.f32.xlu0 %v5414
        %v5416 = vpop.xlane.xlu0 %5415
        %v5417 = vsel %vm4595, %v5157, -inf
        %5418 = vmax.xlane.f32.xlu0 %v5417
        %v5419 = vpop.xlane.xlu0 %5418
        %v5420 = vsel %vm4595, %v5201, -inf
        %5421 = vmax.xlane.f32.xlu0 %v5420
        %v5422 = vpop.xlane.xlu0 %5421
        %v5423 = vsel %vm4595, %v5204, -inf
        %5424 = vmax.xlane.f32.xlu0 %v5423
        %v5425 = vpop.xlane.xlu0 %5424
        %v5426 = vsel %vm4595, %v5248, -inf
        %5427 = vmax.xlane.f32.xlu0 %v5426
        %v5428 = vpop.xlane.xlu0 %5427
        %v5429 = vsel %vm4595, %v5251, -inf
        %5430 = vmax.xlane.f32.xlu0 %v5429
        %v5431 = vpop.xlane.xlu0 %5430
        %v5432 = vsel %vm4595, %v5295, -inf
        %5433 = vmax.xlane.f32.xlu0 %v5432
        %v5434 = vpop.xlane.xlu0 %5433
        %v5435 = vsel %vm4595, %v5298, -inf
        %5436 = vmax.xlane.f32.xlu0 %v5435
        %v5437 = vpop.xlane.xlu0 %5436
        %v5438 = vsel %vm4595, %v5342, -inf
        %5439 = vmax.xlane.f32.xlu0 %v5438
        %v5440 = vpop.xlane.xlu0 %5439
        %v5441 = vsel %vm4595, %v5345, -inf
        %5442 = vmax.xlane.f32.xlu0 %v5441
        %v5443 = vpop.xlane.xlu0 %5442
        %v5444 = vsub.f32 %v4637, %v5350
        %v5445 = vsub.f32 %v4640, %v5353
        %v5446 = vsub.f32 %v4684, %v5356
        %v5447 = vsub.f32 %v4687, %v5359
        %v5448 = vsub.f32 %v4731, %v5362
        %v5449 = vsub.f32 %v4734, %v5365
        %v5450 = vsub.f32 %v4778, %v5368
        %v5451 = vsub.f32 %v4781, %v5371
        %v5452 = vsub.f32 %v4825, %v5374
        %v5453 = vsub.f32 %v4828, %v5377
        %v5454 = vsub.f32 %v4872, %v5380
        %v5455 = vsub.f32 %v4875, %v5383
        %v5456 = vsub.f32 %v4919, %v5386
        %v5457 = vsub.f32 %v4922, %v5389
        %v5458 = vsub.f32 %v4966, %v5392
        %v5459 = vsub.f32 %v4969, %v5395
        %v5460 = vsub.f32 %v5013, %v5398
        %v5461 = vsub.f32 %v5016, %v5401
        %v5462 = vsub.f32 %v5060, %v5404
        %v5463 = vsub.f32 %v5063, %v5407
        %v5464 = vsub.f32 %v5107, %v5410
        %v5465 = vsub.f32 %v5110, %v5413
        %v5466 = vsub.f32 %v5154, %v5416
        %v5467 = vsub.f32 %v5157, %v5419
        %v5468 = vsub.f32 %v5201, %v5422
        %v5469 = vsub.f32 %v5204, %v5425
        %v5470 = vsub.f32 %v5248, %v5428
        %v5471 = vsub.f32 %v5251, %v5431
        %v5472 = vsub.f32 %v5295, %v5434
        %v5473 = vsub.f32 %v5298, %v5437
        %v5474 = vsub.f32 %v5342, %v5440
        %v5475 = vsub.f32 %v5345, %v5443
        %v5476 = vmul.f32 %v5444, 1.442695
        %v5477 = vpow.pop %v5476
        %v5478 = vmul.f32 %v5445, 1.442695
        %v5479 = vpow.pop %v5478
        %v5480 = vmul.f32 %v5446, 1.442695
        %v5481 = vpow.pop %v5480
        %v5482 = vmul.f32 %v5447, 1.442695
        %v5483 = vpow.pop %v5482
        %v5484 = vmul.f32 %v5448, 1.442695
        %v5485 = vpow.pop %v5484
        %v5486 = vmul.f32 %v5449, 1.442695
        %v5487 = vpow.pop %v5486
        %v5488 = vmul.f32 %v5450, 1.442695
        %v5489 = vpow.pop %v5488
        %v5490 = vmul.f32 %v5451, 1.442695
        %v5491 = vpow.pop %v5490
        %v5492 = vmul.f32 %v5452, 1.442695
        %v5493 = vpow.pop %v5492
        %v5494 = vmul.f32 %v5453, 1.442695
        %v5495 = vpow.pop %v5494
        %v5496 = vmul.f32 %v5454, 1.442695
        %v5497 = vpow.pop %v5496
        %v5498 = vmul.f32 %v5455, 1.442695
        %v5499 = vpow.pop %v5498
        %v5500 = vmul.f32 %v5456, 1.442695
        %v5501 = vpow.pop %v5500
        %v5502 = vmul.f32 %v5457, 1.442695
        %v5503 = vpow.pop %v5502
        %v5504 = vmul.f32 %v5458, 1.442695
        %v5505 = vpow.pop %v5504
        %v5506 = vmul.f32 %v5459, 1.442695
        %v5507 = vpow.pop %v5506
        %v5508 = vmul.f32 %v5460, 1.442695
        %v5509 = vpow.pop %v5508
        %v5510 = vmul.f32 %v5461, 1.442695
        %v5511 = vpow.pop %v5510
        %v5512 = vmul.f32 %v5462, 1.442695
        %v5513 = vpow.pop %v5512
        %v5514 = vmul.f32 %v5463, 1.442695
        %v5515 = vpow.pop %v5514
        %v5516 = vmul.f32 %v5464, 1.442695
        %v5517 = vpow.pop %v5516
        %v5518 = vmul.f32 %v5465, 1.442695
        %v5519 = vpow.pop %v5518
        %v5520 = vmul.f32 %v5466, 1.442695
        %v5521 = vpow.pop %v5520
        %v5522 = vmul.f32 %v5467, 1.442695
        %v5523 = vpow.pop %v5522
        %v5524 = vmul.f32 %v5468, 1.442695
        %v5525 = vpow.pop %v5524
        %v5526 = vmul.f32 %v5469, 1.442695
        %v5527 = vpow.pop %v5526
        %v5528 = vmul.f32 %v5470, 1.442695
        %v5529 = vpow.pop %v5528
        %v5530 = vmul.f32 %v5471, 1.442695
        %v5531 = vpow.pop %v5530
        %v5532 = vmul.f32 %v5472, 1.442695
        %v5533 = vpow.pop %v5532
        %v5534 = vmul.f32 %v5473, 1.442695
        %v5535 = vpow.pop %v5534
        %v5536 = vmul.f32 %v5474, 1.442695
        %v5537 = vpow.pop %v5536
        %v5538 = vmul.f32 %v5475, 1.442695
        %v5539 = vpow.pop %v5538
        %v5540 = vsel %vm4595, %v5477, 0.0
        %5541 = vadd.xlane.f32.xlu0 %v5540
        %v5542 = vpop.xlane.xlu0 %5541
        %v5543 = vsel %vm4595, %v5479, 0.0
        %5544 = vadd.xlane.f32.xlu0 %v5543
        %v5545 = vpop.xlane.xlu0 %5544
        %v5546 = vsel %vm4595, %v5481, 0.0
        %5547 = vadd.xlane.f32.xlu0 %v5546
        %v5548 = vpop.xlane.xlu0 %5547
        %v5549 = vsel %vm4595, %v5483, 0.0
        %5550 = vadd.xlane.f32.xlu0 %v5549
        %v5551 = vpop.xlane.xlu0 %5550
        %v5552 = vsel %vm4595, %v5485, 0.0
        %5553 = vadd.xlane.f32.xlu0 %v5552
        %v5554 = vpop.xlane.xlu0 %5553
        %v5555 = vsel %vm4595, %v5487, 0.0
        %5556 = vadd.xlane.f32.xlu0 %v5555
        %v5557 = vpop.xlane.xlu0 %5556
        %v5558 = vsel %vm4595, %v5489, 0.0
        %5559 = vadd.xlane.f32.xlu0 %v5558
        %v5560 = vpop.xlane.xlu0 %5559
        %v5561 = vsel %vm4595, %v5491, 0.0
        %5562 = vadd.xlane.f32.xlu0 %v5561
        %v5563 = vpop.xlane.xlu0 %5562
        %v5564 = vsel %vm4595, %v5493, 0.0
        %5565 = vadd.xlane.f32.xlu0 %v5564
        %v5566 = vpop.xlane.xlu0 %5565
        %v5567 = vsel %vm4595, %v5495, 0.0
        %5568 = vadd.xlane.f32.xlu0 %v5567
        %v5569 = vpop.xlane.xlu0 %5568
        %v5570 = vsel %vm4595, %v5497, 0.0
        %5571 = vadd.xlane.f32.xlu0 %v5570
        %v5572 = vpop.xlane.xlu0 %5571
        %v5573 = vsel %vm4595, %v5499, 0.0
        %5574 = vadd.xlane.f32.xlu0 %v5573
        %v5575 = vpop.xlane.xlu0 %5574
        %v5576 = vsel %vm4595, %v5501, 0.0
        %5577 = vadd.xlane.f32.xlu0 %v5576
        %v5578 = vpop.xlane.xlu0 %5577
        %v5579 = vsel %vm4595, %v5503, 0.0
        %5580 = vadd.xlane.f32.xlu0 %v5579
        %v5581 = vpop.xlane.xlu0 %5580
        %v5582 = vsel %vm4595, %v5505, 0.0
        %5583 = vadd.xlane.f32.xlu0 %v5582
        %v5584 = vpop.xlane.xlu0 %5583
        %v5585 = vsel %vm4595, %v5507, 0.0
        %5586 = vadd.xlane.f32.xlu0 %v5585
        %v5587 = vpop.xlane.xlu0 %5586
        %v5588 = vsel %vm4595, %v5509, 0.0
        %5589 = vadd.xlane.f32.xlu0 %v5588
        %v5590 = vpop.xlane.xlu0 %5589
        %v5591 = vsel %vm4595, %v5511, 0.0
        %5592 = vadd.xlane.f32.xlu0 %v5591
        %v5593 = vpop.xlane.xlu0 %5592
        %v5594 = vsel %vm4595, %v5513, 0.0
        %5595 = vadd.xlane.f32.xlu0 %v5594
        %v5596 = vpop.xlane.xlu0 %5595
        %v5597 = vsel %vm4595, %v5515, 0.0
        %5598 = vadd.xlane.f32.xlu0 %v5597
        %v5599 = vpop.xlane.xlu0 %5598
        %v5600 = vsel %vm4595, %v5517, 0.0
        %5601 = vadd.xlane.f32.xlu0 %v5600
        %v5602 = vpop.xlane.xlu0 %5601
        %v5603 = vsel %vm4595, %v5519, 0.0
        %5604 = vadd.xlane.f32.xlu0 %v5603
        %v5605 = vpop.xlane.xlu0 %5604
        %v5606 = vsel %vm4595, %v5521, 0.0
        %5607 = vadd.xlane.f32.xlu0 %v5606
        %v5608 = vpop.xlane.xlu0 %5607
        %v5609 = vsel %vm4595, %v5523, 0.0
        %5610 = vadd.xlane.f32.xlu0 %v5609
        %v5611 = vpop.xlane.xlu0 %5610
        %v5612 = vsel %vm4595, %v5525, 0.0
        %5613 = vadd.xlane.f32.xlu0 %v5612
        %v5614 = vpop.xlane.xlu0 %5613
        %v5615 = vsel %vm4595, %v5527, 0.0
        %5616 = vadd.xlane.f32.xlu0 %v5615
        %v5617 = vpop.xlane.xlu0 %5616
        %v5618 = vsel %vm4595, %v5529, 0.0
        %5619 = vadd.xlane.f32.xlu0 %v5618
        %v5620 = vpop.xlane.xlu0 %5619
        %v5621 = vsel %vm4595, %v5531, 0.0
        %5622 = vadd.xlane.f32.xlu0 %v5621
        %v5623 = vpop.xlane.xlu0 %5622
        %v5624 = vsel %vm4595, %v5533, 0.0
        %5625 = vadd.xlane.f32.xlu0 %v5624
        %v5626 = vpop.xlane.xlu0 %5625
        %v5627 = vsel %vm4595, %v5535, 0.0
        %5628 = vadd.xlane.f32.xlu0 %v5627
        %v5629 = vpop.xlane.xlu0 %5628
        %v5630 = vsel %vm4595, %v5537, 0.0
        %5631 = vadd.xlane.f32.xlu0 %v5630
        %v5632 = vpop.xlane.xlu0 %5631
        %v5633 = vsel %vm4595, %v5539, 0.0
        %5634 = vadd.xlane.f32.xlu0 %v5633
        %v5635 = vpop.xlane.xlu0 %5634
        %v5636 = vrcp.pop %v5542
        %v5637 = vrcp.pop %v5545
        %v5638 = vrcp.pop %v5548
        %v5639 = vrcp.pop %v5551
        %v5640 = vrcp.pop %v5554
        %v5641 = vrcp.pop %v5557
        %v5642 = vrcp.pop %v5560
        %v5643 = vrcp.pop %v5563
        %v5644 = vrcp.pop %v5566
        %v5645 = vrcp.pop %v5569
        %v5646 = vrcp.pop %v5572
        %v5647 = vrcp.pop %v5575
        %v5648 = vrcp.pop %v5578
        %v5649 = vrcp.pop %v5581
        %v5650 = vrcp.pop %v5584
        %v5651 = vrcp.pop %v5587
        %v5652 = vrcp.pop %v5590
        %v5653 = vrcp.pop %v5593
        %v5654 = vrcp.pop %v5596
        %v5655 = vrcp.pop %v5599
        %v5656 = vrcp.pop %v5602
        %v5657 = vrcp.pop %v5605
        %v5658 = vrcp.pop %v5608
        %v5659 = vrcp.pop %v5611
        %v5660 = vrcp.pop %v5614
        %v5661 = vrcp.pop %v5617
        %v5662 = vrcp.pop %v5620
        %v5663 = vrcp.pop %v5623
        %v5664 = vrcp.pop %v5626
        %v5665 = vrcp.pop %v5629
        %v5666 = vrcp.pop %v5632
        %v5667 = vrcp.pop %v5635
        %v5668 = vmul.f32 %v5477, %v5636
        %v5669 = vmul.f32 %v5479, %v5637
        %v5670 = vmul.f32 %v5481, %v5638
        %v5671 = vmul.f32 %v5483, %v5639
        %v5672 = vmul.f32 %v5485, %v5640
        %v5673 = vmul.f32 %v5487, %v5641
        %v5674 = vmul.f32 %v5489, %v5642
        %v5675 = vmul.f32 %v5491, %v5643
        %v5676 = vmul.f32 %v5493, %v5644
        %v5677 = vmul.f32 %v5495, %v5645
        %v5678 = vmul.f32 %v5497, %v5646
        %v5679 = vmul.f32 %v5499, %v5647
        %v5680 = vmul.f32 %v5501, %v5648
        %v5681 = vmul.f32 %v5503, %v5649
        %v5682 = vmul.f32 %v5505, %v5650
        %v5683 = vmul.f32 %v5507, %v5651
        %v5684 = vmul.f32 %v5509, %v5652
        %v5685 = vmul.f32 %v5511, %v5653
        %v5686 = vmul.f32 %v5513, %v5654
        %v5687 = vmul.f32 %v5515, %v5655
        %v5688 = vmul.f32 %v5517, %v5656
        %v5689 = vmul.f32 %v5519, %v5657
        %v5690 = vmul.f32 %v5521, %v5658
        %v5691 = vmul.f32 %v5523, %v5659
        %v5692 = vmul.f32 %v5525, %v5660
        %v5693 = vmul.f32 %v5527, %v5661
        %v5694 = vmul.f32 %v5529, %v5662
        %v5695 = vmul.f32 %v5531, %v5663
        %v5696 = vmul.f32 %v5533, %v5664
        %v5697 = vmul.f32 %v5535, %v5665
        %v5698 = vmul.f32 %v5537, %v5666
        %v5699 = vmul.f32 %v5539, %v5667
        %v5700 = vpack.c.bf16 %v5669, %v5668
        %v5701 = vpack.c.bf16 %v5671, %v5670
        %v5702 = vpack.c.bf16 %v5673, %v5672
        %v5703 = vpack.c.bf16 %v5675, %v5674
        %v5704 = vpack.c.bf16 %v5677, %v5676
        %v5705 = vpack.c.bf16 %v5679, %v5678
        %v5706 = vpack.c.bf16 %v5681, %v5680
        %v5707 = vpack.c.bf16 %v5683, %v5682
        %v5708 = vpack.c.bf16 %v5685, %v5684
        %v5709 = vpack.c.bf16 %v5687, %v5686
        %v5710 = vpack.c.bf16 %v5689, %v5688
        %v5711 = vpack.c.bf16 %v5691, %v5690
        %v5712 = vpack.c.bf16 %v5693, %v5692
        %v5713 = vpack.c.bf16 %v5695, %v5694
        %v5714 = vpack.c.bf16 %v5697, %v5696
        %v5715 = vpack.c.bf16 %v5699, %v5698
        %v5717 = vsel %vm4595, %v5700, 0
        %5719 = vmatprep.subr.bf16.mxu0 0
        %5720 = vmatpush1.bf16.msra.mxu0 %v4579
        %5721 = vmatprep.subr.bf16.mxu0 0
        %5722 = vmatpush1.bf16.msra.mxu0 0
        %5723 = vmatprep.subr.bf16.mxu0 0
        %5724 = vmatpush1.bf16.msra.mxu0 0
        %5725 = vmatprep.subr.bf16.mxu0 0
        %5726 = vmatpush1.bf16.msra.mxu0 0
        %5727 = vmatprep.subr.bf16.mxu0 0
        %5728 = vmatpush1.bf16.msra.mxu0 0
        %5729 = vmatprep.subr.bf16.mxu0 0
        %5730 = vmatpush1.bf16.msra.mxu0 0
        %5731 = vmatprep.subr.bf16.mxu0 0
        %5732 = vmatpush1.bf16.msra.mxu0 0
        %5733 = vmatprep.subr.bf16.mxu0 0
        %5734 = vmatpush1.bf16.msra.mxu0 0
        %5735 = vmatprep.subr.bf16.mxu0 0
        %5736 = vmatpush1.bf16.msra.mxu0 0
        %5737 = vmatprep.subr.bf16.mxu0 0
        %5738 = vmatpush1.bf16.msra.mxu0 0
        %5739 = vmatprep.subr.bf16.mxu0 0
        %5740 = vmatpush1.bf16.msra.mxu0 0
        %5741 = vmatprep.subr.bf16.mxu0 0
        %5742 = vmatpush1.bf16.msra.mxu0 0
        %5743 = vmatprep.subr.bf16.mxu0 0
        %5744 = vmatpush1.bf16.msra.mxu0 0
        %5745 = vmatprep.subr.bf16.mxu0 0
        %5746 = vmatpush1.bf16.msra.mxu0 0
        %5747 = vmatprep.subr.bf16.mxu0 0
        %5748 = vmatpush1.bf16.msra.mxu0 0
        %5749 = vmatprep.subr.bf16.mxu0 0
        %5750 = vmatpush1.bf16.msra.mxu0 0
        %5751 = vmatprep.mubr.bf16.mxu0 0
        %5752 = vmatmul.mubr.bf16.gmra.mrb[0].mxu0 %v5717
        %v5753 = vpop.f32.mrb[0].mxu0
        %v5754 = vadd.f32 0.0, %v5753
        %v5755 = vpop.f32.mrb[0].mxu0
        %v5756 = vpop.f32.mrb[0].mxu0
        %v5757 = vadd.f32 0.0, %v5756
        %v5758 = vpop.f32.mrb[0].mxu0
        %5759 = vdwg.mxu0
        %v5761 = vsel %vm4595, %v5701, 0
        %5763 = vmatprep.subr.bf16.mxu0 0
        %5764 = vmatpush1.bf16.msra.mxu0 %v4580
        %5765 = vmatprep.subr.bf16.mxu0 0
        %5766 = vmatpush1.bf16.msra.mxu0 0
        %5767 = vmatprep.subr.bf16.mxu0 0
        %5768 = vmatpush1.bf16.msra.mxu0 0
        %5769 = vmatprep.subr.bf16.mxu0 0
        %5770 = vmatpush1.bf16.msra.mxu0 0
        %5771 = vmatprep.subr.bf16.mxu0 0
        %5772 = vmatpush1.bf16.msra.mxu0 0
        %5773 = vmatprep.subr.bf16.mxu0 0
        %5774 = vmatpush1.bf16.msra.mxu0 0
        %5775 = vmatprep.subr.bf16.mxu0 0
        %5776 = vmatpush1.bf16.msra.mxu0 0
        %5777 = vmatprep.subr.bf16.mxu0 0
        %5778 = vmatpush1.bf16.msra.mxu0 0
        %5779 = vmatprep.subr.bf16.mxu0 0
        %5780 = vmatpush1.bf16.msra.mxu0 0
        %5781 = vmatprep.subr.bf16.mxu0 0
        %5782 = vmatpush1.bf16.msra.mxu0 0
        %5783 = vmatprep.subr.bf16.mxu0 0
        %5784 = vmatpush1.bf16.msra.mxu0 0
        %5785 = vmatprep.subr.bf16.mxu0 0
        %5786 = vmatpush1.bf16.msra.mxu0 0
        %5787 = vmatprep.subr.bf16.mxu0 0
        %5788 = vmatpush1.bf16.msra.mxu0 0
        %5789 = vmatprep.subr.bf16.mxu0 0
        %5790 = vmatpush1.bf16.msra.mxu0 0
        %5791 = vmatprep.subr.bf16.mxu0 0
        %5792 = vmatpush1.bf16.msra.mxu0 0
        %5793 = vmatprep.subr.bf16.mxu0 0
        %5794 = vmatpush1.bf16.msra.mxu0 0
        %5795 = vmatprep.mubr.bf16.mxu0 0
        %5796 = vmatmul.mubr.bf16.gmra.mrb[0].mxu0 %v5761
        %v5797 = vpop.f32.mrb[0].mxu0
        %v5798 = vadd.f32 0.0, %v5797
        %v5799 = vpop.f32.mrb[0].mxu0
        %v5800 = vpop.f32.mrb[0].mxu0
        %v5801 = vadd.f32 0.0, %v5800
        %v5802 = vpop.f32.mrb[0].mxu0
        %5803 = vdwg.mxu0
        %v5805 = vsel %vm4595, %v5702, 0
        %5807 = vmatprep.subr.bf16.mxu0 0
        %5808 = vmatpush1.bf16.msra.mxu0 %v4581
        %5809 = vmatprep.subr.bf16.mxu0 0
        %5810 = vmatpush1.bf16.msra.mxu0 0
        %5811 = vmatprep.subr.bf16.mxu0 0
        %5812 = vmatpush1.bf16.msra.mxu0 0
        %5813 = vmatprep.subr.bf16.mxu0 0
        %5814 = vmatpush1.bf16.msra.mxu0 0
        %5815 = vmatprep.subr.bf16.mxu0 0
        %5816 = vmatpush1.bf16.msra.mxu0 0
        %5817 = vmatprep.subr.bf16.mxu0 0
        %5818 = vmatpush1.bf16.msra.mxu0 0
        %5819 = vmatprep.subr.bf16.mxu0 0
        %5820 = vmatpush1.bf16.msra.mxu0 0
        %5821 = vmatprep.subr.bf16.mxu0 0
        %5822 = vmatpush1.bf16.msra.mxu0 0
        %5823 = vmatprep.subr.bf16.mxu0 0
        %5824 = vmatpush1.bf16.msra.mxu0 0
        %5825 = vmatprep.subr.bf16.mxu0 0
        %5826 = vmatpush1.bf16.msra.mxu0 0
        %5827 = vmatprep.subr.bf16.mxu0 0
        %5828 = vmatpush1.bf16.msra.mxu0 0
        %5829 = vmatprep.subr.bf16.mxu0 0
        %5830 = vmatpush1.bf16.msra.mxu0 0
        %5831 = vmatprep.subr.bf16.mxu0 0
        %5832 = vmatpush1.bf16.msra.mxu0 0
        %5833 = vmatprep.subr.bf16.mxu0 0
        %5834 = vmatpush1.bf16.msra.mxu0 0
        %5835 = vmatprep.subr.bf16.mxu0 0
        %5836 = vmatpush1.bf16.msra.mxu0 0
        %5837 = vmatprep.subr.bf16.mxu0 0
        %5838 = vmatpush1.bf16.msra.mxu0 0
        %5839 = vmatprep.mubr.bf16.mxu0 0
        %5840 = vmatmul.mubr.bf16.gmra.mrb[0].mxu0 %v5805
        %v5841 = vpop.f32.mrb[0].mxu0
        %v5842 = vadd.f32 0.0, %v5841
        %v5843 = vpop.f32.mrb[0].mxu0
        %v5844 = vpop.f32.mrb[0].mxu0
        %v5845 = vadd.f32 0.0, %v5844
        %v5846 = vpop.f32.mrb[0].mxu0
        %5847 = vdwg.mxu0
        %v5849 = vsel %vm4595, %v5703, 0
        %5851 = vmatprep.subr.bf16.mxu0 0
        %5852 = vmatpush1.bf16.msra.mxu0 %v4582
        %5853 = vmatprep.subr.bf16.mxu0 0
        %5854 = vmatpush1.bf16.msra.mxu0 0
        %5855 = vmatprep.subr.bf16.mxu0 0
        %5856 = vmatpush1.bf16.msra.mxu0 0
        %5857 = vmatprep.subr.bf16.mxu0 0
        %5858 = vmatpush1.bf16.msra.mxu0 0
        %5859 = vmatprep.subr.bf16.mxu0 0
        %5860 = vmatpush1.bf16.msra.mxu0 0
        %5861 = vmatprep.subr.bf16.mxu0 0
        %5862 = vmatpush1.bf16.msra.mxu0 0
        %5863 = vmatprep.subr.bf16.mxu0 0
        %5864 = vmatpush1.bf16.msra.mxu0 0
        %5865 = vmatprep.subr.bf16.mxu0 0
        %5866 = vmatpush1.bf16.msra.mxu0 0
        %5867 = vmatprep.subr.bf16.mxu0 0
        %5868 = vmatpush1.bf16.msra.mxu0 0
        %5869 = vmatprep.subr.bf16.mxu0 0
        %5870 = vmatpush1.bf16.msra.mxu0 0
        %5871 = vmatprep.subr.bf16.mxu0 0
        %5872 = vmatpush1.bf16.msra.mxu0 0
        %5873 = vmatprep.subr.bf16.mxu0 0
        %5874 = vmatpush1.bf16.msra.mxu0 0
        %5875 = vmatprep.subr.bf16.mxu0 0
        %5876 = vmatpush1.bf16.msra.mxu0 0
        %5877 = vmatprep.subr.bf16.mxu0 0
        %5878 = vmatpush1.bf16.msra.mxu0 0
        %5879 = vmatprep.subr.bf16.mxu0 0
        %5880 = vmatpush1.bf16.msra.mxu0 0
        %5881 = vmatprep.subr.bf16.mxu0 0
        %5882 = vmatpush1.bf16.msra.mxu0 0
        %5883 = vmatprep.mubr.bf16.mxu0 0
        %5884 = vmatmul.mubr.bf16.gmra.mrb[0].mxu0 %v5849
        %v5885 = vpop.f32.mrb[0].mxu0
        %v5886 = vadd.f32 0.0, %v5885
        %v5887 = vpop.f32.mrb[0].mxu0
        %v5888 = vpop.f32.mrb[0].mxu0
        %v5889 = vadd.f32 0.0, %v5888
        %v5890 = vpop.f32.mrb[0].mxu0
        %5891 = vdwg.mxu0
        %v5893 = vsel %vm4595, %v5704, 0
        %5895 = vmatprep.subr.bf16.mxu0 0
        %5896 = vmatpush1.bf16.msra.mxu0 %v4583
        %5897 = vmatprep.subr.bf16.mxu0 0
        %5898 = vmatpush1.bf16.msra.mxu0 0
        %5899 = vmatprep.subr.bf16.mxu0 0
        %5900 = vmatpush1.bf16.msra.mxu0 0
        %5901 = vmatprep.subr.bf16.mxu0 0
        %5902 = vmatpush1.bf16.msra.mxu0 0
        %5903 = vmatprep.subr.bf16.mxu0 0
        %5904 = vmatpush1.bf16.msra.mxu0 0
        %5905 = vmatprep.subr.bf16.mxu0 0
        %5906 = vmatpush1.bf16.msra.mxu0 0
        %5907 = vmatprep.subr.bf16.mxu0 0
        %5908 = vmatpush1.bf16.msra.mxu0 0
        %5909 = vmatprep.subr.bf16.mxu0 0
        %5910 = vmatpush1.bf16.msra.mxu0 0
        %5911 = vmatprep.subr.bf16.mxu0 0
        %5912 = vmatpush1.bf16.msra.mxu0 0
        %5913 = vmatprep.subr.bf16.mxu0 0
        %5914 = vmatpush1.bf16.msra.mxu0 0
        %5915 = vmatprep.subr.bf16.mxu0 0
        %5916 = vmatpush1.bf16.msra.mxu0 0
        %5917 = vmatprep.subr.bf16.mxu0 0
        %5918 = vmatpush1.bf16.msra.mxu0 0
        %5919 = vmatprep.subr.bf16.mxu0 0
        %5920 = vmatpush1.bf16.msra.mxu0 0
        %5921 = vmatprep.subr.bf16.mxu0 0
        %5922 = vmatpush1.bf16.msra.mxu0 0
        %5923 = vmatprep.subr.bf16.mxu0 0
        %5924 = vmatpush1.bf16.msra.mxu0 0
        %5925 = vmatprep.subr.bf16.mxu0 0
        %5926 = vmatpush1.bf16.msra.mxu0 0
        %5927 = vmatprep.mubr.bf16.mxu0 0
        %5928 = vmatmul.mubr.bf16.gmra.mrb[0].mxu0 %v5893
        %v5929 = vpop.f32.mrb[0].mxu0
        %v5930 = vadd.f32 0.0, %v5929
        %v5931 = vpop.f32.mrb[0].mxu0
        %v5932 = vpop.f32.mrb[0].mxu0
        %v5933 = vadd.f32 0.0, %v5932
        %v5934 = vpop.f32.mrb[0].mxu0
        %5935 = vdwg.mxu0
        %v5937 = vsel %vm4595, %v5705, 0
        %5939 = vmatprep.subr.bf16.mxu0 0
        %5940 = vmatpush1.bf16.msra.mxu0 %v4584
        %5941 = vmatprep.subr.bf16.mxu0 0
        %5942 = vmatpush1.bf16.msra.mxu0 0
        %5943 = vmatprep.subr.bf16.mxu0 0
        %5944 = vmatpush1.bf16.msra.mxu0 0
        %5945 = vmatprep.subr.bf16.mxu0 0
        %5946 = vmatpush1.bf16.msra.mxu0 0
        %5947 = vmatprep.subr.bf16.mxu0 0
        %5948 = vmatpush1.bf16.msra.mxu0 0
        %5949 = vmatprep.subr.bf16.mxu0 0
        %5950 = vmatpush1.bf16.msra.mxu0 0
        %5951 = vmatprep.subr.bf16.mxu0 0
        %5952 = vmatpush1.bf16.msra.mxu0 0
        %5953 = vmatprep.subr.bf16.mxu0 0
        %5954 = vmatpush1.bf16.msra.mxu0 0
        %5955 = vmatprep.subr.bf16.mxu0 0
        %5956 = vmatpush1.bf16.msra.mxu0 0
        %5957 = vmatprep.subr.bf16.mxu0 0
        %5958 = vmatpush1.bf16.msra.mxu0 0
        %5959 = vmatprep.subr.bf16.mxu0 0
        %5960 = vmatpush1.bf16.msra.mxu0 0
        %5961 = vmatprep.subr.bf16.mxu0 0
        %5962 = vmatpush1.bf16.msra.mxu0 0
        %5963 = vmatprep.subr.bf16.mxu0 0
        %5964 = vmatpush1.bf16.msra.mxu0 0
        %5965 = vmatprep.subr.bf16.mxu0 0
        %5966 = vmatpush1.bf16.msra.mxu0 0
        %5967 = vmatprep.subr.bf16.mxu0 0
        %5968 = vmatpush1.bf16.msra.mxu0 0
        %5969 = vmatprep.subr.bf16.mxu0 0
        %5970 = vmatpush1.bf16.msra.mxu0 0
        %5971 = vmatprep.mubr.bf16.mxu0 0
        %5972 = vmatmul.mubr.bf16.gmra.mrb[0].mxu0 %v5937
        %v5973 = vpop.f32.mrb[0].mxu0
        %v5974 = vadd.f32 0.0, %v5973
        %v5975 = vpop.f32.mrb[0].mxu0
        %v5976 = vpop.f32.mrb[0].mxu0
        %v5977 = vadd.f32 0.0, %v5976
        %v5978 = vpop.f32.mrb[0].mxu0
        %5979 = vdwg.mxu0
        %v5981 = vsel %vm4595, %v5706, 0
        %5983 = vmatprep.subr.bf16.mxu0 0
        %5984 = vmatpush1.bf16.msra.mxu0 %v4585
        %5985 = vmatprep.subr.bf16.mxu0 0
        %5986 = vmatpush1.bf16.msra.mxu0 0
        %5987 = vmatprep.subr.bf16.mxu0 0
        %5988 = vmatpush1.bf16.msra.mxu0 0
        %5989 = vmatprep.subr.bf16.mxu0 0
        %5990 = vmatpush1.bf16.msra.mxu0 0
        %5991 = vmatprep.subr.bf16.mxu0 0
        %5992 = vmatpush1.bf16.msra.mxu0 0
        %5993 = vmatprep.subr.bf16.mxu0 0
        %5994 = vmatpush1.bf16.msra.mxu0 0
        %5995 = vmatprep.subr.bf16.mxu0 0
        %5996 = vmatpush1.bf16.msra.mxu0 0
        %5997 = vmatprep.subr.bf16.mxu0 0
        %5998 = vmatpush1.bf16.msra.mxu0 0
        %5999 = vmatprep.subr.bf16.mxu0 0
        %6000 = vmatpush1.bf16.msra.mxu0 0
        %6001 = vmatprep.subr.bf16.mxu0 0
        %6002 = vmatpush1.bf16.msra.mxu0 0
        %6003 = vmatprep.subr.bf16.mxu0 0
        %6004 = vmatpush1.bf16.msra.mxu0 0
        %6005 = vmatprep.subr.bf16.mxu0 0
        %6006 = vmatpush1.bf16.msra.mxu0 0
        %6007 = vmatprep.subr.bf16.mxu0 0
        %6008 = vmatpush1.bf16.msra.mxu0 0
        %6009 = vmatprep.subr.bf16.mxu0 0
        %6010 = vmatpush1.bf16.msra.mxu0 0
        %6011 = vmatprep.subr.bf16.mxu0 0
        %6012 = vmatpush1.bf16.msra.mxu0 0
        %6013 = vmatprep.subr.bf16.mxu0 0
        %6014 = vmatpush1.bf16.msra.mxu0 0
        %6015 = vmatprep.mubr.bf16.mxu0 0
        %6016 = vmatmul.mubr.bf16.gmra.mrb[0].mxu0 %v5981
        %v6017 = vpop.f32.mrb[0].mxu0
        %v6018 = vadd.f32 0.0, %v6017
        %v6019 = vpop.f32.mrb[0].mxu0
        %v6020 = vpop.f32.mrb[0].mxu0
        %v6021 = vadd.f32 0.0, %v6020
        %v6022 = vpop.f32.mrb[0].mxu0
        %6023 = vdwg.mxu0
        %v6025 = vsel %vm4595, %v5707, 0
        %6027 = vmatprep.subr.bf16.mxu0 0
        %6028 = vmatpush1.bf16.msra.mxu0 %v4586
        %6029 = vmatprep.subr.bf16.mxu0 0
        %6030 = vmatpush1.bf16.msra.mxu0 0
        %6031 = vmatprep.subr.bf16.mxu0 0
        %6032 = vmatpush1.bf16.msra.mxu0 0
        %6033 = vmatprep.subr.bf16.mxu0 0
        %6034 = vmatpush1.bf16.msra.mxu0 0
        %6035 = vmatprep.subr.bf16.mxu0 0
        %6036 = vmatpush1.bf16.msra.mxu0 0
        %6037 = vmatprep.subr.bf16.mxu0 0
        %6038 = vmatpush1.bf16.msra.mxu0 0
        %6039 = vmatprep.subr.bf16.mxu0 0
        %6040 = vmatpush1.bf16.msra.mxu0 0
        %6041 = vmatprep.subr.bf16.mxu0 0
        %6042 = vmatpush1.bf16.msra.mxu0 0
        %6043 = vmatprep.subr.bf16.mxu0 0
        %6044 = vmatpush1.bf16.msra.mxu0 0
        %6045 = vmatprep.subr.bf16.mxu0 0
        %6046 = vmatpush1.bf16.msra.mxu0 0
        %6047 = vmatprep.subr.bf16.mxu0 0
        %6048 = vmatpush1.bf16.msra.mxu0 0
        %6049 = vmatprep.subr.bf16.mxu0 0
        %6050 = vmatpush1.bf16.msra.mxu0 0
        %6051 = vmatprep.subr.bf16.mxu0 0
        %6052 = vmatpush1.bf16.msra.mxu0 0
        %6053 = vmatprep.subr.bf16.mxu0 0
        %6054 = vmatpush1.bf16.msra.mxu0 0
        %6055 = vmatprep.subr.bf16.mxu0 0
        %6056 = vmatpush1.bf16.msra.mxu0 0
        %6057 = vmatprep.subr.bf16.mxu0 0
        %6058 = vmatpush1.bf16.msra.mxu0 0
        %6059 = vmatprep.mubr.bf16.mxu0 0
        %6060 = vmatmul.mubr.bf16.gmra.mrb[0].mxu0 %v6025
        %v6061 = vpop.f32.mrb[0].mxu0
        %v6062 = vadd.f32 0.0, %v6061
        %v6063 = vpop.f32.mrb[0].mxu0
        %v6064 = vpop.f32.mrb[0].mxu0
        %v6065 = vadd.f32 0.0, %v6064
        %v6066 = vpop.f32.mrb[0].mxu0
        %6067 = vdwg.mxu0
        %v6069 = vsel %vm4595, %v5708, 0
        %6071 = vmatprep.subr.bf16.mxu0 0
        %6072 = vmatpush1.bf16.msra.mxu0 %v4587
        %6073 = vmatprep.subr.bf16.mxu0 0
        %6074 = vmatpush1.bf16.msra.mxu0 0
        %6075 = vmatprep.subr.bf16.mxu0 0
        %6076 = vmatpush1.bf16.msra.mxu0 0
        %6077 = vmatprep.subr.bf16.mxu0 0
        %6078 = vmatpush1.bf16.msra.mxu0 0
        %6079 = vmatprep.subr.bf16.mxu0 0
        %6080 = vmatpush1.bf16.msra.mxu0 0
        %6081 = vmatprep.subr.bf16.mxu0 0
        %6082 = vmatpush1.bf16.msra.mxu0 0
        %6083 = vmatprep.subr.bf16.mxu0 0
        %6084 = vmatpush1.bf16.msra.mxu0 0
        %6085 = vmatprep.subr.bf16.mxu0 0
        %6086 = vmatpush1.bf16.msra.mxu0 0
        %6087 = vmatprep.subr.bf16.mxu0 0
        %6088 = vmatpush1.bf16.msra.mxu0 0
        %6089 = vmatprep.subr.bf16.mxu0 0
        %6090 = vmatpush1.bf16.msra.mxu0 0
        %6091 = vmatprep.subr.bf16.mxu0 0
        %6092 = vmatpush1.bf16.msra.mxu0 0
        %6093 = vmatprep.subr.bf16.mxu0 0
        %6094 = vmatpush1.bf16.msra.mxu0 0
        %6095 = vmatprep.subr.bf16.mxu0 0
        %6096 = vmatpush1.bf16.msra.mxu0 0
        %6097 = vmatprep.subr.bf16.mxu0 0
        %6098 = vmatpush1.bf16.msra.mxu0 0
        %6099 = vmatprep.subr.bf16.mxu0 0
        %6100 = vmatpush1.bf16.msra.mxu0 0
        %6101 = vmatprep.subr.bf16.mxu0 0
        %6102 = vmatpush1.bf16.msra.mxu0 0
        %6103 = vmatprep.mubr.bf16.mxu0 0
        %6104 = vmatmul.mubr.bf16.gmra.mrb[0].mxu0 %v6069
        %v6105 = vpop.f32.mrb[0].mxu0
        %v6106 = vadd.f32 0.0, %v6105
        %v6107 = vpop.f32.mrb[0].mxu0
        %v6108 = vpop.f32.mrb[0].mxu0
        %v6109 = vadd.f32 0.0, %v6108
        %v6110 = vpop.f32.mrb[0].mxu0
        %6111 = vdwg.mxu0
        %v6113 = vsel %vm4595, %v5709, 0
        %6115 = vmatprep.subr.bf16.mxu0 0
        %6116 = vmatpush1.bf16.msra.mxu0 %v4588
        %6117 = vmatprep.subr.bf16.mxu0 0
        %6118 = vmatpush1.bf16.msra.mxu0 0
        %6119 = vmatprep.subr.bf16.mxu0 0
        %6120 = vmatpush1.bf16.msra.mxu0 0
        %6121 = vmatprep.subr.bf16.mxu0 0
        %6122 = vmatpush1.bf16.msra.mxu0 0
        %6123 = vmatprep.subr.bf16.mxu0 0
        %6124 = vmatpush1.bf16.msra.mxu0 0
        %6125 = vmatprep.subr.bf16.mxu0 0
        %6126 = vmatpush1.bf16.msra.mxu0 0
        %6127 = vmatprep.subr.bf16.mxu0 0
        %6128 = vmatpush1.bf16.msra.mxu0 0
        %6129 = vmatprep.subr.bf16.mxu0 0
        %6130 = vmatpush1.bf16.msra.mxu0 0
        %6131 = vmatprep.subr.bf16.mxu0 0
        %6132 = vmatpush1.bf16.msra.mxu0 0
        %6133 = vmatprep.subr.bf16.mxu0 0
        %6134 = vmatpush1.bf16.msra.mxu0 0
        %6135 = vmatprep.subr.bf16.mxu0 0
        %6136 = vmatpush1.bf16.msra.mxu0 0
        %6137 = vmatprep.subr.bf16.mxu0 0
        %6138 = vmatpush1.bf16.msra.mxu0 0
        %6139 = vmatprep.subr.bf16.mxu0 0
        %6140 = vmatpush1.bf16.msra.mxu0 0
        %6141 = vmatprep.subr.bf16.mxu0 0
        %6142 = vmatpush1.bf16.msra.mxu0 0
        %6143 = vmatprep.subr.bf16.mxu0 0
        %6144 = vmatpush1.bf16.msra.mxu0 0
        %6145 = vmatprep.subr.bf16.mxu0 0
        %6146 = vmatpush1.bf16.msra.mxu0 0
        %6147 = vmatprep.mubr.bf16.mxu0 0
        %6148 = vmatmul.mubr.bf16.gmra.mrb[0].mxu0 %v6113
        %v6149 = vpop.f32.mrb[0].mxu0
        %v6150 = vadd.f32 0.0, %v6149
        %v6151 = vpop.f32.mrb[0].mxu0
        %v6152 = vpop.f32.mrb[0].mxu0
        %v6153 = vadd.f32 0.0, %v6152
        %v6154 = vpop.f32.mrb[0].mxu0
        %6155 = vdwg.mxu0
        %v6157 = vsel %vm4595, %v5710, 0
        %6159 = vmatprep.subr.bf16.mxu0 0
        %6160 = vmatpush1.bf16.msra.mxu0 %v4589
        %6161 = vmatprep.subr.bf16.mxu0 0
        %6162 = vmatpush1.bf16.msra.mxu0 0
        %6163 = vmatprep.subr.bf16.mxu0 0
        %6164 = vmatpush1.bf16.msra.mxu0 0
        %6165 = vmatprep.subr.bf16.mxu0 0
        %6166 = vmatpush1.bf16.msra.mxu0 0
        %6167 = vmatprep.subr.bf16.mxu0 0
        %6168 = vmatpush1.bf16.msra.mxu0 0
        %6169 = vmatprep.subr.bf16.mxu0 0
        %6170 = vmatpush1.bf16.msra.mxu0 0
        %6171 = vmatprep.subr.bf16.mxu0 0
        %6172 = vmatpush1.bf16.msra.mxu0 0
        %6173 = vmatprep.subr.bf16.mxu0 0
        %6174 = vmatpush1.bf16.msra.mxu0 0
        %6175 = vmatprep.subr.bf16.mxu0 0
        %6176 = vmatpush1.bf16.msra.mxu0 0
        %6177 = vmatprep.subr.bf16.mxu0 0
        %6178 = vmatpush1.bf16.msra.mxu0 0
        %6179 = vmatprep.subr.bf16.mxu0 0
        %6180 = vmatpush1.bf16.msra.mxu0 0
        %6181 = vmatprep.subr.bf16.mxu0 0
        %6182 = vmatpush1.bf16.msra.mxu0 0
        %6183 = vmatprep.subr.bf16.mxu0 0
        %6184 = vmatpush1.bf16.msra.mxu0 0
        %6185 = vmatprep.subr.bf16.mxu0 0
        %6186 = vmatpush1.bf16.msra.mxu0 0
        %6187 = vmatprep.subr.bf16.mxu0 0
        %6188 = vmatpush1.bf16.msra.mxu0 0
        %6189 = vmatprep.subr.bf16.mxu0 0
        %6190 = vmatpush1.bf16.msra.mxu0 0
        %6191 = vmatprep.mubr.bf16.mxu0 0
        %6192 = vmatmul.mubr.bf16.gmra.mrb[0].mxu0 %v6157
        %v6193 = vpop.f32.mrb[0].mxu0
        %v6194 = vadd.f32 0.0, %v6193
        %v6195 = vpop.f32.mrb[0].mxu0
        %v6196 = vpop.f32.mrb[0].mxu0
        %v6197 = vadd.f32 0.0, %v6196
        %v6198 = vpop.f32.mrb[0].mxu0
        %6199 = vdwg.mxu0
        %v6201 = vsel %vm4595, %v5711, 0
        %6203 = vmatprep.subr.bf16.mxu0 0
        %6204 = vmatpush1.bf16.msra.mxu0 %v4590
        %6205 = vmatprep.subr.bf16.mxu0 0
        %6206 = vmatpush1.bf16.msra.mxu0 0
        %6207 = vmatprep.subr.bf16.mxu0 0
        %6208 = vmatpush1.bf16.msra.mxu0 0
        %6209 = vmatprep.subr.bf16.mxu0 0
        %6210 = vmatpush1.bf16.msra.mxu0 0
        %6211 = vmatprep.subr.bf16.mxu0 0
        %6212 = vmatpush1.bf16.msra.mxu0 0
        %6213 = vmatprep.subr.bf16.mxu0 0
        %6214 = vmatpush1.bf16.msra.mxu0 0
        %6215 = vmatprep.subr.bf16.mxu0 0
        %6216 = vmatpush1.bf16.msra.mxu0 0
        %6217 = vmatprep.subr.bf16.mxu0 0
        %6218 = vmatpush1.bf16.msra.mxu0 0
        %6219 = vmatprep.subr.bf16.mxu0 0
        %6220 = vmatpush1.bf16.msra.mxu0 0
        %6221 = vmatprep.subr.bf16.mxu0 0
        %6222 = vmatpush1.bf16.msra.mxu0 0
        %6223 = vmatprep.subr.bf16.mxu0 0
        %6224 = vmatpush1.bf16.msra.mxu0 0
        %6225 = vmatprep.subr.bf16.mxu0 0
        %6226 = vmatpush1.bf16.msra.mxu0 0
        %6227 = vmatprep.subr.bf16.mxu0 0
        %6228 = vmatpush1.bf16.msra.mxu0 0
        %6229 = vmatprep.subr.bf16.mxu0 0
        %6230 = vmatpush1.bf16.msra.mxu0 0
        %6231 = vmatprep.subr.bf16.mxu0 0
        %6232 = vmatpush1.bf16.msra.mxu0 0
        %6233 = vmatprep.subr.bf16.mxu0 0
        %6234 = vmatpush1.bf16.msra.mxu0 0
        %6235 = vmatprep.mubr.bf16.mxu0 0
        %6236 = vmatmul.mubr.bf16.gmra.mrb[0].mxu0 %v6201
        %v6237 = vpop.f32.mrb[0].mxu0
        %v6238 = vadd.f32 0.0, %v6237
        %v6239 = vpop.f32.mrb[0].mxu0
        %v6240 = vpop.f32.mrb[0].mxu0
        %v6241 = vadd.f32 0.0, %v6240
        %v6242 = vpop.f32.mrb[0].mxu0
        %6243 = vdwg.mxu0
        %v6245 = vsel %vm4595, %v5712, 0
        %6247 = vmatprep.subr.bf16.mxu0 0
        %6248 = vmatpush1.bf16.msra.mxu0 %v4591
        %6249 = vmatprep.subr.bf16.mxu0 0
        %6250 = vmatpush1.bf16.msra.mxu0 0
        %6251 = vmatprep.subr.bf16.mxu0 0
        %6252 = vmatpush1.bf16.msra.mxu0 0
        %6253 = vmatprep.subr.bf16.mxu0 0
        %6254 = vmatpush1.bf16.msra.mxu0 0
        %6255 = vmatprep.subr.bf16.mxu0 0
        %6256 = vmatpush1.bf16.msra.mxu0 0
        %6257 = vmatprep.subr.bf16.mxu0 0
        %6258 = vmatpush1.bf16.msra.mxu0 0
        %6259 = vmatprep.subr.bf16.mxu0 0
        %6260 = vmatpush1.bf16.msra.mxu0 0
        %6261 = vmatprep.subr.bf16.mxu0 0
        %6262 = vmatpush1.bf16.msra.mxu0 0
        %6263 = vmatprep.subr.bf16.mxu0 0
        %6264 = vmatpush1.bf16.msra.mxu0 0
        %6265 = vmatprep.subr.bf16.mxu0 0
        %6266 = vmatpush1.bf16.msra.mxu0 0
        %6267 = vmatprep.subr.bf16.mxu0 0
        %6268 = vmatpush1.bf16.msra.mxu0 0
        %6269 = vmatprep.subr.bf16.mxu0 0
        %6270 = vmatpush1.bf16.msra.mxu0 0
        %6271 = vmatprep.subr.bf16.mxu0 0
        %6272 = vmatpush1.bf16.msra.mxu0 0
        %6273 = vmatprep.subr.bf16.mxu0 0
        %6274 = vmatpush1.bf16.msra.mxu0 0
        %6275 = vmatprep.subr.bf16.mxu0 0
        %6276 = vmatpush1.bf16.msra.mxu0 0
        %6277 = vmatprep.subr.bf16.mxu0 0
        %6278 = vmatpush1.bf16.msra.mxu0 0
        %6279 = vmatprep.mubr.bf16.mxu0 0
        %6280 = vmatmul.mubr.bf16.gmra.mrb[0].mxu0 %v6245
        %v6281 = vpop.f32.mrb[0].mxu0
        %v6282 = vadd.f32 0.0, %v6281
        %v6283 = vpop.f32.mrb[0].mxu0
        %v6284 = vpop.f32.mrb[0].mxu0
        %v6285 = vadd.f32 0.0, %v6284
        %v6286 = vpop.f32.mrb[0].mxu0
        %6287 = vdwg.mxu0
        %v6289 = vsel %vm4595, %v5713, 0
        %6291 = vmatprep.subr.bf16.mxu0 0
        %6292 = vmatpush1.bf16.msra.mxu0 %v4592
        %6293 = vmatprep.subr.bf16.mxu0 0
        %6294 = vmatpush1.bf16.msra.mxu0 0
        %6295 = vmatprep.subr.bf16.mxu0 0
        %6296 = vmatpush1.bf16.msra.mxu0 0
        %6297 = vmatprep.subr.bf16.mxu0 0
        %6298 = vmatpush1.bf16.msra.mxu0 0
        %6299 = vmatprep.subr.bf16.mxu0 0
        %6300 = vmatpush1.bf16.msra.mxu0 0
        %6301 = vmatprep.subr.bf16.mxu0 0
        %6302 = vmatpush1.bf16.msra.mxu0 0
        %6303 = vmatprep.subr.bf16.mxu0 0
        %6304 = vmatpush1.bf16.msra.mxu0 0
        %6305 = vmatprep.subr.bf16.mxu0 0
        %6306 = vmatpush1.bf16.msra.mxu0 0
        %6307 = vmatprep.subr.bf16.mxu0 0
        %6308 = vmatpush1.bf16.msra.mxu0 0
        %6309 = vmatprep.subr.bf16.mxu0 0
        %6310 = vmatpush1.bf16.msra.mxu0 0
        %6311 = vmatprep.subr.bf16.mxu0 0
        %6312 = vmatpush1.bf16.msra.mxu0 0
        %6313 = vmatprep.subr.bf16.mxu0 0
        %6314 = vmatpush1.bf16.msra.mxu0 0
        %6315 = vmatprep.subr.bf16.mxu0 0
        %6316 = vmatpush1.bf16.msra.mxu0 0
        %6317 = vmatprep.subr.bf16.mxu0 0
        %6318 = vmatpush1.bf16.msra.mxu0 0
        %6319 = vmatprep.subr.bf16.mxu0 0
        %6320 = vmatpush1.bf16.msra.mxu0 0
        %6321 = vmatprep.subr.bf16.mxu0 0
        %6322 = vmatpush1.bf16.msra.mxu0 0
        %6323 = vmatprep.mubr.bf16.mxu0 0
        %6324 = vmatmul.mubr.bf16.gmra.mrb[0].mxu0 %v6289
        %v6325 = vpop.f32.mrb[0].mxu0
        %v6326 = vadd.f32 0.0, %v6325
        %v6327 = vpop.f32.mrb[0].mxu0
        %v6328 = vpop.f32.mrb[0].mxu0
        %v6329 = vadd.f32 0.0, %v6328
        %v6330 = vpop.f32.mrb[0].mxu0
        %6331 = vdwg.mxu0
        %v6333 = vsel %vm4595, %v5714, 0
        %6335 = vmatprep.subr.bf16.mxu0 0
        %6336 = vmatpush1.bf16.msra.mxu0 %v4593
        %6337 = vmatprep.subr.bf16.mxu0 0
        %6338 = vmatpush1.bf16.msra.mxu0 0
        %6339 = vmatprep.subr.bf16.mxu0 0
        %6340 = vmatpush1.bf16.msra.mxu0 0
        %6341 = vmatprep.subr.bf16.mxu0 0
        %6342 = vmatpush1.bf16.msra.mxu0 0
        %6343 = vmatprep.subr.bf16.mxu0 0
        %6344 = vmatpush1.bf16.msra.mxu0 0
        %6345 = vmatprep.subr.bf16.mxu0 0
        %6346 = vmatpush1.bf16.msra.mxu0 0
        %6347 = vmatprep.subr.bf16.mxu0 0
        %6348 = vmatpush1.bf16.msra.mxu0 0
        %6349 = vmatprep.subr.bf16.mxu0 0
        %6350 = vmatpush1.bf16.msra.mxu0 0
        %6351 = vmatprep.subr.bf16.mxu0 0
        %6352 = vmatpush1.bf16.msra.mxu0 0
        %6353 = vmatprep.subr.bf16.mxu0 0
        %6354 = vmatpush1.bf16.msra.mxu0 0
        %6355 = vmatprep.subr.bf16.mxu0 0
        %6356 = vmatpush1.bf16.msra.mxu0 0
        %6357 = vmatprep.subr.bf16.mxu0 0
        %6358 = vmatpush1.bf16.msra.mxu0 0
        %6359 = vmatprep.subr.bf16.mxu0 0
        %6360 = vmatpush1.bf16.msra.mxu0 0
        %6361 = vmatprep.subr.bf16.mxu0 0
        %6362 = vmatpush1.bf16.msra.mxu0 0
        %6363 = vmatprep.subr.bf16.mxu0 0
        %6364 = vmatpush1.bf16.msra.mxu0 0
        %6365 = vmatprep.subr.bf16.mxu0 0
        %6366 = vmatpush1.bf16.msra.mxu0 0
        %6367 = vmatprep.mubr.bf16.mxu0 0
        %6368 = vmatmul.mubr.bf16.gmra.mrb[0].mxu0 %v6333
        %v6369 = vpop.f32.mrb[0].mxu0
        %v6370 = vadd.f32 0.0, %v6369
        %v6371 = vpop.f32.mrb[0].mxu0
        %v6372 = vpop.f32.mrb[0].mxu0
        %v6373 = vadd.f32 0.0, %v6372
        %v6374 = vpop.f32.mrb[0].mxu0
        %6375 = vdwg.mxu0
        %v6377 = vsel %vm4595, %v5715, 0
        %6379 = vmatprep.subr.bf16.mxu0 0
        %6380 = vmatpush1.bf16.msra.mxu0 %v4594
        %6381 = vmatprep.subr.bf16.mxu0 0
        %6382 = vmatpush1.bf16.msra.mxu0 0
        %6383 = vmatprep.subr.bf16.mxu0 0
        %6384 = vmatpush1.bf16.msra.mxu0 0
        %6385 = vmatprep.subr.bf16.mxu0 0
        %6386 = vmatpush1.bf16.msra.mxu0 0
        %6387 = vmatprep.subr.bf16.mxu0 0
        %6388 = vmatpush1.bf16.msra.mxu0 0
        %6389 = vmatprep.subr.bf16.mxu0 0
        %6390 = vmatpush1.bf16.msra.mxu0 0
        %6391 = vmatprep.subr.bf16.mxu0 0
        %6392 = vmatpush1.bf16.msra.mxu0 0
        %6393 = vmatprep.subr.bf16.mxu0 0
        %6394 = vmatpush1.bf16.msra.mxu0 0
        %6395 = vmatprep.subr.bf16.mxu0 0
        %6396 = vmatpush1.bf16.msra.mxu0 0
        %6397 = vmatprep.subr.bf16.mxu0 0
        %6398 = vmatpush1.bf16.msra.mxu0 0
        %6399 = vmatprep.subr.bf16.mxu0 0
        %6400 = vmatpush1.bf16.msra.mxu0 0
        %6401 = vmatprep.subr.bf16.mxu0 0
        %6402 = vmatpush1.bf16.msra.mxu0 0
        %6403 = vmatprep.subr.bf16.mxu0 0
        %6404 = vmatpush1.bf16.msra.mxu0 0
        %6405 = vmatprep.subr.bf16.mxu0 0
        %6406 = vmatpush1.bf16.msra.mxu0 0
        %6407 = vmatprep.subr.bf16.mxu0 0
        %6408 = vmatpush1.bf16.msra.mxu0 0
        %6409 = vmatprep.subr.bf16.mxu0 0
        %6410 = vmatpush1.bf16.msra.mxu0 0
        %6411 = vmatprep.mubr.bf16.mxu0 0
        %6412 = vmatmul.mubr.bf16.gmra.mrb[0].mxu0 %v6377
        %v6413 = vpop.f32.mrb[0].mxu0
        %v6414 = vadd.f32 0.0, %v6413
        %v6415 = vpop.f32.mrb[0].mxu0
        %v6416 = vpop.f32.mrb[0].mxu0
        %v6417 = vadd.f32 0.0, %v6416
        %v6418 = vpop.f32.mrb[0].mxu0
        %6419 = vdwg.mxu0
        %v6420 = vcombine.low %v5754, %v5842
        %v6421 = vcombine.high %v5754, %v5842
        %v6423 = vunpack.c.l.s4 1983009808
        %v6424 = vunpack.c.0.s8 %v6423
        %v6425 = vlaneseq
        %v6426 = vshrl.u32 %v6425, 7
        %v6427 = vsub.s32 %v6424, %v6426
        %v6428 = vrot.slane %v6420, %v6427
        %v6430 = vunpack.c.l.s4 1983009808
        %v6431 = vunpack.c.0.s8 %v6430
        %v6432 = vlaneseq
        %v6433 = vshrl.u32 %v6432, 7
        %v6434 = vsub.s32 %v6431, %v6433
        %v6435 = vrot.slane %v6421, %v6434
        %v6436 = vcombine.low %v5798, %v5886
        %v6437 = vcombine.high %v5798, %v5886
        %v6439 = vunpack.c.l.s4 1983009808
        %v6440 = vunpack.c.0.s8 %v6439
        %v6441 = vlaneseq
        %v6442 = vshrl.u32 %v6441, 7
        %v6443 = vsub.s32 %v6440, %v6442
        %v6444 = vrot.slane %v6436, %v6443
        %v6446 = vunpack.c.l.s4 1983009808
        %v6447 = vunpack.c.0.s8 %v6446
        %v6448 = vlaneseq
        %v6449 = vshrl.u32 %v6448, 7
        %v6450 = vsub.s32 %v6447, %v6449
        %v6451 = vrot.slane %v6437, %v6450
        %v6452 = vcombine.low %v5930, %v6018
        %v6453 = vcombine.high %v5930, %v6018
        %v6455 = vunpack.c.l.s4 1983009808
        %v6456 = vunpack.c.0.s8 %v6455
        %v6457 = vlaneseq
        %v6458 = vshrl.u32 %v6457, 7
        %v6459 = vsub.s32 %v6456, %v6458
        %v6460 = vrot.slane %v6452, %v6459
        %v6462 = vunpack.c.l.s4 1983009808
        %v6463 = vunpack.c.0.s8 %v6462
        %v6464 = vlaneseq
        %v6465 = vshrl.u32 %v6464, 7
        %v6466 = vsub.s32 %v6463, %v6465
        %v6467 = vrot.slane %v6453, %v6466
        %v6468 = vcombine.low %v5974, %v6062
        %v6469 = vcombine.high %v5974, %v6062
        %v6471 = vunpack.c.l.s4 1983009808
        %v6472 = vunpack.c.0.s8 %v6471
        %v6473 = vlaneseq
        %v6474 = vshrl.u32 %v6473, 7
        %v6475 = vsub.s32 %v6472, %v6474
        %v6476 = vrot.slane %v6468, %v6475
        %v6478 = vunpack.c.l.s4 1983009808
        %v6479 = vunpack.c.0.s8 %v6478
        %v6480 = vlaneseq
        %v6481 = vshrl.u32 %v6480, 7
        %v6482 = vsub.s32 %v6479, %v6481
        %v6483 = vrot.slane %v6469, %v6482
        %v6484 = vcombine.low %v6428, %v6444
        %v6485 = vcombine.high %v6428, %v6444
        %v6487 = vunpack.c.l.s4 1934713408
        %v6488 = vunpack.c.0.s8 %v6487
        %v6489 = vlaneseq
        %v6490 = vshrl.u32 %v6489, 7
        %v6491 = vsub.s32 %v6488, %v6490
        %v6492 = vrot.slane %v6484, %v6491
        %v6494 = vunpack.c.l.s4 1934713408
        %v6495 = vunpack.c.0.s8 %v6494
        %v6496 = vlaneseq
        %v6497 = vshrl.u32 %v6496, 7
        %v6498 = vsub.s32 %v6495, %v6497
        %v6499 = vrot.slane %v6485, %v6498
        %v6500 = vcombine.low %v6435, %v6451
        %v6501 = vcombine.high %v6435, %v6451
        %v6503 = vunpack.c.l.s4 1934713408
        %v6504 = vunpack.c.0.s8 %v6503
        %v6505 = vlaneseq
        %v6506 = vshrl.u32 %v6505, 7
        %v6507 = vsub.s32 %v6504, %v6506
        %v6508 = vrot.slane %v6500, %v6507
        %v6510 = vunpack.c.l.s4 1934713408
        %v6511 = vunpack.c.0.s8 %v6510
        %v6512 = vlaneseq
        %v6513 = vshrl.u32 %v6512, 7
        %v6514 = vsub.s32 %v6511, %v6513
        %v6515 = vrot.slane %v6501, %v6514
        %v6516 = vcombine.low %v6460, %v6476
        %v6517 = vcombine.high %v6460, %v6476
        %v6519 = vunpack.c.l.s4 1934713408
        %v6520 = vunpack.c.0.s8 %v6519
        %v6521 = vlaneseq
        %v6522 = vshrl.u32 %v6521, 7
        %v6523 = vsub.s32 %v6520, %v6522
        %v6524 = vrot.slane %v6516, %v6523
        %v6526 = vunpack.c.l.s4 1934713408
        %v6527 = vunpack.c.0.s8 %v6526
        %v6528 = vlaneseq
        %v6529 = vshrl.u32 %v6528, 7
        %v6530 = vsub.s32 %v6527, %v6529
        %v6531 = vrot.slane %v6517, %v6530
        %v6532 = vcombine.low %v6467, %v6483
        %v6533 = vcombine.high %v6467, %v6483
        %v6535 = vunpack.c.l.s4 1934713408
        %v6536 = vunpack.c.0.s8 %v6535
        %v6537 = vlaneseq
        %v6538 = vshrl.u32 %v6537, 7
        %v6539 = vsub.s32 %v6536, %v6538
        %v6540 = vrot.slane %v6532, %v6539
        %v6542 = vunpack.c.l.s4 1934713408
        %v6543 = vunpack.c.0.s8 %v6542
        %v6544 = vlaneseq
        %v6545 = vshrl.u32 %v6544, 7
        %v6546 = vsub.s32 %v6543, %v6545
        %v6547 = vrot.slane %v6533, %v6546
        %v6548 = vcombine.low %v6492, %v6524
        %v6549 = vcombine.high %v6492, %v6524
        %v6550 = vcombine.low %v6499, %v6531
        %v6551 = vcombine.high %v6499, %v6531
        %v6552 = vcombine.low %v6508, %v6540
        %v6553 = vcombine.high %v6508, %v6540
        %v6554 = vcombine.low %v6515, %v6547
        %v6555 = vcombine.high %v6515, %v6547
        %v6556 = vcombine.low %v5757, %v5845
        %v6557 = vcombine.high %v5757, %v5845
        %v6559 = vunpack.c.l.s4 1983009808
        %v6560 = vunpack.c.0.s8 %v6559
        %v6561 = vlaneseq
        %v6562 = vshrl.u32 %v6561, 7
        %v6563 = vsub.s32 %v6560, %v6562
        %v6564 = vrot.slane %v6556, %v6563
        %v6566 = vunpack.c.l.s4 1983009808
        %v6567 = vunpack.c.0.s8 %v6566
        %v6568 = vlaneseq
        %v6569 = vshrl.u32 %v6568, 7
        %v6570 = vsub.s32 %v6567, %v6569
        %v6571 = vrot.slane %v6557, %v6570
        %v6572 = vcombine.low %v5801, %v5889
        %v6573 = vcombine.high %v5801, %v5889
        %v6575 = vunpack.c.l.s4 1983009808
        %v6576 = vunpack.c.0.s8 %v6575
        %v6577 = vlaneseq
        %v6578 = vshrl.u32 %v6577, 7
        %v6579 = vsub.s32 %v6576, %v6578
        %v6580 = vrot.slane %v6572, %v6579
        %v6582 = vunpack.c.l.s4 1983009808
        %v6583 = vunpack.c.0.s8 %v6582
        %v6584 = vlaneseq
        %v6585 = vshrl.u32 %v6584, 7
        %v6586 = vsub.s32 %v6583, %v6585
        %v6587 = vrot.slane %v6573, %v6586
        %v6588 = vcombine.low %v5933, %v6021
        %v6589 = vcombine.high %v5933, %v6021
        %v6591 = vunpack.c.l.s4 1983009808
        %v6592 = vunpack.c.0.s8 %v6591
        %v6593 = vlaneseq
        %v6594 = vshrl.u32 %v6593, 7
        %v6595 = vsub.s32 %v6592, %v6594
        %v6596 = vrot.slane %v6588, %v6595
        %v6598 = vunpack.c.l.s4 1983009808
        %v6599 = vunpack.c.0.s8 %v6598
        %v6600 = vlaneseq
        %v6601 = vshrl.u32 %v6600, 7
        %v6602 = vsub.s32 %v6599, %v6601
        %v6603 = vrot.slane %v6589, %v6602
        %v6604 = vcombine.low %v5977, %v6065
        %v6605 = vcombine.high %v5977, %v6065
        %v6607 = vunpack.c.l.s4 1983009808
        %v6608 = vunpack.c.0.s8 %v6607
        %v6609 = vlaneseq
        %v6610 = vshrl.u32 %v6609, 7
        %v6611 = vsub.s32 %v6608, %v6610
        %v6612 = vrot.slane %v6604, %v6611
        %v6614 = vunpack.c.l.s4 1983009808
        %v6615 = vunpack.c.0.s8 %v6614
        %v6616 = vlaneseq
        %v6617 = vshrl.u32 %v6616, 7
        %v6618 = vsub.s32 %v6615, %v6617
        %v6619 = vrot.slane %v6605, %v6618
        %v6620 = vcombine.low %v6564, %v6580
        %v6621 = vcombine.high %v6564, %v6580
        %v6623 = vunpack.c.l.s4 1934713408
        %v6624 = vunpack.c.0.s8 %v6623
        %v6625 = vlaneseq
        %v6626 = vshrl.u32 %v6625, 7
        %v6627 = vsub.s32 %v6624, %v6626
        %v6628 = vrot.slane %v6620, %v6627
        %v6630 = vunpack.c.l.s4 1934713408
        %v6631 = vunpack.c.0.s8 %v6630
        %v6632 = vlaneseq
        %v6633 = vshrl.u32 %v6632, 7
        %v6634 = vsub.s32 %v6631, %v6633
        %v6635 = vrot.slane %v6621, %v6634
        %v6636 = vcombine.low %v6571, %v6587
        %v6637 = vcombine.high %v6571, %v6587
        %v6639 = vunpack.c.l.s4 1934713408
        %v6640 = vunpack.c.0.s8 %v6639
        %v6641 = vlaneseq
        %v6642 = vshrl.u32 %v6641, 7
        %v6643 = vsub.s32 %v6640, %v6642
        %v6644 = vrot.slane %v6636, %v6643
        %v6646 = vunpack.c.l.s4 1934713408
        %v6647 = vunpack.c.0.s8 %v6646
        %v6648 = vlaneseq
        %v6649 = vshrl.u32 %v6648, 7
        %v6650 = vsub.s32 %v6647, %v6649
        %v6651 = vrot.slane %v6637, %v6650
        %v6652 = vcombine.low %v6596, %v6612
        %v6653 = vcombine.high %v6596, %v6612
        %v6655 = vunpack.c.l.s4 1934713408
        %v6656 = vunpack.c.0.s8 %v6655
        %v6657 = vlaneseq
        %v6658 = vshrl.u32 %v6657, 7
        %v6659 = vsub.s32 %v6656, %v6658
        %v6660 = vrot.slane %v6652, %v6659
        %v6662 = vunpack.c.l.s4 1934713408
        %v6663 = vunpack.c.0.s8 %v6662
        %v6664 = vlaneseq
        %v6665 = vshrl.u32 %v6664, 7
        %v6666 = vsub.s32 %v6663, %v6665
        %v6667 = vrot.slane %v6653, %v6666
        %v6668 = vcombine.low %v6603, %v6619
        %v6669 = vcombine.high %v6603, %v6619
        %v6671 = vunpack.c.l.s4 1934713408
        %v6672 = vunpack.c.0.s8 %v6671
        %v6673 = vlaneseq
        %v6674 = vshrl.u32 %v6673, 7
        %v6675 = vsub.s32 %v6672, %v6674
        %v6676 = vrot.slane %v6668, %v6675
        %v6678 = vunpack.c.l.s4 1934713408
        %v6679 = vunpack.c.0.s8 %v6678
        %v6680 = vlaneseq
        %v6681 = vshrl.u32 %v6680, 7
        %v6682 = vsub.s32 %v6679, %v6681
        %v6683 = vrot.slane %v6669, %v6682
        %v6684 = vcombine.low %v6628, %v6660
        %v6685 = vcombine.high %v6628, %v6660
        %v6686 = vcombine.low %v6635, %v6667
        %v6687 = vcombine.high %v6635, %v6667
        %v6688 = vcombine.low %v6644, %v6676
        %v6689 = vcombine.high %v6644, %v6676
        %v6690 = vcombine.low %v6651, %v6683
        %v6691 = vcombine.high %v6651, %v6683
        %v6692 = vcombine.low %v6106, %v6194
        %v6693 = vcombine.high %v6106, %v6194
        %v6695 = vunpack.c.l.s4 1983009808
        %v6696 = vunpack.c.0.s8 %v6695
        %v6697 = vlaneseq
        %v6698 = vshrl.u32 %v6697, 7
        %v6699 = vsub.s32 %v6696, %v6698
        %v6700 = vrot.slane %v6692, %v6699
        %v6702 = vunpack.c.l.s4 1983009808
        %v6703 = vunpack.c.0.s8 %v6702
        %v6704 = vlaneseq
        %v6705 = vshrl.u32 %v6704, 7
        %v6706 = vsub.s32 %v6703, %v6705
        %v6707 = vrot.slane %v6693, %v6706
        %v6708 = vcombine.low %v6150, %v6238
        %v6709 = vcombine.high %v6150, %v6238
        %v6711 = vunpack.c.l.s4 1983009808
        %v6712 = vunpack.c.0.s8 %v6711
        %v6713 = vlaneseq
        %v6714 = vshrl.u32 %v6713, 7
        %v6715 = vsub.s32 %v6712, %v6714
        %v6716 = vrot.slane %v6708, %v6715
        %v6718 = vunpack.c.l.s4 1983009808
        %v6719 = vunpack.c.0.s8 %v6718
        %v6720 = vlaneseq
        %v6721 = vshrl.u32 %v6720, 7
        %v6722 = vsub.s32 %v6719, %v6721
        %v6723 = vrot.slane %v6709, %v6722
        %v6724 = vcombine.low %v6282, %v6370
        %v6725 = vcombine.high %v6282, %v6370
        %v6727 = vunpack.c.l.s4 1983009808
        %v6728 = vunpack.c.0.s8 %v6727
        %v6729 = vlaneseq
        %v6730 = vshrl.u32 %v6729, 7
        %v6731 = vsub.s32 %v6728, %v6730
        %v6732 = vrot.slane %v6724, %v6731
        %v6734 = vunpack.c.l.s4 1983009808
        %v6735 = vunpack.c.0.s8 %v6734
        %v6736 = vlaneseq
        %v6737 = vshrl.u32 %v6736, 7
        %v6738 = vsub.s32 %v6735, %v6737
        %v6739 = vrot.slane %v6725, %v6738
        %v6740 = vcombine.low %v6326, %v6414
        %v6741 = vcombine.high %v6326, %v6414
        %v6743 = vunpack.c.l.s4 1983009808
        %v6744 = vunpack.c.0.s8 %v6743
        %v6745 = vlaneseq
        %v6746 = vshrl.u32 %v6745, 7
        %v6747 = vsub.s32 %v6744, %v6746
        %v6748 = vrot.slane %v6740, %v6747
        %v6750 = vunpack.c.l.s4 1983009808
        %v6751 = vunpack.c.0.s8 %v6750
        %v6752 = vlaneseq
        %v6753 = vshrl.u32 %v6752, 7
        %v6754 = vsub.s32 %v6751, %v6753
        %v6755 = vrot.slane %v6741, %v6754
        %v6756 = vcombine.low %v6700, %v6716
        %v6757 = vcombine.high %v6700, %v6716
        %v6759 = vunpack.c.l.s4 1934713408
        %v6760 = vunpack.c.0.s8 %v6759
        %v6761 = vlaneseq
        %v6762 = vshrl.u32 %v6761, 7
        %v6763 = vsub.s32 %v6760, %v6762
        %v6764 = vrot.slane %v6756, %v6763
        %v6766 = vunpack.c.l.s4 1934713408
        %v6767 = vunpack.c.0.s8 %v6766
        %v6768 = vlaneseq
        %v6769 = vshrl.u32 %v6768, 7
        %v6770 = vsub.s32 %v6767, %v6769
        %v6771 = vrot.slane %v6757, %v6770
        %v6772 = vcombine.low %v6707, %v6723
        %v6773 = vcombine.high %v6707, %v6723
        %v6775 = vunpack.c.l.s4 1934713408
        %v6776 = vunpack.c.0.s8 %v6775
        %v6777 = vlaneseq
        %v6778 = vshrl.u32 %v6777, 7
        %v6779 = vsub.s32 %v6776, %v6778
        %v6780 = vrot.slane %v6772, %v6779
        %v6782 = vunpack.c.l.s4 1934713408
        %v6783 = vunpack.c.0.s8 %v6782
        %v6784 = vlaneseq
        %v6785 = vshrl.u32 %v6784, 7
        %v6786 = vsub.s32 %v6783, %v6785
        %v6787 = vrot.slane %v6773, %v6786
        %v6788 = vcombine.low %v6732, %v6748
        %v6789 = vcombine.high %v6732, %v6748
        %v6791 = vunpack.c.l.s4 1934713408
        %v6792 = vunpack.c.0.s8 %v6791
        %v6793 = vlaneseq
        %v6794 = vshrl.u32 %v6793, 7
        %v6795 = vsub.s32 %v6792, %v6794
        %v6796 = vrot.slane %v6788, %v6795
        %v6798 = vunpack.c.l.s4 1934713408
        %v6799 = vunpack.c.0.s8 %v6798
        %v6800 = vlaneseq
        %v6801 = vshrl.u32 %v6800, 7
        %v6802 = vsub.s32 %v6799, %v6801
        %v6803 = vrot.slane %v6789, %v6802
        %v6804 = vcombine.low %v6739, %v6755
        %v6805 = vcombine.high %v6739, %v6755
        %v6807 = vunpack.c.l.s4 1934713408
        %v6808 = vunpack.c.0.s8 %v6807
        %v6809 = vlaneseq
        %v6810 = vshrl.u32 %v6809, 7
        %v6811 = vsub.s32 %v6808, %v6810
        %v6812 = vrot.slane %v6804, %v6811
        %v6814 = vunpack.c.l.s4 1934713408
        %v6815 = vunpack.c.0.s8 %v6814
        %v6816 = vlaneseq
        %v6817 = vshrl.u32 %v6816, 7
        %v6818 = vsub.s32 %v6815, %v6817
        %v6819 = vrot.slane %v6805, %v6818
        %v6820 = vcombine.low %v6764, %v6796
        %v6821 = vcombine.high %v6764, %v6796
        %v6822 = vcombine.low %v6771, %v6803
        %v6823 = vcombine.high %v6771, %v6803
        %v6824 = vcombine.low %v6780, %v6812
        %v6825 = vcombine.high %v6780, %v6812
        %v6826 = vcombine.low %v6787, %v6819
        %v6827 = vcombine.high %v6787, %v6819
        %v6828 = vcombine.low %v6109, %v6197
        %v6829 = vcombine.high %v6109, %v6197
        %v6831 = vunpack.c.l.s4 1983009808
        %v6832 = vunpack.c.0.s8 %v6831
        %v6833 = vlaneseq
        %v6834 = vshrl.u32 %v6833, 7
        %v6835 = vsub.s32 %v6832, %v6834
        %v6836 = vrot.slane %v6828, %v6835
        %v6838 = vunpack.c.l.s4 1983009808
        %v6839 = vunpack.c.0.s8 %v6838
        %v6840 = vlaneseq
        %v6841 = vshrl.u32 %v6840, 7
        %v6842 = vsub.s32 %v6839, %v6841
        %v6843 = vrot.slane %v6829, %v6842
        %v6844 = vcombine.low %v6153, %v6241
        %v6845 = vcombine.high %v6153, %v6241
        %v6847 = vunpack.c.l.s4 1983009808
        %v6848 = vunpack.c.0.s8 %v6847
        %v6849 = vlaneseq
        %v6850 = vshrl.u32 %v6849, 7
        %v6851 = vsub.s32 %v6848, %v6850
        %v6852 = vrot.slane %v6844, %v6851
        %v6854 = vunpack.c.l.s4 1983009808
        %v6855 = vunpack.c.0.s8 %v6854
        %v6856 = vlaneseq
        %v6857 = vshrl.u32 %v6856, 7
        %v6858 = vsub.s32 %v6855, %v6857
        %v6859 = vrot.slane %v6845, %v6858
        %v6860 = vcombine.low %v6285, %v6373
        %v6861 = vcombine.high %v6285, %v6373
        %v6863 = vunpack.c.l.s4 1983009808
        %v6864 = vunpack.c.0.s8 %v6863
        %v6865 = vlaneseq
        %v6866 = vshrl.u32 %v6865, 7
        %v6867 = vsub.s32 %v6864, %v6866
        %v6868 = vrot.slane %v6860, %v6867
        %v6870 = vunpack.c.l.s4 1983009808
        %v6871 = vunpack.c.0.s8 %v6870
        %v6872 = vlaneseq
        %v6873 = vshrl.u32 %v6872, 7
        %v6874 = vsub.s32 %v6871, %v6873
        %v6875 = vrot.slane %v6861, %v6874
        %v6876 = vcombine.low %v6329, %v6417
        %v6877 = vcombine.high %v6329, %v6417
        %v6879 = vunpack.c.l.s4 1983009808
        %v6880 = vunpack.c.0.s8 %v6879
        %v6881 = vlaneseq
        %v6882 = vshrl.u32 %v6881, 7
        %v6883 = vsub.s32 %v6880, %v6882
        %v6884 = vrot.slane %v6876, %v6883
        %v6886 = vunpack.c.l.s4 1983009808
        %v6887 = vunpack.c.0.s8 %v6886
        %v6888 = vlaneseq
        %v6889 = vshrl.u32 %v6888, 7
        %v6890 = vsub.s32 %v6887, %v6889
        %v6891 = vrot.slane %v6877, %v6890
        %v6892 = vcombine.low %v6836, %v6852
        %v6893 = vcombine.high %v6836, %v6852
        %v6895 = vunpack.c.l.s4 1934713408
        %v6896 = vunpack.c.0.s8 %v6895
        %v6897 = vlaneseq
        %v6898 = vshrl.u32 %v6897, 7
        %v6899 = vsub.s32 %v6896, %v6898
        %v6900 = vrot.slane %v6892, %v6899
        %v6902 = vunpack.c.l.s4 1934713408
        %v6903 = vunpack.c.0.s8 %v6902
        %v6904 = vlaneseq
        %v6905 = vshrl.u32 %v6904, 7
        %v6906 = vsub.s32 %v6903, %v6905
        %v6907 = vrot.slane %v6893, %v6906
        %v6908 = vcombine.low %v6843, %v6859
        %v6909 = vcombine.high %v6843, %v6859
        %v6911 = vunpack.c.l.s4 1934713408
        %v6912 = vunpack.c.0.s8 %v6911
        %v6913 = vlaneseq
        %v6914 = vshrl.u32 %v6913, 7
        %v6915 = vsub.s32 %v6912, %v6914
        %v6916 = vrot.slane %v6908, %v6915
        %v6918 = vunpack.c.l.s4 1934713408
        %v6919 = vunpack.c.0.s8 %v6918
        %v6920 = vlaneseq
        %v6921 = vshrl.u32 %v6920, 7
        %v6922 = vsub.s32 %v6919, %v6921
        %v6923 = vrot.slane %v6909, %v6922
        %v6924 = vcombine.low %v6868, %v6884
        %v6925 = vcombine.high %v6868, %v6884
        %v6927 = vunpack.c.l.s4 1934713408
        %v6928 = vunpack.c.0.s8 %v6927
        %v6929 = vlaneseq
        %v6930 = vshrl.u32 %v6929, 7
        %v6931 = vsub.s32 %v6928, %v6930
        %v6932 = vrot.slane %v6924, %v6931
        %v6934 = vunpack.c.l.s4 1934713408
        %v6935 = vunpack.c.0.s8 %v6934
        %v6936 = vlaneseq
        %v6937 = vshrl.u32 %v6936, 7
        %v6938 = vsub.s32 %v6935, %v6937
        %v6939 = vrot.slane %v6925, %v6938
        %v6940 = vcombine.low %v6875, %v6891
        %v6941 = vcombine.high %v6875, %v6891
        %v6943 = vunpack.c.l.s4 1934713408
        %v6944 = vunpack.c.0.s8 %v6943
        %v6945 = vlaneseq
        %v6946 = vshrl.u32 %v6945, 7
        %v6947 = vsub.s32 %v6944, %v6946
        %v6948 = vrot.slane %v6940, %v6947
        %v6950 = vunpack.c.l.s4 1934713408
        %v6951 = vunpack.c.0.s8 %v6950
        %v6952 = vlaneseq
        %v6953 = vshrl.u32 %v6952, 7
        %v6954 = vsub.s32 %v6951, %v6953
        %v6955 = vrot.slane %v6941, %v6954
        %v6956 = vcombine.low %v6900, %v6932
        %v6957 = vcombine.high %v6900, %v6932
        %v6958 = vcombine.low %v6907, %v6939
        %v6959 = vcombine.high %v6907, %v6939
        %v6960 = vcombine.low %v6916, %v6948
        %v6961 = vcombine.high %v6916, %v6948
        %v6962 = vcombine.low %v6923, %v6955
        %v6963 = vcombine.high %v6923, %v6955
        %v6964 = vcombine.low %v6548, %v6550
        %v6965 = vcombine.high %v6548, %v6550
        %v6967 = vunpack.c.l.s4 1983009808
        %v6968 = vunpack.c.0.s8 %v6967
        %v6969 = vlaneseq
        %v6970 = vshrl.u32 %v6969, 7
        %v6971 = vsub.s32 %v6968, %v6970
        %v6972 = vrot.slane %v6964, %v6971
        %v6974 = vunpack.c.l.s4 1983009808
        %v6975 = vunpack.c.0.s8 %v6974
        %v6976 = vlaneseq
        %v6977 = vshrl.u32 %v6976, 7
        %v6978 = vsub.s32 %v6975, %v6977
        %v6979 = vrot.slane %v6965, %v6978
        %v6980 = vcombine.low %v6549, %v6551
        %v6981 = vcombine.high %v6549, %v6551
        %v6983 = vunpack.c.l.s4 1983009808
        %v6984 = vunpack.c.0.s8 %v6983
        %v6985 = vlaneseq
        %v6986 = vshrl.u32 %v6985, 7
        %v6987 = vsub.s32 %v6984, %v6986
        %v6988 = vrot.slane %v6980, %v6987
        %v6990 = vunpack.c.l.s4 1983009808
        %v6991 = vunpack.c.0.s8 %v6990
        %v6992 = vlaneseq
        %v6993 = vshrl.u32 %v6992, 7
        %v6994 = vsub.s32 %v6991, %v6993
        %v6995 = vrot.slane %v6981, %v6994
        %v6996 = vcombine.low %v6552, %v6554
        %v6997 = vcombine.high %v6552, %v6554
        %v6999 = vunpack.c.l.s4 1983009808
        %v7000 = vunpack.c.0.s8 %v6999
        %v7001 = vlaneseq
        %v7002 = vshrl.u32 %v7001, 7
        %v7003 = vsub.s32 %v7000, %v7002
        %v7004 = vrot.slane %v6996, %v7003
        %v7006 = vunpack.c.l.s4 1983009808
        %v7007 = vunpack.c.0.s8 %v7006
        %v7008 = vlaneseq
        %v7009 = vshrl.u32 %v7008, 7
        %v7010 = vsub.s32 %v7007, %v7009
        %v7011 = vrot.slane %v6997, %v7010
        %v7012 = vcombine.low %v6553, %v6555
        %v7013 = vcombine.high %v6553, %v6555
        %v7015 = vunpack.c.l.s4 1983009808
        %v7016 = vunpack.c.0.s8 %v7015
        %v7017 = vlaneseq
        %v7018 = vshrl.u32 %v7017, 7
        %v7019 = vsub.s32 %v7016, %v7018
        %v7020 = vrot.slane %v7012, %v7019
        %v7022 = vunpack.c.l.s4 1983009808
        %v7023 = vunpack.c.0.s8 %v7022
        %v7024 = vlaneseq
        %v7025 = vshrl.u32 %v7024, 7
        %v7026 = vsub.s32 %v7023, %v7025
        %v7027 = vrot.slane %v7013, %v7026
        %v7028 = vcombine.low %v6972, %v6988
        %v7029 = vcombine.high %v6972, %v6988
        %v7031 = vunpack.c.l.s4 1934713408
        %v7032 = vunpack.c.0.s8 %v7031
        %v7033 = vlaneseq
        %v7034 = vshrl.u32 %v7033, 7
        %v7035 = vsub.s32 %v7032, %v7034
        %v7036 = vrot.slane %v7028, %v7035
        %v7038 = vunpack.c.l.s4 1934713408
        %v7039 = vunpack.c.0.s8 %v7038
        %v7040 = vlaneseq
        %v7041 = vshrl.u32 %v7040, 7
        %v7042 = vsub.s32 %v7039, %v7041
        %v7043 = vrot.slane %v7029, %v7042
        %v7044 = vcombine.low %v6979, %v6995
        %v7045 = vcombine.high %v6979, %v6995
        %v7047 = vunpack.c.l.s4 1934713408
        %v7048 = vunpack.c.0.s8 %v7047
        %v7049 = vlaneseq
        %v7050 = vshrl.u32 %v7049, 7
        %v7051 = vsub.s32 %v7048, %v7050
        %v7052 = vrot.slane %v7044, %v7051
        %v7054 = vunpack.c.l.s4 1934713408
        %v7055 = vunpack.c.0.s8 %v7054
        %v7056 = vlaneseq
        %v7057 = vshrl.u32 %v7056, 7
        %v7058 = vsub.s32 %v7055, %v7057
        %v7059 = vrot.slane %v7045, %v7058
        %v7060 = vcombine.low %v7004, %v7020
        %v7061 = vcombine.high %v7004, %v7020
        %v7063 = vunpack.c.l.s4 1934713408
        %v7064 = vunpack.c.0.s8 %v7063
        %v7065 = vlaneseq
        %v7066 = vshrl.u32 %v7065, 7
        %v7067 = vsub.s32 %v7064, %v7066
        %v7068 = vrot.slane %v7060, %v7067
        %v7070 = vunpack.c.l.s4 1934713408
        %v7071 = vunpack.c.0.s8 %v7070
        %v7072 = vlaneseq
        %v7073 = vshrl.u32 %v7072, 7
        %v7074 = vsub.s32 %v7071, %v7073
        %v7075 = vrot.slane %v7061, %v7074
        %v7076 = vcombine.low %v7011, %v7027
        %v7077 = vcombine.high %v7011, %v7027
        %v7079 = vunpack.c.l.s4 1934713408
        %v7080 = vunpack.c.0.s8 %v7079
        %v7081 = vlaneseq
        %v7082 = vshrl.u32 %v7081, 7
        %v7083 = vsub.s32 %v7080, %v7082
        %v7084 = vrot.slane %v7076, %v7083
        %v7086 = vunpack.c.l.s4 1934713408
        %v7087 = vunpack.c.0.s8 %v7086
        %v7088 = vlaneseq
        %v7089 = vshrl.u32 %v7088, 7
        %v7090 = vsub.s32 %v7087, %v7089
        %v7091 = vrot.slane %v7077, %v7090
        %v7092 = vcombine.low %v7036, %v7068
        %v7093 = vcombine.high %v7036, %v7068
        %v7094 = vcombine.low %v7043, %v7075
        %v7095 = vcombine.high %v7043, %v7075
        %v7096 = vcombine.low %v7052, %v7084
        %v7097 = vcombine.high %v7052, %v7084
        %v7098 = vcombine.low %v7059, %v7091
        %v7099 = vcombine.high %v7059, %v7091
        %v7100 = vcombine.low %v6684, %v6686
        %v7101 = vcombine.high %v6684, %v6686
        %v7103 = vunpack.c.l.s4 1983009808
        %v7104 = vunpack.c.0.s8 %v7103
        %v7105 = vlaneseq
        %v7106 = vshrl.u32 %v7105, 7
        %v7107 = vsub.s32 %v7104, %v7106
        %v7108 = vrot.slane %v7100, %v7107
        %v7110 = vunpack.c.l.s4 1983009808
        %v7111 = vunpack.c.0.s8 %v7110
        %v7112 = vlaneseq
        %v7113 = vshrl.u32 %v7112, 7
        %v7114 = vsub.s32 %v7111, %v7113
        %v7115 = vrot.slane %v7101, %v7114
        %v7116 = vcombine.low %v6685, %v6687
        %v7117 = vcombine.high %v6685, %v6687
        %v7119 = vunpack.c.l.s4 1983009808
        %v7120 = vunpack.c.0.s8 %v7119
        %v7121 = vlaneseq
        %v7122 = vshrl.u32 %v7121, 7
        %v7123 = vsub.s32 %v7120, %v7122
        %v7124 = vrot.slane %v7116, %v7123
        %v7126 = vunpack.c.l.s4 1983009808
        %v7127 = vunpack.c.0.s8 %v7126
        %v7128 = vlaneseq
        %v7129 = vshrl.u32 %v7128, 7
        %v7130 = vsub.s32 %v7127, %v7129
        %v7131 = vrot.slane %v7117, %v7130
        %v7132 = vcombine.low %v6688, %v6690
        %v7133 = vcombine.high %v6688, %v6690
        %v7135 = vunpack.c.l.s4 1983009808
        %v7136 = vunpack.c.0.s8 %v7135
        %v7137 = vlaneseq
        %v7138 = vshrl.u32 %v7137, 7
        %v7139 = vsub.s32 %v7136, %v7138
        %v7140 = vrot.slane %v7132, %v7139
        %v7142 = vunpack.c.l.s4 1983009808
        %v7143 = vunpack.c.0.s8 %v7142
        %v7144 = vlaneseq
        %v7145 = vshrl.u32 %v7144, 7
        %v7146 = vsub.s32 %v7143, %v7145
        %v7147 = vrot.slane %v7133, %v7146
        %v7148 = vcombine.low %v6689, %v6691
        %v7149 = vcombine.high %v6689, %v6691
        %v7151 = vunpack.c.l.s4 1983009808
        %v7152 = vunpack.c.0.s8 %v7151
        %v7153 = vlaneseq
        %v7154 = vshrl.u32 %v7153, 7
        %v7155 = vsub.s32 %v7152, %v7154
        %v7156 = vrot.slane %v7148, %v7155
        %v7158 = vunpack.c.l.s4 1983009808
        %v7159 = vunpack.c.0.s8 %v7158
        %v7160 = vlaneseq
        %v7161 = vshrl.u32 %v7160, 7
        %v7162 = vsub.s32 %v7159, %v7161
        %v7163 = vrot.slane %v7149, %v7162
        %v7164 = vcombine.low %v7108, %v7124
        %v7165 = vcombine.high %v7108, %v7124
        %v7167 = vunpack.c.l.s4 1934713408
        %v7168 = vunpack.c.0.s8 %v7167
        %v7169 = vlaneseq
        %v7170 = vshrl.u32 %v7169, 7
        %v7171 = vsub.s32 %v7168, %v7170
        %v7172 = vrot.slane %v7164, %v7171
        %v7174 = vunpack.c.l.s4 1934713408
        %v7175 = vunpack.c.0.s8 %v7174
        %v7176 = vlaneseq
        %v7177 = vshrl.u32 %v7176, 7
        %v7178 = vsub.s32 %v7175, %v7177
        %v7179 = vrot.slane %v7165, %v7178
        %v7180 = vcombine.low %v7115, %v7131
        %v7181 = vcombine.high %v7115, %v7131
        %v7183 = vunpack.c.l.s4 1934713408
        %v7184 = vunpack.c.0.s8 %v7183
        %v7185 = vlaneseq
        %v7186 = vshrl.u32 %v7185, 7
        %v7187 = vsub.s32 %v7184, %v7186
        %v7188 = vrot.slane %v7180, %v7187
        %v7190 = vunpack.c.l.s4 1934713408
        %v7191 = vunpack.c.0.s8 %v7190
        %v7192 = vlaneseq
        %v7193 = vshrl.u32 %v7192, 7
        %v7194 = vsub.s32 %v7191, %v7193
        %v7195 = vrot.slane %v7181, %v7194
        %v7196 = vcombine.low %v7140, %v7156
        %v7197 = vcombine.high %v7140, %v7156
        %v7199 = vunpack.c.l.s4 1934713408
        %v7200 = vunpack.c.0.s8 %v7199
        %v7201 = vlaneseq
        %v7202 = vshrl.u32 %v7201, 7
        %v7203 = vsub.s32 %v7200, %v7202
        %v7204 = vrot.slane %v7196, %v7203
        %v7206 = vunpack.c.l.s4 1934713408
        %v7207 = vunpack.c.0.s8 %v7206
        %v7208 = vlaneseq
        %v7209 = vshrl.u32 %v7208, 7
        %v7210 = vsub.s32 %v7207, %v7209
        %v7211 = vrot.slane %v7197, %v7210
        %v7212 = vcombine.low %v7147, %v7163
        %v7213 = vcombine.high %v7147, %v7163
        %v7215 = vunpack.c.l.s4 1934713408
        %v7216 = vunpack.c.0.s8 %v7215
        %v7217 = vlaneseq
        %v7218 = vshrl.u32 %v7217, 7
        %v7219 = vsub.s32 %v7216, %v7218
        %v7220 = vrot.slane %v7212, %v7219
        %v7222 = vunpack.c.l.s4 1934713408
        %v7223 = vunpack.c.0.s8 %v7222
        %v7224 = vlaneseq
        %v7225 = vshrl.u32 %v7224, 7
        %v7226 = vsub.s32 %v7223, %v7225
        %v7227 = vrot.slane %v7213, %v7226
        %v7228 = vcombine.low %v7172, %v7204
        %v7229 = vcombine.high %v7172, %v7204
        %v7230 = vcombine.low %v7179, %v7211
        %v7231 = vcombine.high %v7179, %v7211
        %v7232 = vcombine.low %v7188, %v7220
        %v7233 = vcombine.high %v7188, %v7220
        %v7234 = vcombine.low %v7195, %v7227
        %v7235 = vcombine.high %v7195, %v7227
        %v7236 = vcombine.low %v6820, %v6822
        %v7237 = vcombine.high %v6820, %v6822
        %v7239 = vunpack.c.l.s4 1983009808
        %v7240 = vunpack.c.0.s8 %v7239
        %v7241 = vlaneseq
        %v7242 = vshrl.u32 %v7241, 7
        %v7243 = vsub.s32 %v7240, %v7242
        %v7244 = vrot.slane %v7236, %v7243
        %v7246 = vunpack.c.l.s4 1983009808
        %v7247 = vunpack.c.0.s8 %v7246
        %v7248 = vlaneseq
        %v7249 = vshrl.u32 %v7248, 7
        %v7250 = vsub.s32 %v7247, %v7249
        %v7251 = vrot.slane %v7237, %v7250
        %v7252 = vcombine.low %v6821, %v6823
        %v7253 = vcombine.high %v6821, %v6823
        %v7255 = vunpack.c.l.s4 1983009808
        %v7256 = vunpack.c.0.s8 %v7255
        %v7257 = vlaneseq
        %v7258 = vshrl.u32 %v7257, 7
        %v7259 = vsub.s32 %v7256, %v7258
        %v7260 = vrot.slane %v7252, %v7259
        %v7262 = vunpack.c.l.s4 1983009808
        %v7263 = vunpack.c.0.s8 %v7262
        %v7264 = vlaneseq
        %v7265 = vshrl.u32 %v7264, 7
        %v7266 = vsub.s32 %v7263, %v7265
        %v7267 = vrot.slane %v7253, %v7266
        %v7268 = vcombine.low %v6824, %v6826
        %v7269 = vcombine.high %v6824, %v6826
        %v7271 = vunpack.c.l.s4 1983009808
        %v7272 = vunpack.c.0.s8 %v7271
        %v7273 = vlaneseq
        %v7274 = vshrl.u32 %v7273, 7
        %v7275 = vsub.s32 %v7272, %v7274
        %v7276 = vrot.slane %v7268, %v7275
        %v7278 = vunpack.c.l.s4 1983009808
        %v7279 = vunpack.c.0.s8 %v7278
        %v7280 = vlaneseq
        %v7281 = vshrl.u32 %v7280, 7
        %v7282 = vsub.s32 %v7279, %v7281
        %v7283 = vrot.slane %v7269, %v7282
        %v7284 = vcombine.low %v6825, %v6827
        %v7285 = vcombine.high %v6825, %v6827
        %v7287 = vunpack.c.l.s4 1983009808
        %v7288 = vunpack.c.0.s8 %v7287
        %v7289 = vlaneseq
        %v7290 = vshrl.u32 %v7289, 7
        %v7291 = vsub.s32 %v7288, %v7290
        %v7292 = vrot.slane %v7284, %v7291
        %v7294 = vunpack.c.l.s4 1983009808
        %v7295 = vunpack.c.0.s8 %v7294
        %v7296 = vlaneseq
        %v7297 = vshrl.u32 %v7296, 7
        %v7298 = vsub.s32 %v7295, %v7297
        %v7299 = vrot.slane %v7285, %v7298
        %v7300 = vcombine.low %v7244, %v7260
        %v7301 = vcombine.high %v7244, %v7260
        %v7303 = vunpack.c.l.s4 1934713408
        %v7304 = vunpack.c.0.s8 %v7303
        %v7305 = vlaneseq
        %v7306 = vshrl.u32 %v7305, 7
        %v7307 = vsub.s32 %v7304, %v7306
        %v7308 = vrot.slane %v7300, %v7307
        %v7310 = vunpack.c.l.s4 1934713408
        %v7311 = vunpack.c.0.s8 %v7310
        %v7312 = vlaneseq
        %v7313 = vshrl.u32 %v7312, 7
        %v7314 = vsub.s32 %v7311, %v7313
        %v7315 = vrot.slane %v7301, %v7314
        %v7316 = vcombine.low %v7251, %v7267
        %v7317 = vcombine.high %v7251, %v7267
        %v7319 = vunpack.c.l.s4 1934713408
        %v7320 = vunpack.c.0.s8 %v7319
        %v7321 = vlaneseq
        %v7322 = vshrl.u32 %v7321, 7
        %v7323 = vsub.s32 %v7320, %v7322
        %v7324 = vrot.slane %v7316, %v7323
        %v7326 = vunpack.c.l.s4 1934713408
        %v7327 = vunpack.c.0.s8 %v7326
        %v7328 = vlaneseq
        %v7329 = vshrl.u32 %v7328, 7
        %v7330 = vsub.s32 %v7327, %v7329
        %v7331 = vrot.slane %v7317, %v7330
        %v7332 = vcombine.low %v7276, %v7292
        %v7333 = vcombine.high %v7276, %v7292
        %v7335 = vunpack.c.l.s4 1934713408
        %v7336 = vunpack.c.0.s8 %v7335
        %v7337 = vlaneseq
        %v7338 = vshrl.u32 %v7337, 7
        %v7339 = vsub.s32 %v7336, %v7338
        %v7340 = vrot.slane %v7332, %v7339
        %v7342 = vunpack.c.l.s4 1934713408
        %v7343 = vunpack.c.0.s8 %v7342
        %v7344 = vlaneseq
        %v7345 = vshrl.u32 %v7344, 7
        %v7346 = vsub.s32 %v7343, %v7345
        %v7347 = vrot.slane %v7333, %v7346
        %v7348 = vcombine.low %v7283, %v7299
        %v7349 = vcombine.high %v7283, %v7299
        %v7351 = vunpack.c.l.s4 1934713408
        %v7352 = vunpack.c.0.s8 %v7351
        %v7353 = vlaneseq
        %v7354 = vshrl.u32 %v7353, 7
        %v7355 = vsub.s32 %v7352, %v7354
        %v7356 = vrot.slane %v7348, %v7355
        %v7358 = vunpack.c.l.s4 1934713408
        %v7359 = vunpack.c.0.s8 %v7358
        %v7360 = vlaneseq
        %v7361 = vshrl.u32 %v7360, 7
        %v7362 = vsub.s32 %v7359, %v7361
        %v7363 = vrot.slane %v7349, %v7362
        %v7364 = vcombine.low %v7308, %v7340
        %v7365 = vcombine.high %v7308, %v7340
        %v7366 = vcombine.low %v7315, %v7347
        %v7367 = vcombine.high %v7315, %v7347
        %v7368 = vcombine.low %v7324, %v7356
        %v7369 = vcombine.high %v7324, %v7356
        %v7370 = vcombine.low %v7331, %v7363
        %v7371 = vcombine.high %v7331, %v7363
        %v7372 = vcombine.low %v6956, %v6958
        %v7373 = vcombine.high %v6956, %v6958
        %v7375 = vunpack.c.l.s4 1983009808
        %v7376 = vunpack.c.0.s8 %v7375
        %v7377 = vlaneseq
        %v7378 = vshrl.u32 %v7377, 7
        %v7379 = vsub.s32 %v7376, %v7378
        %v7380 = vrot.slane %v7372, %v7379
        %v7382 = vunpack.c.l.s4 1983009808
        %v7383 = vunpack.c.0.s8 %v7382
        %v7384 = vlaneseq
        %v7385 = vshrl.u32 %v7384, 7
        %v7386 = vsub.s32 %v7383, %v7385
        %v7387 = vrot.slane %v7373, %v7386
        %v7388 = vcombine.low %v6957, %v6959
        %v7389 = vcombine.high %v6957, %v6959
        %v7391 = vunpack.c.l.s4 1983009808
        %v7392 = vunpack.c.0.s8 %v7391
        %v7393 = vlaneseq
        %v7394 = vshrl.u32 %v7393, 7
        %v7395 = vsub.s32 %v7392, %v7394
        %v7396 = vrot.slane %v7388, %v7395
        %v7398 = vunpack.c.l.s4 1983009808
        %v7399 = vunpack.c.0.s8 %v7398
        %v7400 = vlaneseq
        %v7401 = vshrl.u32 %v7400, 7
        %v7402 = vsub.s32 %v7399, %v7401
        %v7403 = vrot.slane %v7389, %v7402
        %v7404 = vcombine.low %v6960, %v6962
        %v7405 = vcombine.high %v6960, %v6962
        %v7407 = vunpack.c.l.s4 1983009808
        %v7408 = vunpack.c.0.s8 %v7407
        %v7409 = vlaneseq
        %v7410 = vshrl.u32 %v7409, 7
        %v7411 = vsub.s32 %v7408, %v7410
        %v7412 = vrot.slane %v7404, %v7411
        %v7414 = vunpack.c.l.s4 1983009808
        %v7415 = vunpack.c.0.s8 %v7414
        %v7416 = vlaneseq
        %v7417 = vshrl.u32 %v7416, 7
        %v7418 = vsub.s32 %v7415, %v7417
        %v7419 = vrot.slane %v7405, %v7418
        %v7420 = vcombine.low %v6961, %v6963
        %v7421 = vcombine.high %v6961, %v6963
        %v7423 = vunpack.c.l.s4 1983009808
        %v7424 = vunpack.c.0.s8 %v7423
        %v7425 = vlaneseq
        %v7426 = vshrl.u32 %v7425, 7
        %v7427 = vsub.s32 %v7424, %v7426
        %v7428 = vrot.slane %v7420, %v7427
        %v7430 = vunpack.c.l.s4 1983009808
        %v7431 = vunpack.c.0.s8 %v7430
        %v7432 = vlaneseq
        %v7433 = vshrl.u32 %v7432, 7
        %v7434 = vsub.s32 %v7431, %v7433
        %v7435 = vrot.slane %v7421, %v7434
        %v7436 = vcombine.low %v7380, %v7396
        %v7437 = vcombine.high %v7380, %v7396
        %v7439 = vunpack.c.l.s4 1934713408
        %v7440 = vunpack.c.0.s8 %v7439
        %v7441 = vlaneseq
        %v7442 = vshrl.u32 %v7441, 7
        %v7443 = vsub.s32 %v7440, %v7442
        %v7444 = vrot.slane %v7436, %v7443
        %v7446 = vunpack.c.l.s4 1934713408
        %v7447 = vunpack.c.0.s8 %v7446
        %v7448 = vlaneseq
        %v7449 = vshrl.u32 %v7448, 7
        %v7450 = vsub.s32 %v7447, %v7449
        %v7451 = vrot.slane %v7437, %v7450
        %v7452 = vcombine.low %v7387, %v7403
        %v7453 = vcombine.high %v7387, %v7403
        %v7455 = vunpack.c.l.s4 1934713408
        %v7456 = vunpack.c.0.s8 %v7455
        %v7457 = vlaneseq
        %v7458 = vshrl.u32 %v7457, 7
        %v7459 = vsub.s32 %v7456, %v7458
        %v7460 = vrot.slane %v7452, %v7459
        %v7462 = vunpack.c.l.s4 1934713408
        %v7463 = vunpack.c.0.s8 %v7462
        %v7464 = vlaneseq
        %v7465 = vshrl.u32 %v7464, 7
        %v7466 = vsub.s32 %v7463, %v7465
        %v7467 = vrot.slane %v7453, %v7466
        %v7468 = vcombine.low %v7412, %v7428
        %v7469 = vcombine.high %v7412, %v7428
        %v7471 = vunpack.c.l.s4 1934713408
        %v7472 = vunpack.c.0.s8 %v7471
        %v7473 = vlaneseq
        %v7474 = vshrl.u32 %v7473, 7
        %v7475 = vsub.s32 %v7472, %v7474
        %v7476 = vrot.slane %v7468, %v7475
        %v7478 = vunpack.c.l.s4 1934713408
        %v7479 = vunpack.c.0.s8 %v7478
        %v7480 = vlaneseq
        %v7481 = vshrl.u32 %v7480, 7
        %v7482 = vsub.s32 %v7479, %v7481
        %v7483 = vrot.slane %v7469, %v7482
        %v7484 = vcombine.low %v7419, %v7435
        %v7485 = vcombine.high %v7419, %v7435
        %v7487 = vunpack.c.l.s4 1934713408
        %v7488 = vunpack.c.0.s8 %v7487
        %v7489 = vlaneseq
        %v7490 = vshrl.u32 %v7489, 7
        %v7491 = vsub.s32 %v7488, %v7490
        %v7492 = vrot.slane %v7484, %v7491
        %v7494 = vunpack.c.l.s4 1934713408
        %v7495 = vunpack.c.0.s8 %v7494
        %v7496 = vlaneseq
        %v7497 = vshrl.u32 %v7496, 7
        %v7498 = vsub.s32 %v7495, %v7497
        %v7499 = vrot.slane %v7485, %v7498
        %v7500 = vcombine.low %v7444, %v7476
        %v7501 = vcombine.high %v7444, %v7476
        %v7502 = vcombine.low %v7451, %v7483
        %v7503 = vcombine.high %v7451, %v7483
        %v7504 = vcombine.low %v7460, %v7492
        %v7505 = vcombine.high %v7460, %v7492
        %v7506 = vcombine.low %v7467, %v7499
        %v7507 = vcombine.high %v7467, %v7499
        %7512 = vrot.lane.b32.xlu0 %v7093, 16
        %v7513 = vpop.permute.xlu0 %7512
        %7514 = vrot.lane.b32.xlu0 %v7229, 16
        %v7515 = vpop.permute.xlu0 %7514
        %7516 = vrot.lane.b32.xlu0 %v7365, 16
        %v7517 = vpop.permute.xlu0 %7516
        %7518 = vrot.lane.b32.xlu0 %v7501, 16
        %v7519 = vpop.permute.xlu0 %7518
        %7528 = vrot.lane.b32.xlu0 %v7094, 32
        %v7529 = vpop.permute.xlu0 %7528
        %7530 = vrot.lane.b32.xlu0 %v7230, 32
        %v7531 = vpop.permute.xlu0 %7530
        %7532 = vrot.lane.b32.xlu0 %v7366, 32
        %v7533 = vpop.permute.xlu0 %7532
        %7534 = vrot.lane.b32.xlu0 %v7502, 32
        %v7535 = vpop.permute.xlu0 %7534
        %7544 = vrot.lane.b32.xlu0 %v7095, 48
        %v7545 = vpop.permute.xlu0 %7544
        %7546 = vrot.lane.b32.xlu0 %v7231, 48
        %v7547 = vpop.permute.xlu0 %7546
        %7548 = vrot.lane.b32.xlu0 %v7367, 48
        %v7549 = vpop.permute.xlu0 %7548
        %7550 = vrot.lane.b32.xlu0 %v7503, 48
        %v7551 = vpop.permute.xlu0 %7550
        %7560 = vrot.lane.b32.xlu0 %v7096, 64
        %v7561 = vpop.permute.xlu0 %7560
        %7562 = vrot.lane.b32.xlu0 %v7232, 64
        %v7563 = vpop.permute.xlu0 %7562
        %7564 = vrot.lane.b32.xlu0 %v7368, 64
        %v7565 = vpop.permute.xlu0 %7564
        %7566 = vrot.lane.b32.xlu0 %v7504, 64
        %v7567 = vpop.permute.xlu0 %7566
        %7576 = vrot.lane.b32.xlu0 %v7097, 80
        %v7577 = vpop.permute.xlu0 %7576
        %7578 = vrot.lane.b32.xlu0 %v7233, 80
        %v7579 = vpop.permute.xlu0 %7578
        %7580 = vrot.lane.b32.xlu0 %v7369, 80
        %v7581 = vpop.permute.xlu0 %7580
        %7582 = vrot.lane.b32.xlu0 %v7505, 80
        %v7583 = vpop.permute.xlu0 %7582
        %7592 = vrot.lane.b32.xlu0 %v7098, 96
        %v7593 = vpop.permute.xlu0 %7592
        %7594 = vrot.lane.b32.xlu0 %v7234, 96
        %v7595 = vpop.permute.xlu0 %7594
        %7596 = vrot.lane.b32.xlu0 %v7370, 96
        %v7597 = vpop.permute.xlu0 %7596
        %7598 = vrot.lane.b32.xlu0 %v7506, 96
        %v7599 = vpop.permute.xlu0 %7598
        %7608 = vrot.lane.b32.xlu0 %v7099, 112
        %v7609 = vpop.permute.xlu0 %7608
        %7610 = vrot.lane.b32.xlu0 %v7235, 112
        %v7611 = vpop.permute.xlu0 %7610
        %7612 = vrot.lane.b32.xlu0 %v7371, 112
        %v7613 = vpop.permute.xlu0 %7612
        %7614 = vrot.lane.b32.xlu0 %v7507, 112
        %v7615 = vpop.permute.xlu0 %7614
        %v7620 = vsel %vm4595, %v7092, %v7513
        %v7621 = vsel %vm4595, %v7228, %v7515
        %v7622 = vsel %vm4595, %v7364, %v7517
        %v7623 = vsel %vm4595, %v7500, %v7519
        %vm7624 = vcmask 261120
        %v7625 = vsel %vm7624, %v7620, %v7529
        %v7626 = vsel %vm7624, %v7621, %v7531
        %v7627 = vsel %vm7624, %v7622, %v7533
        %v7628 = vsel %vm7624, %v7623, %v7535
        %vm7629 = vcmask 392192
        %v7630 = vsel %vm7629, %v7625, %v7545
        %v7631 = vsel %vm7629, %v7626, %v7547
        %v7632 = vsel %vm7629, %v7627, %v7549
        %v7633 = vsel %vm7629, %v7628, %v7551
        %vm7634 = vcmask 523264
        %v7635 = vsel %vm7634, %v7630, %v7561
        %v7636 = vsel %vm7634, %v7631, %v7563
        %v7637 = vsel %vm7634, %v7632, %v7565
        %v7638 = vsel %vm7634, %v7633, %v7567
        %vm7639 = vcmask 654336
        %v7640 = vsel %vm7639, %v7635, %v7577
        %v7641 = vsel %vm7639, %v7636, %v7579
        %v7642 = vsel %vm7639, %v7637, %v7581
        %v7643 = vsel %vm7639, %v7638, %v7583
        %vm7644 = vcmask 785408
        %v7645 = vsel %vm7644, %v7640, %v7593
        %v7646 = vsel %vm7644, %v7641, %v7595
        %v7647 = vsel %vm7644, %v7642, %v7597
        %v7648 = vsel %vm7644, %v7643, %v7599
        %vm7649 = vcmask 916480
        %v7650 = vsel %vm7649, %v7645, %v7609
        %v7651 = vsel %vm7649, %v7646, %v7611
        %v7652 = vsel %vm7649, %v7647, %v7613
        %v7653 = vsel %vm7649, %v7648, %v7615
        %v7654 = vpack.c.bf16 %v7651, %v7650
        %v7655 = vpack.c.bf16 %v7653, %v7652
        %v7656 = vld [vmem:[%s527] sm:$0xf]
        %v7657 = vld [vmem:[%s527 + $0x4] sm:$0xf]
        %v7658 = vld [vmem:[%s527 + $0x8] sm:$0xf]
        %v7659 = vld [vmem:[%s527 + $0xc] sm:$0xf]
        %v7660 = vld [vmem:[%s527 + $0x10] sm:$0xf]
        %v7661 = vld [vmem:[%s527 + $0x14] sm:$0xf]
        %v7662 = vld [vmem:[%s527 + $0x18] sm:$0xf]
        %v7663 = vld [vmem:[%s527 + $0x1c] sm:$0xf]
        %v7664 = vld [vmem:[%s527 + $0x20] sm:$0xf]
        %v7665 = vld [vmem:[%s527 + $0x24] sm:$0xf]
        %v7666 = vld [vmem:[%s527 + $0x28] sm:$0xf]
        %v7667 = vld [vmem:[%s527 + $0x2c] sm:$0xf]
        %v7668 = vld [vmem:[%s527 + $0x30] sm:$0xf]
        %v7669 = vld [vmem:[%s527 + $0x34] sm:$0xf]
        %v7670 = vld [vmem:[%s527 + $0x38] sm:$0xf]
        %v7671 = vld [vmem:[%s527 + $0x3c] sm:$0xf]
        %v7672 = vld [vmem:[%s647] sm:$0x1]
        %v7674 = vlaneseq
        %v7675 = vshrl.u32 %v7674, 7
        %v7676 = vsub.s32 0, %v7675
        %v7677 = vrot.slane %v7672, %v7676
        %v7695 = vunpack.c.l.b16 %v7656
        %v7696 = vunpack.c.l.b16 %v7657
        %v7697 = vunpack.c.l.b16 %v7658
        %v7698 = vunpack.c.l.b16 %v7659
        %v7699 = vunpack.c.l.b16 %v7660
        %v7700 = vunpack.c.l.b16 %v7661
        %v7701 = vunpack.c.l.b16 %v7662
        %v7702 = vunpack.c.l.b16 %v7663
        %v7703 = vunpack.c.l.b16 %v7664
        %v7704 = vunpack.c.l.b16 %v7665
        %v7705 = vunpack.c.l.b16 %v7666
        %v7706 = vunpack.c.l.b16 %v7667
        %v7707 = vunpack.c.l.b16 %v7668
        %v7708 = vunpack.c.l.b16 %v7669
        %v7709 = vunpack.c.l.b16 %v7670
        %v7710 = vunpack.c.l.b16 %v7671
        %v7711 = vpack.c.b16 %v7696, %v7695
        %v7712 = vpack.c.b16 %v7698, %v7697
        %v7713 = vpack.c.b16 %v7700, %v7699
        %v7714 = vpack.c.b16 %v7702, %v7701
        %v7715 = vpack.c.b16 %v7704, %v7703
        %v7716 = vpack.c.b16 %v7706, %v7705
        %v7717 = vpack.c.b16 %v7708, %v7707
        %v7718 = vpack.c.b16 %v7710, %v7709
        %7727 = vmatprep.subr.bf16.mxu0 0
        %7728 = vmatpush1.bf16.msra.mxu0 %v7711
        %7729 = vmatprep.subr.bf16.mxu0 0
        %7730 = vmatpush1.bf16.msra.mxu0 %v7712
        %7731 = vmatprep.subr.bf16.mxu0 0
        %7732 = vmatpush1.bf16.msra.mxu0 %v7713
        %7733 = vmatprep.subr.bf16.mxu0 0
        %7734 = vmatpush1.bf16.msra.mxu0 %v7714
        %7735 = vmatprep.subr.bf16.mxu0 0
        %7736 = vmatpush1.bf16.msra.mxu0 %v7715
        %7737 = vmatprep.subr.bf16.mxu0 0
        %7738 = vmatpush1.bf16.msra.mxu0 %v7716
        %7739 = vmatprep.subr.bf16.mxu0 0
        %7740 = vmatpush1.bf16.msra.mxu0 %v7717
        %7741 = vmatprep.subr.bf16.mxu0 0
        %7742 = vmatpush1.bf16.msra.mxu0 %v7718
        %7743 = vmatprep.subr.bf16.mxu0 0
        %7744 = vmatpush1.bf16.msra.mxu0 0
        %7745 = vmatprep.subr.bf16.mxu0 0
        %7746 = vmatpush1.bf16.msra.mxu0 0
        %7747 = vmatprep.subr.bf16.mxu0 0
        %7748 = vmatpush1.bf16.msra.mxu0 0
        %7749 = vmatprep.subr.bf16.mxu0 0
        %7750 = vmatpush1.bf16.msra.mxu0 0
        %7751 = vmatprep.subr.bf16.mxu0 0
        %7752 = vmatpush1.bf16.msra.mxu0 0
        %7753 = vmatprep.subr.bf16.mxu0 0
        %7754 = vmatpush1.bf16.msra.mxu0 0
        %7755 = vmatprep.subr.bf16.mxu0 0
        %7756 = vmatpush1.bf16.msra.mxu0 0
        %7757 = vmatprep.subr.bf16.mxu0 0
        %7758 = vmatpush1.bf16.msra.mxu0 0
        %7759 = vmatprep.mubr.bf16.mxu0 0
        %7760 = vmatmul.mubr.bf16.gmra.mrb[0].mxu0 %v7654
        %v7761 = vpop.f32.mrb[0].mxu0
        %v7762 = vadd.f32 %v7677, %v7761
        %v7763 = vpop.f32.mrb[0].mxu0
        %v7764 = vpop.f32.mrb[0].mxu0
        %v7765 = vadd.f32 %v7677, %v7764
        %v7766 = vpop.f32.mrb[0].mxu0
        %7767 = vmatprep.mubr.bf16.mxu0 0
        %7768 = vmatmul.mubr.bf16.gmra.mrb[0].mxu0 %v7655
        %v7769 = vpop.f32.mrb[0].mxu0
        %v7770 = vadd.f32 %v7677, %v7769
        %v7771 = vpop.f32.mrb[0].mxu0
        %v7772 = vpop.f32.mrb[0].mxu0
        %v7773 = vadd.f32 %v7677, %v7772
        %v7774 = vpop.f32.mrb[0].mxu0
        %7775 = vdwg.mxu0
        %v7776 = vadd.f32 %v680, %v7762
        %v7777 = vadd.f32 %v681, %v7765
        %v7778 = vadd.f32 %v682, %v7770
        %v7779 = vadd.f32 %v683, %v7773
        %v7780 = vld [vmem:[%s650] sm:$0x1]
        %v7781 = vld [vmem:[%s653] sm:$0x1]
        %7782 = vadd.xlane.f32.xlu0 %v7776
        %v7783 = vpop.xlane.xlu0 %7782
        %7784 = vadd.xlane.f32.xlu0 %v7777
        %v7785 = vpop.xlane.xlu0 %7784
        %7786 = vadd.xlane.f32.xlu0 %v7778
        %v7787 = vpop.xlane.xlu0 %7786
        %7788 = vadd.xlane.f32.xlu0 %v7779
        %v7789 = vpop.xlane.xlu0 %7788
        %v7790 = vmul.f32 %v7783, %v694
        %v7791 = vmul.f32 %v7785, %v694
        %v7792 = vmul.f32 %v7787, %v694
        %v7793 = vmul.f32 %v7789, %v694
        %v7794 = vsub.f32 %v7776, %v7790
        %v7795 = vsub.f32 %v7777, %v7791
        %v7796 = vsub.f32 %v7778, %v7792
        %v7797 = vsub.f32 %v7779, %v7793
        %v7798 = vmul.f32 %v7794, %v7794
        %v7799 = vmul.f32 %v7795, %v7795
        %v7800 = vmul.f32 %v7796, %v7796
        %v7801 = vmul.f32 %v7797, %v7797
        %7802 = vadd.xlane.f32.xlu0 %v7798
        %v7803 = vpop.xlane.xlu0 %7802
        %7804 = vadd.xlane.f32.xlu0 %v7799
        %v7805 = vpop.xlane.xlu0 %7804
        %7806 = vadd.xlane.f32.xlu0 %v7800
        %v7807 = vpop.xlane.xlu0 %7806
        %7808 = vadd.xlane.f32.xlu0 %v7801
        %v7809 = vpop.xlane.xlu0 %7808
        %v7810 = vmul.f32 %v7803, %v694
        %v7811 = vmul.f32 %v7805, %v694
        %v7812 = vmul.f32 %v7807, %v694
        %v7813 = vmul.f32 %v7809, %v694
        %v7814 = vadd.f32 %v7810, 1e-05
        %v7815 = vadd.f32 %v7811, 1e-05
        %v7816 = vadd.f32 %v7812, 1e-05
        %v7817 = vadd.f32 %v7813, 1e-05
        %v7818 = vrsqrt.pop %v7814
        %v7819 = vrsqrt.pop %v7815
        %v7820 = vrsqrt.pop %v7816
        %v7821 = vrsqrt.pop %v7817
        %v7822 = vmul.f32 %v7794, %v7818
        %v7823 = vmul.f32 %v7795, %v7819
        %v7824 = vmul.f32 %v7796, %v7820
        %v7825 = vmul.f32 %v7797, %v7821
        %v7827 = vlaneseq
        %v7828 = vshrl.u32 %v7827, 7
        %v7829 = vsub.s32 0, %v7828
        %v7830 = vrot.slane %v7780, %v7829
        %v7832 = vmul.f32 %v7822, %v7830
        %v7833 = vmul.f32 %v7823, %v7830
        %v7834 = vmul.f32 %v7824, %v7830
        %v7835 = vmul.f32 %v7825, %v7830
        %v7837 = vlaneseq
        %v7838 = vshrl.u32 %v7837, 7
        %v7839 = vsub.s32 0, %v7838
        %v7840 = vrot.slane %v7781, %v7839
        %v7842 = vadd.f32 %v7832, %v7840
        %v7843 = vadd.f32 %v7833, %v7840
        %v7844 = vadd.f32 %v7834, %v7840
        %v7845 = vadd.f32 %v7835, %v7840
        %v7846 = vpack.c.bf16 %v7843, %v7842
        %v7847 = vpack.c.bf16 %v7845, %v7844
        %v7848 = vld [vmem:[%s536] sm:$0xff]
        %v7849 = vld [vmem:[%s536 + $0x8] sm:$0xff]
        %v7850 = vld [vmem:[%s536 + $0x10] sm:$0xff]
        %v7851 = vld [vmem:[%s536 + $0x18] sm:$0xff]
        %v7852 = vld [vmem:[%s536 + $0x20] sm:$0xff]
        %v7853 = vld [vmem:[%s536 + $0x28] sm:$0xff]
        %v7854 = vld [vmem:[%s536 + $0x30] sm:$0xff]
        %v7855 = vld [vmem:[%s536 + $0x38] sm:$0xff]
        %v7856 = vld [vmem:[%s536 + $0x40] sm:$0xff]
        %v7857 = vld [vmem:[%s536 + $0x48] sm:$0xff]
        %v7858 = vld [vmem:[%s536 + $0x50] sm:$0xff]
        %v7859 = vld [vmem:[%s536 + $0x58] sm:$0xff]
        %v7860 = vld [vmem:[%s536 + $0x60] sm:$0xff]
        %v7861 = vld [vmem:[%s536 + $0x68] sm:$0xff]
        %v7862 = vld [vmem:[%s536 + $0x70] sm:$0xff]
        %v7863 = vld [vmem:[%s536 + $0x78] sm:$0xff]
        %v7864 = vld [vmem:[%s657] sm:$0x3]
        %v7866 = vlaneseq
        %v7867 = vshrl.u32 %v7866, 7
        %v7868 = vsub.s32 0, %v7867
        %v7869 = vrot.slane %v7864, %v7868
        %v7870 = vlaneseq
        %v7871 = vshrl.u32 %v7870, 7
        %v7872 = vsub.s32 1, %v7871
        %v7873 = vrot.slane %v7864, %v7872
        %v7892 = vunpack.c.l.b16 %v7848
        %v7893 = vunpack.c.h.b16 %v7848
        %v7894 = vunpack.c.l.b16 %v7849
        %v7895 = vunpack.c.h.b16 %v7849
        %v7896 = vunpack.c.l.b16 %v7850
        %v7897 = vunpack.c.h.b16 %v7850
        %v7898 = vunpack.c.l.b16 %v7851
        %v7899 = vunpack.c.h.b16 %v7851
        %v7900 = vunpack.c.l.b16 %v7852
        %v7901 = vunpack.c.h.b16 %v7852
        %v7902 = vunpack.c.l.b16 %v7853
        %v7903 = vunpack.c.h.b16 %v7853
        %v7904 = vunpack.c.l.b16 %v7854
        %v7905 = vunpack.c.h.b16 %v7854
        %v7906 = vunpack.c.l.b16 %v7855
        %v7907 = vunpack.c.h.b16 %v7855
        %v7908 = vunpack.c.l.b16 %v7856
        %v7909 = vunpack.c.h.b16 %v7856
        %v7910 = vunpack.c.l.b16 %v7857
        %v7911 = vunpack.c.h.b16 %v7857
        %v7912 = vunpack.c.l.b16 %v7858
        %v7913 = vunpack.c.h.b16 %v7858
        %v7914 = vunpack.c.l.b16 %v7859
        %v7915 = vunpack.c.h.b16 %v7859
        %v7916 = vunpack.c.l.b16 %v7860
        %v7917 = vunpack.c.h.b16 %v7860
        %v7918 = vunpack.c.l.b16 %v7861
        %v7919 = vunpack.c.h.b16 %v7861
        %v7920 = vunpack.c.l.b16 %v7862
        %v7921 = vunpack.c.h.b16 %v7862
        %v7922 = vunpack.c.l.b16 %v7863
        %v7923 = vunpack.c.h.b16 %v7863
        %v7924 = vpack.c.b16 %v7894, %v7892
        %v7925 = vpack.c.b16 %v7895, %v7893
        %v7926 = vpack.c.b16 %v7898, %v7896
        %v7927 = vpack.c.b16 %v7899, %v7897
        %v7928 = vpack.c.b16 %v7902, %v7900
        %v7929 = vpack.c.b16 %v7903, %v7901
        %v7930 = vpack.c.b16 %v7906, %v7904
        %v7931 = vpack.c.b16 %v7907, %v7905
        %v7932 = vpack.c.b16 %v7910, %v7908
        %v7933 = vpack.c.b16 %v7911, %v7909
        %v7934 = vpack.c.b16 %v7914, %v7912
        %v7935 = vpack.c.b16 %v7915, %v7913
        %v7936 = vpack.c.b16 %v7918, %v7916
        %v7937 = vpack.c.b16 %v7919, %v7917
        %v7938 = vpack.c.b16 %v7922, %v7920
        %v7939 = vpack.c.b16 %v7923, %v7921
        %7956 = vmatprep.subr.bf16.mxu0 %v7925
        %7957 = vmatpush1.bf16.msra.mxu0 %v7924
        %7958 = vmatprep.subr.bf16.mxu0 %v7927
        %7959 = vmatpush1.bf16.msra.mxu0 %v7926
        %7960 = vmatprep.subr.bf16.mxu0 %v7929
        %7961 = vmatpush1.bf16.msra.mxu0 %v7928
        %7962 = vmatprep.subr.bf16.mxu0 %v7931
        %7963 = vmatpush1.bf16.msra.mxu0 %v7930
        %7964 = vmatprep.subr.bf16.mxu0 %v7933
        %7965 = vmatpush1.bf16.msra.mxu0 %v7932
        %7966 = vmatprep.subr.bf16.mxu0 %v7935
        %7967 = vmatpush1.bf16.msra.mxu0 %v7934
        %7968 = vmatprep.subr.bf16.mxu0 %v7937
        %7969 = vmatpush1.bf16.msra.mxu0 %v7936
        %7970 = vmatprep.subr.bf16.mxu0 %v7939
        %7971 = vmatpush1.bf16.msra.mxu0 %v7938
        %7972 = vmatprep.subr.bf16.mxu0 0
        %7973 = vmatpush1.bf16.msra.mxu0 0
        %7974 = vmatprep.subr.bf16.mxu0 0
        %7975 = vmatpush1.bf16.msra.mxu0 0
        %7976 = vmatprep.subr.bf16.mxu0 0
        %7977 = vmatpush1.bf16.msra.mxu0 0
        %7978 = vmatprep.subr.bf16.mxu0 0
        %7979 = vmatpush1.bf16.msra.mxu0 0
        %7980 = vmatprep.subr.bf16.mxu0 0
        %7981 = vmatpush1.bf16.msra.mxu0 0
        %7982 = vmatprep.subr.bf16.mxu0 0
        %7983 = vmatpush1.bf16.msra.mxu0 0
        %7984 = vmatprep.subr.bf16.mxu0 0
        %7985 = vmatpush1.bf16.msra.mxu0 0
        %7986 = vmatprep.subr.bf16.mxu0 0
        %7987 = vmatpush1.bf16.msra.mxu0 0
        %7988 = vmatprep.mubr.bf16.mxu0 0
        %7989 = vmatmul.mubr.bf16.gmra.mrb[0].mxu0 %v7846
        %v7990 = vpop.f32.mrb[0].mxu0
        %v7991 = vadd.f32 %v7869, %v7990
        %v7992 = vpop.f32.mrb[0].mxu0
        %v7993 = vadd.f32 %v7873, %v7992
        %v7994 = vpop.f32.mrb[0].mxu0
        %v7995 = vadd.f32 %v7869, %v7994
        %v7996 = vpop.f32.mrb[0].mxu0
        %v7997 = vadd.f32 %v7873, %v7996
        %7998 = vmatprep.mubr.bf16.mxu0 0
        %7999 = vmatmul.mubr.bf16.gmra.mrb[0].mxu0 %v7847
        %v8000 = vpop.f32.mrb[0].mxu0
        %v8001 = vadd.f32 %v7869, %v8000
        %v8002 = vpop.f32.mrb[0].mxu0
        %v8003 = vadd.f32 %v7873, %v8002
        %v8004 = vpop.f32.mrb[0].mxu0
        %v8005 = vadd.f32 %v7869, %v8004
        %v8006 = vpop.f32.mrb[0].mxu0
        %v8007 = vadd.f32 %v7873, %v8006
        %8008 = vdwg.mxu0
        %v8009 = vmax.f32 %v7991, 0.0
        %v8010 = vmax.f32 %v7993, 0.0
        %v8011 = vmax.f32 %v7995, 0.0
        %v8012 = vmax.f32 %v7997, 0.0
        %v8013 = vmax.f32 %v8001, 0.0
        %v8014 = vmax.f32 %v8003, 0.0
        %v8015 = vmax.f32 %v8005, 0.0
        %v8016 = vmax.f32 %v8007, 0.0
        %v8017 = vpack.c.bf16 %v8011, %v8009
        %v8018 = vpack.c.bf16 %v8012, %v8010
        %v8019 = vpack.c.bf16 %v8015, %v8013
        %v8020 = vpack.c.bf16 %v8016, %v8014
        %v8021 = vld [vmem:[%s545] sm:$0xf]
        %v8022 = vld [vmem:[%s545 + $0x4] sm:$0xf]
        %v8023 = vld [vmem:[%s545 + $0x8] sm:$0xf]
        %v8024 = vld [vmem:[%s545 + $0xc] sm:$0xf]
        %v8025 = vld [vmem:[%s545 + $0x10] sm:$0xf]
        %v8026 = vld [vmem:[%s545 + $0x14] sm:$0xf]
        %v8027 = vld [vmem:[%s545 + $0x18] sm:$0xf]
        %v8028 = vld [vmem:[%s545 + $0x1c] sm:$0xf]
        %v8029 = vld [vmem:[%s545 + $0x20] sm:$0xf]
        %v8030 = vld [vmem:[%s545 + $0x24] sm:$0xf]
        %v8031 = vld [vmem:[%s545 + $0x28] sm:$0xf]
        %v8032 = vld [vmem:[%s545 + $0x2c] sm:$0xf]
        %v8033 = vld [vmem:[%s545 + $0x30] sm:$0xf]
        %v8034 = vld [vmem:[%s545 + $0x34] sm:$0xf]
        %v8035 = vld [vmem:[%s545 + $0x38] sm:$0xf]
        %v8036 = vld [vmem:[%s545 + $0x3c] sm:$0xf]
        %v8037 = vld [vmem:[%s545 + $0x40] sm:$0xf]
        %v8038 = vld [vmem:[%s545 + $0x44] sm:$0xf]
        %v8039 = vld [vmem:[%s545 + $0x48] sm:$0xf]
        %v8040 = vld [vmem:[%s545 + $0x4c] sm:$0xf]
        %v8041 = vld [vmem:[%s545 + $0x50] sm:$0xf]
        %v8042 = vld [vmem:[%s545 + $0x54] sm:$0xf]
        %v8043 = vld [vmem:[%s545 + $0x58] sm:$0xf]
        %v8044 = vld [vmem:[%s545 + $0x5c] sm:$0xf]
        %v8045 = vld [vmem:[%s545 + $0x60] sm:$0xf]
        %v8046 = vld [vmem:[%s545 + $0x64] sm:$0xf]
        %v8047 = vld [vmem:[%s545 + $0x68] sm:$0xf]
        %v8048 = vld [vmem:[%s545 + $0x6c] sm:$0xf]
        %v8049 = vld [vmem:[%s545 + $0x70] sm:$0xf]
        %v8050 = vld [vmem:[%s545 + $0x74] sm:$0xf]
        %v8051 = vld [vmem:[%s545 + $0x78] sm:$0xf]
        %v8052 = vld [vmem:[%s545 + $0x7c] sm:$0xf]
        %v8053 = vld [vmem:[%s660] sm:$0x1]
        %v8055 = vlaneseq
        %v8056 = vshrl.u32 %v8055, 7
        %v8057 = vsub.s32 0, %v8056
        %v8058 = vrot.slane %v8053, %v8057
        %v8092 = vunpack.c.l.b16 %v8021
        %v8093 = vunpack.c.l.b16 %v8022
        %v8094 = vunpack.c.l.b16 %v8023
        %v8095 = vunpack.c.l.b16 %v8024
        %v8096 = vunpack.c.l.b16 %v8025
        %v8097 = vunpack.c.l.b16 %v8026
        %v8098 = vunpack.c.l.b16 %v8027
        %v8099 = vunpack.c.l.b16 %v8028
        %v8100 = vunpack.c.l.b16 %v8029
        %v8101 = vunpack.c.l.b16 %v8030
        %v8102 = vunpack.c.l.b16 %v8031
        %v8103 = vunpack.c.l.b16 %v8032
        %v8104 = vunpack.c.l.b16 %v8033
        %v8105 = vunpack.c.l.b16 %v8034
        %v8106 = vunpack.c.l.b16 %v8035
        %v8107 = vunpack.c.l.b16 %v8036
        %v8108 = vunpack.c.l.b16 %v8037
        %v8109 = vunpack.c.l.b16 %v8038
        %v8110 = vunpack.c.l.b16 %v8039
        %v8111 = vunpack.c.l.b16 %v8040
        %v8112 = vunpack.c.l.b16 %v8041
        %v8113 = vunpack.c.l.b16 %v8042
        %v8114 = vunpack.c.l.b16 %v8043
        %v8115 = vunpack.c.l.b16 %v8044
        %v8116 = vunpack.c.l.b16 %v8045
        %v8117 = vunpack.c.l.b16 %v8046
        %v8118 = vunpack.c.l.b16 %v8047
        %v8119 = vunpack.c.l.b16 %v8048
        %v8120 = vunpack.c.l.b16 %v8049
        %v8121 = vunpack.c.l.b16 %v8050
        %v8122 = vunpack.c.l.b16 %v8051
        %v8123 = vunpack.c.l.b16 %v8052
        %v8124 = vpack.c.b16 %v8093, %v8092
        %v8125 = vpack.c.b16 %v8095, %v8094
        %v8126 = vpack.c.b16 %v8097, %v8096
        %v8127 = vpack.c.b16 %v8099, %v8098
        %v8128 = vpack.c.b16 %v8101, %v8100
        %v8129 = vpack.c.b16 %v8103, %v8102
        %v8130 = vpack.c.b16 %v8105, %v8104
        %v8131 = vpack.c.b16 %v8107, %v8106
        %v8132 = vpack.c.b16 %v8109, %v8108
        %v8133 = vpack.c.b16 %v8111, %v8110
        %v8134 = vpack.c.b16 %v8113, %v8112
        %v8135 = vpack.c.b16 %v8115, %v8114
        %v8136 = vpack.c.b16 %v8117, %v8116
        %v8137 = vpack.c.b16 %v8119, %v8118
        %v8138 = vpack.c.b16 %v8121, %v8120
        %v8139 = vpack.c.b16 %v8123, %v8122
        %8156 = vmatprep.subr.bf16.mxu0 0
        %8157 = vmatpush1.bf16.msra.mxu0 %v8124
        %8158 = vmatprep.subr.bf16.mxu0 0
        %8159 = vmatpush1.bf16.msra.mxu0 %v8125
        %8160 = vmatprep.subr.bf16.mxu0 0
        %8161 = vmatpush1.bf16.msra.mxu0 %v8126
        %8162 = vmatprep.subr.bf16.mxu0 0
        %8163 = vmatpush1.bf16.msra.mxu0 %v8127
        %8164 = vmatprep.subr.bf16.mxu0 0
        %8165 = vmatpush1.bf16.msra.mxu0 %v8128
        %8166 = vmatprep.subr.bf16.mxu0 0
        %8167 = vmatpush1.bf16.msra.mxu0 %v8129
        %8168 = vmatprep.subr.bf16.mxu0 0
        %8169 = vmatpush1.bf16.msra.mxu0 %v8130
        %8170 = vmatprep.subr.bf16.mxu0 0
        %8171 = vmatpush1.bf16.msra.mxu0 %v8131
        %8172 = vmatprep.subr.bf16.mxu0 0
        %8173 = vmatpush1.bf16.msra.mxu0 %v8132
        %8174 = vmatprep.subr.bf16.mxu0 0
        %8175 = vmatpush1.bf16.msra.mxu0 %v8133
        %8176 = vmatprep.subr.bf16.mxu0 0
        %8177 = vmatpush1.bf16.msra.mxu0 %v8134
        %8178 = vmatprep.subr.bf16.mxu0 0
        %8179 = vmatpush1.bf16.msra.mxu0 %v8135
        %8180 = vmatprep.subr.bf16.mxu0 0
        %8181 = vmatpush1.bf16.msra.mxu0 %v8136
        %8182 = vmatprep.subr.bf16.mxu0 0
        %8183 = vmatpush1.bf16.msra.mxu0 %v8137
        %8184 = vmatprep.subr.bf16.mxu0 0
        %8185 = vmatpush1.bf16.msra.mxu0 %v8138
        %8186 = vmatprep.subr.bf16.mxu0 0
        %8187 = vmatpush1.bf16.msra.mxu0 %v8139
        %8188 = vmatprep.mubr.bf16.mxu0 %v8018
        %8189 = vmatmul.mubr.bf16.gmra.mrb[0].mxu0 %v8017
        %v8190 = vpop.f32.mrb[0].mxu0
        %v8191 = vadd.f32 %v8058, %v8190
        %v8192 = vpop.f32.mrb[0].mxu0
        %v8193 = vpop.f32.mrb[0].mxu0
        %v8194 = vadd.f32 %v8058, %v8193
        %v8195 = vpop.f32.mrb[0].mxu0
        %8196 = vmatprep.mubr.bf16.mxu0 %v8020
        %8197 = vmatmul.mubr.bf16.gmra.mrb[0].mxu0 %v8019
        %v8198 = vpop.f32.mrb[0].mxu0
        %v8199 = vadd.f32 %v8058, %v8198
        %v8200 = vpop.f32.mrb[0].mxu0
        %v8201 = vpop.f32.mrb[0].mxu0
        %v8202 = vadd.f32 %v8058, %v8201
        %v8203 = vpop.f32.mrb[0].mxu0
        %8204 = vdwg.mxu0
        %v8205 = vadd.f32 %v7776, %v8191
        %v8206 = vadd.f32 %v7777, %v8194
        %v8207 = vadd.f32 %v7778, %v8199
        %v8208 = vadd.f32 %v7779, %v8202
        %8209 = vst [vmem:[#allocation2] sm:$0xff] %v8205
        %8210 = vst [vmem:[#allocation2 + $0x8] sm:$0xff] %v8206
        %8211 = vst [vmem:[#allocation2 + $0x10] sm:$0xff] %v8207
        %8212 = vst [vmem:[#allocation2 + $0x18] sm:$0xff] %v8208
        %p8213 = scmp.eq.s32.totalorder %s34, 1
        // Predicated region
        $region85: #{transformer_mapper_forward.3} parent=67 // pred_check
          %p8214 = pneg %p8213
        $region86: #{transformer_mapper_forward.3} parent=67 // pred_check_branch
          %8216 = sbr.rel (%p8214) target = $region88
        $region87: #{transformer_mapper_forward.3} parent=67 // pred_region
          %8217 = vst [vmem:[%s665] sm:$0xff] %v8205
          %8218 = vst [vmem:[%s665 + $0x8] sm:$0xff] %v8206
          %8219 = vst [vmem:[%s665 + $0x10] sm:$0xff] %v8207
          %8220 = vst [vmem:[%s665 + $0x18] sm:$0xff] %v8208
        $region88: #{transformer_mapper_forward.3} parent=67 // pred_fallthru
          _
        %s8221 = smul.u32 4, %s33
        %p8222 = scmp.lt.s32.totalorder %s8221, 3
        %s8223 = scalar_select %p8222, %s8221, 3
        %s8224 = smul.addr %s8223, 8
        %s8225 = scalar_lea.vmem %s12, %s8224
        // Predicated region
        $region89: #{transformer_mapper_forward.3} parent=67 // pred_check
          %p8226 = pneg %p371
        $region90: #{transformer_mapper_forward.3} parent=67 // pred_check_branch
          %8228 = sbr.rel (%p8226) target = $region92
        $region91: #{transformer_mapper_forward.3} parent=67 // pred_region
          %s8229 = smul.u32 4, %s33
        $region92: #{transformer_mapper_forward.3} parent=67 // pred_fallthru
          _
        // Predicated region
        $region93: #{transformer_mapper_forward.3} parent=67 // pred_check
          %p8230 = pneg %p371
        $region94: #{transformer_mapper_forward.3} parent=67 // pred_check_branch
          %8232 = sbr.rel (%p8230) target = $region96
        $region95: #{transformer_mapper_forward.3} parent=67 // pred_region
          %s8233 = smul.u32 4, %s33
          %p8234 = scmp.lt.s32.totalorder %s8233, 3
          %s8235 = scalar_select %p8234, %s8233, 3
          %s8236 = smul.addr %s8235, 8
          %s8237 = scalar_lea.vmem %s12, %s8236
        $region96: #{transformer_mapper_forward.3} parent=67 // pred_fallthru
          _
      $region68: #{transformer_mapper_forward.3} parent=5 // pred_fallthru
        _
      %p8238 = scmp.le.s32.totalorder 2, %s24
      // Predicated region
      $region97: #{transformer_mapper_forward.3} parent=5 // pred_check
        %p8239 = pneg %p8238
      $region98: #{transformer_mapper_forward.3} parent=5 // pred_check_branch
        %8241 = sbr.rel (%p8239) target = $region100
      $region99: #{transformer_mapper_forward.3} parent=5 // pred_region
        %s8242 = ssub.s32 %s24, 2
      $region100: #{transformer_mapper_forward.3} parent=5 // pred_fallthru
        _
    $region6: #{transformer_mapper_forward.3} parent=1 // loop_footer
      %s28 = sadd.s32 1, %s24
    $region7: #{transformer_mapper_forward.3} parent=1 // loop_footer_branch
      %23 = sbr.rel target = $region3
    $region8: #{transformer_mapper_forward.3} parent=1 // loop_exit
      _
    %8243 = vsyncpa [#allocation4], 1
    %s8244 = scalar_lea.sflag [#allocation4], 1
    %8245 = vsyncpa %s8244, 1
    %8246 = vsyncpa [#allocation6], 1
    %s8247 = scalar_lea.sflag [#allocation6], 1
    %8248 = vsyncpa %s8247, 1

</llo_original>
